<compile_context>
chip_gen: v6e
topology: v6e:2x2x1
jax: 0.10.0
libtpu: 0.0.40
codegen_flags: <defaults>
</compile_context>

<pallas_src>
import functools

import jax
import jax.numpy as jnp
from jax import lax
from jax.experimental import pallas as pl
from jax.experimental.pallas import tpu as pltpu


def _local_grouper_kernel(xyz_t_ref, feat_t_ref, alpha_ref, beta_ref,
                          new_xyz_ref, out_ref, sel_ref):
    """Block shapes (leading batch dim of 1 where present):

    xyz_t_ref  : (1, 3, N)        xyz channel-major (coords on sublanes, N lanes)
    feat_t_ref : (1, C1, N)       concat([points, xyz], -1) channel-major
    alpha_ref  : (C1, 1)          affine_alpha as a column
    beta_ref   : (C1, 1)          affine_beta  as a column
    new_xyz_ref: (1, S, 3)        OUT: FPS anchor coordinates
    out_ref    : (1, C_out, K*S)  OUT: new_points, channel-major, lane = k*S + s
    sel_ref    : (S, N)  VMEM     scratch: one-hot FPS selection rows
    """
    s, n = sel_ref.shape
    c1 = feat_t_ref.shape[1]
    c_out = out_ref.shape[1]
    d = c_out - c1
    kk = out_ref.shape[2] // s

    f32 = jnp.float32
    xyz_t = xyz_t_ref[0]                       # (3, N)
    feat_t = feat_t_ref[0]                     # (C1, N)

    iota1 = lax.broadcasted_iota(jnp.int32, (1, n), 1).astype(f32)   # (1, N)
    iota_s = lax.broadcasted_iota(jnp.int32, (s, n), 1).astype(f32)  # (S, N)
    big = f32(1e30)
    # dot_general contracting the N (lane) axis of both operands: A @ B^T on MXU.
    nt_dims = (((1,), (1,)), ((), ()))

    # ---------------- farthest point sampling (start at index 0) -------------
    sel_ref[0:1, :] = (iota1 == f32(0.0)).astype(f32)

    def fps_body(i, carry):
        dists, last = carry                            # (1, N), (3, 1)
        diff = xyz_t - last                            # (3, N)
        dsq = (diff[0:1, :] * diff[0:1, :]
               + diff[1:2, :] * diff[1:2, :]
               + diff[2:3, :] * diff[2:3, :])          # (1, N)
        dists = jnp.minimum(dists, dsq)
        dmax = jnp.max(dists, axis=1, keepdims=True)   # (1, 1)
        cand = jnp.where(dists == dmax, iota1, f32(n))
        nxt = jnp.min(cand, axis=1, keepdims=True)     # first index of the max
        onehot = (iota1 == nxt).astype(f32)            # (1, N)
        sel_ref[pl.ds(i, 1), :] = onehot
        # exact one-hot gather of the newly selected point's coordinates (VPU)
        new_last = jnp.sum(onehot * xyz_t, axis=1, keepdims=True)    # (3, 1)
        return dists, new_last

    _ = lax.fori_loop(1, s, fps_body,
                      (jnp.full((1, n), jnp.inf, f32), xyz_t[:, 0:1]))

    sel = sel_ref[...]                                 # (S, N) one-hot rows

    # ------------- anchor coordinates: exact VPU one-hot gather --------------
    q0 = jnp.sum(sel * xyz_t[0:1, :], axis=1, keepdims=True)   # (S, 1)
    q1 = jnp.sum(sel * xyz_t[1:2, :], axis=1, keepdims=True)
    q2 = jnp.sum(sel * xyz_t[2:3, :], axis=1, keepdims=True)
    new_xyz_ref[0, :, 0:1] = q0
    new_xyz_ref[0, :, 1:2] = q1
    new_xyz_ref[0, :, 2:3] = q2

    # ------------- anchor point features: one-hot gather on the MXU ----------
    anchor_t = lax.dot_general(feat_t[0:d, :], sel, nt_dims,
                               precision=lax.Precision.HIGHEST,
                               preferred_element_type=f32)         # (D, S)

    # ------------- kNN distances (lane-dense (S, N) tiles) -------------------
    dx = q0 - xyz_t[0:1, :]
    dy = q1 - xyz_t[1:2, :]
    dz = q2 - xyz_t[2:3, :]
    dist = dx * dx + dy * dy + dz * dz                 # (S, N)

    # ------------- K nearest neighbours + MXU gather (channel-major) ---------
    groups = []
    mean_acc = jnp.zeros((c1, s), f32)
    for _k in range(kk):                               # static unroll, K small
        dmin = jnp.min(dist, axis=1, keepdims=True)
        cand = jnp.where(dist == dmin, iota_s, f32(n))
        sel_k = jnp.min(cand, axis=1, keepdims=True)   # lowest-index tie-break
        mask = (iota_s == sel_k).astype(f32)           # (S, N) one-hot rows
        g_k = lax.dot_general(feat_t, mask, nt_dims,
                              precision=lax.Precision.HIGHEST,
                              preferred_element_type=f32)          # (C1, S)
        groups.append(g_k)
        mean_acc = mean_acc + g_k
        dist = jnp.where(iota_s == sel_k, big, dist)   # mask the selected point

    mean_t = mean_acc * f32(1.0 / kk)                               # (C1, S)
    # centered neighbourhood, channel-major, lane index = k*S + s
    centered = jnp.concatenate([g - mean_t for g in groups], axis=1)  # (C1, K*S)

    # ------------- normalize='center': single-pass unbiased std --------------
    m = float(s * kk * c1)
    s1 = jnp.sum(jnp.sum(centered, axis=1, keepdims=True), axis=0, keepdims=True)
    s2 = jnp.sum(jnp.sum(centered * centered, axis=1, keepdims=True),
                 axis=0, keepdims=True)
    var = (s2 - s1 * s1 * f32(1.0 / m)) * f32(1.0 / (m - 1.0))
    std = jnp.sqrt(var)                                             # (1, 1)
    inv = f32(1.0) / (std + f32(1e-5))

    gp = alpha_ref[...] * (centered * inv) + beta_ref[...]          # (C1, K*S)

    # ------------- two lane-dense sublane-slab stores (no minor-dim concat) --
    out_ref[0, 0:c1, :] = gp
    out_ref[0, c1:c_out, :] = jnp.concatenate([anchor_t] * kk, axis=1)  # (D, K*S)


@functools.partial(jax.jit, static_argnames=("groups", "kneighbors"))
def local_grouper_forward(xyz, points, alpha, beta, *, groups, kneighbors):
    """xyz [B,N,3], points [B,N,D] -> (new_xyz [B,S,3], new_points [B,S,K,2D+3]).

    use_xyz=True, normalize='center' (the module defaults).
    """
    b, n, _ = xyz.shape
    d = points.shape[-1]
    s, kk = groups, kneighbors
    c1 = d + 3
    c_out = c1 + d

    xyz_f = xyz.astype(jnp.float32)
    pts_f = points.astype(jnp.float32)
    xyz_t = jnp.transpose(xyz_f, (0, 2, 1))                          # (B, 3, N)
    feat_t = jnp.transpose(jnp.concatenate([pts_f, xyz_f], axis=-1),
                           (0, 2, 1))                                # (B, C1, N)
    alpha_col = alpha.reshape(c1, 1).astype(jnp.float32)
    beta_col = beta.reshape(c1, 1).astype(jnp.float32)

    new_xyz, new_pts_cm = pl.pallas_call(
        _local_grouper_kernel,
        out_shape=(
            jax.ShapeDtypeStruct((b, s, 3), jnp.float32),
            jax.ShapeDtypeStruct((b, c_out, kk * s), jnp.float32),
        ),
        grid_spec=pltpu.PrefetchScalarGridSpec(
            num_scalar_prefetch=0,
            grid=(b,),
            in_specs=[
                pl.BlockSpec((1, 3, n), lambda i: (i, 0, 0)),
                pl.BlockSpec((1, c1, n), lambda i: (i, 0, 0)),
                pl.BlockSpec((c1, 1), lambda i: (0, 0)),
                pl.BlockSpec((c1, 1), lambda i: (0, 0)),
            ],
            out_specs=[
                pl.BlockSpec((1, s, 3), lambda i: (i, 0, 0)),
                pl.BlockSpec((1, c_out, kk * s), lambda i: (i, 0, 0)),
            ],
            scratch_shapes=[pltpu.VMEM((s, n), jnp.float32)],
        ),
        compiler_params=pltpu.CompilerParams(
            dimension_semantics=("parallel",)),
    )(xyz_t, feat_t, alpha_col, beta_col)

    # (B, C_out, K*S) -> (B, C_out, K, S) -> (B, S, K, C_out)
    new_points = jnp.transpose(new_pts_cm.reshape(b, c_out, kk, s), (0, 3, 2, 1))
    return new_xyz, new_points


# --------------------------------------------------------------------------
# Pure-JAX reference (mirrors the torch module; same FPS / tie-break rules).
# --------------------------------------------------------------------------
def _fps_single(xyz, s):
    """FPS on one cloud [N,3] -> [S] int32 indices (deterministic start at 0)."""
    n = xyz.shape[0]
    idx0 = jnp.zeros((s,), jnp.int32)
    dist0 = jnp.full((n,), jnp.inf, jnp.float32)

    def body(i, carry):
        idx, dists = carry
        last = xyz[idx[i - 1]]
        diff = xyz - last
        dsq = (diff[:, 0] * diff[:, 0] + diff[:, 1] * diff[:, 1]
               + diff[:, 2] * diff[:, 2])
        dists = jnp.minimum(dists, dsq)
        nxt = jnp.argmax(dists).astype(jnp.int32)
        return idx.at[i].set(nxt), dists

    idx, _ = jax.lax.fori_loop(1, s, body, (idx0, dist0))
    return idx


def _reference_forward(xyz, points, alpha, beta, *, groups, kneighbors):
    b, n, _ = xyz.shape
    d = points.shape[-1]
    s, k = groups, kneighbors

    fps_idx = jax.vmap(lambda p: _fps_single(p, s))(xyz)
    gather = jax.vmap(lambda a, i: a[i])
    new_xyz = gather(xyz, fps_idx)                                    # [B,S,3]
    new_pts = gather(points, fps_idx)                                 # [B,S,D]

    diff = new_xyz[:, :, None, :] - xyz[:, None, :, :]                # [B,S,N,3]
    d2 = diff * diff
    dist = d2[..., 0] + d2[..., 1] + d2[..., 2]                       # [B,S,N]
    idx = jnp.argsort(dist, axis=-1)[..., :k]                         # [B,S,K]

    feat = jnp.concatenate([points, xyz], axis=-1)                    # [B,N,C1]
    grouped = jax.vmap(lambda a, i: a[i])(feat, idx)                  # [B,S,K,C1]

    mean = jnp.mean(grouped, axis=2, keepdims=True)
    centered = grouped - mean
    std = jnp.std(centered.reshape(b, -1), axis=-1, ddof=1)           # [B]
    gp = centered / (std[:, None, None, None] + 1e-5)
    gp = alpha.reshape(1, 1, 1, -1) * gp + beta.reshape(1, 1, 1, -1)

    anchor_b = jnp.broadcast_to(new_pts[:, :, None, :], (b, s, k, d))
    new_points = jnp.concatenate([gp, anchor_b], axis=-1)
    return new_xyz, new_points


if __name__ == "__main__":
    key = jax.random.PRNGKey(0)
    B, N, D = 2, 128, 16          # point clouds, points per cloud, feature channels
    S, K = 32, 8                  # groups (FPS samples), k-neighbours
    C1 = D + 3                    # use_xyz=True

    k1, k2, k3, k4 = jax.random.split(key, 4)
    xyz = jax.random.normal(k1, (B, N, 3), jnp.float32)
    points = jax.random.normal(k2, (B, N, D), jnp.float32)
    # affine_alpha/beta (torch inits ones/zeros; perturb for a stricter check)
    alpha = 1.0 + 0.1 * jax.random.normal(k3, (1, 1, 1, C1), jnp.float32)
    beta = 0.1 * jax.random.normal(k4, (1, 1, 1, C1), jnp.float32)

    new_xyz, new_points = local_grouper_forward(
        xyz, points, alpha, beta, groups=S, kneighbors=K)
    new_points = jax.block_until_ready(new_points)

    ref_xyz, ref_points = _reference_forward(
        xyz, points, alpha, beta, groups=S, kneighbors=K)

    assert new_xyz.shape == (B, S, 3)
    assert new_points.shape == (B, S, K, 2 * D + 3)
    assert jnp.allclose(new_xyz, ref_xyz, atol=1e-5, rtol=1e-5), "new_xyz mismatch"
    assert jnp.allclose(new_points, ref_points, atol=1e-4, rtol=1e-4), \
        "new_points mismatch vs reference"
    print("KERNEL_OK")
</pallas_src>

<mosaic_0001>
module attributes {stable_mosaic.version = 11 : i64} {
  func.func @_local_grouper_kernel(%arg0: i32, %arg1: memref<1x3x128xf32, #tpu.memory_space<vmem>>, %arg2: memref<1x19x128xf32, #tpu.memory_space<vmem>>, %arg3: memref<19x1xf32, #tpu.memory_space<vmem>>, %arg4: memref<19x1xf32, #tpu.memory_space<vmem>>, %arg5: memref<1x32x3xf32, #tpu.memory_space<vmem>>, %arg6: memref<1x35x256xf32, #tpu.memory_space<vmem>>, %arg7: memref<32x128xf32, #tpu.memory_space<vmem>>) attributes {dimension_semantics = [#tpu.dimension_semantics<parallel>], iteration_bounds = array<i64: 2>, scalar_prefetch = 0 : i64, scratch_operands = 1 : i64, tpu.core_type = #tpu.core_type<tc>, window_params = [{transform_indices = @transform_0, window_bounds = array<i64: 1, 3, 128>}, {transform_indices = @transform_1, window_bounds = array<i64: 1, 19, 128>}, {pipeline_mode = #tpu.pipeline_mode<synchronous>, transform_indices = @transform_2, window_bounds = array<i64: 19, 1>}, {pipeline_mode = #tpu.pipeline_mode<synchronous>, transform_indices = @transform_3, window_bounds = array<i64: 19, 1>}, {transform_indices = @transform_4, window_bounds = array<i64: 1, 32, 3>}, {transform_indices = @transform_5, window_bounds = array<i64: 1, 35, 256>}]} {
    %c0 = arith.constant 0 : index
    %c0_0 = arith.constant 0 : index
    %c0_1 = arith.constant 0 : index
    %0 = vector.load %arg1[%c0, %c0_0, %c0_1] : memref<1x3x128xf32, #tpu.memory_space<vmem>>, vector<1x3x128xf32>
    %1 = vector.shape_cast %0 : vector<1x3x128xf32> to vector<3x128xf32>
    %c0_2 = arith.constant 0 : index
    %c0_3 = arith.constant 0 : index
    %c0_4 = arith.constant 0 : index
    %2 = vector.load %arg2[%c0_2, %c0_3, %c0_4] : memref<1x19x128xf32, #tpu.memory_space<vmem>>, vector<1x19x128xf32>
    %3 = vector.shape_cast %2 : vector<1x19x128xf32> to vector<19x128xf32>
    %4 = tpu.iota {dimensions = array<i32: 1>} : vector<1x128xi32>
    %5 = arith.sitofp %4 : vector<1x128xi32> to vector<1x128xf32>
    %6 = tpu.iota {dimensions = array<i32: 1>} : vector<32x128xi32>
    %7 = arith.sitofp %6 : vector<32x128xi32> to vector<32x128xf32>
    %cst = arith.constant 0.000000e+00 : f32
    %8 = vector.broadcast %cst : f32 to vector<1x128xf32>
    %9 = arith.cmpf oeq, %5, %8 : vector<1x128xf32>
    %10 = arith.extui %9 : vector<1x128xi1> to vector<1x128xi32>
    %11 = arith.sitofp %10 : vector<1x128xi32> to vector<1x128xf32>
    %c0_5 = arith.constant 0 : index
    %c0_6 = arith.constant 0 : index
    %12 = vector.load %arg7[%c0_5, %c0_6] : memref<32x128xf32, #tpu.memory_space<vmem>>, vector<1x128xf32>
    tpu.vector_store %arg7[%c0_5, %c0_6], %11 {strides = array<i32>} : memref<32x128xf32, #tpu.memory_space<vmem>>, vector<1x128xf32>,
    %cst_7 = arith.constant 0x7F800000 : f32
    %13 = vector.broadcast %cst_7 : f32 to vector<1x128xf32>
    %14 = vector.extract_strided_slice %1 {offsets = [0, 0], sizes = [3, 1], strides = [1, 1]} : vector<3x128xf32> to vector<3x1xf32>
    %c1_i32 = arith.constant 1 : i32
    %c31_i32 = arith.constant 31 : i32
    %15 = arith.addi %c1_i32, %c31_i32 : i32
    %c1_i32_8 = arith.constant 1 : i32
    %16:2 = scf.for %arg8 = %c1_i32 to %15 step %c1_i32_8 iter_args(%arg9 = %13, %arg10 = %14) -> (vector<1x128xf32>, vector<3x1xf32>)  : i32 {
      %248 = vector.broadcast %arg10 : vector<3x1xf32> to vector<3x128xf32>
      %249 = arith.subf %1, %248 : vector<3x128xf32>
      %250 = vector.extract_strided_slice %249 {offsets = [0, 0], sizes = [1, 128], strides = [1, 1]} : vector<3x128xf32> to vector<1x128xf32>
      %251 = vector.extract_strided_slice %249 {offsets = [0, 0], sizes = [1, 128], strides = [1, 1]} : vector<3x128xf32> to vector<1x128xf32>
      %252 = arith.mulf %250, %251 : vector<1x128xf32>
      %253 = vector.extract_strided_slice %249 {offsets = [1, 0], sizes = [1, 128], strides = [1, 1]} : vector<3x128xf32> to vector<1x128xf32>
      %254 = vector.extract_strided_slice %249 {offsets = [1, 0], sizes = [1, 128], strides = [1, 1]} : vector<3x128xf32> to vector<1x128xf32>
      %255 = arith.mulf %253, %254 : vector<1x128xf32>
      %256 = arith.addf %252, %255 : vector<1x128xf32>
      %257 = vector.extract_strided_slice %249 {offsets = [2, 0], sizes = [1, 128], strides = [1, 1]} : vector<3x128xf32> to vector<1x128xf32>
      %258 = vector.extract_strided_slice %249 {offsets = [2, 0], sizes = [1, 128], strides = [1, 1]} : vector<3x128xf32> to vector<1x128xf32>
      %259 = arith.mulf %257, %258 : vector<1x128xf32>
      %260 = arith.addf %256, %259 : vector<1x128xf32>
      %261 = arith.minimumf %arg9, %260 : vector<1x128xf32>
      %cst_81 = arith.constant dense<0xFF800000> : vector<1xf32>
      %262 = vector.multi_reduction <maximumf>, %261, %cst_81 [1] : vector<1x128xf32> to vector<1xf32>
      %263 = vector.shape_cast %262 : vector<1xf32> to vector<1x1xf32>
      %264 = vector.broadcast %263 : vector<1x1xf32> to vector<1x128xf32>
      %265 = arith.cmpf oeq, %261, %264 : vector<1x128xf32>
      %cst_82 = arith.constant 1.280000e+02 : f32
      %266 = vector.broadcast %cst_82 : f32 to vector<1x128xf32>
      %267 = arith.select %265, %5, %266 : vector<1x128xi1>, vector<1x128xf32>
      %cst_83 = arith.constant dense<0x7F800000> : vector<1xf32>
      %268 = vector.multi_reduction <minimumf>, %267, %cst_83 [1] : vector<1x128xf32> to vector<1xf32>
      %269 = vector.shape_cast %268 : vector<1xf32> to vector<1x1xf32>
      %270 = vector.broadcast %269 : vector<1x1xf32> to vector<1x128xf32>
      %271 = arith.cmpf oeq, %5, %270 : vector<1x128xf32>
      %272 = arith.extui %271 : vector<1x128xi1> to vector<1x128xi32>
      %273 = arith.sitofp %272 : vector<1x128xi32> to vector<1x128xf32>
      %274 = arith.index_cast %arg8 : i32 to index
      %c0_84 = arith.constant 0 : index
      %275 = vector.load %arg7[%274, %c0_84] : memref<32x128xf32, #tpu.memory_space<vmem>>, vector<1x128xf32>
      tpu.vector_store %arg7[%274, %c0_84], %273 {strides = array<i32>} : memref<32x128xf32, #tpu.memory_space<vmem>>, vector<1x128xf32>,
      %276 = vector.broadcast %273 : vector<1x128xf32> to vector<3x128xf32>
      %277 = arith.mulf %276, %1 : vector<3x128xf32>
      %cst_85 = arith.constant dense<0.000000e+00> : vector<3xf32>
      %278 = vector.multi_reduction <add>, %277, %cst_85 [1] : vector<3x128xf32> to vector<3xf32>
      %279 = vector.shape_cast %278 : vector<3xf32> to vector<3x1xf32>
      scf.yield %261, %279 : vector<1x128xf32>, vector<3x1xf32>
    }
    %c31_i32_9 = arith.constant 31 : i32
    %c0_10 = arith.constant 0 : index
    %c0_11 = arith.constant 0 : index
    %17 = vector.load %arg7[%c0_10, %c0_11] : memref<32x128xf32, #tpu.memory_space<vmem>>, vector<32x128xf32>
    %18 = vector.extract_strided_slice %1 {offsets = [0, 0], sizes = [1, 128], strides = [1, 1]} : vector<3x128xf32> to vector<1x128xf32>
    %19 = vector.broadcast %18 : vector<1x128xf32> to vector<32x128xf32>
    %20 = arith.mulf %17, %19 : vector<32x128xf32>
    %cst_12 = arith.constant dense<0.000000e+00> : vector<32xf32>
    %21 = vector.multi_reduction <add>, %20, %cst_12 [1] : vector<32x128xf32> to vector<32xf32>
    %22 = vector.shape_cast %21 : vector<32xf32> to vector<32x1xf32>
    %23 = vector.extract_strided_slice %1 {offsets = [1, 0], sizes = [1, 128], strides = [1, 1]} : vector<3x128xf32> to vector<1x128xf32>
    %24 = vector.broadcast %23 : vector<1x128xf32> to vector<32x128xf32>
    %25 = arith.mulf %17, %24 : vector<32x128xf32>
    %cst_13 = arith.constant dense<0.000000e+00> : vector<32xf32>
    %26 = vector.multi_reduction <add>, %25, %cst_13 [1] : vector<32x128xf32> to vector<32xf32>
    %27 = vector.shape_cast %26 : vector<32xf32> to vector<32x1xf32>
    %28 = vector.extract_strided_slice %1 {offsets = [2, 0], sizes = [1, 128], strides = [1, 1]} : vector<3x128xf32> to vector<1x128xf32>
    %29 = vector.broadcast %28 : vector<1x128xf32> to vector<32x128xf32>
    %30 = arith.mulf %17, %29 : vector<32x128xf32>
    %cst_14 = arith.constant dense<0.000000e+00> : vector<32xf32>
    %31 = vector.multi_reduction <add>, %30, %cst_14 [1] : vector<32x128xf32> to vector<32xf32>
    %32 = vector.shape_cast %31 : vector<32xf32> to vector<32x1xf32>
    %c0_15 = arith.constant 0 : index
    %c0_16 = arith.constant 0 : index
    %c0_17 = arith.constant 0 : index
    %33 = vector.load %arg5[%c0_15, %c0_16, %c0_17] : memref<1x32x3xf32, #tpu.memory_space<vmem>>, vector<1x32x1xf32>
    %34 = vector.shape_cast %33 : vector<1x32x1xf32> to vector<32x1xf32>
    %35 = vector.shape_cast %22 : vector<32x1xf32> to vector<1x32x1xf32>
    tpu.vector_store %arg5[%c0_15, %c0_16, %c0_17], %35 {strides = array<i32>} : memref<1x32x3xf32, #tpu.memory_space<vmem>>, vector<1x32x1xf32>,
    %c0_18 = arith.constant 0 : index
    %c0_19 = arith.constant 0 : index
    %c1 = arith.constant 1 : index
    %36 = vector.load %arg5[%c0_18, %c0_19, %c1] : memref<1x32x3xf32, #tpu.memory_space<vmem>>, vector<1x32x1xf32>
    %37 = vector.shape_cast %36 : vector<1x32x1xf32> to vector<32x1xf32>
    %38 = vector.shape_cast %27 : vector<32x1xf32> to vector<1x32x1xf32>
    tpu.vector_store %arg5[%c0_18, %c0_19, %c1], %38 {strides = array<i32>} : memref<1x32x3xf32, #tpu.memory_space<vmem>>, vector<1x32x1xf32>,
    %c0_20 = arith.constant 0 : index
    %c0_21 = arith.constant 0 : index
    %c2 = arith.constant 2 : index
    %39 = vector.load %arg5[%c0_20, %c0_21, %c2] : memref<1x32x3xf32, #tpu.memory_space<vmem>>, vector<1x32x1xf32>
    %40 = vector.shape_cast %39 : vector<1x32x1xf32> to vector<32x1xf32>
    %41 = vector.shape_cast %32 : vector<32x1xf32> to vector<1x32x1xf32>
    tpu.vector_store %arg5[%c0_20, %c0_21, %c2], %41 {strides = array<i32>} : memref<1x32x3xf32, #tpu.memory_space<vmem>>, vector<1x32x1xf32>,
    %42 = vector.extract_strided_slice %3 {offsets = [0, 0], sizes = [16, 128], strides = [1, 1]} : vector<19x128xf32> to vector<16x128xf32>
    %cst_22 = arith.constant dense<0.000000e+00> : vector<16x32xf32>
    %43 = tpu.matmul %42, %17, %cst_22 {dimension_numbers = #tpu.dot_dimension_numbers<[1], [1], [0], [0], [0, 0, 1, 0], [], []>, precision = #tpu.contract_precision<fp32>} : vector<16x128xf32>, vector<32x128xf32>, vector<16x32xf32> -> vector<16x32xf32>
    %44 = vector.extract_strided_slice %1 {offsets = [0, 0], sizes = [1, 128], strides = [1, 1]} : vector<3x128xf32> to vector<1x128xf32>
    %45 = vector.broadcast %22 : vector<32x1xf32> to vector<32x128xf32>
    %46 = vector.broadcast %44 : vector<1x128xf32> to vector<32x128xf32>
    %47 = arith.subf %45, %46 : vector<32x128xf32>
    %48 = vector.extract_strided_slice %1 {offsets = [1, 0], sizes = [1, 128], strides = [1, 1]} : vector<3x128xf32> to vector<1x128xf32>
    %49 = vector.broadcast %27 : vector<32x1xf32> to vector<32x128xf32>
    %50 = vector.broadcast %48 : vector<1x128xf32> to vector<32x128xf32>
    %51 = arith.subf %49, %50 : vector<32x128xf32>
    %52 = vector.extract_strided_slice %1 {offsets = [2, 0], sizes = [1, 128], strides = [1, 1]} : vector<3x128xf32> to vector<1x128xf32>
    %53 = vector.broadcast %32 : vector<32x1xf32> to vector<32x128xf32>
    %54 = vector.broadcast %52 : vector<1x128xf32> to vector<32x128xf32>
    %55 = arith.subf %53, %54 : vector<32x128xf32>
    %56 = arith.mulf %47, %47 : vector<32x128xf32>
    %57 = arith.mulf %51, %51 : vector<32x128xf32>
    %58 = arith.addf %56, %57 : vector<32x128xf32>
    %59 = arith.mulf %55, %55 : vector<32x128xf32>
    %60 = arith.addf %58, %59 : vector<32x128xf32>
    %cst_23 = arith.constant 0.000000e+00 : f32
    %61 = vector.broadcast %cst_23 : f32 to vector<19x32xf32>
    %cst_24 = arith.constant dense<0x7F800000> : vector<32xf32>
    %62 = vector.multi_reduction <minimumf>, %60, %cst_24 [1] : vector<32x128xf32> to vector<32xf32>
    %63 = vector.shape_cast %62 : vector<32xf32> to vector<32x1xf32>
    %64 = vector.broadcast %63 : vector<32x1xf32> to vector<32x128xf32>
    %65 = arith.cmpf oeq, %60, %64 : vector<32x128xf32>
    %cst_25 = arith.constant 1.280000e+02 : f32
    %66 = vector.broadcast %cst_25 : f32 to vector<32x128xf32>
    %67 = arith.select %65, %7, %66 : vector<32x128xi1>, vector<32x128xf32>
    %cst_26 = arith.constant dense<0x7F800000> : vector<32xf32>
    %68 = vector.multi_reduction <minimumf>, %67, %cst_26 [1] : vector<32x128xf32> to vector<32xf32>
    %69 = vector.shape_cast %68 : vector<32xf32> to vector<32x1xf32>
    %70 = vector.broadcast %69 : vector<32x1xf32> to vector<32x128xf32>
    %71 = arith.cmpf oeq, %7, %70 : vector<32x128xf32>
    %72 = arith.extui %71 : vector<32x128xi1> to vector<32x128xi32>
    %73 = arith.sitofp %72 : vector<32x128xi32> to vector<32x128xf32>
    %cst_27 = arith.constant dense<0.000000e+00> : vector<19x32xf32>
    %74 = tpu.matmul %3, %73, %cst_27 {dimension_numbers = #tpu.dot_dimension_numbers<[1], [1], [0], [0], [0, 0, 1, 0], [], []>, precision = #tpu.contract_precision<fp32>} : vector<19x128xf32>, vector<32x128xf32>, vector<19x32xf32> -> vector<19x32xf32>
    %75 = arith.addf %61, %74 : vector<19x32xf32>
    %76 = vector.broadcast %69 : vector<32x1xf32> to vector<32x128xf32>
    %77 = arith.cmpf oeq, %7, %76 : vector<32x128xf32>
    %cst_28 = arith.constant 1.000000e+30 : f32
    %78 = vector.broadcast %cst_28 : f32 to vector<32x128xf32>
    %79 = arith.select %77, %78, %60 : vector<32x128xi1>, vector<32x128xf32>
    %cst_29 = arith.constant dense<0x7F800000> : vector<32xf32>
    %80 = vector.multi_reduction <minimumf>, %79, %cst_29 [1] : vector<32x128xf32> to vector<32xf32>
    %81 = vector.shape_cast %80 : vector<32xf32> to vector<32x1xf32>
    %82 = vector.broadcast %81 : vector<32x1xf32> to vector<32x128xf32>
    %83 = arith.cmpf oeq, %79, %82 : vector<32x128xf32>
    %cst_30 = arith.constant 1.280000e+02 : f32
    %84 = vector.broadcast %cst_30 : f32 to vector<32x128xf32>
    %85 = arith.select %83, %7, %84 : vector<32x128xi1>, vector<32x128xf32>
    %cst_31 = arith.constant dense<0x7F800000> : vector<32xf32>
    %86 = vector.multi_reduction <minimumf>, %85, %cst_31 [1] : vector<32x128xf32> to vector<32xf32>
    %87 = vector.shape_cast %86 : vector<32xf32> to vector<32x1xf32>
    %88 = vector.broadcast %87 : vector<32x1xf32> to vector<32x128xf32>
    %89 = arith.cmpf oeq, %7, %88 : vector<32x128xf32>
    %90 = arith.extui %89 : vector<32x128xi1> to vector<32x128xi32>
    %91 = arith.sitofp %90 : vector<32x128xi32> to vector<32x128xf32>
    %cst_32 = arith.constant dense<0.000000e+00> : vector<19x32xf32>
    %92 = tpu.matmul %3, %91, %cst_32 {dimension_numbers = #tpu.dot_dimension_numbers<[1], [1], [0], [0], [0, 0, 1, 0], [], []>, precision = #tpu.contract_precision<fp32>} : vector<19x128xf32>, vector<32x128xf32>, vector<19x32xf32> -> vector<19x32xf32>
    %93 = arith.addf %75, %92 : vector<19x32xf32>
    %94 = vector.broadcast %87 : vector<32x1xf32> to vector<32x128xf32>
    %95 = arith.cmpf oeq, %7, %94 : vector<32x128xf32>
    %cst_33 = arith.constant 1.000000e+30 : f32
    %96 = vector.broadcast %cst_33 : f32 to vector<32x128xf32>
    %97 = arith.select %95, %96, %79 : vector<32x128xi1>, vector<32x128xf32>
    %cst_34 = arith.constant dense<0x7F800000> : vector<32xf32>
    %98 = vector.multi_reduction <minimumf>, %97, %cst_34 [1] : vector<32x128xf32> to vector<32xf32>
    %99 = vector.shape_cast %98 : vector<32xf32> to vector<32x1xf32>
    %100 = vector.broadcast %99 : vector<32x1xf32> to vector<32x128xf32>
    %101 = arith.cmpf oeq, %97, %100 : vector<32x128xf32>
    %cst_35 = arith.constant 1.280000e+02 : f32
    %102 = vector.broadcast %cst_35 : f32 to vector<32x128xf32>
    %103 = arith.select %101, %7, %102 : vector<32x128xi1>, vector<32x128xf32>
    %cst_36 = arith.constant dense<0x7F800000> : vector<32xf32>
    %104 = vector.multi_reduction <minimumf>, %103, %cst_36 [1] : vector<32x128xf32> to vector<32xf32>
    %105 = vector.shape_cast %104 : vector<32xf32> to vector<32x1xf32>
    %106 = vector.broadcast %105 : vector<32x1xf32> to vector<32x128xf32>
    %107 = arith.cmpf oeq, %7, %106 : vector<32x128xf32>
    %108 = arith.extui %107 : vector<32x128xi1> to vector<32x128xi32>
    %109 = arith.sitofp %108 : vector<32x128xi32> to vector<32x128xf32>
    %cst_37 = arith.constant dense<0.000000e+00> : vector<19x32xf32>
    %110 = tpu.matmul %3, %109, %cst_37 {dimension_numbers = #tpu.dot_dimension_numbers<[1], [1], [0], [0], [0, 0, 1, 0], [], []>, precision = #tpu.contract_precision<fp32>} : vector<19x128xf32>, vector<32x128xf32>, vector<19x32xf32> -> vector<19x32xf32>
    %111 = arith.addf %93, %110 : vector<19x32xf32>
    %112 = vector.broadcast %105 : vector<32x1xf32> to vector<32x128xf32>
    %113 = arith.cmpf oeq, %7, %112 : vector<32x128xf32>
    %cst_38 = arith.constant 1.000000e+30 : f32
    %114 = vector.broadcast %cst_38 : f32 to vector<32x128xf32>
    %115 = arith.select %113, %114, %97 : vector<32x128xi1>, vector<32x128xf32>
    %cst_39 = arith.constant dense<0x7F800000> : vector<32xf32>
    %116 = vector.multi_reduction <minimumf>, %115, %cst_39 [1] : vector<32x128xf32> to vector<32xf32>
    %117 = vector.shape_cast %116 : vector<32xf32> to vector<32x1xf32>
    %118 = vector.broadcast %117 : vector<32x1xf32> to vector<32x128xf32>
    %119 = arith.cmpf oeq, %115, %118 : vector<32x128xf32>
    %cst_40 = arith.constant 1.280000e+02 : f32
    %120 = vector.broadcast %cst_40 : f32 to vector<32x128xf32>
    %121 = arith.select %119, %7, %120 : vector<32x128xi1>, vector<32x128xf32>
    %cst_41 = arith.constant dense<0x7F800000> : vector<32xf32>
    %122 = vector.multi_reduction <minimumf>, %121, %cst_41 [1] : vector<32x128xf32> to vector<32xf32>
    %123 = vector.shape_cast %122 : vector<32xf32> to vector<32x1xf32>
    %124 = vector.broadcast %123 : vector<32x1xf32> to vector<32x128xf32>
    %125 = arith.cmpf oeq, %7, %124 : vector<32x128xf32>
    %126 = arith.extui %125 : vector<32x128xi1> to vector<32x128xi32>
    %127 = arith.sitofp %126 : vector<32x128xi32> to vector<32x128xf32>
    %cst_42 = arith.constant dense<0.000000e+00> : vector<19x32xf32>
    %128 = tpu.matmul %3, %127, %cst_42 {dimension_numbers = #tpu.dot_dimension_numbers<[1], [1], [0], [0], [0, 0, 1, 0], [], []>, precision = #tpu.contract_precision<fp32>} : vector<19x128xf32>, vector<32x128xf32>, vector<19x32xf32> -> vector<19x32xf32>
    %129 = arith.addf %111, %128 : vector<19x32xf32>
    %130 = vector.broadcast %123 : vector<32x1xf32> to vector<32x128xf32>
    %131 = arith.cmpf oeq, %7, %130 : vector<32x128xf32>
    %cst_43 = arith.constant 1.000000e+30 : f32
    %132 = vector.broadcast %cst_43 : f32 to vector<32x128xf32>
    %133 = arith.select %131, %132, %115 : vector<32x128xi1>, vector<32x128xf32>
    %cst_44 = arith.constant dense<0x7F800000> : vector<32xf32>
    %134 = vector.multi_reduction <minimumf>, %133, %cst_44 [1] : vector<32x128xf32> to vector<32xf32>
    %135 = vector.shape_cast %134 : vector<32xf32> to vector<32x1xf32>
    %136 = vector.broadcast %135 : vector<32x1xf32> to vector<32x128xf32>
    %137 = arith.cmpf oeq, %133, %136 : vector<32x128xf32>
    %cst_45 = arith.constant 1.280000e+02 : f32
    %138 = vector.broadcast %cst_45 : f32 to vector<32x128xf32>
    %139 = arith.select %137, %7, %138 : vector<32x128xi1>, vector<32x128xf32>
    %cst_46 = arith.constant dense<0x7F800000> : vector<32xf32>
    %140 = vector.multi_reduction <minimumf>, %139, %cst_46 [1] : vector<32x128xf32> to vector<32xf32>
    %141 = vector.shape_cast %140 : vector<32xf32> to vector<32x1xf32>
    %142 = vector.broadcast %141 : vector<32x1xf32> to vector<32x128xf32>
    %143 = arith.cmpf oeq, %7, %142 : vector<32x128xf32>
    %144 = arith.extui %143 : vector<32x128xi1> to vector<32x128xi32>
    %145 = arith.sitofp %144 : vector<32x128xi32> to vector<32x128xf32>
    %cst_47 = arith.constant dense<0.000000e+00> : vector<19x32xf32>
    %146 = tpu.matmul %3, %145, %cst_47 {dimension_numbers = #tpu.dot_dimension_numbers<[1], [1], [0], [0], [0, 0, 1, 0], [], []>, precision = #tpu.contract_precision<fp32>} : vector<19x128xf32>, vector<32x128xf32>, vector<19x32xf32> -> vector<19x32xf32>
    %147 = arith.addf %129, %146 : vector<19x32xf32>
    %148 = vector.broadcast %141 : vector<32x1xf32> to vector<32x128xf32>
    %149 = arith.cmpf oeq, %7, %148 : vector<32x128xf32>
    %cst_48 = arith.constant 1.000000e+30 : f32
    %150 = vector.broadcast %cst_48 : f32 to vector<32x128xf32>
    %151 = arith.select %149, %150, %133 : vector<32x128xi1>, vector<32x128xf32>
    %cst_49 = arith.constant dense<0x7F800000> : vector<32xf32>
    %152 = vector.multi_reduction <minimumf>, %151, %cst_49 [1] : vector<32x128xf32> to vector<32xf32>
    %153 = vector.shape_cast %152 : vector<32xf32> to vector<32x1xf32>
    %154 = vector.broadcast %153 : vector<32x1xf32> to vector<32x128xf32>
    %155 = arith.cmpf oeq, %151, %154 : vector<32x128xf32>
    %cst_50 = arith.constant 1.280000e+02 : f32
    %156 = vector.broadcast %cst_50 : f32 to vector<32x128xf32>
    %157 = arith.select %155, %7, %156 : vector<32x128xi1>, vector<32x128xf32>
    %cst_51 = arith.constant dense<0x7F800000> : vector<32xf32>
    %158 = vector.multi_reduction <minimumf>, %157, %cst_51 [1] : vector<32x128xf32> to vector<32xf32>
    %159 = vector.shape_cast %158 : vector<32xf32> to vector<32x1xf32>
    %160 = vector.broadcast %159 : vector<32x1xf32> to vector<32x128xf32>
    %161 = arith.cmpf oeq, %7, %160 : vector<32x128xf32>
    %162 = arith.extui %161 : vector<32x128xi1> to vector<32x128xi32>
    %163 = arith.sitofp %162 : vector<32x128xi32> to vector<32x128xf32>
    %cst_52 = arith.constant dense<0.000000e+00> : vector<19x32xf32>
    %164 = tpu.matmul %3, %163, %cst_52 {dimension_numbers = #tpu.dot_dimension_numbers<[1], [1], [0], [0], [0, 0, 1, 0], [], []>, precision = #tpu.contract_precision<fp32>} : vector<19x128xf32>, vector<32x128xf32>, vector<19x32xf32> -> vector<19x32xf32>
    %165 = arith.addf %147, %164 : vector<19x32xf32>
    %166 = vector.broadcast %159 : vector<32x1xf32> to vector<32x128xf32>
    %167 = arith.cmpf oeq, %7, %166 : vector<32x128xf32>
    %cst_53 = arith.constant 1.000000e+30 : f32
    %168 = vector.broadcast %cst_53 : f32 to vector<32x128xf32>
    %169 = arith.select %167, %168, %151 : vector<32x128xi1>, vector<32x128xf32>
    %cst_54 = arith.constant dense<0x7F800000> : vector<32xf32>
    %170 = vector.multi_reduction <minimumf>, %169, %cst_54 [1] : vector<32x128xf32> to vector<32xf32>
    %171 = vector.shape_cast %170 : vector<32xf32> to vector<32x1xf32>
    %172 = vector.broadcast %171 : vector<32x1xf32> to vector<32x128xf32>
    %173 = arith.cmpf oeq, %169, %172 : vector<32x128xf32>
    %cst_55 = arith.constant 1.280000e+02 : f32
    %174 = vector.broadcast %cst_55 : f32 to vector<32x128xf32>
    %175 = arith.select %173, %7, %174 : vector<32x128xi1>, vector<32x128xf32>
    %cst_56 = arith.constant dense<0x7F800000> : vector<32xf32>
    %176 = vector.multi_reduction <minimumf>, %175, %cst_56 [1] : vector<32x128xf32> to vector<32xf32>
    %177 = vector.shape_cast %176 : vector<32xf32> to vector<32x1xf32>
    %178 = vector.broadcast %177 : vector<32x1xf32> to vector<32x128xf32>
    %179 = arith.cmpf oeq, %7, %178 : vector<32x128xf32>
    %180 = arith.extui %179 : vector<32x128xi1> to vector<32x128xi32>
    %181 = arith.sitofp %180 : vector<32x128xi32> to vector<32x128xf32>
    %cst_57 = arith.constant dense<0.000000e+00> : vector<19x32xf32>
    %182 = tpu.matmul %3, %181, %cst_57 {dimension_numbers = #tpu.dot_dimension_numbers<[1], [1], [0], [0], [0, 0, 1, 0], [], []>, precision = #tpu.contract_precision<fp32>} : vector<19x128xf32>, vector<32x128xf32>, vector<19x32xf32> -> vector<19x32xf32>
    %183 = arith.addf %165, %182 : vector<19x32xf32>
    %184 = vector.broadcast %177 : vector<32x1xf32> to vector<32x128xf32>
    %185 = arith.cmpf oeq, %7, %184 : vector<32x128xf32>
    %cst_58 = arith.constant 1.000000e+30 : f32
    %186 = vector.broadcast %cst_58 : f32 to vector<32x128xf32>
    %187 = arith.select %185, %186, %169 : vector<32x128xi1>, vector<32x128xf32>
    %cst_59 = arith.constant dense<0x7F800000> : vector<32xf32>
    %188 = vector.multi_reduction <minimumf>, %187, %cst_59 [1] : vector<32x128xf32> to vector<32xf32>
    %189 = vector.shape_cast %188 : vector<32xf32> to vector<32x1xf32>
    %190 = vector.broadcast %189 : vector<32x1xf32> to vector<32x128xf32>
    %191 = arith.cmpf oeq, %187, %190 : vector<32x128xf32>
    %cst_60 = arith.constant 1.280000e+02 : f32
    %192 = vector.broadcast %cst_60 : f32 to vector<32x128xf32>
    %193 = arith.select %191, %7, %192 : vector<32x128xi1>, vector<32x128xf32>
    %cst_61 = arith.constant dense<0x7F800000> : vector<32xf32>
    %194 = vector.multi_reduction <minimumf>, %193, %cst_61 [1] : vector<32x128xf32> to vector<32xf32>
    %195 = vector.shape_cast %194 : vector<32xf32> to vector<32x1xf32>
    %196 = vector.broadcast %195 : vector<32x1xf32> to vector<32x128xf32>
    %197 = arith.cmpf oeq, %7, %196 : vector<32x128xf32>
    %198 = arith.extui %197 : vector<32x128xi1> to vector<32x128xi32>
    %199 = arith.sitofp %198 : vector<32x128xi32> to vector<32x128xf32>
    %cst_62 = arith.constant dense<0.000000e+00> : vector<19x32xf32>
    %200 = tpu.matmul %3, %199, %cst_62 {dimension_numbers = #tpu.dot_dimension_numbers<[1], [1], [0], [0], [0, 0, 1, 0], [], []>, precision = #tpu.contract_precision<fp32>} : vector<19x128xf32>, vector<32x128xf32>, vector<19x32xf32> -> vector<19x32xf32>
    %201 = arith.addf %183, %200 : vector<19x32xf32>
    %cst_63 = arith.constant 1.250000e-01 : f32
    %202 = vector.broadcast %cst_63 : f32 to vector<19x32xf32>
    %203 = arith.mulf %201, %202 : vector<19x32xf32>
    %204 = arith.subf %74, %203 : vector<19x32xf32>
    %205 = arith.subf %92, %203 : vector<19x32xf32>
    %206 = arith.subf %110, %203 : vector<19x32xf32>
    %207 = arith.subf %128, %203 : vector<19x32xf32>
    %208 = arith.subf %146, %203 : vector<19x32xf32>
    %209 = arith.subf %164, %203 : vector<19x32xf32>
    %210 = arith.subf %182, %203 : vector<19x32xf32>
    %211 = arith.subf %200, %203 : vector<19x32xf32>
    %212 = tpu.concatenate %204, %205, %206, %207, %208, %209, %210, %211 in 1 : vector<19x32xf32>, vector<19x32xf32>, vector<19x32xf32>, vector<19x32xf32>, vector<19x32xf32>, vector<19x32xf32>, vector<19x32xf32>, vector<19x32xf32> -> vector<19x256xf32>
    %cst_64 = arith.constant dense<0.000000e+00> : vector<19xf32>
    %213 = vector.multi_reduction <add>, %212, %cst_64 [1] : vector<19x256xf32> to vector<19xf32>
    %214 = vector.shape_cast %213 : vector<19xf32> to vector<19x1xf32>
    %cst_65 = arith.constant dense<0.000000e+00> : vector<1xf32>
    %215 = vector.multi_reduction <add>, %214, %cst_65 [0] : vector<19x1xf32> to vector<1xf32>
    %216 = vector.shape_cast %215 : vector<1xf32> to vector<1x1xf32>
    %217 = arith.mulf %212, %212 : vector<19x256xf32>
    %cst_66 = arith.constant dense<0.000000e+00> : vector<19xf32>
    %218 = vector.multi_reduction <add>, %217, %cst_66 [1] : vector<19x256xf32> to vector<19xf32>
    %219 = vector.shape_cast %218 : vector<19xf32> to vector<19x1xf32>
    %cst_67 = arith.constant dense<0.000000e+00> : vector<1xf32>
    %220 = vector.multi_reduction <add>, %219, %cst_67 [0] : vector<19x1xf32> to vector<1xf32>
    %221 = vector.shape_cast %220 : vector<1xf32> to vector<1x1xf32>
    %222 = arith.mulf %216, %216 : vector<1x1xf32>
    %cst_68 = arith.constant 2.05592107E-4 : f32
    %223 = vector.broadcast %cst_68 : f32 to vector<1x1xf32>
    %224 = arith.mulf %222, %223 : vector<1x1xf32>
    %225 = arith.subf %221, %224 : vector<1x1xf32>
    %cst_69 = arith.constant 2.0563438E-4 : f32
    %226 = vector.broadcast %cst_69 : f32 to vector<1x1xf32>
    %227 = arith.mulf %225, %226 : vector<1x1xf32>
    %228 = math.sqrt %227 : vector<1x1xf32>
    %cst_70 = arith.constant 9.99999974E-6 : f32
    %229 = vector.broadcast %cst_70 : f32 to vector<1x1xf32>
    %230 = arith.addf %228, %229 : vector<1x1xf32>
    %cst_71 = arith.constant 1.000000e+00 : f32
    %231 = vector.broadcast %cst_71 : f32 to vector<1x1xf32>
    %232 = arith.divf %231, %230 : vector<1x1xf32>
    %c0_72 = arith.constant 0 : index
    %c0_73 = arith.constant 0 : index
    %233 = vector.load %arg3[%c0_72, %c0_73] : memref<19x1xf32, #tpu.memory_space<vmem>>, vector<19x1xf32>
    %234 = vector.broadcast %232 : vector<1x1xf32> to vector<19x256xf32>
    %235 = arith.mulf %212, %234 : vector<19x256xf32>
    %236 = vector.broadcast %233 : vector<19x1xf32> to vector<19x256xf32>
    %237 = arith.mulf %236, %235 : vector<19x256xf32>
    %c0_74 = arith.constant 0 : index
    %c0_75 = arith.constant 0 : index
    %238 = vector.load %arg4[%c0_74, %c0_75] : memref<19x1xf32, #tpu.memory_space<vmem>>, vector<19x1xf32>
    %239 = vector.broadcast %238 : vector<19x1xf32> to vector<19x256xf32>
    %240 = arith.addf %237, %239 : vector<19x256xf32>
    %c0_76 = arith.constant 0 : index
    %c0_77 = arith.constant 0 : index
    %c0_78 = arith.constant 0 : index
    %241 = vector.load %arg6[%c0_76, %c0_77, %c0_78] : memref<1x35x256xf32, #tpu.memory_space<vmem>>, vector<1x19x256xf32>
    %242 = vector.shape_cast %241 : vector<1x19x256xf32> to vector<19x256xf32>
    %243 = vector.shape_cast %240 : vector<19x256xf32> to vector<1x19x256xf32>
    tpu.vector_store %arg6[%c0_76, %c0_77, %c0_78], %243 {strides = array<i32>} : memref<1x35x256xf32, #tpu.memory_space<vmem>>, vector<1x19x256xf32>,
    %244 = tpu.concatenate %43, %43, %43, %43, %43, %43, %43, %43 in 1 : vector<16x32xf32>, vector<16x32xf32>, vector<16x32xf32>, vector<16x32xf32>, vector<16x32xf32>, vector<16x32xf32>, vector<16x32xf32>, vector<16x32xf32> -> vector<16x256xf32>
    %c0_79 = arith.constant 0 : index
    %c19 = arith.constant 19 : index
    %c0_80 = arith.constant 0 : index
    %245 = vector.load %arg6[%c0_79, %c19, %c0_80] : memref<1x35x256xf32, #tpu.memory_space<vmem>>, vector<1x16x256xf32>
    %246 = vector.shape_cast %245 : vector<1x16x256xf32> to vector<16x256xf32>
    %247 = vector.shape_cast %244 : vector<16x256xf32> to vector<1x16x256xf32>
    tpu.vector_store %arg6[%c0_79, %c19, %c0_80], %247 {strides = array<i32>} : memref<1x35x256xf32, #tpu.memory_space<vmem>>, vector<1x16x256xf32>,
    return
  }
  func.func @transform_0(%arg0: i32) -> (i32, i32, i32) {
    %c0_i32 = arith.constant 0 : i32
    %c0_i32_0 = arith.constant 0 : i32
    %c0_i32_1 = arith.constant 0 : i32
    return %arg0, %c0_i32, %c0_i32_0 : i32, i32, i32
  }
  func.func @transform_1(%arg0: i32) -> (i32, i32, i32) {
    %c0_i32 = arith.constant 0 : i32
    %c0_i32_0 = arith.constant 0 : i32
    %c0_i32_1 = arith.constant 0 : i32
    return %arg0, %c0_i32, %c0_i32_0 : i32, i32, i32
  }
  func.func @transform_2(%arg0: i32) -> (i32, i32) {
    %c0_i32 = arith.constant 0 : i32
    %c0_i32_0 = arith.constant 0 : i32
    %c0_i32_1 = arith.constant 0 : i32
    return %c0_i32, %c0_i32_0 : i32, i32
  }
  func.func @transform_3(%arg0: i32) -> (i32, i32) {
    %c0_i32 = arith.constant 0 : i32
    %c0_i32_0 = arith.constant 0 : i32
    %c0_i32_1 = arith.constant 0 : i32
    return %c0_i32, %c0_i32_0 : i32, i32
  }
  func.func @transform_4(%arg0: i32) -> (i32, i32, i32) {
    %c0_i32 = arith.constant 0 : i32
    %c0_i32_0 = arith.constant 0 : i32
    %c0_i32_1 = arith.constant 0 : i32
    return %arg0, %c0_i32, %c0_i32_0 : i32, i32, i32
  }
  func.func @transform_5(%arg0: i32) -> (i32, i32, i32) {
    %c0_i32 = arith.constant 0 : i32
    %c0_i32_0 = arith.constant 0 : i32
    %c0_i32_1 = arith.constant 0 : i32
    return %arg0, %c0_i32, %c0_i32_0 : i32, i32, i32
  }
}

</mosaic_0001>

<llo_original>
// kernel: local_grouper_forward.1
$region0: #{local_grouper_forward.1}
  #allocation0 [shape = 'u32[]', space=smem, size = 0x4, offset = 0x4, fixed_abs, tag = 'smem constant byte address 0x4 - core index']
  #allocation1 [shape = 'u32[144,128]{1,0:T(1,128)}', space=vmem, size = 0x12000, scoped, tag = 'internal scratch']
  #allocation2 [shape = 'f32[32,128]{1,0:T(8,128)}', space=vmem, size = 0x4000, scoped, tag = 'scratch operand']
  %s0 = inlined_call_operand.vmem [shape: f32[2,3,128], index: 0, kind: input, shape index: {}]
  %s1 = inlined_call_operand.vmem [shape: f32[2,19,128], index: 1, kind: input, shape index: {}]
  %s2 = inlined_call_operand.vmem [shape: f32[19,1], index: 2, kind: input, shape index: {}]
  %s3 = inlined_call_operand.vmem [shape: f32[19,1], index: 3, kind: input, shape index: {}]
  %s4 = inlined_call_operand.vmem [shape: f32[2,32,3], index: 4, kind: output, shape index: {0}]
  %s5 = inlined_call_operand.vmem [shape: f32[2,35,256], index: 5, kind: output, shape index: {1}]
  %6 = xla_tuple %s4, %s5
  %s7 = sld [smem:[#allocation0]]
  $region64: #{local_grouper_forward.1} parent=0
    _
  %s9 = ssub.s32 1, %s7
  %s10 = scalar_select 0, %s9, %s7
  loop: start=0, step=1, limit=4
  $region2: #{local_grouper_forward.1} parent=0 // loop_pre_header
    _
  $region3: #{local_grouper_forward.1} parent=0 // loop_header
    %s12 = sphi 0, %s16
    %p13 = scmp.ge.s32.totalorder %s12, 4
    %s22 = sphi 0, %s24
    %s25 = sphi 0, %s22
    %s26 = sphi 0, %s25
    %s42 = sphi 0, %s26
    %s48 = sphi 0, %s50
    %s51 = sphi 0, %s48
    %s52 = sphi 0, %s51
    %s68 = sphi 0, %s52
    %s72 = sphi 0, %s72
    %s74 = sphi 0, %s72
    %s75 = sphi 0, %s74
    %s89 = sphi 0, %s75
    %s93 = sphi 0, %s93
    %s95 = sphi 0, %s93
    %s96 = sphi 0, %s95
    %s110 = sphi 0, %s96
    %s116 = sphi 0, %s118
    %s119 = sphi 0, %s116
    %s120 = sphi 0, %s119
    %s136 = sphi 0, %s120
    %s142 = sphi 0, %s144
    %s145 = sphi 0, %s142
    %s146 = sphi 0, %s145
    %s162 = sphi 0, %s146
  $region4: #{local_grouper_forward.1} parent=0 // loop_header_branch
    %15 = sbr.rel (%p13) target = $region8
  $region5: #{local_grouper_forward.1} parent=0 // loop_body
    %s17 = ssub.s32 %s12, 1
    %s18 = ssub.s32 %s12, 2
    %s19 = sadd.s32 %s12, 1
    %s20 = ssub.s32 %s12, %s19
    %p21 = scmp.eq.s32.totalorder %s20, 0
    %s23 = sadd.s32 %s22, 1
    %s24 = scalar_select %p21, %s22, %s23
    %p27 = pneg %p21
    %p28 = scmp.eq.s32.totalorder %s12, 1
    %p29 = por %p27, %p28
    %p30 = scmp.ne.s32.totalorder %s22, %s25
    %p31 = scmp.eq.s32.totalorder %s12, 0
    %p32 = por %p30, %p31
    %p33 = scmp.ne.s32.totalorder %s22, %s25
    %p34 = scmp.eq.s32.totalorder %s17, 1
    %p35 = por %p33, %p34
    %p36 = scmp.ne.s32.totalorder %s25, %s26
    %p37 = scmp.eq.s32.totalorder %s17, 0
    %p38 = por %p36, %p37
    %p39 = scmp.ne.s32.totalorder %s25, %s26
    %p40 = scmp.eq.s32.totalorder %s18, 1
    %p41 = por %p39, %p40
    %p43 = scmp.ne.s32.totalorder %s26, %s42
    %p44 = scmp.eq.s32.totalorder %s18, 0
    %p45 = por %p43, %p44
    %s46 = ssub.s32 %s12, %s19
    %p47 = scmp.eq.s32.totalorder %s46, 0
    %s49 = sadd.s32 %s48, 1
    %s50 = scalar_select %p47, %s48, %s49
    %p53 = pneg %p47
    %p54 = scmp.eq.s32.totalorder %s12, 1
    %p55 = por %p53, %p54
    %p56 = scmp.ne.s32.totalorder %s48, %s51
    %p57 = scmp.eq.s32.totalorder %s12, 0
    %p58 = por %p56, %p57
    %p59 = scmp.ne.s32.totalorder %s48, %s51
    %p60 = scmp.eq.s32.totalorder %s17, 1
    %p61 = por %p59, %p60
    %p62 = scmp.ne.s32.totalorder %s51, %s52
    %p63 = scmp.eq.s32.totalorder %s17, 0
    %p64 = por %p62, %p63
    %p65 = scmp.ne.s32.totalorder %s51, %s52
    %p66 = scmp.eq.s32.totalorder %s18, 1
    %p67 = por %p65, %p66
    %p69 = scmp.ne.s32.totalorder %s52, %s68
    %p70 = scmp.eq.s32.totalorder %s18, 0
    %p71 = por %p69, %p70
    %s73 = sadd.s32 %s72, 1
    %p76 = scmp.eq.s32.totalorder %s12, 1
    %p77 = scmp.ne.s32.totalorder %s72, %s74
    %p78 = scmp.eq.s32.totalorder %s12, 0
    %p79 = por %p77, %p78
    %p80 = scmp.ne.s32.totalorder %s72, %s74
    %p81 = scmp.eq.s32.totalorder %s17, 1
    %p82 = por %p80, %p81
    %p83 = scmp.ne.s32.totalorder %s74, %s75
    %p84 = scmp.eq.s32.totalorder %s17, 0
    %p85 = por %p83, %p84
    %p86 = scmp.ne.s32.totalorder %s74, %s75
    %p87 = scmp.eq.s32.totalorder %s18, 1
    %p88 = por %p86, %p87
    %p90 = scmp.ne.s32.totalorder %s75, %s89
    %p91 = scmp.eq.s32.totalorder %s18, 0
    %p92 = por %p90, %p91
    %s94 = sadd.s32 %s93, 1
    %p97 = scmp.eq.s32.totalorder %s12, 1
    %p98 = scmp.ne.s32.totalorder %s93, %s95
    %p99 = scmp.eq.s32.totalorder %s12, 0
    %p100 = por %p98, %p99
    %p101 = scmp.ne.s32.totalorder %s93, %s95
    %p102 = scmp.eq.s32.totalorder %s17, 1
    %p103 = por %p101, %p102
    %p104 = scmp.ne.s32.totalorder %s95, %s96
    %p105 = scmp.eq.s32.totalorder %s17, 0
    %p106 = por %p104, %p105
    %p107 = scmp.ne.s32.totalorder %s95, %s96
    %p108 = scmp.eq.s32.totalorder %s18, 1
    %p109 = por %p107, %p108
    %p111 = scmp.ne.s32.totalorder %s96, %s110
    %p112 = scmp.eq.s32.totalorder %s18, 0
    %p113 = por %p111, %p112
    %s114 = ssub.s32 %s12, %s19
    %p115 = scmp.eq.s32.totalorder %s114, 0
    %s117 = sadd.s32 %s116, 1
    %s118 = scalar_select %p115, %s116, %s117
    %p121 = pneg %p115
    %p122 = scmp.eq.s32.totalorder %s12, 1
    %p123 = por %p121, %p122
    %p124 = scmp.ne.s32.totalorder %s116, %s119
    %p125 = scmp.eq.s32.totalorder %s12, 0
    %p126 = por %p124, %p125
    %p127 = scmp.ne.s32.totalorder %s116, %s119
    %p128 = scmp.eq.s32.totalorder %s17, 1
    %p129 = por %p127, %p128
    %p130 = scmp.ne.s32.totalorder %s119, %s120
    %p131 = scmp.eq.s32.totalorder %s17, 0
    %p132 = por %p130, %p131
    %p133 = scmp.ne.s32.totalorder %s119, %s120
    %p134 = scmp.eq.s32.totalorder %s18, 1
    %p135 = por %p133, %p134
    %p137 = scmp.ne.s32.totalorder %s120, %s136
    %p138 = scmp.eq.s32.totalorder %s18, 0
    %p139 = por %p137, %p138
    %s140 = ssub.s32 %s12, %s19
    %p141 = scmp.eq.s32.totalorder %s140, 0
    %s143 = sadd.s32 %s142, 1
    %s144 = scalar_select %p141, %s142, %s143
    %p147 = pneg %p141
    %p148 = scmp.eq.s32.totalorder %s12, 1
    %p149 = por %p147, %p148
    %p150 = scmp.ne.s32.totalorder %s142, %s145
    %p151 = scmp.eq.s32.totalorder %s12, 0
    %p152 = por %p150, %p151
    %p153 = scmp.ne.s32.totalorder %s142, %s145
    %p154 = scmp.eq.s32.totalorder %s17, 1
    %p155 = por %p153, %p154
    %p156 = scmp.ne.s32.totalorder %s145, %s146
    %p157 = scmp.eq.s32.totalorder %s17, 0
    %p158 = por %p156, %p157
    %p159 = scmp.ne.s32.totalorder %s145, %s146
    %p160 = scmp.eq.s32.totalorder %s18, 1
    %p161 = por %p159, %p160
    %p163 = scmp.ne.s32.totalorder %s146, %s162
    %p164 = scmp.eq.s32.totalorder %s18, 0
    %p165 = por %p163, %p164
    %p166 = scmp.le.s32.totalorder 1, %s12
    %p167 = scmp.lt.s32.totalorder %s12, 3
    %p168 = pnand %p166, %p167
    %p169 = pneg %p168
    // Predicated region
    $region9: #{local_grouper_forward.1} parent=5 // pred_check
      _
    $region10: #{local_grouper_forward.1} parent=5 // pred_check_branch
      %171 = sbr.rel (%p168) target = $region12
    $region11: #{local_grouper_forward.1} parent=5 // pred_region
      %s172 = ssub.s32 %s12, 1
      // Predicated region
      $region13: #{local_grouper_forward.1} parent=11 // pred_check
        %p173 = pneg %p85
      $region14: #{local_grouper_forward.1} parent=11 // pred_check_branch
        %175 = sbr.rel (%p173) target = $region16
      $region15: #{local_grouper_forward.1} parent=11 // pred_region
        _
      $region16: #{local_grouper_forward.1} parent=11 // pred_fallthru
        _
      // Predicated region
      $region17: #{local_grouper_forward.1} parent=11 // pred_check
        %p176 = pneg %p106
      $region18: #{local_grouper_forward.1} parent=11 // pred_check_branch
        %178 = sbr.rel (%p176) target = $region20
      $region19: #{local_grouper_forward.1} parent=11 // pred_region
        _
      $region20: #{local_grouper_forward.1} parent=11 // pred_fallthru
        _
    $region12: #{local_grouper_forward.1} parent=5 // pred_fallthru
      _
    %p179 = scmp.lt.s32.totalorder %s12, 2
    // Predicated region
    $region21: #{local_grouper_forward.1} parent=5 // pred_check
      %p180 = pneg %p179
    $region22: #{local_grouper_forward.1} parent=5 // pred_check_branch
      %182 = sbr.rel (%p180) target = $region24
    $region23: #{local_grouper_forward.1} parent=5 // pred_region
      // Predicated region
      $region25: #{local_grouper_forward.1} parent=23 // pred_check
        %p183 = pneg %p32
      $region26: #{local_grouper_forward.1} parent=23 // pred_check_branch
        %185 = sbr.rel (%p183) target = $region28
      $region27: #{local_grouper_forward.1} parent=23 // pred_region
        %p186 = scmp.lt.s32.totalorder %s12, 1
        %s187 = scalar_select %p186, %s12, 1
        %s188 = smul.addr %s187, 4
        %s189 = scalar_lea.vmem %s0, %s188
      $region28: #{local_grouper_forward.1} parent=23 // pred_fallthru
        _
      // Predicated region
      $region29: #{local_grouper_forward.1} parent=23 // pred_check
        %p190 = pneg %p58
      $region30: #{local_grouper_forward.1} parent=23 // pred_check_branch
        %192 = sbr.rel (%p190) target = $region32
      $region31: #{local_grouper_forward.1} parent=23 // pred_region
        %p193 = scmp.lt.s32.totalorder %s12, 1
        %s194 = scalar_select %p193, %s12, 1
        %s195 = smul.addr %s194, 3
        %s196 = smul.addr %s195, 8
        %s197 = scalar_lea.vmem %s1, %s196
      $region32: #{local_grouper_forward.1} parent=23 // pred_fallthru
        _
    $region24: #{local_grouper_forward.1} parent=5 // pred_fallthru
      _
    %p198 = scmp.le.s32.totalorder 1, %s12
    %p199 = scmp.lt.s32.totalorder %s12, 3
    %p200 = pnand %p198, %p199
    %p201 = pneg %p200
    // Predicated region
    $region33: #{local_grouper_forward.1} parent=5 // pred_check
      _
    $region34: #{local_grouper_forward.1} parent=5 // pred_check_branch
      %203 = sbr.rel (%p200) target = $region36
    $region35: #{local_grouper_forward.1} parent=5 // pred_region
      %s204 = ssub.s32 %s12, 1
      %p205 = scmp.lt.s32.totalorder %s17, 1
      %s206 = scalar_select %p205, %s17, 1
      %s207 = smul.addr %s206, 4
      %s208 = scalar_lea.vmem %s0, %s207
      %p209 = pneg %p38
      %p210 = pneg %p35
      %p211 = scmp.lt.s32.totalorder %s17, 1
      %s212 = scalar_select %p211, %s17, 1
      %s213 = smul.addr %s212, 3
      %s214 = smul.addr %s213, 8
      %s215 = scalar_lea.vmem %s1, %s214
      %p216 = pneg %p64
      %p217 = pneg %p61
      %p218 = pneg %p85
      %p219 = pneg %p82
      %p220 = pneg %p106
      %p221 = pneg %p103
      %p222 = pneg %p132
      %p223 = pneg %p129
      %p224 = scmp.lt.s32.totalorder %s17, 1
      %s225 = scalar_select %p224, %s17, 1
      %s226 = smul.addr %s225, 4
      %s227 = smul.addr %s226, 8
      %s228 = scalar_lea.vmem %s4, %s227
      %p229 = pneg %p158
      %p230 = pneg %p155
      %p231 = scmp.lt.s32.totalorder %s17, 1
      %s232 = scalar_select %p231, %s17, 1
      %s233 = smul.addr %s232, 10
      %s234 = smul.addr %s233, 8
      %s235 = scalar_lea.vmem %s5, %s234
      %p236 = scmp.lt.s32.totalorder %s17, 1
      %s237 = scalar_select %p236, %s17, 1
      %s238 = smul.addr %s237, 4
      %s239 = scalar_lea.vmem %s0, %s238
      %p240 = scmp.lt.s32.totalorder %s17, 1
      %s241 = scalar_select %p240, %s17, 1
      %s242 = smul.addr %s241, 3
      %s243 = smul.addr %s242, 8
      %s244 = scalar_lea.vmem %s1, %s243
      %p245 = scmp.lt.s32.totalorder %s17, 1
      %s246 = scalar_select %p245, %s17, 1
      %s247 = smul.addr %s246, 4
      %s248 = smul.addr %s247, 8
      %s249 = scalar_lea.vmem %s4, %s248
      %p250 = scmp.lt.s32.totalorder %s17, 1
      %s251 = scalar_select %p250, %s17, 1
      %s252 = smul.addr %s251, 10
      %s253 = smul.addr %s252, 8
      %s254 = scalar_lea.vmem %s5, %s253
      %v255 = vld [vmem:[%s239] sm:$0x7]
      %v256 = vld [vmem:[%s244] sm:$0xff]
      %v257 = vld [vmem:[%s244 + $0x8] sm:$0xff]
      %v258 = vld [vmem:[%s244 + $0x10] sm:$0x7]
      %v259 = vlaneseq
      %v260 = vand.u32 %v259, 127
      %v261 = vcvt.s32.f32 %v260
      %vm262 = vcmp.eq.f32.partialorder %v261, 0.0
      %v263 = vsel %vm262, 1, 0
      %v264 = vcvt.s32.f32 %v263
      %265 = vst [vmem:[#allocation2] sm:$0x1] %v264
      loop: start=1, step=1, limit=32
      $region37: #{local_grouper_forward.1} parent=35 // loop_pre_header
        _
      $region38: #{local_grouper_forward.1} parent=35 // loop_header
        %s267 = sphi 1, %s271
        %p268 = scmp.ge.s32.totalorder %s267, 32
        %v272 = vphi inf, %v288
        %v273 = vphi %v255, %v311
      $region39: #{local_grouper_forward.1} parent=35 // loop_header_branch
        %270 = sbr.rel (%p268) target = $region43
      $region40: #{local_grouper_forward.1} parent=35 // loop_body
        %275 = vset.pattern.permute.xlu0 0
        %276 = vperm.xlu0 %275, %v273
        %v277 = vpop.permute.xlu0 %276
        %v279 = vsub.f32 %v255, %v277
        %v280 = vmul.f32 %v279, %v279
        %v282 = vrot.slane %v280, 1
        %v284 = vadd.f32 %v280, %v282
        %v285 = vrot.slane %v280, 2
        %v287 = vadd.f32 %v284, %v285
        %v288 = vmin.f32 %v272, %v287
        %vm289 = vcmask 1040384
        %v290 = vsel %vm289, %v288, -inf
        %291 = vmax.xlane.f32.xlu0 %v290
        %v292 = vpop.xlane.xlu0 %291
        %vm293 = vcmp.eq.f32.partialorder %v288, %v292
        %v294 = vsel %vm293, %v261, 128.0
        %v295 = vsel %vm289, %v294, inf
        %296 = vmin.xlane.f32.xlu0 %v295
        %v297 = vpop.xlane.xlu0 %296
        %vm298 = vcmp.eq.f32.partialorder %v261, %v297
        %v299 = vsel %vm298, 1, 0
        %v300 = vcvt.s32.f32 %v299
        %s301 = scalar_lea.vmem [#allocation2], %s267
        %302 = vst [vmem:[%s301] sm:$0x1] %v300
        %v303 = vlaneseq
        %v304 = vshrl.u32 %v303, 7
        %v305 = vsub.s32 0, %v304
        %v306 = vrot.slane %v300, %v305
        %v307 = vmul.f32 %v306, %v255
        %vm308 = vcmask 1042432
        %v309 = vsel %vm308, %v307, 0.0
        %310 = vadd.xlane.f32.xlu0 %v309
        %v311 = vpop.xlane.xlu0 %310
      $region41: #{local_grouper_forward.1} parent=35 // loop_footer
        %s271 = sadd.s32 1, %s267
      $region42: #{local_grouper_forward.1} parent=35 // loop_footer_branch
        %266 = sbr.rel target = $region38
      $region43: #{local_grouper_forward.1} parent=35 // loop_exit
        _
      %v312 = vld [vmem:[#allocation2] sm:$0xff]
      %v313 = vld [vmem:[#allocation2 + $0x8] sm:$0xff]
      %v314 = vld [vmem:[#allocation2 + $0x10] sm:$0xff]
      %v315 = vld [vmem:[#allocation2 + $0x18] sm:$0xff]
      %v316 = vlaneseq
      %v317 = vshrl.u32 %v316, 7
      %v318 = vsub.s32 0, %v317
      %v319 = vrot.slane %v255, %v318
      %v320 = vmul.f32 %v312, %v319
      %v321 = vmul.f32 %v313, %v319
      %v322 = vmul.f32 %v314, %v319
      %v323 = vmul.f32 %v315, %v319
      %324 = vadd.xlane.f32.xlu0 %v320
      %v325 = vpop.xlane.xlu0 %324
      %326 = vadd.xlane.f32.xlu0 %v321
      %v327 = vpop.xlane.xlu0 %326
      %328 = vadd.xlane.f32.xlu0 %v322
      %v329 = vpop.xlane.xlu0 %328
      %330 = vadd.xlane.f32.xlu0 %v323
      %v331 = vpop.xlane.xlu0 %330
      %v332 = vlaneseq
      %v333 = vshrl.u32 %v332, 7
      %v334 = vsub.s32 1, %v333
      %v335 = vrot.slane %v255, %v334
      %v336 = vmul.f32 %v312, %v335
      %v337 = vmul.f32 %v313, %v335
      %v338 = vmul.f32 %v314, %v335
      %v339 = vmul.f32 %v315, %v335
      %340 = vadd.xlane.f32.xlu0 %v336
      %v341 = vpop.xlane.xlu0 %340
      %342 = vadd.xlane.f32.xlu0 %v337
      %v343 = vpop.xlane.xlu0 %342
      %344 = vadd.xlane.f32.xlu0 %v338
      %v345 = vpop.xlane.xlu0 %344
      %346 = vadd.xlane.f32.xlu0 %v339
      %v347 = vpop.xlane.xlu0 %346
      %v348 = vlaneseq
      %v349 = vshrl.u32 %v348, 7
      %v350 = vsub.s32 2, %v349
      %v351 = vrot.slane %v255, %v350
      %v352 = vmul.f32 %v312, %v351
      %v353 = vmul.f32 %v313, %v351
      %v354 = vmul.f32 %v314, %v351
      %v355 = vmul.f32 %v315, %v351
      %356 = vadd.xlane.f32.xlu0 %v352
      %v357 = vpop.xlane.xlu0 %356
      %358 = vadd.xlane.f32.xlu0 %v353
      %v359 = vpop.xlane.xlu0 %358
      %360 = vadd.xlane.f32.xlu0 %v354
      %v361 = vpop.xlane.xlu0 %360
      %362 = vadd.xlane.f32.xlu0 %v355
      %v363 = vpop.xlane.xlu0 %362
      %vm364 = vcmask 7168
      %365 = vst.msk [vmem:[%s249] sm:$0xff] %vm364, %v325
      %366 = vst.msk [vmem:[%s249 + $0x8] sm:$0xff] %vm364, %v327
      %367 = vst.msk [vmem:[%s249 + $0x10] sm:$0xff] %vm364, %v329
      %368 = vst.msk [vmem:[%s249 + $0x18] sm:$0xff] %vm364, %v331
      %vm369 = vcmask 15368
      %370 = vst.msk [vmem:[%s249] sm:$0xff] %vm369, %v341
      %371 = vst.msk [vmem:[%s249 + $0x8] sm:$0xff] %vm369, %v343
      %372 = vst.msk [vmem:[%s249 + $0x10] sm:$0xff] %vm369, %v345
      %373 = vst.msk [vmem:[%s249 + $0x18] sm:$0xff] %vm369, %v347
      %vm374 = vcmask 23568
      %375 = vst.msk [vmem:[%s249] sm:$0xff] %vm374, %v357
      %376 = vst.msk [vmem:[%s249 + $0x8] sm:$0xff] %vm374, %v359
      %377 = vst.msk [vmem:[%s249 + $0x10] sm:$0xff] %vm374, %v361
      %378 = vst.msk [vmem:[%s249 + $0x18] sm:$0xff] %vm374, %v363
      %379 = vmatprep.subr.mxu0 0.0
      %380 = vmatpush1.xpose.msra.mxu0 0.0
      %381 = vmatprep.subr.mxu0 0.0
      %382 = vmatpush1.xpose.msra.mxu0 0.0
      %383 = vmatprep.subr.mxu0 0.0
      %384 = vmatpush1.xpose.msra.mxu0 0.0
      %385 = vmatprep.subr.mxu0 0.0
      %386 = vmatpush1.xpose.msra.mxu0 0.0
      %387 = vmatprep.subr.mxu0 0.0
      %388 = vmatpush1.xpose.msra.mxu0 0.0
      %389 = vmatprep.subr.mxu0 0.0
      %390 = vmatpush1.xpose.msra.mxu0 0.0
      %391 = vmatprep.subr.mxu0 0.0
      %392 = vmatpush1.xpose.msra.mxu0 0.0
      %393 = vmatprep.subr.mxu0 0.0
      %394 = vmatpush1.xpose.msra.mxu0 0.0
      %395 = vmatprep.subr.mxu0 0.0
      %396 = vmatpush1.xpose.msra.mxu0 0.0
      %397 = vmatprep.subr.mxu0 0.0
      %398 = vmatpush1.xpose.msra.mxu0 0.0
      %399 = vmatprep.subr.mxu0 0.0
      %400 = vmatpush1.xpose.msra.mxu0 0.0
      %401 = vmatprep.subr.mxu0 0.0
      %402 = vmatpush1.xpose.msra.mxu0 0.0
      %403 = vmatprep.subr.mxu0 0.0
      %v404 = vand.u32 %v315, 4294901760
      %405 = vmatpush1.xpose.msra.mxu0 %v404
      %406 = vmatprep.subr.mxu0 0.0
      %v407 = vand.u32 %v314, 4294901760
      %408 = vmatpush1.xpose.msra.mxu0 %v407
      %409 = vmatprep.subr.mxu0 0.0
      %v410 = vand.u32 %v313, 4294901760
      %411 = vmatpush1.xpose.msra.mxu0 %v410
      %412 = vmatprep.subr.mxu0 0.0
      %v413 = vand.u32 %v312, 4294901760
      %414 = vmatpush1.xpose.msra.mxu0 %v413
      %415 = vmatprep.subr.mxu0 0.0
      %416 = vmatpush2.xpose.msra.mxu0 0.0
      %417 = vmatprep.subr.mxu0 0.0
      %418 = vmatpush2.xpose.msra.mxu0 0.0
      %419 = vmatprep.subr.mxu0 0.0
      %420 = vmatpush2.xpose.msra.mxu0 0.0
      %421 = vmatprep.subr.mxu0 0.0
      %422 = vmatpush2.xpose.msra.mxu0 0.0
      %423 = vmatprep.subr.mxu0 0.0
      %424 = vmatpush2.xpose.msra.mxu0 0.0
      %425 = vmatprep.subr.mxu0 0.0
      %426 = vmatpush2.xpose.msra.mxu0 0.0
      %427 = vmatprep.subr.mxu0 0.0
      %428 = vmatpush2.xpose.msra.mxu0 0.0
      %429 = vmatprep.subr.mxu0 0.0
      %430 = vmatpush2.xpose.msra.mxu0 0.0
      %431 = vmatprep.subr.mxu0 0.0
      %432 = vmatpush2.xpose.msra.mxu0 0.0
      %433 = vmatprep.subr.mxu0 0.0
      %434 = vmatpush2.xpose.msra.mxu0 0.0
      %435 = vmatprep.subr.mxu0 0.0
      %436 = vmatpush2.xpose.msra.mxu0 0.0
      %437 = vmatprep.subr.mxu0 0.0
      %438 = vmatpush2.xpose.msra.mxu0 0.0
      %439 = vmatprep.subr.mxu0 0.0
      %440 = vmatpush2.xpose.msra.mxu0 0.0
      %441 = vmatprep.subr.mxu0 0.0
      %442 = vmatpush2.xpose.msra.mxu0 0.0
      %443 = vmatprep.subr.mxu0 0.0
      %444 = vmatpush2.xpose.msra.mxu0 0.0
      %445 = vmatprep.subr.mxu0 0.0
      %446 = vmatpush2.xpose.msra.mxu0 0.0
      %447 = vmatprep.mubr.f32.mxu0 0.0
      %v448 = vand.u32 %v256, 4294901760
      %v449 = vsub.f32 %v256, %v448
      %v450 = vand.u32 %v449, 4294901760
      %v451 = vsub.f32 %v449, %v450
      %v452 = vand.u32 %v451, 4294901760
      %453 = vmatmul.mubr.f32.gmra.mxu0 %v452
      %v454 = vpop.f32.mrf.mxu0
      %v455 = vadd.f32 0.0, %v454
      %v456 = vpop.f32.mrf.mxu0
      %457 = vmatprep.mubr.f32.mxu0 0.0
      %v458 = vand.u32 %v257, 4294901760
      %v459 = vsub.f32 %v257, %v458
      %v460 = vand.u32 %v459, 4294901760
      %v461 = vsub.f32 %v459, %v460
      %v462 = vand.u32 %v461, 4294901760
      %463 = vmatmul.mubr.f32.gmra.mxu0 %v462
      %v464 = vpop.f32.mrf.mxu0
      %v465 = vadd.f32 0.0, %v464
      %v466 = vpop.f32.mrf.mxu0
      %467 = vdwg.mxu0
      %468 = vmatprep.subr.mxu0 0.0
      %469 = vmatpush1.xpose.msra.mxu0 0.0
      %470 = vmatprep.subr.mxu0 0.0
      %471 = vmatpush1.xpose.msra.mxu0 0.0
      %472 = vmatprep.subr.mxu0 0.0
      %473 = vmatpush1.xpose.msra.mxu0 0.0
      %474 = vmatprep.subr.mxu0 0.0
      %475 = vmatpush1.xpose.msra.mxu0 0.0
      %476 = vmatprep.subr.mxu0 0.0
      %477 = vmatpush1.xpose.msra.mxu0 0.0
      %478 = vmatprep.subr.mxu0 0.0
      %479 = vmatpush1.xpose.msra.mxu0 0.0
      %480 = vmatprep.subr.mxu0 0.0
      %481 = vmatpush1.xpose.msra.mxu0 0.0
      %482 = vmatprep.subr.mxu0 0.0
      %483 = vmatpush1.xpose.msra.mxu0 0.0
      %484 = vmatprep.subr.mxu0 0.0
      %485 = vmatpush1.xpose.msra.mxu0 0.0
      %486 = vmatprep.subr.mxu0 0.0
      %487 = vmatpush1.xpose.msra.mxu0 0.0
      %488 = vmatprep.subr.mxu0 0.0
      %489 = vmatpush1.xpose.msra.mxu0 0.0
      %490 = vmatprep.subr.mxu0 0.0
      %491 = vmatpush1.xpose.msra.mxu0 0.0
      %492 = vmatprep.subr.mxu0 0.0
      %v493 = vand.u32 %v315, 4294901760
      %v494 = vsub.f32 %v315, %v493
      %v495 = vand.u32 %v494, 4294901760
      %v496 = vsub.f32 %v494, %v495
      %v497 = vand.u32 %v496, 4294901760
      %498 = vmatpush1.xpose.msra.mxu0 %v497
      %499 = vmatprep.subr.mxu0 0.0
      %v500 = vand.u32 %v314, 4294901760
      %v501 = vsub.f32 %v314, %v500
      %v502 = vand.u32 %v501, 4294901760
      %v503 = vsub.f32 %v501, %v502
      %v504 = vand.u32 %v503, 4294901760
      %505 = vmatpush1.xpose.msra.mxu0 %v504
      %506 = vmatprep.subr.mxu0 0.0
      %v507 = vand.u32 %v313, 4294901760
      %v508 = vsub.f32 %v313, %v507
      %v509 = vand.u32 %v508, 4294901760
      %v510 = vsub.f32 %v508, %v509
      %v511 = vand.u32 %v510, 4294901760
      %512 = vmatpush1.xpose.msra.mxu0 %v511
      %513 = vmatprep.subr.mxu0 0.0
      %v514 = vand.u32 %v312, 4294901760
      %v515 = vsub.f32 %v312, %v514
      %v516 = vand.u32 %v515, 4294901760
      %v517 = vsub.f32 %v515, %v516
      %v518 = vand.u32 %v517, 4294901760
      %519 = vmatpush1.xpose.msra.mxu0 %v518
      %520 = vmatprep.subr.mxu0 0.0
      %521 = vmatpush2.xpose.msra.mxu0 0.0
      %522 = vmatprep.subr.mxu0 0.0
      %523 = vmatpush2.xpose.msra.mxu0 0.0
      %524 = vmatprep.subr.mxu0 0.0
      %525 = vmatpush2.xpose.msra.mxu0 0.0
      %526 = vmatprep.subr.mxu0 0.0
      %527 = vmatpush2.xpose.msra.mxu0 0.0
      %528 = vmatprep.subr.mxu0 0.0
      %529 = vmatpush2.xpose.msra.mxu0 0.0
      %530 = vmatprep.subr.mxu0 0.0
      %531 = vmatpush2.xpose.msra.mxu0 0.0
      %532 = vmatprep.subr.mxu0 0.0
      %533 = vmatpush2.xpose.msra.mxu0 0.0
      %534 = vmatprep.subr.mxu0 0.0
      %535 = vmatpush2.xpose.msra.mxu0 0.0
      %536 = vmatprep.subr.mxu0 0.0
      %537 = vmatpush2.xpose.msra.mxu0 0.0
      %538 = vmatprep.subr.mxu0 0.0
      %539 = vmatpush2.xpose.msra.mxu0 0.0
      %540 = vmatprep.subr.mxu0 0.0
      %541 = vmatpush2.xpose.msra.mxu0 0.0
      %542 = vmatprep.subr.mxu0 0.0
      %543 = vmatpush2.xpose.msra.mxu0 0.0
      %544 = vmatprep.subr.mxu0 0.0
      %545 = vmatpush2.xpose.msra.mxu0 0.0
      %546 = vmatprep.subr.mxu0 0.0
      %547 = vmatpush2.xpose.msra.mxu0 0.0
      %548 = vmatprep.subr.mxu0 0.0
      %549 = vmatpush2.xpose.msra.mxu0 0.0
      %550 = vmatprep.subr.mxu0 0.0
      %551 = vmatpush2.xpose.msra.mxu0 0.0
      %552 = vmatprep.mubr.f32.mxu0 0.0
      %v553 = vand.u32 %v256, 4294901760
      %554 = vmatmul.mubr.f32.gmra.mxu0 %v553
      %v555 = vpop.f32.mrf.mxu0
      %v556 = vadd.f32 %v455, %v555
      %v557 = vpop.f32.mrf.mxu0
      %558 = vmatprep.mubr.f32.mxu0 0.0
      %v559 = vand.u32 %v257, 4294901760
      %560 = vmatmul.mubr.f32.gmra.mxu0 %v559
      %v561 = vpop.f32.mrf.mxu0
      %v562 = vadd.f32 %v465, %v561
      %v563 = vpop.f32.mrf.mxu0
      %564 = vdwg.mxu0
      %565 = vmatprep.subr.mxu0 0.0
      %566 = vmatpush1.xpose.msra.mxu0 0.0
      %567 = vmatprep.subr.mxu0 0.0
      %568 = vmatpush1.xpose.msra.mxu0 0.0
      %569 = vmatprep.subr.mxu0 0.0
      %570 = vmatpush1.xpose.msra.mxu0 0.0
      %571 = vmatprep.subr.mxu0 0.0
      %572 = vmatpush1.xpose.msra.mxu0 0.0
      %573 = vmatprep.subr.mxu0 0.0
      %574 = vmatpush1.xpose.msra.mxu0 0.0
      %575 = vmatprep.subr.mxu0 0.0
      %576 = vmatpush1.xpose.msra.mxu0 0.0
      %577 = vmatprep.subr.mxu0 0.0
      %578 = vmatpush1.xpose.msra.mxu0 0.0
      %579 = vmatprep.subr.mxu0 0.0
      %580 = vmatpush1.xpose.msra.mxu0 0.0
      %581 = vmatprep.subr.mxu0 0.0
      %582 = vmatpush1.xpose.msra.mxu0 0.0
      %583 = vmatprep.subr.mxu0 0.0
      %584 = vmatpush1.xpose.msra.mxu0 0.0
      %585 = vmatprep.subr.mxu0 0.0
      %586 = vmatpush1.xpose.msra.mxu0 0.0
      %587 = vmatprep.subr.mxu0 0.0
      %588 = vmatpush1.xpose.msra.mxu0 0.0
      %589 = vmatprep.subr.mxu0 0.0
      %v590 = vand.u32 %v315, 4294901760
      %v591 = vsub.f32 %v315, %v590
      %592 = vmatpush1.xpose.msra.mxu0 %v591
      %593 = vmatprep.subr.mxu0 0.0
      %v594 = vand.u32 %v314, 4294901760
      %v595 = vsub.f32 %v314, %v594
      %596 = vmatpush1.xpose.msra.mxu0 %v595
      %597 = vmatprep.subr.mxu0 0.0
      %v598 = vand.u32 %v313, 4294901760
      %v599 = vsub.f32 %v313, %v598
      %600 = vmatpush1.xpose.msra.mxu0 %v599
      %601 = vmatprep.subr.mxu0 0.0
      %v602 = vand.u32 %v312, 4294901760
      %v603 = vsub.f32 %v312, %v602
      %604 = vmatpush1.xpose.msra.mxu0 %v603
      %605 = vmatprep.subr.mxu0 0.0
      %606 = vmatpush2.xpose.msra.mxu0 0.0
      %607 = vmatprep.subr.mxu0 0.0
      %608 = vmatpush2.xpose.msra.mxu0 0.0
      %609 = vmatprep.subr.mxu0 0.0
      %610 = vmatpush2.xpose.msra.mxu0 0.0
      %611 = vmatprep.subr.mxu0 0.0
      %612 = vmatpush2.xpose.msra.mxu0 0.0
      %613 = vmatprep.subr.mxu0 0.0
      %614 = vmatpush2.xpose.msra.mxu0 0.0
      %615 = vmatprep.subr.mxu0 0.0
      %616 = vmatpush2.xpose.msra.mxu0 0.0
      %617 = vmatprep.subr.mxu0 0.0
      %618 = vmatpush2.xpose.msra.mxu0 0.0
      %619 = vmatprep.subr.mxu0 0.0
      %620 = vmatpush2.xpose.msra.mxu0 0.0
      %621 = vmatprep.subr.mxu0 0.0
      %622 = vmatpush2.xpose.msra.mxu0 0.0
      %623 = vmatprep.subr.mxu0 0.0
      %624 = vmatpush2.xpose.msra.mxu0 0.0
      %625 = vmatprep.subr.mxu0 0.0
      %626 = vmatpush2.xpose.msra.mxu0 0.0
      %627 = vmatprep.subr.mxu0 0.0
      %628 = vmatpush2.xpose.msra.mxu0 0.0
      %629 = vmatprep.subr.mxu0 0.0
      %630 = vmatpush2.xpose.msra.mxu0 0.0
      %631 = vmatprep.subr.mxu0 0.0
      %632 = vmatpush2.xpose.msra.mxu0 0.0
      %633 = vmatprep.subr.mxu0 0.0
      %634 = vmatpush2.xpose.msra.mxu0 0.0
      %635 = vmatprep.subr.mxu0 0.0
      %636 = vmatpush2.xpose.msra.mxu0 0.0
      %637 = vmatprep.mubr.f32.mxu0 0.0
      %v638 = vand.u32 %v256, 4294901760
      %v639 = vsub.f32 %v256, %v638
      %640 = vmatmul.mubr.f32.gmra.mxu0 %v639
      %v641 = vpop.f32.mrf.mxu0
      %v642 = vadd.f32 %v556, %v641
      %v643 = vpop.f32.mrf.mxu0
      %644 = vmatprep.mubr.f32.mxu0 0.0
      %v645 = vand.u32 %v257, 4294901760
      %v646 = vsub.f32 %v257, %v645
      %647 = vmatmul.mubr.f32.gmra.mxu0 %v646
      %v648 = vpop.f32.mrf.mxu0
      %v649 = vadd.f32 %v562, %v648
      %v650 = vpop.f32.mrf.mxu0
      %651 = vdwg.mxu0
      %652 = vmatprep.subr.mxu0 0.0
      %653 = vmatpush1.xpose.msra.mxu0 0.0
      %654 = vmatprep.subr.mxu0 0.0
      %655 = vmatpush1.xpose.msra.mxu0 0.0
      %656 = vmatprep.subr.mxu0 0.0
      %657 = vmatpush1.xpose.msra.mxu0 0.0
      %658 = vmatprep.subr.mxu0 0.0
      %659 = vmatpush1.xpose.msra.mxu0 0.0
      %660 = vmatprep.subr.mxu0 0.0
      %661 = vmatpush1.xpose.msra.mxu0 0.0
      %662 = vmatprep.subr.mxu0 0.0
      %663 = vmatpush1.xpose.msra.mxu0 0.0
      %664 = vmatprep.subr.mxu0 0.0
      %665 = vmatpush1.xpose.msra.mxu0 0.0
      %666 = vmatprep.subr.mxu0 0.0
      %667 = vmatpush1.xpose.msra.mxu0 0.0
      %668 = vmatprep.subr.mxu0 0.0
      %669 = vmatpush1.xpose.msra.mxu0 0.0
      %670 = vmatprep.subr.mxu0 0.0
      %671 = vmatpush1.xpose.msra.mxu0 0.0
      %672 = vmatprep.subr.mxu0 0.0
      %673 = vmatpush1.xpose.msra.mxu0 0.0
      %674 = vmatprep.subr.mxu0 0.0
      %675 = vmatpush1.xpose.msra.mxu0 0.0
      %676 = vmatprep.subr.mxu0 0.0
      %v677 = vand.u32 %v315, 4294901760
      %678 = vmatpush1.xpose.msra.mxu0 %v677
      %679 = vmatprep.subr.mxu0 0.0
      %v680 = vand.u32 %v314, 4294901760
      %681 = vmatpush1.xpose.msra.mxu0 %v680
      %682 = vmatprep.subr.mxu0 0.0
      %v683 = vand.u32 %v313, 4294901760
      %684 = vmatpush1.xpose.msra.mxu0 %v683
      %685 = vmatprep.subr.mxu0 0.0
      %v686 = vand.u32 %v312, 4294901760
      %687 = vmatpush1.xpose.msra.mxu0 %v686
      %688 = vmatprep.subr.mxu0 0.0
      %689 = vmatpush2.xpose.msra.mxu0 0.0
      %690 = vmatprep.subr.mxu0 0.0
      %691 = vmatpush2.xpose.msra.mxu0 0.0
      %692 = vmatprep.subr.mxu0 0.0
      %693 = vmatpush2.xpose.msra.mxu0 0.0
      %694 = vmatprep.subr.mxu0 0.0
      %695 = vmatpush2.xpose.msra.mxu0 0.0
      %696 = vmatprep.subr.mxu0 0.0
      %697 = vmatpush2.xpose.msra.mxu0 0.0
      %698 = vmatprep.subr.mxu0 0.0
      %699 = vmatpush2.xpose.msra.mxu0 0.0
      %700 = vmatprep.subr.mxu0 0.0
      %701 = vmatpush2.xpose.msra.mxu0 0.0
      %702 = vmatprep.subr.mxu0 0.0
      %703 = vmatpush2.xpose.msra.mxu0 0.0
      %704 = vmatprep.subr.mxu0 0.0
      %705 = vmatpush2.xpose.msra.mxu0 0.0
      %706 = vmatprep.subr.mxu0 0.0
      %707 = vmatpush2.xpose.msra.mxu0 0.0
      %708 = vmatprep.subr.mxu0 0.0
      %709 = vmatpush2.xpose.msra.mxu0 0.0
      %710 = vmatprep.subr.mxu0 0.0
      %711 = vmatpush2.xpose.msra.mxu0 0.0
      %712 = vmatprep.subr.mxu0 0.0
      %713 = vmatpush2.xpose.msra.mxu0 0.0
      %714 = vmatprep.subr.mxu0 0.0
      %715 = vmatpush2.xpose.msra.mxu0 0.0
      %716 = vmatprep.subr.mxu0 0.0
      %717 = vmatpush2.xpose.msra.mxu0 0.0
      %718 = vmatprep.subr.mxu0 0.0
      %719 = vmatpush2.xpose.msra.mxu0 0.0
      %720 = vmatprep.mubr.f32.mxu0 0.0
      %v721 = vand.u32 %v256, 4294901760
      %v722 = vsub.f32 %v256, %v721
      %v723 = vand.u32 %v722, 4294901760
      %724 = vmatmul.mubr.f32.gmra.mxu0 %v723
      %v725 = vpop.f32.mrf.mxu0
      %v726 = vadd.f32 %v642, %v725
      %v727 = vpop.f32.mrf.mxu0
      %728 = vmatprep.mubr.f32.mxu0 0.0
      %v729 = vand.u32 %v257, 4294901760
      %v730 = vsub.f32 %v257, %v729
      %v731 = vand.u32 %v730, 4294901760
      %732 = vmatmul.mubr.f32.gmra.mxu0 %v731
      %v733 = vpop.f32.mrf.mxu0
      %v734 = vadd.f32 %v649, %v733
      %v735 = vpop.f32.mrf.mxu0
      %736 = vdwg.mxu0
      %737 = vmatprep.subr.mxu0 0.0
      %738 = vmatpush1.xpose.msra.mxu0 0.0
      %739 = vmatprep.subr.mxu0 0.0
      %740 = vmatpush1.xpose.msra.mxu0 0.0
      %741 = vmatprep.subr.mxu0 0.0
      %742 = vmatpush1.xpose.msra.mxu0 0.0
      %743 = vmatprep.subr.mxu0 0.0
      %744 = vmatpush1.xpose.msra.mxu0 0.0
      %745 = vmatprep.subr.mxu0 0.0
      %746 = vmatpush1.xpose.msra.mxu0 0.0
      %747 = vmatprep.subr.mxu0 0.0
      %748 = vmatpush1.xpose.msra.mxu0 0.0
      %749 = vmatprep.subr.mxu0 0.0
      %750 = vmatpush1.xpose.msra.mxu0 0.0
      %751 = vmatprep.subr.mxu0 0.0
      %752 = vmatpush1.xpose.msra.mxu0 0.0
      %753 = vmatprep.subr.mxu0 0.0
      %754 = vmatpush1.xpose.msra.mxu0 0.0
      %755 = vmatprep.subr.mxu0 0.0
      %756 = vmatpush1.xpose.msra.mxu0 0.0
      %757 = vmatprep.subr.mxu0 0.0
      %758 = vmatpush1.xpose.msra.mxu0 0.0
      %759 = vmatprep.subr.mxu0 0.0
      %760 = vmatpush1.xpose.msra.mxu0 0.0
      %761 = vmatprep.subr.mxu0 0.0
      %v762 = vand.u32 %v315, 4294901760
      %v763 = vsub.f32 %v315, %v762
      %v764 = vand.u32 %v763, 4294901760
      %765 = vmatpush1.xpose.msra.mxu0 %v764
      %766 = vmatprep.subr.mxu0 0.0
      %v767 = vand.u32 %v314, 4294901760
      %v768 = vsub.f32 %v314, %v767
      %v769 = vand.u32 %v768, 4294901760
      %770 = vmatpush1.xpose.msra.mxu0 %v769
      %771 = vmatprep.subr.mxu0 0.0
      %v772 = vand.u32 %v313, 4294901760
      %v773 = vsub.f32 %v313, %v772
      %v774 = vand.u32 %v773, 4294901760
      %775 = vmatpush1.xpose.msra.mxu0 %v774
      %776 = vmatprep.subr.mxu0 0.0
      %v777 = vand.u32 %v312, 4294901760
      %v778 = vsub.f32 %v312, %v777
      %v779 = vand.u32 %v778, 4294901760
      %780 = vmatpush1.xpose.msra.mxu0 %v779
      %781 = vmatprep.subr.mxu0 0.0
      %782 = vmatpush2.xpose.msra.mxu0 0.0
      %783 = vmatprep.subr.mxu0 0.0
      %784 = vmatpush2.xpose.msra.mxu0 0.0
      %785 = vmatprep.subr.mxu0 0.0
      %786 = vmatpush2.xpose.msra.mxu0 0.0
      %787 = vmatprep.subr.mxu0 0.0
      %788 = vmatpush2.xpose.msra.mxu0 0.0
      %789 = vmatprep.subr.mxu0 0.0
      %790 = vmatpush2.xpose.msra.mxu0 0.0
      %791 = vmatprep.subr.mxu0 0.0
      %792 = vmatpush2.xpose.msra.mxu0 0.0
      %793 = vmatprep.subr.mxu0 0.0
      %794 = vmatpush2.xpose.msra.mxu0 0.0
      %795 = vmatprep.subr.mxu0 0.0
      %796 = vmatpush2.xpose.msra.mxu0 0.0
      %797 = vmatprep.subr.mxu0 0.0
      %798 = vmatpush2.xpose.msra.mxu0 0.0
      %799 = vmatprep.subr.mxu0 0.0
      %800 = vmatpush2.xpose.msra.mxu0 0.0
      %801 = vmatprep.subr.mxu0 0.0
      %802 = vmatpush2.xpose.msra.mxu0 0.0
      %803 = vmatprep.subr.mxu0 0.0
      %804 = vmatpush2.xpose.msra.mxu0 0.0
      %805 = vmatprep.subr.mxu0 0.0
      %806 = vmatpush2.xpose.msra.mxu0 0.0
      %807 = vmatprep.subr.mxu0 0.0
      %808 = vmatpush2.xpose.msra.mxu0 0.0
      %809 = vmatprep.subr.mxu0 0.0
      %810 = vmatpush2.xpose.msra.mxu0 0.0
      %811 = vmatprep.subr.mxu0 0.0
      %812 = vmatpush2.xpose.msra.mxu0 0.0
      %813 = vmatprep.mubr.f32.mxu0 0.0
      %v814 = vand.u32 %v256, 4294901760
      %815 = vmatmul.mubr.f32.gmra.mxu0 %v814
      %v816 = vpop.f32.mrf.mxu0
      %v817 = vadd.f32 %v726, %v816
      %v818 = vpop.f32.mrf.mxu0
      %819 = vmatprep.mubr.f32.mxu0 0.0
      %v820 = vand.u32 %v257, 4294901760
      %821 = vmatmul.mubr.f32.gmra.mxu0 %v820
      %v822 = vpop.f32.mrf.mxu0
      %v823 = vadd.f32 %v734, %v822
      %v824 = vpop.f32.mrf.mxu0
      %825 = vdwg.mxu0
      %826 = vmatprep.subr.mxu0 0.0
      %827 = vmatpush1.xpose.msra.mxu0 0.0
      %828 = vmatprep.subr.mxu0 0.0
      %829 = vmatpush1.xpose.msra.mxu0 0.0
      %830 = vmatprep.subr.mxu0 0.0
      %831 = vmatpush1.xpose.msra.mxu0 0.0
      %832 = vmatprep.subr.mxu0 0.0
      %833 = vmatpush1.xpose.msra.mxu0 0.0
      %834 = vmatprep.subr.mxu0 0.0
      %835 = vmatpush1.xpose.msra.mxu0 0.0
      %836 = vmatprep.subr.mxu0 0.0
      %837 = vmatpush1.xpose.msra.mxu0 0.0
      %838 = vmatprep.subr.mxu0 0.0
      %839 = vmatpush1.xpose.msra.mxu0 0.0
      %840 = vmatprep.subr.mxu0 0.0
      %841 = vmatpush1.xpose.msra.mxu0 0.0
      %842 = vmatprep.subr.mxu0 0.0
      %843 = vmatpush1.xpose.msra.mxu0 0.0
      %844 = vmatprep.subr.mxu0 0.0
      %845 = vmatpush1.xpose.msra.mxu0 0.0
      %846 = vmatprep.subr.mxu0 0.0
      %847 = vmatpush1.xpose.msra.mxu0 0.0
      %848 = vmatprep.subr.mxu0 0.0
      %849 = vmatpush1.xpose.msra.mxu0 0.0
      %850 = vmatprep.subr.mxu0 0.0
      %v851 = vand.u32 %v315, 4294901760
      %852 = vmatpush1.xpose.msra.mxu0 %v851
      %853 = vmatprep.subr.mxu0 0.0
      %v854 = vand.u32 %v314, 4294901760
      %855 = vmatpush1.xpose.msra.mxu0 %v854
      %856 = vmatprep.subr.mxu0 0.0
      %v857 = vand.u32 %v313, 4294901760
      %858 = vmatpush1.xpose.msra.mxu0 %v857
      %859 = vmatprep.subr.mxu0 0.0
      %v860 = vand.u32 %v312, 4294901760
      %861 = vmatpush1.xpose.msra.mxu0 %v860
      %862 = vmatprep.subr.mxu0 0.0
      %863 = vmatpush2.xpose.msra.mxu0 0.0
      %864 = vmatprep.subr.mxu0 0.0
      %865 = vmatpush2.xpose.msra.mxu0 0.0
      %866 = vmatprep.subr.mxu0 0.0
      %867 = vmatpush2.xpose.msra.mxu0 0.0
      %868 = vmatprep.subr.mxu0 0.0
      %869 = vmatpush2.xpose.msra.mxu0 0.0
      %870 = vmatprep.subr.mxu0 0.0
      %871 = vmatpush2.xpose.msra.mxu0 0.0
      %872 = vmatprep.subr.mxu0 0.0
      %873 = vmatpush2.xpose.msra.mxu0 0.0
      %874 = vmatprep.subr.mxu0 0.0
      %875 = vmatpush2.xpose.msra.mxu0 0.0
      %876 = vmatprep.subr.mxu0 0.0
      %877 = vmatpush2.xpose.msra.mxu0 0.0
      %878 = vmatprep.subr.mxu0 0.0
      %879 = vmatpush2.xpose.msra.mxu0 0.0
      %880 = vmatprep.subr.mxu0 0.0
      %881 = vmatpush2.xpose.msra.mxu0 0.0
      %882 = vmatprep.subr.mxu0 0.0
      %883 = vmatpush2.xpose.msra.mxu0 0.0
      %884 = vmatprep.subr.mxu0 0.0
      %885 = vmatpush2.xpose.msra.mxu0 0.0
      %886 = vmatprep.subr.mxu0 0.0
      %887 = vmatpush2.xpose.msra.mxu0 0.0
      %888 = vmatprep.subr.mxu0 0.0
      %889 = vmatpush2.xpose.msra.mxu0 0.0
      %890 = vmatprep.subr.mxu0 0.0
      %891 = vmatpush2.xpose.msra.mxu0 0.0
      %892 = vmatprep.subr.mxu0 0.0
      %893 = vmatpush2.xpose.msra.mxu0 0.0
      %894 = vmatprep.mubr.f32.mxu0 0.0
      %v895 = vand.u32 %v256, 4294901760
      %896 = vmatmul.mubr.f32.gmra.mxu0 %v895
      %v897 = vpop.f32.mrf.mxu0
      %v898 = vadd.f32 %v817, %v897
      %v899 = vpop.f32.mrf.mxu0
      %900 = vmatprep.mubr.f32.mxu0 0.0
      %v901 = vand.u32 %v257, 4294901760
      %902 = vmatmul.mubr.f32.gmra.mxu0 %v901
      %v903 = vpop.f32.mrf.mxu0
      %v904 = vadd.f32 %v823, %v903
      %v905 = vpop.f32.mrf.mxu0
      %906 = vdwg.mxu0
      %v907 = vsub.f32 %v325, %v319
      %v908 = vsub.f32 %v327, %v319
      %v909 = vsub.f32 %v329, %v319
      %v910 = vsub.f32 %v331, %v319
      %v911 = vsub.f32 %v341, %v335
      %v912 = vsub.f32 %v343, %v335
      %v913 = vsub.f32 %v345, %v335
      %v914 = vsub.f32 %v347, %v335
      %v915 = vsub.f32 %v357, %v351
      %v916 = vsub.f32 %v359, %v351
      %v917 = vsub.f32 %v361, %v351
      %v918 = vsub.f32 %v363, %v351
      %v919 = vmul.f32 %v907, %v907
      %v920 = vmul.f32 %v908, %v908
      %v921 = vmul.f32 %v909, %v909
      %v922 = vmul.f32 %v910, %v910
      %v923 = vmul.f32 %v911, %v911
      %v924 = vmul.f32 %v912, %v912
      %v925 = vmul.f32 %v913, %v913
      %v926 = vmul.f32 %v914, %v914
      %v927 = vadd.f32 %v919, %v923
      %v928 = vadd.f32 %v920, %v924
      %v929 = vadd.f32 %v921, %v925
      %v930 = vadd.f32 %v922, %v926
      %v931 = vmul.f32 %v915, %v915
      %v932 = vmul.f32 %v916, %v916
      %v933 = vmul.f32 %v917, %v917
      %v934 = vmul.f32 %v918, %v918
      %v935 = vadd.f32 %v927, %v931
      %v936 = vadd.f32 %v928, %v932
      %v937 = vadd.f32 %v929, %v933
      %v938 = vadd.f32 %v930, %v934
      %939 = vmin.xlane.f32.xlu0 %v935
      %v940 = vpop.xlane.xlu0 %939
      %941 = vmin.xlane.f32.xlu0 %v936
      %v942 = vpop.xlane.xlu0 %941
      %943 = vmin.xlane.f32.xlu0 %v937
      %v944 = vpop.xlane.xlu0 %943
      %945 = vmin.xlane.f32.xlu0 %v938
      %v946 = vpop.xlane.xlu0 %945
      %vm947 = vcmp.eq.f32.partialorder %v935, %v940
      %vm948 = vcmp.eq.f32.partialorder %v936, %v942
      %vm949 = vcmp.eq.f32.partialorder %v937, %v944
      %vm950 = vcmp.eq.f32.partialorder %v938, %v946
      %v951 = vsel %vm947, %v261, 128.0
      %v952 = vsel %vm948, %v261, 128.0
      %v953 = vsel %vm949, %v261, 128.0
      %v954 = vsel %vm950, %v261, 128.0
      %955 = vmin.xlane.f32.xlu0 %v951
      %v956 = vpop.xlane.xlu0 %955
      %957 = vmin.xlane.f32.xlu0 %v952
      %v958 = vpop.xlane.xlu0 %957
      %959 = vmin.xlane.f32.xlu0 %v953
      %v960 = vpop.xlane.xlu0 %959
      %961 = vmin.xlane.f32.xlu0 %v954
      %v962 = vpop.xlane.xlu0 %961
      %vm963 = vcmp.eq.f32.partialorder %v261, %v956
      %vm964 = vcmp.eq.f32.partialorder %v261, %v958
      %vm965 = vcmp.eq.f32.partialorder %v261, %v960
      %vm966 = vcmp.eq.f32.partialorder %v261, %v962
      %v967 = vsel %vm963, 1, 0
      %v968 = vsel %vm964, 1, 0
      %v969 = vsel %vm965, 1, 0
      %v970 = vsel %vm966, 1, 0
      %v971 = vcvt.s32.f32 %v967
      %v972 = vcvt.s32.f32 %v968
      %v973 = vcvt.s32.f32 %v969
      %v974 = vcvt.s32.f32 %v970
      %975 = vmatprep.subr.mxu0 0.0
      %976 = vmatpush1.xpose.msra.mxu0 0.0
      %977 = vmatprep.subr.mxu0 0.0
      %978 = vmatpush1.xpose.msra.mxu0 0.0
      %979 = vmatprep.subr.mxu0 0.0
      %980 = vmatpush1.xpose.msra.mxu0 0.0
      %981 = vmatprep.subr.mxu0 0.0
      %982 = vmatpush1.xpose.msra.mxu0 0.0
      %983 = vmatprep.subr.mxu0 0.0
      %984 = vmatpush1.xpose.msra.mxu0 0.0
      %985 = vmatprep.subr.mxu0 0.0
      %986 = vmatpush1.xpose.msra.mxu0 0.0
      %987 = vmatprep.subr.mxu0 0.0
      %988 = vmatpush1.xpose.msra.mxu0 0.0
      %989 = vmatprep.subr.mxu0 0.0
      %990 = vmatpush1.xpose.msra.mxu0 0.0
      %991 = vmatprep.subr.mxu0 0.0
      %992 = vmatpush1.xpose.msra.mxu0 0.0
      %993 = vmatprep.subr.mxu0 0.0
      %994 = vmatpush1.xpose.msra.mxu0 0.0
      %995 = vmatprep.subr.mxu0 0.0
      %996 = vmatpush1.xpose.msra.mxu0 0.0
      %997 = vmatprep.subr.mxu0 0.0
      %998 = vmatpush1.xpose.msra.mxu0 0.0
      %999 = vmatprep.subr.mxu0 0.0
      %v1000 = vand.u32 %v974, 4294901760
      %1001 = vmatpush1.xpose.msra.mxu0 %v1000
      %1002 = vmatprep.subr.mxu0 0.0
      %v1003 = vand.u32 %v973, 4294901760
      %1004 = vmatpush1.xpose.msra.mxu0 %v1003
      %1005 = vmatprep.subr.mxu0 0.0
      %v1006 = vand.u32 %v972, 4294901760
      %1007 = vmatpush1.xpose.msra.mxu0 %v1006
      %1008 = vmatprep.subr.mxu0 0.0
      %v1009 = vand.u32 %v971, 4294901760
      %1010 = vmatpush1.xpose.msra.mxu0 %v1009
      %1011 = vmatprep.subr.mxu0 0.0
      %1012 = vmatpush2.xpose.msra.mxu0 0.0
      %1013 = vmatprep.subr.mxu0 0.0
      %1014 = vmatpush2.xpose.msra.mxu0 0.0
      %1015 = vmatprep.subr.mxu0 0.0
      %1016 = vmatpush2.xpose.msra.mxu0 0.0
      %1017 = vmatprep.subr.mxu0 0.0
      %1018 = vmatpush2.xpose.msra.mxu0 0.0
      %1019 = vmatprep.subr.mxu0 0.0
      %1020 = vmatpush2.xpose.msra.mxu0 0.0
      %1021 = vmatprep.subr.mxu0 0.0
      %1022 = vmatpush2.xpose.msra.mxu0 0.0
      %1023 = vmatprep.subr.mxu0 0.0
      %1024 = vmatpush2.xpose.msra.mxu0 0.0
      %1025 = vmatprep.subr.mxu0 0.0
      %1026 = vmatpush2.xpose.msra.mxu0 0.0
      %1027 = vmatprep.subr.mxu0 0.0
      %1028 = vmatpush2.xpose.msra.mxu0 0.0
      %1029 = vmatprep.subr.mxu0 0.0
      %1030 = vmatpush2.xpose.msra.mxu0 0.0
      %1031 = vmatprep.subr.mxu0 0.0
      %1032 = vmatpush2.xpose.msra.mxu0 0.0
      %1033 = vmatprep.subr.mxu0 0.0
      %1034 = vmatpush2.xpose.msra.mxu0 0.0
      %1035 = vmatprep.subr.mxu0 0.0
      %1036 = vmatpush2.xpose.msra.mxu0 0.0
      %1037 = vmatprep.subr.mxu0 0.0
      %1038 = vmatpush2.xpose.msra.mxu0 0.0
      %1039 = vmatprep.subr.mxu0 0.0
      %1040 = vmatpush2.xpose.msra.mxu0 0.0
      %1041 = vmatprep.subr.mxu0 0.0
      %1042 = vmatpush2.xpose.msra.mxu0 0.0
      %1043 = vmatprep.mubr.f32.mxu0 0.0
      %v1044 = vand.u32 %v256, 4294901760
      %v1045 = vsub.f32 %v256, %v1044
      %v1046 = vand.u32 %v1045, 4294901760
      %v1047 = vsub.f32 %v1045, %v1046
      %v1048 = vand.u32 %v1047, 4294901760
      %1049 = vmatmul.mubr.f32.gmra.mxu0 %v1048
      %v1050 = vpop.f32.mrf.mxu0
      %v1051 = vadd.f32 0.0, %v1050
      %v1052 = vpop.f32.mrf.mxu0
      %1053 = vmatprep.mubr.f32.mxu0 0.0
      %v1054 = vand.u32 %v257, 4294901760
      %v1055 = vsub.f32 %v257, %v1054
      %v1056 = vand.u32 %v1055, 4294901760
      %v1057 = vsub.f32 %v1055, %v1056
      %v1058 = vand.u32 %v1057, 4294901760
      %1059 = vmatmul.mubr.f32.gmra.mxu0 %v1058
      %v1060 = vpop.f32.mrf.mxu0
      %v1061 = vadd.f32 0.0, %v1060
      %v1062 = vpop.f32.mrf.mxu0
      %1063 = vmatprep.mubr.f32.mxu0 0.0
      %v1064 = vand.u32 %v258, 4294901760
      %v1065 = vsub.f32 %v258, %v1064
      %v1066 = vand.u32 %v1065, 4294901760
      %v1067 = vsub.f32 %v1065, %v1066
      %v1068 = vand.u32 %v1067, 4294901760
      %1069 = vmatmul.mubr.f32.gmra.mxu0 %v1068
      %v1070 = vpop.f32.mrf.mxu0
      %v1071 = vadd.f32 0.0, %v1070
      %v1072 = vpop.f32.mrf.mxu0
      %1073 = vdwg.mxu0
      %1074 = vmatprep.subr.mxu0 0.0
      %1075 = vmatpush1.xpose.msra.mxu0 0.0
      %1076 = vmatprep.subr.mxu0 0.0
      %1077 = vmatpush1.xpose.msra.mxu0 0.0
      %1078 = vmatprep.subr.mxu0 0.0
      %1079 = vmatpush1.xpose.msra.mxu0 0.0
      %1080 = vmatprep.subr.mxu0 0.0
      %1081 = vmatpush1.xpose.msra.mxu0 0.0
      %1082 = vmatprep.subr.mxu0 0.0
      %1083 = vmatpush1.xpose.msra.mxu0 0.0
      %1084 = vmatprep.subr.mxu0 0.0
      %1085 = vmatpush1.xpose.msra.mxu0 0.0
      %1086 = vmatprep.subr.mxu0 0.0
      %1087 = vmatpush1.xpose.msra.mxu0 0.0
      %1088 = vmatprep.subr.mxu0 0.0
      %1089 = vmatpush1.xpose.msra.mxu0 0.0
      %1090 = vmatprep.subr.mxu0 0.0
      %1091 = vmatpush1.xpose.msra.mxu0 0.0
      %1092 = vmatprep.subr.mxu0 0.0
      %1093 = vmatpush1.xpose.msra.mxu0 0.0
      %1094 = vmatprep.subr.mxu0 0.0
      %1095 = vmatpush1.xpose.msra.mxu0 0.0
      %1096 = vmatprep.subr.mxu0 0.0
      %1097 = vmatpush1.xpose.msra.mxu0 0.0
      %1098 = vmatprep.subr.mxu0 0.0
      %v1099 = vand.u32 %v974, 4294901760
      %v1100 = vsub.f32 %v974, %v1099
      %v1101 = vand.u32 %v1100, 4294901760
      %v1102 = vsub.f32 %v1100, %v1101
      %v1103 = vand.u32 %v1102, 4294901760
      %1104 = vmatpush1.xpose.msra.mxu0 %v1103
      %1105 = vmatprep.subr.mxu0 0.0
      %v1106 = vand.u32 %v973, 4294901760
      %v1107 = vsub.f32 %v973, %v1106
      %v1108 = vand.u32 %v1107, 4294901760
      %v1109 = vsub.f32 %v1107, %v1108
      %v1110 = vand.u32 %v1109, 4294901760
      %1111 = vmatpush1.xpose.msra.mxu0 %v1110
      %1112 = vmatprep.subr.mxu0 0.0
      %v1113 = vand.u32 %v972, 4294901760
      %v1114 = vsub.f32 %v972, %v1113
      %v1115 = vand.u32 %v1114, 4294901760
      %v1116 = vsub.f32 %v1114, %v1115
      %v1117 = vand.u32 %v1116, 4294901760
      %1118 = vmatpush1.xpose.msra.mxu0 %v1117
      %1119 = vmatprep.subr.mxu0 0.0
      %v1120 = vand.u32 %v971, 4294901760
      %v1121 = vsub.f32 %v971, %v1120
      %v1122 = vand.u32 %v1121, 4294901760
      %v1123 = vsub.f32 %v1121, %v1122
      %v1124 = vand.u32 %v1123, 4294901760
      %1125 = vmatpush1.xpose.msra.mxu0 %v1124
      %1126 = vmatprep.subr.mxu0 0.0
      %1127 = vmatpush2.xpose.msra.mxu0 0.0
      %1128 = vmatprep.subr.mxu0 0.0
      %1129 = vmatpush2.xpose.msra.mxu0 0.0
      %1130 = vmatprep.subr.mxu0 0.0
      %1131 = vmatpush2.xpose.msra.mxu0 0.0
      %1132 = vmatprep.subr.mxu0 0.0
      %1133 = vmatpush2.xpose.msra.mxu0 0.0
      %1134 = vmatprep.subr.mxu0 0.0
      %1135 = vmatpush2.xpose.msra.mxu0 0.0
      %1136 = vmatprep.subr.mxu0 0.0
      %1137 = vmatpush2.xpose.msra.mxu0 0.0
      %1138 = vmatprep.subr.mxu0 0.0
      %1139 = vmatpush2.xpose.msra.mxu0 0.0
      %1140 = vmatprep.subr.mxu0 0.0
      %1141 = vmatpush2.xpose.msra.mxu0 0.0
      %1142 = vmatprep.subr.mxu0 0.0
      %1143 = vmatpush2.xpose.msra.mxu0 0.0
      %1144 = vmatprep.subr.mxu0 0.0
      %1145 = vmatpush2.xpose.msra.mxu0 0.0
      %1146 = vmatprep.subr.mxu0 0.0
      %1147 = vmatpush2.xpose.msra.mxu0 0.0
      %1148 = vmatprep.subr.mxu0 0.0
      %1149 = vmatpush2.xpose.msra.mxu0 0.0
      %1150 = vmatprep.subr.mxu0 0.0
      %1151 = vmatpush2.xpose.msra.mxu0 0.0
      %1152 = vmatprep.subr.mxu0 0.0
      %1153 = vmatpush2.xpose.msra.mxu0 0.0
      %1154 = vmatprep.subr.mxu0 0.0
      %1155 = vmatpush2.xpose.msra.mxu0 0.0
      %1156 = vmatprep.subr.mxu0 0.0
      %1157 = vmatpush2.xpose.msra.mxu0 0.0
      %1158 = vmatprep.mubr.f32.mxu0 0.0
      %v1159 = vand.u32 %v256, 4294901760
      %1160 = vmatmul.mubr.f32.gmra.mxu0 %v1159
      %v1161 = vpop.f32.mrf.mxu0
      %v1162 = vadd.f32 %v1051, %v1161
      %v1163 = vpop.f32.mrf.mxu0
      %1164 = vmatprep.mubr.f32.mxu0 0.0
      %v1165 = vand.u32 %v257, 4294901760
      %1166 = vmatmul.mubr.f32.gmra.mxu0 %v1165
      %v1167 = vpop.f32.mrf.mxu0
      %v1168 = vadd.f32 %v1061, %v1167
      %v1169 = vpop.f32.mrf.mxu0
      %1170 = vmatprep.mubr.f32.mxu0 0.0
      %v1171 = vand.u32 %v258, 4294901760
      %1172 = vmatmul.mubr.f32.gmra.mxu0 %v1171
      %v1173 = vpop.f32.mrf.mxu0
      %v1174 = vadd.f32 %v1071, %v1173
      %v1175 = vpop.f32.mrf.mxu0
      %1176 = vdwg.mxu0
      %1177 = vmatprep.subr.mxu0 0.0
      %1178 = vmatpush1.xpose.msra.mxu0 0.0
      %1179 = vmatprep.subr.mxu0 0.0
      %1180 = vmatpush1.xpose.msra.mxu0 0.0
      %1181 = vmatprep.subr.mxu0 0.0
      %1182 = vmatpush1.xpose.msra.mxu0 0.0
      %1183 = vmatprep.subr.mxu0 0.0
      %1184 = vmatpush1.xpose.msra.mxu0 0.0
      %1185 = vmatprep.subr.mxu0 0.0
      %1186 = vmatpush1.xpose.msra.mxu0 0.0
      %1187 = vmatprep.subr.mxu0 0.0
      %1188 = vmatpush1.xpose.msra.mxu0 0.0
      %1189 = vmatprep.subr.mxu0 0.0
      %1190 = vmatpush1.xpose.msra.mxu0 0.0
      %1191 = vmatprep.subr.mxu0 0.0
      %1192 = vmatpush1.xpose.msra.mxu0 0.0
      %1193 = vmatprep.subr.mxu0 0.0
      %1194 = vmatpush1.xpose.msra.mxu0 0.0
      %1195 = vmatprep.subr.mxu0 0.0
      %1196 = vmatpush1.xpose.msra.mxu0 0.0
      %1197 = vmatprep.subr.mxu0 0.0
      %1198 = vmatpush1.xpose.msra.mxu0 0.0
      %1199 = vmatprep.subr.mxu0 0.0
      %1200 = vmatpush1.xpose.msra.mxu0 0.0
      %1201 = vmatprep.subr.mxu0 0.0
      %v1202 = vand.u32 %v974, 4294901760
      %v1203 = vsub.f32 %v974, %v1202
      %1204 = vmatpush1.xpose.msra.mxu0 %v1203
      %1205 = vmatprep.subr.mxu0 0.0
      %v1206 = vand.u32 %v973, 4294901760
      %v1207 = vsub.f32 %v973, %v1206
      %1208 = vmatpush1.xpose.msra.mxu0 %v1207
      %1209 = vmatprep.subr.mxu0 0.0
      %v1210 = vand.u32 %v972, 4294901760
      %v1211 = vsub.f32 %v972, %v1210
      %1212 = vmatpush1.xpose.msra.mxu0 %v1211
      %1213 = vmatprep.subr.mxu0 0.0
      %v1214 = vand.u32 %v971, 4294901760
      %v1215 = vsub.f32 %v971, %v1214
      %1216 = vmatpush1.xpose.msra.mxu0 %v1215
      %1217 = vmatprep.subr.mxu0 0.0
      %1218 = vmatpush2.xpose.msra.mxu0 0.0
      %1219 = vmatprep.subr.mxu0 0.0
      %1220 = vmatpush2.xpose.msra.mxu0 0.0
      %1221 = vmatprep.subr.mxu0 0.0
      %1222 = vmatpush2.xpose.msra.mxu0 0.0
      %1223 = vmatprep.subr.mxu0 0.0
      %1224 = vmatpush2.xpose.msra.mxu0 0.0
      %1225 = vmatprep.subr.mxu0 0.0
      %1226 = vmatpush2.xpose.msra.mxu0 0.0
      %1227 = vmatprep.subr.mxu0 0.0
      %1228 = vmatpush2.xpose.msra.mxu0 0.0
      %1229 = vmatprep.subr.mxu0 0.0
      %1230 = vmatpush2.xpose.msra.mxu0 0.0
      %1231 = vmatprep.subr.mxu0 0.0
      %1232 = vmatpush2.xpose.msra.mxu0 0.0
      %1233 = vmatprep.subr.mxu0 0.0
      %1234 = vmatpush2.xpose.msra.mxu0 0.0
      %1235 = vmatprep.subr.mxu0 0.0
      %1236 = vmatpush2.xpose.msra.mxu0 0.0
      %1237 = vmatprep.subr.mxu0 0.0
      %1238 = vmatpush2.xpose.msra.mxu0 0.0
      %1239 = vmatprep.subr.mxu0 0.0
      %1240 = vmatpush2.xpose.msra.mxu0 0.0
      %1241 = vmatprep.subr.mxu0 0.0
      %1242 = vmatpush2.xpose.msra.mxu0 0.0
      %1243 = vmatprep.subr.mxu0 0.0
      %1244 = vmatpush2.xpose.msra.mxu0 0.0
      %1245 = vmatprep.subr.mxu0 0.0
      %1246 = vmatpush2.xpose.msra.mxu0 0.0
      %1247 = vmatprep.subr.mxu0 0.0
      %1248 = vmatpush2.xpose.msra.mxu0 0.0
      %1249 = vmatprep.mubr.f32.mxu0 0.0
      %v1250 = vand.u32 %v256, 4294901760
      %v1251 = vsub.f32 %v256, %v1250
      %1252 = vmatmul.mubr.f32.gmra.mxu0 %v1251
      %v1253 = vpop.f32.mrf.mxu0
      %v1254 = vadd.f32 %v1162, %v1253
      %v1255 = vpop.f32.mrf.mxu0
      %1256 = vmatprep.mubr.f32.mxu0 0.0
      %v1257 = vand.u32 %v257, 4294901760
      %v1258 = vsub.f32 %v257, %v1257
      %1259 = vmatmul.mubr.f32.gmra.mxu0 %v1258
      %v1260 = vpop.f32.mrf.mxu0
      %v1261 = vadd.f32 %v1168, %v1260
      %v1262 = vpop.f32.mrf.mxu0
      %1263 = vmatprep.mubr.f32.mxu0 0.0
      %v1264 = vand.u32 %v258, 4294901760
      %v1265 = vsub.f32 %v258, %v1264
      %1266 = vmatmul.mubr.f32.gmra.mxu0 %v1265
      %v1267 = vpop.f32.mrf.mxu0
      %v1268 = vadd.f32 %v1174, %v1267
      %v1269 = vpop.f32.mrf.mxu0
      %1270 = vdwg.mxu0
      %1271 = vmatprep.subr.mxu0 0.0
      %1272 = vmatpush1.xpose.msra.mxu0 0.0
      %1273 = vmatprep.subr.mxu0 0.0
      %1274 = vmatpush1.xpose.msra.mxu0 0.0
      %1275 = vmatprep.subr.mxu0 0.0
      %1276 = vmatpush1.xpose.msra.mxu0 0.0
      %1277 = vmatprep.subr.mxu0 0.0
      %1278 = vmatpush1.xpose.msra.mxu0 0.0
      %1279 = vmatprep.subr.mxu0 0.0
      %1280 = vmatpush1.xpose.msra.mxu0 0.0
      %1281 = vmatprep.subr.mxu0 0.0
      %1282 = vmatpush1.xpose.msra.mxu0 0.0
      %1283 = vmatprep.subr.mxu0 0.0
      %1284 = vmatpush1.xpose.msra.mxu0 0.0
      %1285 = vmatprep.subr.mxu0 0.0
      %1286 = vmatpush1.xpose.msra.mxu0 0.0
      %1287 = vmatprep.subr.mxu0 0.0
      %1288 = vmatpush1.xpose.msra.mxu0 0.0
      %1289 = vmatprep.subr.mxu0 0.0
      %1290 = vmatpush1.xpose.msra.mxu0 0.0
      %1291 = vmatprep.subr.mxu0 0.0
      %1292 = vmatpush1.xpose.msra.mxu0 0.0
      %1293 = vmatprep.subr.mxu0 0.0
      %1294 = vmatpush1.xpose.msra.mxu0 0.0
      %1295 = vmatprep.subr.mxu0 0.0
      %v1296 = vand.u32 %v974, 4294901760
      %1297 = vmatpush1.xpose.msra.mxu0 %v1296
      %1298 = vmatprep.subr.mxu0 0.0
      %v1299 = vand.u32 %v973, 4294901760
      %1300 = vmatpush1.xpose.msra.mxu0 %v1299
      %1301 = vmatprep.subr.mxu0 0.0
      %v1302 = vand.u32 %v972, 4294901760
      %1303 = vmatpush1.xpose.msra.mxu0 %v1302
      %1304 = vmatprep.subr.mxu0 0.0
      %v1305 = vand.u32 %v971, 4294901760
      %1306 = vmatpush1.xpose.msra.mxu0 %v1305
      %1307 = vmatprep.subr.mxu0 0.0
      %1308 = vmatpush2.xpose.msra.mxu0 0.0
      %1309 = vmatprep.subr.mxu0 0.0
      %1310 = vmatpush2.xpose.msra.mxu0 0.0
      %1311 = vmatprep.subr.mxu0 0.0
      %1312 = vmatpush2.xpose.msra.mxu0 0.0
      %1313 = vmatprep.subr.mxu0 0.0
      %1314 = vmatpush2.xpose.msra.mxu0 0.0
      %1315 = vmatprep.subr.mxu0 0.0
      %1316 = vmatpush2.xpose.msra.mxu0 0.0
      %1317 = vmatprep.subr.mxu0 0.0
      %1318 = vmatpush2.xpose.msra.mxu0 0.0
      %1319 = vmatprep.subr.mxu0 0.0
      %1320 = vmatpush2.xpose.msra.mxu0 0.0
      %1321 = vmatprep.subr.mxu0 0.0
      %1322 = vmatpush2.xpose.msra.mxu0 0.0
      %1323 = vmatprep.subr.mxu0 0.0
      %1324 = vmatpush2.xpose.msra.mxu0 0.0
      %1325 = vmatprep.subr.mxu0 0.0
      %1326 = vmatpush2.xpose.msra.mxu0 0.0
      %1327 = vmatprep.subr.mxu0 0.0
      %1328 = vmatpush2.xpose.msra.mxu0 0.0
      %1329 = vmatprep.subr.mxu0 0.0
      %1330 = vmatpush2.xpose.msra.mxu0 0.0
      %1331 = vmatprep.subr.mxu0 0.0
      %1332 = vmatpush2.xpose.msra.mxu0 0.0
      %1333 = vmatprep.subr.mxu0 0.0
      %1334 = vmatpush2.xpose.msra.mxu0 0.0
      %1335 = vmatprep.subr.mxu0 0.0
      %1336 = vmatpush2.xpose.msra.mxu0 0.0
      %1337 = vmatprep.subr.mxu0 0.0
      %1338 = vmatpush2.xpose.msra.mxu0 0.0
      %1339 = vmatprep.mubr.f32.mxu0 0.0
      %v1340 = vand.u32 %v256, 4294901760
      %v1341 = vsub.f32 %v256, %v1340
      %v1342 = vand.u32 %v1341, 4294901760
      %1343 = vmatmul.mubr.f32.gmra.mxu0 %v1342
      %v1344 = vpop.f32.mrf.mxu0
      %v1345 = vadd.f32 %v1254, %v1344
      %v1346 = vpop.f32.mrf.mxu0
      %1347 = vmatprep.mubr.f32.mxu0 0.0
      %v1348 = vand.u32 %v257, 4294901760
      %v1349 = vsub.f32 %v257, %v1348
      %v1350 = vand.u32 %v1349, 4294901760
      %1351 = vmatmul.mubr.f32.gmra.mxu0 %v1350
      %v1352 = vpop.f32.mrf.mxu0
      %v1353 = vadd.f32 %v1261, %v1352
      %v1354 = vpop.f32.mrf.mxu0
      %1355 = vmatprep.mubr.f32.mxu0 0.0
      %v1356 = vand.u32 %v258, 4294901760
      %v1357 = vsub.f32 %v258, %v1356
      %v1358 = vand.u32 %v1357, 4294901760
      %1359 = vmatmul.mubr.f32.gmra.mxu0 %v1358
      %v1360 = vpop.f32.mrf.mxu0
      %v1361 = vadd.f32 %v1268, %v1360
      %v1362 = vpop.f32.mrf.mxu0
      %1363 = vdwg.mxu0
      %1364 = vmatprep.subr.mxu0 0.0
      %1365 = vmatpush1.xpose.msra.mxu0 0.0
      %1366 = vmatprep.subr.mxu0 0.0
      %1367 = vmatpush1.xpose.msra.mxu0 0.0
      %1368 = vmatprep.subr.mxu0 0.0
      %1369 = vmatpush1.xpose.msra.mxu0 0.0
      %1370 = vmatprep.subr.mxu0 0.0
      %1371 = vmatpush1.xpose.msra.mxu0 0.0
      %1372 = vmatprep.subr.mxu0 0.0
      %1373 = vmatpush1.xpose.msra.mxu0 0.0
      %1374 = vmatprep.subr.mxu0 0.0
      %1375 = vmatpush1.xpose.msra.mxu0 0.0
      %1376 = vmatprep.subr.mxu0 0.0
      %1377 = vmatpush1.xpose.msra.mxu0 0.0
      %1378 = vmatprep.subr.mxu0 0.0
      %1379 = vmatpush1.xpose.msra.mxu0 0.0
      %1380 = vmatprep.subr.mxu0 0.0
      %1381 = vmatpush1.xpose.msra.mxu0 0.0
      %1382 = vmatprep.subr.mxu0 0.0
      %1383 = vmatpush1.xpose.msra.mxu0 0.0
      %1384 = vmatprep.subr.mxu0 0.0
      %1385 = vmatpush1.xpose.msra.mxu0 0.0
      %1386 = vmatprep.subr.mxu0 0.0
      %1387 = vmatpush1.xpose.msra.mxu0 0.0
      %1388 = vmatprep.subr.mxu0 0.0
      %v1389 = vand.u32 %v974, 4294901760
      %v1390 = vsub.f32 %v974, %v1389
      %v1391 = vand.u32 %v1390, 4294901760
      %1392 = vmatpush1.xpose.msra.mxu0 %v1391
      %1393 = vmatprep.subr.mxu0 0.0
      %v1394 = vand.u32 %v973, 4294901760
      %v1395 = vsub.f32 %v973, %v1394
      %v1396 = vand.u32 %v1395, 4294901760
      %1397 = vmatpush1.xpose.msra.mxu0 %v1396
      %1398 = vmatprep.subr.mxu0 0.0
      %v1399 = vand.u32 %v972, 4294901760
      %v1400 = vsub.f32 %v972, %v1399
      %v1401 = vand.u32 %v1400, 4294901760
      %1402 = vmatpush1.xpose.msra.mxu0 %v1401
      %1403 = vmatprep.subr.mxu0 0.0
      %v1404 = vand.u32 %v971, 4294901760
      %v1405 = vsub.f32 %v971, %v1404
      %v1406 = vand.u32 %v1405, 4294901760
      %1407 = vmatpush1.xpose.msra.mxu0 %v1406
      %1408 = vmatprep.subr.mxu0 0.0
      %1409 = vmatpush2.xpose.msra.mxu0 0.0
      %1410 = vmatprep.subr.mxu0 0.0
      %1411 = vmatpush2.xpose.msra.mxu0 0.0
      %1412 = vmatprep.subr.mxu0 0.0
      %1413 = vmatpush2.xpose.msra.mxu0 0.0
      %1414 = vmatprep.subr.mxu0 0.0
      %1415 = vmatpush2.xpose.msra.mxu0 0.0
      %1416 = vmatprep.subr.mxu0 0.0
      %1417 = vmatpush2.xpose.msra.mxu0 0.0
      %1418 = vmatprep.subr.mxu0 0.0
      %1419 = vmatpush2.xpose.msra.mxu0 0.0
      %1420 = vmatprep.subr.mxu0 0.0
      %1421 = vmatpush2.xpose.msra.mxu0 0.0
      %1422 = vmatprep.subr.mxu0 0.0
      %1423 = vmatpush2.xpose.msra.mxu0 0.0
      %1424 = vmatprep.subr.mxu0 0.0
      %1425 = vmatpush2.xpose.msra.mxu0 0.0
      %1426 = vmatprep.subr.mxu0 0.0
      %1427 = vmatpush2.xpose.msra.mxu0 0.0
      %1428 = vmatprep.subr.mxu0 0.0
      %1429 = vmatpush2.xpose.msra.mxu0 0.0
      %1430 = vmatprep.subr.mxu0 0.0
      %1431 = vmatpush2.xpose.msra.mxu0 0.0
      %1432 = vmatprep.subr.mxu0 0.0
      %1433 = vmatpush2.xpose.msra.mxu0 0.0
      %1434 = vmatprep.subr.mxu0 0.0
      %1435 = vmatpush2.xpose.msra.mxu0 0.0
      %1436 = vmatprep.subr.mxu0 0.0
      %1437 = vmatpush2.xpose.msra.mxu0 0.0
      %1438 = vmatprep.subr.mxu0 0.0
      %1439 = vmatpush2.xpose.msra.mxu0 0.0
      %1440 = vmatprep.mubr.f32.mxu0 0.0
      %v1441 = vand.u32 %v256, 4294901760
      %1442 = vmatmul.mubr.f32.gmra.mxu0 %v1441
      %v1443 = vpop.f32.mrf.mxu0
      %v1444 = vadd.f32 %v1345, %v1443
      %v1445 = vpop.f32.mrf.mxu0
      %1446 = vmatprep.mubr.f32.mxu0 0.0
      %v1447 = vand.u32 %v257, 4294901760
      %1448 = vmatmul.mubr.f32.gmra.mxu0 %v1447
      %v1449 = vpop.f32.mrf.mxu0
      %v1450 = vadd.f32 %v1353, %v1449
      %v1451 = vpop.f32.mrf.mxu0
      %1452 = vmatprep.mubr.f32.mxu0 0.0
      %v1453 = vand.u32 %v258, 4294901760
      %1454 = vmatmul.mubr.f32.gmra.mxu0 %v1453
      %v1455 = vpop.f32.mrf.mxu0
      %v1456 = vadd.f32 %v1361, %v1455
      %v1457 = vpop.f32.mrf.mxu0
      %1458 = vdwg.mxu0
      %1459 = vmatprep.subr.mxu0 0.0
      %1460 = vmatpush1.xpose.msra.mxu0 0.0
      %1461 = vmatprep.subr.mxu0 0.0
      %1462 = vmatpush1.xpose.msra.mxu0 0.0
      %1463 = vmatprep.subr.mxu0 0.0
      %1464 = vmatpush1.xpose.msra.mxu0 0.0
      %1465 = vmatprep.subr.mxu0 0.0
      %1466 = vmatpush1.xpose.msra.mxu0 0.0
      %1467 = vmatprep.subr.mxu0 0.0
      %1468 = vmatpush1.xpose.msra.mxu0 0.0
      %1469 = vmatprep.subr.mxu0 0.0
      %1470 = vmatpush1.xpose.msra.mxu0 0.0
      %1471 = vmatprep.subr.mxu0 0.0
      %1472 = vmatpush1.xpose.msra.mxu0 0.0
      %1473 = vmatprep.subr.mxu0 0.0
      %1474 = vmatpush1.xpose.msra.mxu0 0.0
      %1475 = vmatprep.subr.mxu0 0.0
      %1476 = vmatpush1.xpose.msra.mxu0 0.0
      %1477 = vmatprep.subr.mxu0 0.0
      %1478 = vmatpush1.xpose.msra.mxu0 0.0
      %1479 = vmatprep.subr.mxu0 0.0
      %1480 = vmatpush1.xpose.msra.mxu0 0.0
      %1481 = vmatprep.subr.mxu0 0.0
      %1482 = vmatpush1.xpose.msra.mxu0 0.0
      %1483 = vmatprep.subr.mxu0 0.0
      %v1484 = vand.u32 %v974, 4294901760
      %1485 = vmatpush1.xpose.msra.mxu0 %v1484
      %1486 = vmatprep.subr.mxu0 0.0
      %v1487 = vand.u32 %v973, 4294901760
      %1488 = vmatpush1.xpose.msra.mxu0 %v1487
      %1489 = vmatprep.subr.mxu0 0.0
      %v1490 = vand.u32 %v972, 4294901760
      %1491 = vmatpush1.xpose.msra.mxu0 %v1490
      %1492 = vmatprep.subr.mxu0 0.0
      %v1493 = vand.u32 %v971, 4294901760
      %1494 = vmatpush1.xpose.msra.mxu0 %v1493
      %1495 = vmatprep.subr.mxu0 0.0
      %1496 = vmatpush2.xpose.msra.mxu0 0.0
      %1497 = vmatprep.subr.mxu0 0.0
      %1498 = vmatpush2.xpose.msra.mxu0 0.0
      %1499 = vmatprep.subr.mxu0 0.0
      %1500 = vmatpush2.xpose.msra.mxu0 0.0
      %1501 = vmatprep.subr.mxu0 0.0
      %1502 = vmatpush2.xpose.msra.mxu0 0.0
      %1503 = vmatprep.subr.mxu0 0.0
      %1504 = vmatpush2.xpose.msra.mxu0 0.0
      %1505 = vmatprep.subr.mxu0 0.0
      %1506 = vmatpush2.xpose.msra.mxu0 0.0
      %1507 = vmatprep.subr.mxu0 0.0
      %1508 = vmatpush2.xpose.msra.mxu0 0.0
      %1509 = vmatprep.subr.mxu0 0.0
      %1510 = vmatpush2.xpose.msra.mxu0 0.0
      %1511 = vmatprep.subr.mxu0 0.0
      %1512 = vmatpush2.xpose.msra.mxu0 0.0
      %1513 = vmatprep.subr.mxu0 0.0
      %1514 = vmatpush2.xpose.msra.mxu0 0.0
      %1515 = vmatprep.subr.mxu0 0.0
      %1516 = vmatpush2.xpose.msra.mxu0 0.0
      %1517 = vmatprep.subr.mxu0 0.0
      %1518 = vmatpush2.xpose.msra.mxu0 0.0
      %1519 = vmatprep.subr.mxu0 0.0
      %1520 = vmatpush2.xpose.msra.mxu0 0.0
      %1521 = vmatprep.subr.mxu0 0.0
      %1522 = vmatpush2.xpose.msra.mxu0 0.0
      %1523 = vmatprep.subr.mxu0 0.0
      %1524 = vmatpush2.xpose.msra.mxu0 0.0
      %1525 = vmatprep.subr.mxu0 0.0
      %1526 = vmatpush2.xpose.msra.mxu0 0.0
      %1527 = vmatprep.mubr.f32.mxu0 0.0
      %v1528 = vand.u32 %v256, 4294901760
      %1529 = vmatmul.mubr.f32.gmra.mxu0 %v1528
      %v1530 = vpop.f32.mrf.mxu0
      %v1531 = vadd.f32 %v1444, %v1530
      %v1532 = vpop.f32.mrf.mxu0
      %1533 = vmatprep.mubr.f32.mxu0 0.0
      %v1534 = vand.u32 %v257, 4294901760
      %1535 = vmatmul.mubr.f32.gmra.mxu0 %v1534
      %v1536 = vpop.f32.mrf.mxu0
      %v1537 = vadd.f32 %v1450, %v1536
      %v1538 = vpop.f32.mrf.mxu0
      %1539 = vmatprep.mubr.f32.mxu0 0.0
      %v1540 = vand.u32 %v258, 4294901760
      %1541 = vmatmul.mubr.f32.gmra.mxu0 %v1540
      %v1542 = vpop.f32.mrf.mxu0
      %v1543 = vadd.f32 %v1456, %v1542
      %v1544 = vpop.f32.mrf.mxu0
      %1545 = vdwg.mxu0
      %v1546 = vadd.f32 %v1531, 0.0
      %v1547 = vadd.f32 %v1537, 0.0
      %v1548 = vadd.f32 %v1543, 0.0
      %v1549 = vsel %vm963, 1e+30, %v935
      %v1550 = vsel %vm964, 1e+30, %v936
      %v1551 = vsel %vm965, 1e+30, %v937
      %v1552 = vsel %vm966, 1e+30, %v938
      %1553 = vmin.xlane.f32.xlu0 %v1549
      %v1554 = vpop.xlane.xlu0 %1553
      %1555 = vmin.xlane.f32.xlu0 %v1550
      %v1556 = vpop.xlane.xlu0 %1555
      %1557 = vmin.xlane.f32.xlu0 %v1551
      %v1558 = vpop.xlane.xlu0 %1557
      %1559 = vmin.xlane.f32.xlu0 %v1552
      %v1560 = vpop.xlane.xlu0 %1559
      %vm1561 = vcmp.eq.f32.partialorder %v1549, %v1554
      %vm1562 = vcmp.eq.f32.partialorder %v1550, %v1556
      %vm1563 = vcmp.eq.f32.partialorder %v1551, %v1558
      %vm1564 = vcmp.eq.f32.partialorder %v1552, %v1560
      %v1565 = vsel %vm1561, %v261, 128.0
      %v1566 = vsel %vm1562, %v261, 128.0
      %v1567 = vsel %vm1563, %v261, 128.0
      %v1568 = vsel %vm1564, %v261, 128.0
      %1569 = vmin.xlane.f32.xlu0 %v1565
      %v1570 = vpop.xlane.xlu0 %1569
      %1571 = vmin.xlane.f32.xlu0 %v1566
      %v1572 = vpop.xlane.xlu0 %1571
      %1573 = vmin.xlane.f32.xlu0 %v1567
      %v1574 = vpop.xlane.xlu0 %1573
      %1575 = vmin.xlane.f32.xlu0 %v1568
      %v1576 = vpop.xlane.xlu0 %1575
      %vm1577 = vcmp.eq.f32.partialorder %v261, %v1570
      %vm1578 = vcmp.eq.f32.partialorder %v261, %v1572
      %vm1579 = vcmp.eq.f32.partialorder %v261, %v1574
      %vm1580 = vcmp.eq.f32.partialorder %v261, %v1576
      %v1581 = vsel %vm1577, 1, 0
      %v1582 = vsel %vm1578, 1, 0
      %v1583 = vsel %vm1579, 1, 0
      %v1584 = vsel %vm1580, 1, 0
      %v1585 = vcvt.s32.f32 %v1581
      %v1586 = vcvt.s32.f32 %v1582
      %v1587 = vcvt.s32.f32 %v1583
      %v1588 = vcvt.s32.f32 %v1584
      %1589 = vmatprep.subr.mxu0 0.0
      %1590 = vmatpush1.xpose.msra.mxu0 0.0
      %1591 = vmatprep.subr.mxu0 0.0
      %1592 = vmatpush1.xpose.msra.mxu0 0.0
      %1593 = vmatprep.subr.mxu0 0.0
      %1594 = vmatpush1.xpose.msra.mxu0 0.0
      %1595 = vmatprep.subr.mxu0 0.0
      %1596 = vmatpush1.xpose.msra.mxu0 0.0
      %1597 = vmatprep.subr.mxu0 0.0
      %1598 = vmatpush1.xpose.msra.mxu0 0.0
      %1599 = vmatprep.subr.mxu0 0.0
      %1600 = vmatpush1.xpose.msra.mxu0 0.0
      %1601 = vmatprep.subr.mxu0 0.0
      %1602 = vmatpush1.xpose.msra.mxu0 0.0
      %1603 = vmatprep.subr.mxu0 0.0
      %1604 = vmatpush1.xpose.msra.mxu0 0.0
      %1605 = vmatprep.subr.mxu0 0.0
      %1606 = vmatpush1.xpose.msra.mxu0 0.0
      %1607 = vmatprep.subr.mxu0 0.0
      %1608 = vmatpush1.xpose.msra.mxu0 0.0
      %1609 = vmatprep.subr.mxu0 0.0
      %1610 = vmatpush1.xpose.msra.mxu0 0.0
      %1611 = vmatprep.subr.mxu0 0.0
      %1612 = vmatpush1.xpose.msra.mxu0 0.0
      %1613 = vmatprep.subr.mxu0 0.0
      %v1614 = vand.u32 %v1588, 4294901760
      %1615 = vmatpush1.xpose.msra.mxu0 %v1614
      %1616 = vmatprep.subr.mxu0 0.0
      %v1617 = vand.u32 %v1587, 4294901760
      %1618 = vmatpush1.xpose.msra.mxu0 %v1617
      %1619 = vmatprep.subr.mxu0 0.0
      %v1620 = vand.u32 %v1586, 4294901760
      %1621 = vmatpush1.xpose.msra.mxu0 %v1620
      %1622 = vmatprep.subr.mxu0 0.0
      %v1623 = vand.u32 %v1585, 4294901760
      %1624 = vmatpush1.xpose.msra.mxu0 %v1623
      %1625 = vmatprep.subr.mxu0 0.0
      %1626 = vmatpush2.xpose.msra.mxu0 0.0
      %1627 = vmatprep.subr.mxu0 0.0
      %1628 = vmatpush2.xpose.msra.mxu0 0.0
      %1629 = vmatprep.subr.mxu0 0.0
      %1630 = vmatpush2.xpose.msra.mxu0 0.0
      %1631 = vmatprep.subr.mxu0 0.0
      %1632 = vmatpush2.xpose.msra.mxu0 0.0
      %1633 = vmatprep.subr.mxu0 0.0
      %1634 = vmatpush2.xpose.msra.mxu0 0.0
      %1635 = vmatprep.subr.mxu0 0.0
      %1636 = vmatpush2.xpose.msra.mxu0 0.0
      %1637 = vmatprep.subr.mxu0 0.0
      %1638 = vmatpush2.xpose.msra.mxu0 0.0
      %1639 = vmatprep.subr.mxu0 0.0
      %1640 = vmatpush2.xpose.msra.mxu0 0.0
      %1641 = vmatprep.subr.mxu0 0.0
      %1642 = vmatpush2.xpose.msra.mxu0 0.0
      %1643 = vmatprep.subr.mxu0 0.0
      %1644 = vmatpush2.xpose.msra.mxu0 0.0
      %1645 = vmatprep.subr.mxu0 0.0
      %1646 = vmatpush2.xpose.msra.mxu0 0.0
      %1647 = vmatprep.subr.mxu0 0.0
      %1648 = vmatpush2.xpose.msra.mxu0 0.0
      %1649 = vmatprep.subr.mxu0 0.0
      %1650 = vmatpush2.xpose.msra.mxu0 0.0
      %1651 = vmatprep.subr.mxu0 0.0
      %1652 = vmatpush2.xpose.msra.mxu0 0.0
      %1653 = vmatprep.subr.mxu0 0.0
      %1654 = vmatpush2.xpose.msra.mxu0 0.0
      %1655 = vmatprep.subr.mxu0 0.0
      %1656 = vmatpush2.xpose.msra.mxu0 0.0
      %1657 = vmatprep.mubr.f32.mxu0 0.0
      %v1658 = vand.u32 %v256, 4294901760
      %v1659 = vsub.f32 %v256, %v1658
      %v1660 = vand.u32 %v1659, 4294901760
      %v1661 = vsub.f32 %v1659, %v1660
      %v1662 = vand.u32 %v1661, 4294901760
      %1663 = vmatmul.mubr.f32.gmra.mxu0 %v1662
      %v1664 = vpop.f32.mrf.mxu0
      %v1665 = vadd.f32 0.0, %v1664
      %v1666 = vpop.f32.mrf.mxu0
      %1667 = vmatprep.mubr.f32.mxu0 0.0
      %v1668 = vand.u32 %v257, 4294901760
      %v1669 = vsub.f32 %v257, %v1668
      %v1670 = vand.u32 %v1669, 4294901760
      %v1671 = vsub.f32 %v1669, %v1670
      %v1672 = vand.u32 %v1671, 4294901760
      %1673 = vmatmul.mubr.f32.gmra.mxu0 %v1672
      %v1674 = vpop.f32.mrf.mxu0
      %v1675 = vadd.f32 0.0, %v1674
      %v1676 = vpop.f32.mrf.mxu0
      %1677 = vmatprep.mubr.f32.mxu0 0.0
      %v1678 = vand.u32 %v258, 4294901760
      %v1679 = vsub.f32 %v258, %v1678
      %v1680 = vand.u32 %v1679, 4294901760
      %v1681 = vsub.f32 %v1679, %v1680
      %v1682 = vand.u32 %v1681, 4294901760
      %1683 = vmatmul.mubr.f32.gmra.mxu0 %v1682
      %v1684 = vpop.f32.mrf.mxu0
      %v1685 = vadd.f32 0.0, %v1684
      %v1686 = vpop.f32.mrf.mxu0
      %1687 = vdwg.mxu0
      %1688 = vmatprep.subr.mxu0 0.0
      %1689 = vmatpush1.xpose.msra.mxu0 0.0
      %1690 = vmatprep.subr.mxu0 0.0
      %1691 = vmatpush1.xpose.msra.mxu0 0.0
      %1692 = vmatprep.subr.mxu0 0.0
      %1693 = vmatpush1.xpose.msra.mxu0 0.0
      %1694 = vmatprep.subr.mxu0 0.0
      %1695 = vmatpush1.xpose.msra.mxu0 0.0
      %1696 = vmatprep.subr.mxu0 0.0
      %1697 = vmatpush1.xpose.msra.mxu0 0.0
      %1698 = vmatprep.subr.mxu0 0.0
      %1699 = vmatpush1.xpose.msra.mxu0 0.0
      %1700 = vmatprep.subr.mxu0 0.0
      %1701 = vmatpush1.xpose.msra.mxu0 0.0
      %1702 = vmatprep.subr.mxu0 0.0
      %1703 = vmatpush1.xpose.msra.mxu0 0.0
      %1704 = vmatprep.subr.mxu0 0.0
      %1705 = vmatpush1.xpose.msra.mxu0 0.0
      %1706 = vmatprep.subr.mxu0 0.0
      %1707 = vmatpush1.xpose.msra.mxu0 0.0
      %1708 = vmatprep.subr.mxu0 0.0
      %1709 = vmatpush1.xpose.msra.mxu0 0.0
      %1710 = vmatprep.subr.mxu0 0.0
      %1711 = vmatpush1.xpose.msra.mxu0 0.0
      %1712 = vmatprep.subr.mxu0 0.0
      %v1713 = vand.u32 %v1588, 4294901760
      %v1714 = vsub.f32 %v1588, %v1713
      %v1715 = vand.u32 %v1714, 4294901760
      %v1716 = vsub.f32 %v1714, %v1715
      %v1717 = vand.u32 %v1716, 4294901760
      %1718 = vmatpush1.xpose.msra.mxu0 %v1717
      %1719 = vmatprep.subr.mxu0 0.0
      %v1720 = vand.u32 %v1587, 4294901760
      %v1721 = vsub.f32 %v1587, %v1720
      %v1722 = vand.u32 %v1721, 4294901760
      %v1723 = vsub.f32 %v1721, %v1722
      %v1724 = vand.u32 %v1723, 4294901760
      %1725 = vmatpush1.xpose.msra.mxu0 %v1724
      %1726 = vmatprep.subr.mxu0 0.0
      %v1727 = vand.u32 %v1586, 4294901760
      %v1728 = vsub.f32 %v1586, %v1727
      %v1729 = vand.u32 %v1728, 4294901760
      %v1730 = vsub.f32 %v1728, %v1729
      %v1731 = vand.u32 %v1730, 4294901760
      %1732 = vmatpush1.xpose.msra.mxu0 %v1731
      %1733 = vmatprep.subr.mxu0 0.0
      %v1734 = vand.u32 %v1585, 4294901760
      %v1735 = vsub.f32 %v1585, %v1734
      %v1736 = vand.u32 %v1735, 4294901760
      %v1737 = vsub.f32 %v1735, %v1736
      %v1738 = vand.u32 %v1737, 4294901760
      %1739 = vmatpush1.xpose.msra.mxu0 %v1738
      %1740 = vmatprep.subr.mxu0 0.0
      %1741 = vmatpush2.xpose.msra.mxu0 0.0
      %1742 = vmatprep.subr.mxu0 0.0
      %1743 = vmatpush2.xpose.msra.mxu0 0.0
      %1744 = vmatprep.subr.mxu0 0.0
      %1745 = vmatpush2.xpose.msra.mxu0 0.0
      %1746 = vmatprep.subr.mxu0 0.0
      %1747 = vmatpush2.xpose.msra.mxu0 0.0
      %1748 = vmatprep.subr.mxu0 0.0
      %1749 = vmatpush2.xpose.msra.mxu0 0.0
      %1750 = vmatprep.subr.mxu0 0.0
      %1751 = vmatpush2.xpose.msra.mxu0 0.0
      %1752 = vmatprep.subr.mxu0 0.0
      %1753 = vmatpush2.xpose.msra.mxu0 0.0
      %1754 = vmatprep.subr.mxu0 0.0
      %1755 = vmatpush2.xpose.msra.mxu0 0.0
      %1756 = vmatprep.subr.mxu0 0.0
      %1757 = vmatpush2.xpose.msra.mxu0 0.0
      %1758 = vmatprep.subr.mxu0 0.0
      %1759 = vmatpush2.xpose.msra.mxu0 0.0
      %1760 = vmatprep.subr.mxu0 0.0
      %1761 = vmatpush2.xpose.msra.mxu0 0.0
      %1762 = vmatprep.subr.mxu0 0.0
      %1763 = vmatpush2.xpose.msra.mxu0 0.0
      %1764 = vmatprep.subr.mxu0 0.0
      %1765 = vmatpush2.xpose.msra.mxu0 0.0
      %1766 = vmatprep.subr.mxu0 0.0
      %1767 = vmatpush2.xpose.msra.mxu0 0.0
      %1768 = vmatprep.subr.mxu0 0.0
      %1769 = vmatpush2.xpose.msra.mxu0 0.0
      %1770 = vmatprep.subr.mxu0 0.0
      %1771 = vmatpush2.xpose.msra.mxu0 0.0
      %1772 = vmatprep.mubr.f32.mxu0 0.0
      %v1773 = vand.u32 %v256, 4294901760
      %1774 = vmatmul.mubr.f32.gmra.mxu0 %v1773
      %v1775 = vpop.f32.mrf.mxu0
      %v1776 = vadd.f32 %v1665, %v1775
      %v1777 = vpop.f32.mrf.mxu0
      %1778 = vmatprep.mubr.f32.mxu0 0.0
      %v1779 = vand.u32 %v257, 4294901760
      %1780 = vmatmul.mubr.f32.gmra.mxu0 %v1779
      %v1781 = vpop.f32.mrf.mxu0
      %v1782 = vadd.f32 %v1675, %v1781
      %v1783 = vpop.f32.mrf.mxu0
      %1784 = vmatprep.mubr.f32.mxu0 0.0
      %v1785 = vand.u32 %v258, 4294901760
      %1786 = vmatmul.mubr.f32.gmra.mxu0 %v1785
      %v1787 = vpop.f32.mrf.mxu0
      %v1788 = vadd.f32 %v1685, %v1787
      %v1789 = vpop.f32.mrf.mxu0
      %1790 = vdwg.mxu0
      %1791 = vmatprep.subr.mxu0 0.0
      %1792 = vmatpush1.xpose.msra.mxu0 0.0
      %1793 = vmatprep.subr.mxu0 0.0
      %1794 = vmatpush1.xpose.msra.mxu0 0.0
      %1795 = vmatprep.subr.mxu0 0.0
      %1796 = vmatpush1.xpose.msra.mxu0 0.0
      %1797 = vmatprep.subr.mxu0 0.0
      %1798 = vmatpush1.xpose.msra.mxu0 0.0
      %1799 = vmatprep.subr.mxu0 0.0
      %1800 = vmatpush1.xpose.msra.mxu0 0.0
      %1801 = vmatprep.subr.mxu0 0.0
      %1802 = vmatpush1.xpose.msra.mxu0 0.0
      %1803 = vmatprep.subr.mxu0 0.0
      %1804 = vmatpush1.xpose.msra.mxu0 0.0
      %1805 = vmatprep.subr.mxu0 0.0
      %1806 = vmatpush1.xpose.msra.mxu0 0.0
      %1807 = vmatprep.subr.mxu0 0.0
      %1808 = vmatpush1.xpose.msra.mxu0 0.0
      %1809 = vmatprep.subr.mxu0 0.0
      %1810 = vmatpush1.xpose.msra.mxu0 0.0
      %1811 = vmatprep.subr.mxu0 0.0
      %1812 = vmatpush1.xpose.msra.mxu0 0.0
      %1813 = vmatprep.subr.mxu0 0.0
      %1814 = vmatpush1.xpose.msra.mxu0 0.0
      %1815 = vmatprep.subr.mxu0 0.0
      %v1816 = vand.u32 %v1588, 4294901760
      %v1817 = vsub.f32 %v1588, %v1816
      %1818 = vmatpush1.xpose.msra.mxu0 %v1817
      %1819 = vmatprep.subr.mxu0 0.0
      %v1820 = vand.u32 %v1587, 4294901760
      %v1821 = vsub.f32 %v1587, %v1820
      %1822 = vmatpush1.xpose.msra.mxu0 %v1821
      %1823 = vmatprep.subr.mxu0 0.0
      %v1824 = vand.u32 %v1586, 4294901760
      %v1825 = vsub.f32 %v1586, %v1824
      %1826 = vmatpush1.xpose.msra.mxu0 %v1825
      %1827 = vmatprep.subr.mxu0 0.0
      %v1828 = vand.u32 %v1585, 4294901760
      %v1829 = vsub.f32 %v1585, %v1828
      %1830 = vmatpush1.xpose.msra.mxu0 %v1829
      %1831 = vmatprep.subr.mxu0 0.0
      %1832 = vmatpush2.xpose.msra.mxu0 0.0
      %1833 = vmatprep.subr.mxu0 0.0
      %1834 = vmatpush2.xpose.msra.mxu0 0.0
      %1835 = vmatprep.subr.mxu0 0.0
      %1836 = vmatpush2.xpose.msra.mxu0 0.0
      %1837 = vmatprep.subr.mxu0 0.0
      %1838 = vmatpush2.xpose.msra.mxu0 0.0
      %1839 = vmatprep.subr.mxu0 0.0
      %1840 = vmatpush2.xpose.msra.mxu0 0.0
      %1841 = vmatprep.subr.mxu0 0.0
      %1842 = vmatpush2.xpose.msra.mxu0 0.0
      %1843 = vmatprep.subr.mxu0 0.0
      %1844 = vmatpush2.xpose.msra.mxu0 0.0
      %1845 = vmatprep.subr.mxu0 0.0
      %1846 = vmatpush2.xpose.msra.mxu0 0.0
      %1847 = vmatprep.subr.mxu0 0.0
      %1848 = vmatpush2.xpose.msra.mxu0 0.0
      %1849 = vmatprep.subr.mxu0 0.0
      %1850 = vmatpush2.xpose.msra.mxu0 0.0
      %1851 = vmatprep.subr.mxu0 0.0
      %1852 = vmatpush2.xpose.msra.mxu0 0.0
      %1853 = vmatprep.subr.mxu0 0.0
      %1854 = vmatpush2.xpose.msra.mxu0 0.0
      %1855 = vmatprep.subr.mxu0 0.0
      %1856 = vmatpush2.xpose.msra.mxu0 0.0
      %1857 = vmatprep.subr.mxu0 0.0
      %1858 = vmatpush2.xpose.msra.mxu0 0.0
      %1859 = vmatprep.subr.mxu0 0.0
      %1860 = vmatpush2.xpose.msra.mxu0 0.0
      %1861 = vmatprep.subr.mxu0 0.0
      %1862 = vmatpush2.xpose.msra.mxu0 0.0
      %1863 = vmatprep.mubr.f32.mxu0 0.0
      %v1864 = vand.u32 %v256, 4294901760
      %v1865 = vsub.f32 %v256, %v1864
      %1866 = vmatmul.mubr.f32.gmra.mxu0 %v1865
      %v1867 = vpop.f32.mrf.mxu0
      %v1868 = vadd.f32 %v1776, %v1867
      %v1869 = vpop.f32.mrf.mxu0
      %1870 = vmatprep.mubr.f32.mxu0 0.0
      %v1871 = vand.u32 %v257, 4294901760
      %v1872 = vsub.f32 %v257, %v1871
      %1873 = vmatmul.mubr.f32.gmra.mxu0 %v1872
      %v1874 = vpop.f32.mrf.mxu0
      %v1875 = vadd.f32 %v1782, %v1874
      %v1876 = vpop.f32.mrf.mxu0
      %1877 = vmatprep.mubr.f32.mxu0 0.0
      %v1878 = vand.u32 %v258, 4294901760
      %v1879 = vsub.f32 %v258, %v1878
      %1880 = vmatmul.mubr.f32.gmra.mxu0 %v1879
      %v1881 = vpop.f32.mrf.mxu0
      %v1882 = vadd.f32 %v1788, %v1881
      %v1883 = vpop.f32.mrf.mxu0
      %1884 = vdwg.mxu0
      %1885 = vmatprep.subr.mxu0 0.0
      %1886 = vmatpush1.xpose.msra.mxu0 0.0
      %1887 = vmatprep.subr.mxu0 0.0
      %1888 = vmatpush1.xpose.msra.mxu0 0.0
      %1889 = vmatprep.subr.mxu0 0.0
      %1890 = vmatpush1.xpose.msra.mxu0 0.0
      %1891 = vmatprep.subr.mxu0 0.0
      %1892 = vmatpush1.xpose.msra.mxu0 0.0
      %1893 = vmatprep.subr.mxu0 0.0
      %1894 = vmatpush1.xpose.msra.mxu0 0.0
      %1895 = vmatprep.subr.mxu0 0.0
      %1896 = vmatpush1.xpose.msra.mxu0 0.0
      %1897 = vmatprep.subr.mxu0 0.0
      %1898 = vmatpush1.xpose.msra.mxu0 0.0
      %1899 = vmatprep.subr.mxu0 0.0
      %1900 = vmatpush1.xpose.msra.mxu0 0.0
      %1901 = vmatprep.subr.mxu0 0.0
      %1902 = vmatpush1.xpose.msra.mxu0 0.0
      %1903 = vmatprep.subr.mxu0 0.0
      %1904 = vmatpush1.xpose.msra.mxu0 0.0
      %1905 = vmatprep.subr.mxu0 0.0
      %1906 = vmatpush1.xpose.msra.mxu0 0.0
      %1907 = vmatprep.subr.mxu0 0.0
      %1908 = vmatpush1.xpose.msra.mxu0 0.0
      %1909 = vmatprep.subr.mxu0 0.0
      %v1910 = vand.u32 %v1588, 4294901760
      %1911 = vmatpush1.xpose.msra.mxu0 %v1910
      %1912 = vmatprep.subr.mxu0 0.0
      %v1913 = vand.u32 %v1587, 4294901760
      %1914 = vmatpush1.xpose.msra.mxu0 %v1913
      %1915 = vmatprep.subr.mxu0 0.0
      %v1916 = vand.u32 %v1586, 4294901760
      %1917 = vmatpush1.xpose.msra.mxu0 %v1916
      %1918 = vmatprep.subr.mxu0 0.0
      %v1919 = vand.u32 %v1585, 4294901760
      %1920 = vmatpush1.xpose.msra.mxu0 %v1919
      %1921 = vmatprep.subr.mxu0 0.0
      %1922 = vmatpush2.xpose.msra.mxu0 0.0
      %1923 = vmatprep.subr.mxu0 0.0
      %1924 = vmatpush2.xpose.msra.mxu0 0.0
      %1925 = vmatprep.subr.mxu0 0.0
      %1926 = vmatpush2.xpose.msra.mxu0 0.0
      %1927 = vmatprep.subr.mxu0 0.0
      %1928 = vmatpush2.xpose.msra.mxu0 0.0
      %1929 = vmatprep.subr.mxu0 0.0
      %1930 = vmatpush2.xpose.msra.mxu0 0.0
      %1931 = vmatprep.subr.mxu0 0.0
      %1932 = vmatpush2.xpose.msra.mxu0 0.0
      %1933 = vmatprep.subr.mxu0 0.0
      %1934 = vmatpush2.xpose.msra.mxu0 0.0
      %1935 = vmatprep.subr.mxu0 0.0
      %1936 = vmatpush2.xpose.msra.mxu0 0.0
      %1937 = vmatprep.subr.mxu0 0.0
      %1938 = vmatpush2.xpose.msra.mxu0 0.0
      %1939 = vmatprep.subr.mxu0 0.0
      %1940 = vmatpush2.xpose.msra.mxu0 0.0
      %1941 = vmatprep.subr.mxu0 0.0
      %1942 = vmatpush2.xpose.msra.mxu0 0.0
      %1943 = vmatprep.subr.mxu0 0.0
      %1944 = vmatpush2.xpose.msra.mxu0 0.0
      %1945 = vmatprep.subr.mxu0 0.0
      %1946 = vmatpush2.xpose.msra.mxu0 0.0
      %1947 = vmatprep.subr.mxu0 0.0
      %1948 = vmatpush2.xpose.msra.mxu0 0.0
      %1949 = vmatprep.subr.mxu0 0.0
      %1950 = vmatpush2.xpose.msra.mxu0 0.0
      %1951 = vmatprep.subr.mxu0 0.0
      %1952 = vmatpush2.xpose.msra.mxu0 0.0
      %1953 = vmatprep.mubr.f32.mxu0 0.0
      %v1954 = vand.u32 %v256, 4294901760
      %v1955 = vsub.f32 %v256, %v1954
      %v1956 = vand.u32 %v1955, 4294901760
      %1957 = vmatmul.mubr.f32.gmra.mxu0 %v1956
      %v1958 = vpop.f32.mrf.mxu0
      %v1959 = vadd.f32 %v1868, %v1958
      %v1960 = vpop.f32.mrf.mxu0
      %1961 = vmatprep.mubr.f32.mxu0 0.0
      %v1962 = vand.u32 %v257, 4294901760
      %v1963 = vsub.f32 %v257, %v1962
      %v1964 = vand.u32 %v1963, 4294901760
      %1965 = vmatmul.mubr.f32.gmra.mxu0 %v1964
      %v1966 = vpop.f32.mrf.mxu0
      %v1967 = vadd.f32 %v1875, %v1966
      %v1968 = vpop.f32.mrf.mxu0
      %1969 = vmatprep.mubr.f32.mxu0 0.0
      %v1970 = vand.u32 %v258, 4294901760
      %v1971 = vsub.f32 %v258, %v1970
      %v1972 = vand.u32 %v1971, 4294901760
      %1973 = vmatmul.mubr.f32.gmra.mxu0 %v1972
      %v1974 = vpop.f32.mrf.mxu0
      %v1975 = vadd.f32 %v1882, %v1974
      %v1976 = vpop.f32.mrf.mxu0
      %1977 = vdwg.mxu0
      %1978 = vmatprep.subr.mxu0 0.0
      %1979 = vmatpush1.xpose.msra.mxu0 0.0
      %1980 = vmatprep.subr.mxu0 0.0
      %1981 = vmatpush1.xpose.msra.mxu0 0.0
      %1982 = vmatprep.subr.mxu0 0.0
      %1983 = vmatpush1.xpose.msra.mxu0 0.0
      %1984 = vmatprep.subr.mxu0 0.0
      %1985 = vmatpush1.xpose.msra.mxu0 0.0
      %1986 = vmatprep.subr.mxu0 0.0
      %1987 = vmatpush1.xpose.msra.mxu0 0.0
      %1988 = vmatprep.subr.mxu0 0.0
      %1989 = vmatpush1.xpose.msra.mxu0 0.0
      %1990 = vmatprep.subr.mxu0 0.0
      %1991 = vmatpush1.xpose.msra.mxu0 0.0
      %1992 = vmatprep.subr.mxu0 0.0
      %1993 = vmatpush1.xpose.msra.mxu0 0.0
      %1994 = vmatprep.subr.mxu0 0.0
      %1995 = vmatpush1.xpose.msra.mxu0 0.0
      %1996 = vmatprep.subr.mxu0 0.0
      %1997 = vmatpush1.xpose.msra.mxu0 0.0
      %1998 = vmatprep.subr.mxu0 0.0
      %1999 = vmatpush1.xpose.msra.mxu0 0.0
      %2000 = vmatprep.subr.mxu0 0.0
      %2001 = vmatpush1.xpose.msra.mxu0 0.0
      %2002 = vmatprep.subr.mxu0 0.0
      %v2003 = vand.u32 %v1588, 4294901760
      %v2004 = vsub.f32 %v1588, %v2003
      %v2005 = vand.u32 %v2004, 4294901760
      %2006 = vmatpush1.xpose.msra.mxu0 %v2005
      %2007 = vmatprep.subr.mxu0 0.0
      %v2008 = vand.u32 %v1587, 4294901760
      %v2009 = vsub.f32 %v1587, %v2008
      %v2010 = vand.u32 %v2009, 4294901760
      %2011 = vmatpush1.xpose.msra.mxu0 %v2010
      %2012 = vmatprep.subr.mxu0 0.0
      %v2013 = vand.u32 %v1586, 4294901760
      %v2014 = vsub.f32 %v1586, %v2013
      %v2015 = vand.u32 %v2014, 4294901760
      %2016 = vmatpush1.xpose.msra.mxu0 %v2015
      %2017 = vmatprep.subr.mxu0 0.0
      %v2018 = vand.u32 %v1585, 4294901760
      %v2019 = vsub.f32 %v1585, %v2018
      %v2020 = vand.u32 %v2019, 4294901760
      %2021 = vmatpush1.xpose.msra.mxu0 %v2020
      %2022 = vmatprep.subr.mxu0 0.0
      %2023 = vmatpush2.xpose.msra.mxu0 0.0
      %2024 = vmatprep.subr.mxu0 0.0
      %2025 = vmatpush2.xpose.msra.mxu0 0.0
      %2026 = vmatprep.subr.mxu0 0.0
      %2027 = vmatpush2.xpose.msra.mxu0 0.0
      %2028 = vmatprep.subr.mxu0 0.0
      %2029 = vmatpush2.xpose.msra.mxu0 0.0
      %2030 = vmatprep.subr.mxu0 0.0
      %2031 = vmatpush2.xpose.msra.mxu0 0.0
      %2032 = vmatprep.subr.mxu0 0.0
      %2033 = vmatpush2.xpose.msra.mxu0 0.0
      %2034 = vmatprep.subr.mxu0 0.0
      %2035 = vmatpush2.xpose.msra.mxu0 0.0
      %2036 = vmatprep.subr.mxu0 0.0
      %2037 = vmatpush2.xpose.msra.mxu0 0.0
      %2038 = vmatprep.subr.mxu0 0.0
      %2039 = vmatpush2.xpose.msra.mxu0 0.0
      %2040 = vmatprep.subr.mxu0 0.0
      %2041 = vmatpush2.xpose.msra.mxu0 0.0
      %2042 = vmatprep.subr.mxu0 0.0
      %2043 = vmatpush2.xpose.msra.mxu0 0.0
      %2044 = vmatprep.subr.mxu0 0.0
      %2045 = vmatpush2.xpose.msra.mxu0 0.0
      %2046 = vmatprep.subr.mxu0 0.0
      %2047 = vmatpush2.xpose.msra.mxu0 0.0
      %2048 = vmatprep.subr.mxu0 0.0
      %2049 = vmatpush2.xpose.msra.mxu0 0.0
      %2050 = vmatprep.subr.mxu0 0.0
      %2051 = vmatpush2.xpose.msra.mxu0 0.0
      %2052 = vmatprep.subr.mxu0 0.0
      %2053 = vmatpush2.xpose.msra.mxu0 0.0
      %2054 = vmatprep.mubr.f32.mxu0 0.0
      %v2055 = vand.u32 %v256, 4294901760
      %2056 = vmatmul.mubr.f32.gmra.mxu0 %v2055
      %v2057 = vpop.f32.mrf.mxu0
      %v2058 = vadd.f32 %v1959, %v2057
      %v2059 = vpop.f32.mrf.mxu0
      %2060 = vmatprep.mubr.f32.mxu0 0.0
      %v2061 = vand.u32 %v257, 4294901760
      %2062 = vmatmul.mubr.f32.gmra.mxu0 %v2061
      %v2063 = vpop.f32.mrf.mxu0
      %v2064 = vadd.f32 %v1967, %v2063
      %v2065 = vpop.f32.mrf.mxu0
      %2066 = vmatprep.mubr.f32.mxu0 0.0
      %v2067 = vand.u32 %v258, 4294901760
      %2068 = vmatmul.mubr.f32.gmra.mxu0 %v2067
      %v2069 = vpop.f32.mrf.mxu0
      %v2070 = vadd.f32 %v1975, %v2069
      %v2071 = vpop.f32.mrf.mxu0
      %2072 = vdwg.mxu0
      %2073 = vmatprep.subr.mxu0 0.0
      %2074 = vmatpush1.xpose.msra.mxu0 0.0
      %2075 = vmatprep.subr.mxu0 0.0
      %2076 = vmatpush1.xpose.msra.mxu0 0.0
      %2077 = vmatprep.subr.mxu0 0.0
      %2078 = vmatpush1.xpose.msra.mxu0 0.0
      %2079 = vmatprep.subr.mxu0 0.0
      %2080 = vmatpush1.xpose.msra.mxu0 0.0
      %2081 = vmatprep.subr.mxu0 0.0
      %2082 = vmatpush1.xpose.msra.mxu0 0.0
      %2083 = vmatprep.subr.mxu0 0.0
      %2084 = vmatpush1.xpose.msra.mxu0 0.0
      %2085 = vmatprep.subr.mxu0 0.0
      %2086 = vmatpush1.xpose.msra.mxu0 0.0
      %2087 = vmatprep.subr.mxu0 0.0
      %2088 = vmatpush1.xpose.msra.mxu0 0.0
      %2089 = vmatprep.subr.mxu0 0.0
      %2090 = vmatpush1.xpose.msra.mxu0 0.0
      %2091 = vmatprep.subr.mxu0 0.0
      %2092 = vmatpush1.xpose.msra.mxu0 0.0
      %2093 = vmatprep.subr.mxu0 0.0
      %2094 = vmatpush1.xpose.msra.mxu0 0.0
      %2095 = vmatprep.subr.mxu0 0.0
      %2096 = vmatpush1.xpose.msra.mxu0 0.0
      %2097 = vmatprep.subr.mxu0 0.0
      %v2098 = vand.u32 %v1588, 4294901760
      %2099 = vmatpush1.xpose.msra.mxu0 %v2098
      %2100 = vmatprep.subr.mxu0 0.0
      %v2101 = vand.u32 %v1587, 4294901760
      %2102 = vmatpush1.xpose.msra.mxu0 %v2101
      %2103 = vmatprep.subr.mxu0 0.0
      %v2104 = vand.u32 %v1586, 4294901760
      %2105 = vmatpush1.xpose.msra.mxu0 %v2104
      %2106 = vmatprep.subr.mxu0 0.0
      %v2107 = vand.u32 %v1585, 4294901760
      %2108 = vmatpush1.xpose.msra.mxu0 %v2107
      %2109 = vmatprep.subr.mxu0 0.0
      %2110 = vmatpush2.xpose.msra.mxu0 0.0
      %2111 = vmatprep.subr.mxu0 0.0
      %2112 = vmatpush2.xpose.msra.mxu0 0.0
      %2113 = vmatprep.subr.mxu0 0.0
      %2114 = vmatpush2.xpose.msra.mxu0 0.0
      %2115 = vmatprep.subr.mxu0 0.0
      %2116 = vmatpush2.xpose.msra.mxu0 0.0
      %2117 = vmatprep.subr.mxu0 0.0
      %2118 = vmatpush2.xpose.msra.mxu0 0.0
      %2119 = vmatprep.subr.mxu0 0.0
      %2120 = vmatpush2.xpose.msra.mxu0 0.0
      %2121 = vmatprep.subr.mxu0 0.0
      %2122 = vmatpush2.xpose.msra.mxu0 0.0
      %2123 = vmatprep.subr.mxu0 0.0
      %2124 = vmatpush2.xpose.msra.mxu0 0.0
      %2125 = vmatprep.subr.mxu0 0.0
      %2126 = vmatpush2.xpose.msra.mxu0 0.0
      %2127 = vmatprep.subr.mxu0 0.0
      %2128 = vmatpush2.xpose.msra.mxu0 0.0
      %2129 = vmatprep.subr.mxu0 0.0
      %2130 = vmatpush2.xpose.msra.mxu0 0.0
      %2131 = vmatprep.subr.mxu0 0.0
      %2132 = vmatpush2.xpose.msra.mxu0 0.0
      %2133 = vmatprep.subr.mxu0 0.0
      %2134 = vmatpush2.xpose.msra.mxu0 0.0
      %2135 = vmatprep.subr.mxu0 0.0
      %2136 = vmatpush2.xpose.msra.mxu0 0.0
      %2137 = vmatprep.subr.mxu0 0.0
      %2138 = vmatpush2.xpose.msra.mxu0 0.0
      %2139 = vmatprep.subr.mxu0 0.0
      %2140 = vmatpush2.xpose.msra.mxu0 0.0
      %2141 = vmatprep.mubr.f32.mxu0 0.0
      %v2142 = vand.u32 %v256, 4294901760
      %2143 = vmatmul.mubr.f32.gmra.mxu0 %v2142
      %v2144 = vpop.f32.mrf.mxu0
      %v2145 = vadd.f32 %v2058, %v2144
      %v2146 = vpop.f32.mrf.mxu0
      %2147 = vmatprep.mubr.f32.mxu0 0.0
      %v2148 = vand.u32 %v257, 4294901760
      %2149 = vmatmul.mubr.f32.gmra.mxu0 %v2148
      %v2150 = vpop.f32.mrf.mxu0
      %v2151 = vadd.f32 %v2064, %v2150
      %v2152 = vpop.f32.mrf.mxu0
      %2153 = vmatprep.mubr.f32.mxu0 0.0
      %v2154 = vand.u32 %v258, 4294901760
      %2155 = vmatmul.mubr.f32.gmra.mxu0 %v2154
      %v2156 = vpop.f32.mrf.mxu0
      %v2157 = vadd.f32 %v2070, %v2156
      %v2158 = vpop.f32.mrf.mxu0
      %2159 = vdwg.mxu0
      %v2160 = vadd.f32 %v1546, %v2145
      %v2161 = vadd.f32 %v1547, %v2151
      %v2162 = vadd.f32 %v1548, %v2157
      %v2163 = vsel %vm1577, 1e+30, %v1549
      %v2164 = vsel %vm1578, 1e+30, %v1550
      %v2165 = vsel %vm1579, 1e+30, %v1551
      %v2166 = vsel %vm1580, 1e+30, %v1552
      %2167 = vmin.xlane.f32.xlu0 %v2163
      %v2168 = vpop.xlane.xlu0 %2167
      %2169 = vmin.xlane.f32.xlu0 %v2164
      %v2170 = vpop.xlane.xlu0 %2169
      %2171 = vmin.xlane.f32.xlu0 %v2165
      %v2172 = vpop.xlane.xlu0 %2171
      %2173 = vmin.xlane.f32.xlu0 %v2166
      %v2174 = vpop.xlane.xlu0 %2173
      %vm2175 = vcmp.eq.f32.partialorder %v2163, %v2168
      %vm2176 = vcmp.eq.f32.partialorder %v2164, %v2170
      %vm2177 = vcmp.eq.f32.partialorder %v2165, %v2172
      %vm2178 = vcmp.eq.f32.partialorder %v2166, %v2174
      %v2179 = vsel %vm2175, %v261, 128.0
      %v2180 = vsel %vm2176, %v261, 128.0
      %v2181 = vsel %vm2177, %v261, 128.0
      %v2182 = vsel %vm2178, %v261, 128.0
      %2183 = vmin.xlane.f32.xlu0 %v2179
      %v2184 = vpop.xlane.xlu0 %2183
      %2185 = vmin.xlane.f32.xlu0 %v2180
      %v2186 = vpop.xlane.xlu0 %2185
      %2187 = vmin.xlane.f32.xlu0 %v2181
      %v2188 = vpop.xlane.xlu0 %2187
      %2189 = vmin.xlane.f32.xlu0 %v2182
      %v2190 = vpop.xlane.xlu0 %2189
      %vm2191 = vcmp.eq.f32.partialorder %v261, %v2184
      %vm2192 = vcmp.eq.f32.partialorder %v261, %v2186
      %vm2193 = vcmp.eq.f32.partialorder %v261, %v2188
      %vm2194 = vcmp.eq.f32.partialorder %v261, %v2190
      %v2195 = vsel %vm2191, 1, 0
      %v2196 = vsel %vm2192, 1, 0
      %v2197 = vsel %vm2193, 1, 0
      %v2198 = vsel %vm2194, 1, 0
      %v2199 = vcvt.s32.f32 %v2195
      %v2200 = vcvt.s32.f32 %v2196
      %v2201 = vcvt.s32.f32 %v2197
      %v2202 = vcvt.s32.f32 %v2198
      %2203 = vmatprep.subr.mxu0 0.0
      %2204 = vmatpush1.xpose.msra.mxu0 0.0
      %2205 = vmatprep.subr.mxu0 0.0
      %2206 = vmatpush1.xpose.msra.mxu0 0.0
      %2207 = vmatprep.subr.mxu0 0.0
      %2208 = vmatpush1.xpose.msra.mxu0 0.0
      %2209 = vmatprep.subr.mxu0 0.0
      %2210 = vmatpush1.xpose.msra.mxu0 0.0
      %2211 = vmatprep.subr.mxu0 0.0
      %2212 = vmatpush1.xpose.msra.mxu0 0.0
      %2213 = vmatprep.subr.mxu0 0.0
      %2214 = vmatpush1.xpose.msra.mxu0 0.0
      %2215 = vmatprep.subr.mxu0 0.0
      %2216 = vmatpush1.xpose.msra.mxu0 0.0
      %2217 = vmatprep.subr.mxu0 0.0
      %2218 = vmatpush1.xpose.msra.mxu0 0.0
      %2219 = vmatprep.subr.mxu0 0.0
      %2220 = vmatpush1.xpose.msra.mxu0 0.0
      %2221 = vmatprep.subr.mxu0 0.0
      %2222 = vmatpush1.xpose.msra.mxu0 0.0
      %2223 = vmatprep.subr.mxu0 0.0
      %2224 = vmatpush1.xpose.msra.mxu0 0.0
      %2225 = vmatprep.subr.mxu0 0.0
      %2226 = vmatpush1.xpose.msra.mxu0 0.0
      %2227 = vmatprep.subr.mxu0 0.0
      %v2228 = vand.u32 %v2202, 4294901760
      %2229 = vmatpush1.xpose.msra.mxu0 %v2228
      %2230 = vmatprep.subr.mxu0 0.0
      %v2231 = vand.u32 %v2201, 4294901760
      %2232 = vmatpush1.xpose.msra.mxu0 %v2231
      %2233 = vmatprep.subr.mxu0 0.0
      %v2234 = vand.u32 %v2200, 4294901760
      %2235 = vmatpush1.xpose.msra.mxu0 %v2234
      %2236 = vmatprep.subr.mxu0 0.0
      %v2237 = vand.u32 %v2199, 4294901760
      %2238 = vmatpush1.xpose.msra.mxu0 %v2237
      %2239 = vmatprep.subr.mxu0 0.0
      %2240 = vmatpush2.xpose.msra.mxu0 0.0
      %2241 = vmatprep.subr.mxu0 0.0
      %2242 = vmatpush2.xpose.msra.mxu0 0.0
      %2243 = vmatprep.subr.mxu0 0.0
      %2244 = vmatpush2.xpose.msra.mxu0 0.0
      %2245 = vmatprep.subr.mxu0 0.0
      %2246 = vmatpush2.xpose.msra.mxu0 0.0
      %2247 = vmatprep.subr.mxu0 0.0
      %2248 = vmatpush2.xpose.msra.mxu0 0.0
      %2249 = vmatprep.subr.mxu0 0.0
      %2250 = vmatpush2.xpose.msra.mxu0 0.0
      %2251 = vmatprep.subr.mxu0 0.0
      %2252 = vmatpush2.xpose.msra.mxu0 0.0
      %2253 = vmatprep.subr.mxu0 0.0
      %2254 = vmatpush2.xpose.msra.mxu0 0.0
      %2255 = vmatprep.subr.mxu0 0.0
      %2256 = vmatpush2.xpose.msra.mxu0 0.0
      %2257 = vmatprep.subr.mxu0 0.0
      %2258 = vmatpush2.xpose.msra.mxu0 0.0
      %2259 = vmatprep.subr.mxu0 0.0
      %2260 = vmatpush2.xpose.msra.mxu0 0.0
      %2261 = vmatprep.subr.mxu0 0.0
      %2262 = vmatpush2.xpose.msra.mxu0 0.0
      %2263 = vmatprep.subr.mxu0 0.0
      %2264 = vmatpush2.xpose.msra.mxu0 0.0
      %2265 = vmatprep.subr.mxu0 0.0
      %2266 = vmatpush2.xpose.msra.mxu0 0.0
      %2267 = vmatprep.subr.mxu0 0.0
      %2268 = vmatpush2.xpose.msra.mxu0 0.0
      %2269 = vmatprep.subr.mxu0 0.0
      %2270 = vmatpush2.xpose.msra.mxu0 0.0
      %2271 = vmatprep.mubr.f32.mxu0 0.0
      %v2272 = vand.u32 %v256, 4294901760
      %v2273 = vsub.f32 %v256, %v2272
      %v2274 = vand.u32 %v2273, 4294901760
      %v2275 = vsub.f32 %v2273, %v2274
      %v2276 = vand.u32 %v2275, 4294901760
      %2277 = vmatmul.mubr.f32.gmra.mxu0 %v2276
      %v2278 = vpop.f32.mrf.mxu0
      %v2279 = vadd.f32 0.0, %v2278
      %v2280 = vpop.f32.mrf.mxu0
      %2281 = vmatprep.mubr.f32.mxu0 0.0
      %v2282 = vand.u32 %v257, 4294901760
      %v2283 = vsub.f32 %v257, %v2282
      %v2284 = vand.u32 %v2283, 4294901760
      %v2285 = vsub.f32 %v2283, %v2284
      %v2286 = vand.u32 %v2285, 4294901760
      %2287 = vmatmul.mubr.f32.gmra.mxu0 %v2286
      %v2288 = vpop.f32.mrf.mxu0
      %v2289 = vadd.f32 0.0, %v2288
      %v2290 = vpop.f32.mrf.mxu0
      %2291 = vmatprep.mubr.f32.mxu0 0.0
      %v2292 = vand.u32 %v258, 4294901760
      %v2293 = vsub.f32 %v258, %v2292
      %v2294 = vand.u32 %v2293, 4294901760
      %v2295 = vsub.f32 %v2293, %v2294
      %v2296 = vand.u32 %v2295, 4294901760
      %2297 = vmatmul.mubr.f32.gmra.mxu0 %v2296
      %v2298 = vpop.f32.mrf.mxu0
      %v2299 = vadd.f32 0.0, %v2298
      %v2300 = vpop.f32.mrf.mxu0
      %2301 = vdwg.mxu0
      %2302 = vmatprep.subr.mxu0 0.0
      %2303 = vmatpush1.xpose.msra.mxu0 0.0
      %2304 = vmatprep.subr.mxu0 0.0
      %2305 = vmatpush1.xpose.msra.mxu0 0.0
      %2306 = vmatprep.subr.mxu0 0.0
      %2307 = vmatpush1.xpose.msra.mxu0 0.0
      %2308 = vmatprep.subr.mxu0 0.0
      %2309 = vmatpush1.xpose.msra.mxu0 0.0
      %2310 = vmatprep.subr.mxu0 0.0
      %2311 = vmatpush1.xpose.msra.mxu0 0.0
      %2312 = vmatprep.subr.mxu0 0.0
      %2313 = vmatpush1.xpose.msra.mxu0 0.0
      %2314 = vmatprep.subr.mxu0 0.0
      %2315 = vmatpush1.xpose.msra.mxu0 0.0
      %2316 = vmatprep.subr.mxu0 0.0
      %2317 = vmatpush1.xpose.msra.mxu0 0.0
      %2318 = vmatprep.subr.mxu0 0.0
      %2319 = vmatpush1.xpose.msra.mxu0 0.0
      %2320 = vmatprep.subr.mxu0 0.0
      %2321 = vmatpush1.xpose.msra.mxu0 0.0
      %2322 = vmatprep.subr.mxu0 0.0
      %2323 = vmatpush1.xpose.msra.mxu0 0.0
      %2324 = vmatprep.subr.mxu0 0.0
      %2325 = vmatpush1.xpose.msra.mxu0 0.0
      %2326 = vmatprep.subr.mxu0 0.0
      %v2327 = vand.u32 %v2202, 4294901760
      %v2328 = vsub.f32 %v2202, %v2327
      %v2329 = vand.u32 %v2328, 4294901760
      %v2330 = vsub.f32 %v2328, %v2329
      %v2331 = vand.u32 %v2330, 4294901760
      %2332 = vmatpush1.xpose.msra.mxu0 %v2331
      %2333 = vmatprep.subr.mxu0 0.0
      %v2334 = vand.u32 %v2201, 4294901760
      %v2335 = vsub.f32 %v2201, %v2334
      %v2336 = vand.u32 %v2335, 4294901760
      %v2337 = vsub.f32 %v2335, %v2336
      %v2338 = vand.u32 %v2337, 4294901760
      %2339 = vmatpush1.xpose.msra.mxu0 %v2338
      %2340 = vmatprep.subr.mxu0 0.0
      %v2341 = vand.u32 %v2200, 4294901760
      %v2342 = vsub.f32 %v2200, %v2341
      %v2343 = vand.u32 %v2342, 4294901760
      %v2344 = vsub.f32 %v2342, %v2343
      %v2345 = vand.u32 %v2344, 4294901760
      %2346 = vmatpush1.xpose.msra.mxu0 %v2345
      %2347 = vmatprep.subr.mxu0 0.0
      %v2348 = vand.u32 %v2199, 4294901760
      %v2349 = vsub.f32 %v2199, %v2348
      %v2350 = vand.u32 %v2349, 4294901760
      %v2351 = vsub.f32 %v2349, %v2350
      %v2352 = vand.u32 %v2351, 4294901760
      %2353 = vmatpush1.xpose.msra.mxu0 %v2352
      %2354 = vmatprep.subr.mxu0 0.0
      %2355 = vmatpush2.xpose.msra.mxu0 0.0
      %2356 = vmatprep.subr.mxu0 0.0
      %2357 = vmatpush2.xpose.msra.mxu0 0.0
      %2358 = vmatprep.subr.mxu0 0.0
      %2359 = vmatpush2.xpose.msra.mxu0 0.0
      %2360 = vmatprep.subr.mxu0 0.0
      %2361 = vmatpush2.xpose.msra.mxu0 0.0
      %2362 = vmatprep.subr.mxu0 0.0
      %2363 = vmatpush2.xpose.msra.mxu0 0.0
      %2364 = vmatprep.subr.mxu0 0.0
      %2365 = vmatpush2.xpose.msra.mxu0 0.0
      %2366 = vmatprep.subr.mxu0 0.0
      %2367 = vmatpush2.xpose.msra.mxu0 0.0
      %2368 = vmatprep.subr.mxu0 0.0
      %2369 = vmatpush2.xpose.msra.mxu0 0.0
      %2370 = vmatprep.subr.mxu0 0.0
      %2371 = vmatpush2.xpose.msra.mxu0 0.0
      %2372 = vmatprep.subr.mxu0 0.0
      %2373 = vmatpush2.xpose.msra.mxu0 0.0
      %2374 = vmatprep.subr.mxu0 0.0
      %2375 = vmatpush2.xpose.msra.mxu0 0.0
      %2376 = vmatprep.subr.mxu0 0.0
      %2377 = vmatpush2.xpose.msra.mxu0 0.0
      %2378 = vmatprep.subr.mxu0 0.0
      %2379 = vmatpush2.xpose.msra.mxu0 0.0
      %2380 = vmatprep.subr.mxu0 0.0
      %2381 = vmatpush2.xpose.msra.mxu0 0.0
      %2382 = vmatprep.subr.mxu0 0.0
      %2383 = vmatpush2.xpose.msra.mxu0 0.0
      %2384 = vmatprep.subr.mxu0 0.0
      %2385 = vmatpush2.xpose.msra.mxu0 0.0
      %2386 = vmatprep.mubr.f32.mxu0 0.0
      %v2387 = vand.u32 %v256, 4294901760
      %2388 = vmatmul.mubr.f32.gmra.mxu0 %v2387
      %v2389 = vpop.f32.mrf.mxu0
      %v2390 = vadd.f32 %v2279, %v2389
      %v2391 = vpop.f32.mrf.mxu0
      %2392 = vmatprep.mubr.f32.mxu0 0.0
      %v2393 = vand.u32 %v257, 4294901760
      %2394 = vmatmul.mubr.f32.gmra.mxu0 %v2393
      %v2395 = vpop.f32.mrf.mxu0
      %v2396 = vadd.f32 %v2289, %v2395
      %v2397 = vpop.f32.mrf.mxu0
      %2398 = vmatprep.mubr.f32.mxu0 0.0
      %v2399 = vand.u32 %v258, 4294901760
      %2400 = vmatmul.mubr.f32.gmra.mxu0 %v2399
      %v2401 = vpop.f32.mrf.mxu0
      %v2402 = vadd.f32 %v2299, %v2401
      %v2403 = vpop.f32.mrf.mxu0
      %2404 = vdwg.mxu0
      %2405 = vmatprep.subr.mxu0 0.0
      %2406 = vmatpush1.xpose.msra.mxu0 0.0
      %2407 = vmatprep.subr.mxu0 0.0
      %2408 = vmatpush1.xpose.msra.mxu0 0.0
      %2409 = vmatprep.subr.mxu0 0.0
      %2410 = vmatpush1.xpose.msra.mxu0 0.0
      %2411 = vmatprep.subr.mxu0 0.0
      %2412 = vmatpush1.xpose.msra.mxu0 0.0
      %2413 = vmatprep.subr.mxu0 0.0
      %2414 = vmatpush1.xpose.msra.mxu0 0.0
      %2415 = vmatprep.subr.mxu0 0.0
      %2416 = vmatpush1.xpose.msra.mxu0 0.0
      %2417 = vmatprep.subr.mxu0 0.0
      %2418 = vmatpush1.xpose.msra.mxu0 0.0
      %2419 = vmatprep.subr.mxu0 0.0
      %2420 = vmatpush1.xpose.msra.mxu0 0.0
      %2421 = vmatprep.subr.mxu0 0.0
      %2422 = vmatpush1.xpose.msra.mxu0 0.0
      %2423 = vmatprep.subr.mxu0 0.0
      %2424 = vmatpush1.xpose.msra.mxu0 0.0
      %2425 = vmatprep.subr.mxu0 0.0
      %2426 = vmatpush1.xpose.msra.mxu0 0.0
      %2427 = vmatprep.subr.mxu0 0.0
      %2428 = vmatpush1.xpose.msra.mxu0 0.0
      %2429 = vmatprep.subr.mxu0 0.0
      %v2430 = vand.u32 %v2202, 4294901760
      %v2431 = vsub.f32 %v2202, %v2430
      %2432 = vmatpush1.xpose.msra.mxu0 %v2431
      %2433 = vmatprep.subr.mxu0 0.0
      %v2434 = vand.u32 %v2201, 4294901760
      %v2435 = vsub.f32 %v2201, %v2434
      %2436 = vmatpush1.xpose.msra.mxu0 %v2435
      %2437 = vmatprep.subr.mxu0 0.0
      %v2438 = vand.u32 %v2200, 4294901760
      %v2439 = vsub.f32 %v2200, %v2438
      %2440 = vmatpush1.xpose.msra.mxu0 %v2439
      %2441 = vmatprep.subr.mxu0 0.0
      %v2442 = vand.u32 %v2199, 4294901760
      %v2443 = vsub.f32 %v2199, %v2442
      %2444 = vmatpush1.xpose.msra.mxu0 %v2443
      %2445 = vmatprep.subr.mxu0 0.0
      %2446 = vmatpush2.xpose.msra.mxu0 0.0
      %2447 = vmatprep.subr.mxu0 0.0
      %2448 = vmatpush2.xpose.msra.mxu0 0.0
      %2449 = vmatprep.subr.mxu0 0.0
      %2450 = vmatpush2.xpose.msra.mxu0 0.0
      %2451 = vmatprep.subr.mxu0 0.0
      %2452 = vmatpush2.xpose.msra.mxu0 0.0
      %2453 = vmatprep.subr.mxu0 0.0
      %2454 = vmatpush2.xpose.msra.mxu0 0.0
      %2455 = vmatprep.subr.mxu0 0.0
      %2456 = vmatpush2.xpose.msra.mxu0 0.0
      %2457 = vmatprep.subr.mxu0 0.0
      %2458 = vmatpush2.xpose.msra.mxu0 0.0
      %2459 = vmatprep.subr.mxu0 0.0
      %2460 = vmatpush2.xpose.msra.mxu0 0.0
      %2461 = vmatprep.subr.mxu0 0.0
      %2462 = vmatpush2.xpose.msra.mxu0 0.0
      %2463 = vmatprep.subr.mxu0 0.0
      %2464 = vmatpush2.xpose.msra.mxu0 0.0
      %2465 = vmatprep.subr.mxu0 0.0
      %2466 = vmatpush2.xpose.msra.mxu0 0.0
      %2467 = vmatprep.subr.mxu0 0.0
      %2468 = vmatpush2.xpose.msra.mxu0 0.0
      %2469 = vmatprep.subr.mxu0 0.0
      %2470 = vmatpush2.xpose.msra.mxu0 0.0
      %2471 = vmatprep.subr.mxu0 0.0
      %2472 = vmatpush2.xpose.msra.mxu0 0.0
      %2473 = vmatprep.subr.mxu0 0.0
      %2474 = vmatpush2.xpose.msra.mxu0 0.0
      %2475 = vmatprep.subr.mxu0 0.0
      %2476 = vmatpush2.xpose.msra.mxu0 0.0
      %2477 = vmatprep.mubr.f32.mxu0 0.0
      %v2478 = vand.u32 %v256, 4294901760
      %v2479 = vsub.f32 %v256, %v2478
      %2480 = vmatmul.mubr.f32.gmra.mxu0 %v2479
      %v2481 = vpop.f32.mrf.mxu0
      %v2482 = vadd.f32 %v2390, %v2481
      %v2483 = vpop.f32.mrf.mxu0
      %2484 = vmatprep.mubr.f32.mxu0 0.0
      %v2485 = vand.u32 %v257, 4294901760
      %v2486 = vsub.f32 %v257, %v2485
      %2487 = vmatmul.mubr.f32.gmra.mxu0 %v2486
      %v2488 = vpop.f32.mrf.mxu0
      %v2489 = vadd.f32 %v2396, %v2488
      %v2490 = vpop.f32.mrf.mxu0
      %2491 = vmatprep.mubr.f32.mxu0 0.0
      %v2492 = vand.u32 %v258, 4294901760
      %v2493 = vsub.f32 %v258, %v2492
      %2494 = vmatmul.mubr.f32.gmra.mxu0 %v2493
      %v2495 = vpop.f32.mrf.mxu0
      %v2496 = vadd.f32 %v2402, %v2495
      %v2497 = vpop.f32.mrf.mxu0
      %2498 = vdwg.mxu0
      %2499 = vmatprep.subr.mxu0 0.0
      %2500 = vmatpush1.xpose.msra.mxu0 0.0
      %2501 = vmatprep.subr.mxu0 0.0
      %2502 = vmatpush1.xpose.msra.mxu0 0.0
      %2503 = vmatprep.subr.mxu0 0.0
      %2504 = vmatpush1.xpose.msra.mxu0 0.0
      %2505 = vmatprep.subr.mxu0 0.0
      %2506 = vmatpush1.xpose.msra.mxu0 0.0
      %2507 = vmatprep.subr.mxu0 0.0
      %2508 = vmatpush1.xpose.msra.mxu0 0.0
      %2509 = vmatprep.subr.mxu0 0.0
      %2510 = vmatpush1.xpose.msra.mxu0 0.0
      %2511 = vmatprep.subr.mxu0 0.0
      %2512 = vmatpush1.xpose.msra.mxu0 0.0
      %2513 = vmatprep.subr.mxu0 0.0
      %2514 = vmatpush1.xpose.msra.mxu0 0.0
      %2515 = vmatprep.subr.mxu0 0.0
      %2516 = vmatpush1.xpose.msra.mxu0 0.0
      %2517 = vmatprep.subr.mxu0 0.0
      %2518 = vmatpush1.xpose.msra.mxu0 0.0
      %2519 = vmatprep.subr.mxu0 0.0
      %2520 = vmatpush1.xpose.msra.mxu0 0.0
      %2521 = vmatprep.subr.mxu0 0.0
      %2522 = vmatpush1.xpose.msra.mxu0 0.0
      %2523 = vmatprep.subr.mxu0 0.0
      %v2524 = vand.u32 %v2202, 4294901760
      %2525 = vmatpush1.xpose.msra.mxu0 %v2524
      %2526 = vmatprep.subr.mxu0 0.0
      %v2527 = vand.u32 %v2201, 4294901760
      %2528 = vmatpush1.xpose.msra.mxu0 %v2527
      %2529 = vmatprep.subr.mxu0 0.0
      %v2530 = vand.u32 %v2200, 4294901760
      %2531 = vmatpush1.xpose.msra.mxu0 %v2530
      %2532 = vmatprep.subr.mxu0 0.0
      %v2533 = vand.u32 %v2199, 4294901760
      %2534 = vmatpush1.xpose.msra.mxu0 %v2533
      %2535 = vmatprep.subr.mxu0 0.0
      %2536 = vmatpush2.xpose.msra.mxu0 0.0
      %2537 = vmatprep.subr.mxu0 0.0
      %2538 = vmatpush2.xpose.msra.mxu0 0.0
      %2539 = vmatprep.subr.mxu0 0.0
      %2540 = vmatpush2.xpose.msra.mxu0 0.0
      %2541 = vmatprep.subr.mxu0 0.0
      %2542 = vmatpush2.xpose.msra.mxu0 0.0
      %2543 = vmatprep.subr.mxu0 0.0
      %2544 = vmatpush2.xpose.msra.mxu0 0.0
      %2545 = vmatprep.subr.mxu0 0.0
      %2546 = vmatpush2.xpose.msra.mxu0 0.0
      %2547 = vmatprep.subr.mxu0 0.0
      %2548 = vmatpush2.xpose.msra.mxu0 0.0
      %2549 = vmatprep.subr.mxu0 0.0
      %2550 = vmatpush2.xpose.msra.mxu0 0.0
      %2551 = vmatprep.subr.mxu0 0.0
      %2552 = vmatpush2.xpose.msra.mxu0 0.0
      %2553 = vmatprep.subr.mxu0 0.0
      %2554 = vmatpush2.xpose.msra.mxu0 0.0
      %2555 = vmatprep.subr.mxu0 0.0
      %2556 = vmatpush2.xpose.msra.mxu0 0.0
      %2557 = vmatprep.subr.mxu0 0.0
      %2558 = vmatpush2.xpose.msra.mxu0 0.0
      %2559 = vmatprep.subr.mxu0 0.0
      %2560 = vmatpush2.xpose.msra.mxu0 0.0
      %2561 = vmatprep.subr.mxu0 0.0
      %2562 = vmatpush2.xpose.msra.mxu0 0.0
      %2563 = vmatprep.subr.mxu0 0.0
      %2564 = vmatpush2.xpose.msra.mxu0 0.0
      %2565 = vmatprep.subr.mxu0 0.0
      %2566 = vmatpush2.xpose.msra.mxu0 0.0
      %2567 = vmatprep.mubr.f32.mxu0 0.0
      %v2568 = vand.u32 %v256, 4294901760
      %v2569 = vsub.f32 %v256, %v2568
      %v2570 = vand.u32 %v2569, 4294901760
      %2571 = vmatmul.mubr.f32.gmra.mxu0 %v2570
      %v2572 = vpop.f32.mrf.mxu0
      %v2573 = vadd.f32 %v2482, %v2572
      %v2574 = vpop.f32.mrf.mxu0
      %2575 = vmatprep.mubr.f32.mxu0 0.0
      %v2576 = vand.u32 %v257, 4294901760
      %v2577 = vsub.f32 %v257, %v2576
      %v2578 = vand.u32 %v2577, 4294901760
      %2579 = vmatmul.mubr.f32.gmra.mxu0 %v2578
      %v2580 = vpop.f32.mrf.mxu0
      %v2581 = vadd.f32 %v2489, %v2580
      %v2582 = vpop.f32.mrf.mxu0
      %2583 = vmatprep.mubr.f32.mxu0 0.0
      %v2584 = vand.u32 %v258, 4294901760
      %v2585 = vsub.f32 %v258, %v2584
      %v2586 = vand.u32 %v2585, 4294901760
      %2587 = vmatmul.mubr.f32.gmra.mxu0 %v2586
      %v2588 = vpop.f32.mrf.mxu0
      %v2589 = vadd.f32 %v2496, %v2588
      %v2590 = vpop.f32.mrf.mxu0
      %2591 = vdwg.mxu0
      %2592 = vmatprep.subr.mxu0 0.0
      %2593 = vmatpush1.xpose.msra.mxu0 0.0
      %2594 = vmatprep.subr.mxu0 0.0
      %2595 = vmatpush1.xpose.msra.mxu0 0.0
      %2596 = vmatprep.subr.mxu0 0.0
      %2597 = vmatpush1.xpose.msra.mxu0 0.0
      %2598 = vmatprep.subr.mxu0 0.0
      %2599 = vmatpush1.xpose.msra.mxu0 0.0
      %2600 = vmatprep.subr.mxu0 0.0
      %2601 = vmatpush1.xpose.msra.mxu0 0.0
      %2602 = vmatprep.subr.mxu0 0.0
      %2603 = vmatpush1.xpose.msra.mxu0 0.0
      %2604 = vmatprep.subr.mxu0 0.0
      %2605 = vmatpush1.xpose.msra.mxu0 0.0
      %2606 = vmatprep.subr.mxu0 0.0
      %2607 = vmatpush1.xpose.msra.mxu0 0.0
      %2608 = vmatprep.subr.mxu0 0.0
      %2609 = vmatpush1.xpose.msra.mxu0 0.0
      %2610 = vmatprep.subr.mxu0 0.0
      %2611 = vmatpush1.xpose.msra.mxu0 0.0
      %2612 = vmatprep.subr.mxu0 0.0
      %2613 = vmatpush1.xpose.msra.mxu0 0.0
      %2614 = vmatprep.subr.mxu0 0.0
      %2615 = vmatpush1.xpose.msra.mxu0 0.0
      %2616 = vmatprep.subr.mxu0 0.0
      %v2617 = vand.u32 %v2202, 4294901760
      %v2618 = vsub.f32 %v2202, %v2617
      %v2619 = vand.u32 %v2618, 4294901760
      %2620 = vmatpush1.xpose.msra.mxu0 %v2619
      %2621 = vmatprep.subr.mxu0 0.0
      %v2622 = vand.u32 %v2201, 4294901760
      %v2623 = vsub.f32 %v2201, %v2622
      %v2624 = vand.u32 %v2623, 4294901760
      %2625 = vmatpush1.xpose.msra.mxu0 %v2624
      %2626 = vmatprep.subr.mxu0 0.0
      %v2627 = vand.u32 %v2200, 4294901760
      %v2628 = vsub.f32 %v2200, %v2627
      %v2629 = vand.u32 %v2628, 4294901760
      %2630 = vmatpush1.xpose.msra.mxu0 %v2629
      %2631 = vmatprep.subr.mxu0 0.0
      %v2632 = vand.u32 %v2199, 4294901760
      %v2633 = vsub.f32 %v2199, %v2632
      %v2634 = vand.u32 %v2633, 4294901760
      %2635 = vmatpush1.xpose.msra.mxu0 %v2634
      %2636 = vmatprep.subr.mxu0 0.0
      %2637 = vmatpush2.xpose.msra.mxu0 0.0
      %2638 = vmatprep.subr.mxu0 0.0
      %2639 = vmatpush2.xpose.msra.mxu0 0.0
      %2640 = vmatprep.subr.mxu0 0.0
      %2641 = vmatpush2.xpose.msra.mxu0 0.0
      %2642 = vmatprep.subr.mxu0 0.0
      %2643 = vmatpush2.xpose.msra.mxu0 0.0
      %2644 = vmatprep.subr.mxu0 0.0
      %2645 = vmatpush2.xpose.msra.mxu0 0.0
      %2646 = vmatprep.subr.mxu0 0.0
      %2647 = vmatpush2.xpose.msra.mxu0 0.0
      %2648 = vmatprep.subr.mxu0 0.0
      %2649 = vmatpush2.xpose.msra.mxu0 0.0
      %2650 = vmatprep.subr.mxu0 0.0
      %2651 = vmatpush2.xpose.msra.mxu0 0.0
      %2652 = vmatprep.subr.mxu0 0.0
      %2653 = vmatpush2.xpose.msra.mxu0 0.0
      %2654 = vmatprep.subr.mxu0 0.0
      %2655 = vmatpush2.xpose.msra.mxu0 0.0
      %2656 = vmatprep.subr.mxu0 0.0
      %2657 = vmatpush2.xpose.msra.mxu0 0.0
      %2658 = vmatprep.subr.mxu0 0.0
      %2659 = vmatpush2.xpose.msra.mxu0 0.0
      %2660 = vmatprep.subr.mxu0 0.0
      %2661 = vmatpush2.xpose.msra.mxu0 0.0
      %2662 = vmatprep.subr.mxu0 0.0
      %2663 = vmatpush2.xpose.msra.mxu0 0.0
      %2664 = vmatprep.subr.mxu0 0.0
      %2665 = vmatpush2.xpose.msra.mxu0 0.0
      %2666 = vmatprep.subr.mxu0 0.0
      %2667 = vmatpush2.xpose.msra.mxu0 0.0
      %2668 = vmatprep.mubr.f32.mxu0 0.0
      %v2669 = vand.u32 %v256, 4294901760
      %2670 = vmatmul.mubr.f32.gmra.mxu0 %v2669
      %v2671 = vpop.f32.mrf.mxu0
      %v2672 = vadd.f32 %v2573, %v2671
      %v2673 = vpop.f32.mrf.mxu0
      %2674 = vmatprep.mubr.f32.mxu0 0.0
      %v2675 = vand.u32 %v257, 4294901760
      %2676 = vmatmul.mubr.f32.gmra.mxu0 %v2675
      %v2677 = vpop.f32.mrf.mxu0
      %v2678 = vadd.f32 %v2581, %v2677
      %v2679 = vpop.f32.mrf.mxu0
      %2680 = vmatprep.mubr.f32.mxu0 0.0
      %v2681 = vand.u32 %v258, 4294901760
      %2682 = vmatmul.mubr.f32.gmra.mxu0 %v2681
      %v2683 = vpop.f32.mrf.mxu0
      %v2684 = vadd.f32 %v2589, %v2683
      %v2685 = vpop.f32.mrf.mxu0
      %2686 = vdwg.mxu0
      %2687 = vmatprep.subr.mxu0 0.0
      %2688 = vmatpush1.xpose.msra.mxu0 0.0
      %2689 = vmatprep.subr.mxu0 0.0
      %2690 = vmatpush1.xpose.msra.mxu0 0.0
      %2691 = vmatprep.subr.mxu0 0.0
      %2692 = vmatpush1.xpose.msra.mxu0 0.0
      %2693 = vmatprep.subr.mxu0 0.0
      %2694 = vmatpush1.xpose.msra.mxu0 0.0
      %2695 = vmatprep.subr.mxu0 0.0
      %2696 = vmatpush1.xpose.msra.mxu0 0.0
      %2697 = vmatprep.subr.mxu0 0.0
      %2698 = vmatpush1.xpose.msra.mxu0 0.0
      %2699 = vmatprep.subr.mxu0 0.0
      %2700 = vmatpush1.xpose.msra.mxu0 0.0
      %2701 = vmatprep.subr.mxu0 0.0
      %2702 = vmatpush1.xpose.msra.mxu0 0.0
      %2703 = vmatprep.subr.mxu0 0.0
      %2704 = vmatpush1.xpose.msra.mxu0 0.0
      %2705 = vmatprep.subr.mxu0 0.0
      %2706 = vmatpush1.xpose.msra.mxu0 0.0
      %2707 = vmatprep.subr.mxu0 0.0
      %2708 = vmatpush1.xpose.msra.mxu0 0.0
      %2709 = vmatprep.subr.mxu0 0.0
      %2710 = vmatpush1.xpose.msra.mxu0 0.0
      %2711 = vmatprep.subr.mxu0 0.0
      %v2712 = vand.u32 %v2202, 4294901760
      %2713 = vmatpush1.xpose.msra.mxu0 %v2712
      %2714 = vmatprep.subr.mxu0 0.0
      %v2715 = vand.u32 %v2201, 4294901760
      %2716 = vmatpush1.xpose.msra.mxu0 %v2715
      %2717 = vmatprep.subr.mxu0 0.0
      %v2718 = vand.u32 %v2200, 4294901760
      %2719 = vmatpush1.xpose.msra.mxu0 %v2718
      %2720 = vmatprep.subr.mxu0 0.0
      %v2721 = vand.u32 %v2199, 4294901760
      %2722 = vmatpush1.xpose.msra.mxu0 %v2721
      %2723 = vmatprep.subr.mxu0 0.0
      %2724 = vmatpush2.xpose.msra.mxu0 0.0
      %2725 = vmatprep.subr.mxu0 0.0
      %2726 = vmatpush2.xpose.msra.mxu0 0.0
      %2727 = vmatprep.subr.mxu0 0.0
      %2728 = vmatpush2.xpose.msra.mxu0 0.0
      %2729 = vmatprep.subr.mxu0 0.0
      %2730 = vmatpush2.xpose.msra.mxu0 0.0
      %2731 = vmatprep.subr.mxu0 0.0
      %2732 = vmatpush2.xpose.msra.mxu0 0.0
      %2733 = vmatprep.subr.mxu0 0.0
      %2734 = vmatpush2.xpose.msra.mxu0 0.0
      %2735 = vmatprep.subr.mxu0 0.0
      %2736 = vmatpush2.xpose.msra.mxu0 0.0
      %2737 = vmatprep.subr.mxu0 0.0
      %2738 = vmatpush2.xpose.msra.mxu0 0.0
      %2739 = vmatprep.subr.mxu0 0.0
      %2740 = vmatpush2.xpose.msra.mxu0 0.0
      %2741 = vmatprep.subr.mxu0 0.0
      %2742 = vmatpush2.xpose.msra.mxu0 0.0
      %2743 = vmatprep.subr.mxu0 0.0
      %2744 = vmatpush2.xpose.msra.mxu0 0.0
      %2745 = vmatprep.subr.mxu0 0.0
      %2746 = vmatpush2.xpose.msra.mxu0 0.0
      %2747 = vmatprep.subr.mxu0 0.0
      %2748 = vmatpush2.xpose.msra.mxu0 0.0
      %2749 = vmatprep.subr.mxu0 0.0
      %2750 = vmatpush2.xpose.msra.mxu0 0.0
      %2751 = vmatprep.subr.mxu0 0.0
      %2752 = vmatpush2.xpose.msra.mxu0 0.0
      %2753 = vmatprep.subr.mxu0 0.0
      %2754 = vmatpush2.xpose.msra.mxu0 0.0
      %2755 = vmatprep.mubr.f32.mxu0 0.0
      %v2756 = vand.u32 %v256, 4294901760
      %2757 = vmatmul.mubr.f32.gmra.mxu0 %v2756
      %v2758 = vpop.f32.mrf.mxu0
      %v2759 = vadd.f32 %v2672, %v2758
      %v2760 = vpop.f32.mrf.mxu0
      %2761 = vmatprep.mubr.f32.mxu0 0.0
      %v2762 = vand.u32 %v257, 4294901760
      %2763 = vmatmul.mubr.f32.gmra.mxu0 %v2762
      %v2764 = vpop.f32.mrf.mxu0
      %v2765 = vadd.f32 %v2678, %v2764
      %v2766 = vpop.f32.mrf.mxu0
      %2767 = vmatprep.mubr.f32.mxu0 0.0
      %v2768 = vand.u32 %v258, 4294901760
      %2769 = vmatmul.mubr.f32.gmra.mxu0 %v2768
      %v2770 = vpop.f32.mrf.mxu0
      %v2771 = vadd.f32 %v2684, %v2770
      %v2772 = vpop.f32.mrf.mxu0
      %2773 = vdwg.mxu0
      %v2774 = vadd.f32 %v2160, %v2759
      %v2775 = vadd.f32 %v2161, %v2765
      %v2776 = vadd.f32 %v2162, %v2771
      %v2777 = vsel %vm2191, 1e+30, %v2163
      %v2778 = vsel %vm2192, 1e+30, %v2164
      %v2779 = vsel %vm2193, 1e+30, %v2165
      %v2780 = vsel %vm2194, 1e+30, %v2166
      %2781 = vmin.xlane.f32.xlu0 %v2777
      %v2782 = vpop.xlane.xlu0 %2781
      %2783 = vmin.xlane.f32.xlu0 %v2778
      %v2784 = vpop.xlane.xlu0 %2783
      %2785 = vmin.xlane.f32.xlu0 %v2779
      %v2786 = vpop.xlane.xlu0 %2785
      %2787 = vmin.xlane.f32.xlu0 %v2780
      %v2788 = vpop.xlane.xlu0 %2787
      %vm2789 = vcmp.eq.f32.partialorder %v2777, %v2782
      %vm2790 = vcmp.eq.f32.partialorder %v2778, %v2784
      %vm2791 = vcmp.eq.f32.partialorder %v2779, %v2786
      %vm2792 = vcmp.eq.f32.partialorder %v2780, %v2788
      %v2793 = vsel %vm2789, %v261, 128.0
      %v2794 = vsel %vm2790, %v261, 128.0
      %v2795 = vsel %vm2791, %v261, 128.0
      %v2796 = vsel %vm2792, %v261, 128.0
      %2797 = vmin.xlane.f32.xlu0 %v2793
      %v2798 = vpop.xlane.xlu0 %2797
      %2799 = vmin.xlane.f32.xlu0 %v2794
      %v2800 = vpop.xlane.xlu0 %2799
      %2801 = vmin.xlane.f32.xlu0 %v2795
      %v2802 = vpop.xlane.xlu0 %2801
      %2803 = vmin.xlane.f32.xlu0 %v2796
      %v2804 = vpop.xlane.xlu0 %2803
      %vm2805 = vcmp.eq.f32.partialorder %v261, %v2798
      %vm2806 = vcmp.eq.f32.partialorder %v261, %v2800
      %vm2807 = vcmp.eq.f32.partialorder %v261, %v2802
      %vm2808 = vcmp.eq.f32.partialorder %v261, %v2804
      %v2809 = vsel %vm2805, 1, 0
      %v2810 = vsel %vm2806, 1, 0
      %v2811 = vsel %vm2807, 1, 0
      %v2812 = vsel %vm2808, 1, 0
      %v2813 = vcvt.s32.f32 %v2809
      %v2814 = vcvt.s32.f32 %v2810
      %v2815 = vcvt.s32.f32 %v2811
      %v2816 = vcvt.s32.f32 %v2812
      %2817 = vmatprep.subr.mxu0 0.0
      %2818 = vmatpush1.xpose.msra.mxu0 0.0
      %2819 = vmatprep.subr.mxu0 0.0
      %2820 = vmatpush1.xpose.msra.mxu0 0.0
      %2821 = vmatprep.subr.mxu0 0.0
      %2822 = vmatpush1.xpose.msra.mxu0 0.0
      %2823 = vmatprep.subr.mxu0 0.0
      %2824 = vmatpush1.xpose.msra.mxu0 0.0
      %2825 = vmatprep.subr.mxu0 0.0
      %2826 = vmatpush1.xpose.msra.mxu0 0.0
      %2827 = vmatprep.subr.mxu0 0.0
      %2828 = vmatpush1.xpose.msra.mxu0 0.0
      %2829 = vmatprep.subr.mxu0 0.0
      %2830 = vmatpush1.xpose.msra.mxu0 0.0
      %2831 = vmatprep.subr.mxu0 0.0
      %2832 = vmatpush1.xpose.msra.mxu0 0.0
      %2833 = vmatprep.subr.mxu0 0.0
      %2834 = vmatpush1.xpose.msra.mxu0 0.0
      %2835 = vmatprep.subr.mxu0 0.0
      %2836 = vmatpush1.xpose.msra.mxu0 0.0
      %2837 = vmatprep.subr.mxu0 0.0
      %2838 = vmatpush1.xpose.msra.mxu0 0.0
      %2839 = vmatprep.subr.mxu0 0.0
      %2840 = vmatpush1.xpose.msra.mxu0 0.0
      %2841 = vmatprep.subr.mxu0 0.0
      %v2842 = vand.u32 %v2816, 4294901760
      %2843 = vmatpush1.xpose.msra.mxu0 %v2842
      %2844 = vmatprep.subr.mxu0 0.0
      %v2845 = vand.u32 %v2815, 4294901760
      %2846 = vmatpush1.xpose.msra.mxu0 %v2845
      %2847 = vmatprep.subr.mxu0 0.0
      %v2848 = vand.u32 %v2814, 4294901760
      %2849 = vmatpush1.xpose.msra.mxu0 %v2848
      %2850 = vmatprep.subr.mxu0 0.0
      %v2851 = vand.u32 %v2813, 4294901760
      %2852 = vmatpush1.xpose.msra.mxu0 %v2851
      %2853 = vmatprep.subr.mxu0 0.0
      %2854 = vmatpush2.xpose.msra.mxu0 0.0
      %2855 = vmatprep.subr.mxu0 0.0
      %2856 = vmatpush2.xpose.msra.mxu0 0.0
      %2857 = vmatprep.subr.mxu0 0.0
      %2858 = vmatpush2.xpose.msra.mxu0 0.0
      %2859 = vmatprep.subr.mxu0 0.0
      %2860 = vmatpush2.xpose.msra.mxu0 0.0
      %2861 = vmatprep.subr.mxu0 0.0
      %2862 = vmatpush2.xpose.msra.mxu0 0.0
      %2863 = vmatprep.subr.mxu0 0.0
      %2864 = vmatpush2.xpose.msra.mxu0 0.0
      %2865 = vmatprep.subr.mxu0 0.0
      %2866 = vmatpush2.xpose.msra.mxu0 0.0
      %2867 = vmatprep.subr.mxu0 0.0
      %2868 = vmatpush2.xpose.msra.mxu0 0.0
      %2869 = vmatprep.subr.mxu0 0.0
      %2870 = vmatpush2.xpose.msra.mxu0 0.0
      %2871 = vmatprep.subr.mxu0 0.0
      %2872 = vmatpush2.xpose.msra.mxu0 0.0
      %2873 = vmatprep.subr.mxu0 0.0
      %2874 = vmatpush2.xpose.msra.mxu0 0.0
      %2875 = vmatprep.subr.mxu0 0.0
      %2876 = vmatpush2.xpose.msra.mxu0 0.0
      %2877 = vmatprep.subr.mxu0 0.0
      %2878 = vmatpush2.xpose.msra.mxu0 0.0
      %2879 = vmatprep.subr.mxu0 0.0
      %2880 = vmatpush2.xpose.msra.mxu0 0.0
      %2881 = vmatprep.subr.mxu0 0.0
      %2882 = vmatpush2.xpose.msra.mxu0 0.0
      %2883 = vmatprep.subr.mxu0 0.0
      %2884 = vmatpush2.xpose.msra.mxu0 0.0
      %2885 = vmatprep.mubr.f32.mxu0 0.0
      %v2886 = vand.u32 %v256, 4294901760
      %v2887 = vsub.f32 %v256, %v2886
      %v2888 = vand.u32 %v2887, 4294901760
      %v2889 = vsub.f32 %v2887, %v2888
      %v2890 = vand.u32 %v2889, 4294901760
      %2891 = vmatmul.mubr.f32.gmra.mxu0 %v2890
      %v2892 = vpop.f32.mrf.mxu0
      %v2893 = vadd.f32 0.0, %v2892
      %v2894 = vpop.f32.mrf.mxu0
      %2895 = vmatprep.mubr.f32.mxu0 0.0
      %v2896 = vand.u32 %v257, 4294901760
      %v2897 = vsub.f32 %v257, %v2896
      %v2898 = vand.u32 %v2897, 4294901760
      %v2899 = vsub.f32 %v2897, %v2898
      %v2900 = vand.u32 %v2899, 4294901760
      %2901 = vmatmul.mubr.f32.gmra.mxu0 %v2900
      %v2902 = vpop.f32.mrf.mxu0
      %v2903 = vadd.f32 0.0, %v2902
      %v2904 = vpop.f32.mrf.mxu0
      %2905 = vmatprep.mubr.f32.mxu0 0.0
      %v2906 = vand.u32 %v258, 4294901760
      %v2907 = vsub.f32 %v258, %v2906
      %v2908 = vand.u32 %v2907, 4294901760
      %v2909 = vsub.f32 %v2907, %v2908
      %v2910 = vand.u32 %v2909, 4294901760
      %2911 = vmatmul.mubr.f32.gmra.mxu0 %v2910
      %v2912 = vpop.f32.mrf.mxu0
      %v2913 = vadd.f32 0.0, %v2912
      %v2914 = vpop.f32.mrf.mxu0
      %2915 = vdwg.mxu0
      %2916 = vmatprep.subr.mxu0 0.0
      %2917 = vmatpush1.xpose.msra.mxu0 0.0
      %2918 = vmatprep.subr.mxu0 0.0
      %2919 = vmatpush1.xpose.msra.mxu0 0.0
      %2920 = vmatprep.subr.mxu0 0.0
      %2921 = vmatpush1.xpose.msra.mxu0 0.0
      %2922 = vmatprep.subr.mxu0 0.0
      %2923 = vmatpush1.xpose.msra.mxu0 0.0
      %2924 = vmatprep.subr.mxu0 0.0
      %2925 = vmatpush1.xpose.msra.mxu0 0.0
      %2926 = vmatprep.subr.mxu0 0.0
      %2927 = vmatpush1.xpose.msra.mxu0 0.0
      %2928 = vmatprep.subr.mxu0 0.0
      %2929 = vmatpush1.xpose.msra.mxu0 0.0
      %2930 = vmatprep.subr.mxu0 0.0
      %2931 = vmatpush1.xpose.msra.mxu0 0.0
      %2932 = vmatprep.subr.mxu0 0.0
      %2933 = vmatpush1.xpose.msra.mxu0 0.0
      %2934 = vmatprep.subr.mxu0 0.0
      %2935 = vmatpush1.xpose.msra.mxu0 0.0
      %2936 = vmatprep.subr.mxu0 0.0
      %2937 = vmatpush1.xpose.msra.mxu0 0.0
      %2938 = vmatprep.subr.mxu0 0.0
      %2939 = vmatpush1.xpose.msra.mxu0 0.0
      %2940 = vmatprep.subr.mxu0 0.0
      %v2941 = vand.u32 %v2816, 4294901760
      %v2942 = vsub.f32 %v2816, %v2941
      %v2943 = vand.u32 %v2942, 4294901760
      %v2944 = vsub.f32 %v2942, %v2943
      %v2945 = vand.u32 %v2944, 4294901760
      %2946 = vmatpush1.xpose.msra.mxu0 %v2945
      %2947 = vmatprep.subr.mxu0 0.0
      %v2948 = vand.u32 %v2815, 4294901760
      %v2949 = vsub.f32 %v2815, %v2948
      %v2950 = vand.u32 %v2949, 4294901760
      %v2951 = vsub.f32 %v2949, %v2950
      %v2952 = vand.u32 %v2951, 4294901760
      %2953 = vmatpush1.xpose.msra.mxu0 %v2952
      %2954 = vmatprep.subr.mxu0 0.0
      %v2955 = vand.u32 %v2814, 4294901760
      %v2956 = vsub.f32 %v2814, %v2955
      %v2957 = vand.u32 %v2956, 4294901760
      %v2958 = vsub.f32 %v2956, %v2957
      %v2959 = vand.u32 %v2958, 4294901760
      %2960 = vmatpush1.xpose.msra.mxu0 %v2959
      %2961 = vmatprep.subr.mxu0 0.0
      %v2962 = vand.u32 %v2813, 4294901760
      %v2963 = vsub.f32 %v2813, %v2962
      %v2964 = vand.u32 %v2963, 4294901760
      %v2965 = vsub.f32 %v2963, %v2964
      %v2966 = vand.u32 %v2965, 4294901760
      %2967 = vmatpush1.xpose.msra.mxu0 %v2966
      %2968 = vmatprep.subr.mxu0 0.0
      %2969 = vmatpush2.xpose.msra.mxu0 0.0
      %2970 = vmatprep.subr.mxu0 0.0
      %2971 = vmatpush2.xpose.msra.mxu0 0.0
      %2972 = vmatprep.subr.mxu0 0.0
      %2973 = vmatpush2.xpose.msra.mxu0 0.0
      %2974 = vmatprep.subr.mxu0 0.0
      %2975 = vmatpush2.xpose.msra.mxu0 0.0
      %2976 = vmatprep.subr.mxu0 0.0
      %2977 = vmatpush2.xpose.msra.mxu0 0.0
      %2978 = vmatprep.subr.mxu0 0.0
      %2979 = vmatpush2.xpose.msra.mxu0 0.0
      %2980 = vmatprep.subr.mxu0 0.0
      %2981 = vmatpush2.xpose.msra.mxu0 0.0
      %2982 = vmatprep.subr.mxu0 0.0
      %2983 = vmatpush2.xpose.msra.mxu0 0.0
      %2984 = vmatprep.subr.mxu0 0.0
      %2985 = vmatpush2.xpose.msra.mxu0 0.0
      %2986 = vmatprep.subr.mxu0 0.0
      %2987 = vmatpush2.xpose.msra.mxu0 0.0
      %2988 = vmatprep.subr.mxu0 0.0
      %2989 = vmatpush2.xpose.msra.mxu0 0.0
      %2990 = vmatprep.subr.mxu0 0.0
      %2991 = vmatpush2.xpose.msra.mxu0 0.0
      %2992 = vmatprep.subr.mxu0 0.0
      %2993 = vmatpush2.xpose.msra.mxu0 0.0
      %2994 = vmatprep.subr.mxu0 0.0
      %2995 = vmatpush2.xpose.msra.mxu0 0.0
      %2996 = vmatprep.subr.mxu0 0.0
      %2997 = vmatpush2.xpose.msra.mxu0 0.0
      %2998 = vmatprep.subr.mxu0 0.0
      %2999 = vmatpush2.xpose.msra.mxu0 0.0
      %3000 = vmatprep.mubr.f32.mxu0 0.0
      %v3001 = vand.u32 %v256, 4294901760
      %3002 = vmatmul.mubr.f32.gmra.mxu0 %v3001
      %v3003 = vpop.f32.mrf.mxu0
      %v3004 = vadd.f32 %v2893, %v3003
      %v3005 = vpop.f32.mrf.mxu0
      %3006 = vmatprep.mubr.f32.mxu0 0.0
      %v3007 = vand.u32 %v257, 4294901760
      %3008 = vmatmul.mubr.f32.gmra.mxu0 %v3007
      %v3009 = vpop.f32.mrf.mxu0
      %v3010 = vadd.f32 %v2903, %v3009
      %v3011 = vpop.f32.mrf.mxu0
      %3012 = vmatprep.mubr.f32.mxu0 0.0
      %v3013 = vand.u32 %v258, 4294901760
      %3014 = vmatmul.mubr.f32.gmra.mxu0 %v3013
      %v3015 = vpop.f32.mrf.mxu0
      %v3016 = vadd.f32 %v2913, %v3015
      %v3017 = vpop.f32.mrf.mxu0
      %3018 = vdwg.mxu0
      %3019 = vmatprep.subr.mxu0 0.0
      %3020 = vmatpush1.xpose.msra.mxu0 0.0
      %3021 = vmatprep.subr.mxu0 0.0
      %3022 = vmatpush1.xpose.msra.mxu0 0.0
      %3023 = vmatprep.subr.mxu0 0.0
      %3024 = vmatpush1.xpose.msra.mxu0 0.0
      %3025 = vmatprep.subr.mxu0 0.0
      %3026 = vmatpush1.xpose.msra.mxu0 0.0
      %3027 = vmatprep.subr.mxu0 0.0
      %3028 = vmatpush1.xpose.msra.mxu0 0.0
      %3029 = vmatprep.subr.mxu0 0.0
      %3030 = vmatpush1.xpose.msra.mxu0 0.0
      %3031 = vmatprep.subr.mxu0 0.0
      %3032 = vmatpush1.xpose.msra.mxu0 0.0
      %3033 = vmatprep.subr.mxu0 0.0
      %3034 = vmatpush1.xpose.msra.mxu0 0.0
      %3035 = vmatprep.subr.mxu0 0.0
      %3036 = vmatpush1.xpose.msra.mxu0 0.0
      %3037 = vmatprep.subr.mxu0 0.0
      %3038 = vmatpush1.xpose.msra.mxu0 0.0
      %3039 = vmatprep.subr.mxu0 0.0
      %3040 = vmatpush1.xpose.msra.mxu0 0.0
      %3041 = vmatprep.subr.mxu0 0.0
      %3042 = vmatpush1.xpose.msra.mxu0 0.0
      %3043 = vmatprep.subr.mxu0 0.0
      %v3044 = vand.u32 %v2816, 4294901760
      %v3045 = vsub.f32 %v2816, %v3044
      %3046 = vmatpush1.xpose.msra.mxu0 %v3045
      %3047 = vmatprep.subr.mxu0 0.0
      %v3048 = vand.u32 %v2815, 4294901760
      %v3049 = vsub.f32 %v2815, %v3048
      %3050 = vmatpush1.xpose.msra.mxu0 %v3049
      %3051 = vmatprep.subr.mxu0 0.0
      %v3052 = vand.u32 %v2814, 4294901760
      %v3053 = vsub.f32 %v2814, %v3052
      %3054 = vmatpush1.xpose.msra.mxu0 %v3053
      %3055 = vmatprep.subr.mxu0 0.0
      %v3056 = vand.u32 %v2813, 4294901760
      %v3057 = vsub.f32 %v2813, %v3056
      %3058 = vmatpush1.xpose.msra.mxu0 %v3057
      %3059 = vmatprep.subr.mxu0 0.0
      %3060 = vmatpush2.xpose.msra.mxu0 0.0
      %3061 = vmatprep.subr.mxu0 0.0
      %3062 = vmatpush2.xpose.msra.mxu0 0.0
      %3063 = vmatprep.subr.mxu0 0.0
      %3064 = vmatpush2.xpose.msra.mxu0 0.0
      %3065 = vmatprep.subr.mxu0 0.0
      %3066 = vmatpush2.xpose.msra.mxu0 0.0
      %3067 = vmatprep.subr.mxu0 0.0
      %3068 = vmatpush2.xpose.msra.mxu0 0.0
      %3069 = vmatprep.subr.mxu0 0.0
      %3070 = vmatpush2.xpose.msra.mxu0 0.0
      %3071 = vmatprep.subr.mxu0 0.0
      %3072 = vmatpush2.xpose.msra.mxu0 0.0
      %3073 = vmatprep.subr.mxu0 0.0
      %3074 = vmatpush2.xpose.msra.mxu0 0.0
      %3075 = vmatprep.subr.mxu0 0.0
      %3076 = vmatpush2.xpose.msra.mxu0 0.0
      %3077 = vmatprep.subr.mxu0 0.0
      %3078 = vmatpush2.xpose.msra.mxu0 0.0
      %3079 = vmatprep.subr.mxu0 0.0
      %3080 = vmatpush2.xpose.msra.mxu0 0.0
      %3081 = vmatprep.subr.mxu0 0.0
      %3082 = vmatpush2.xpose.msra.mxu0 0.0
      %3083 = vmatprep.subr.mxu0 0.0
      %3084 = vmatpush2.xpose.msra.mxu0 0.0
      %3085 = vmatprep.subr.mxu0 0.0
      %3086 = vmatpush2.xpose.msra.mxu0 0.0
      %3087 = vmatprep.subr.mxu0 0.0
      %3088 = vmatpush2.xpose.msra.mxu0 0.0
      %3089 = vmatprep.subr.mxu0 0.0
      %3090 = vmatpush2.xpose.msra.mxu0 0.0
      %3091 = vmatprep.mubr.f32.mxu0 0.0
      %v3092 = vand.u32 %v256, 4294901760
      %v3093 = vsub.f32 %v256, %v3092
      %3094 = vmatmul.mubr.f32.gmra.mxu0 %v3093
      %v3095 = vpop.f32.mrf.mxu0
      %v3096 = vadd.f32 %v3004, %v3095
      %v3097 = vpop.f32.mrf.mxu0
      %3098 = vmatprep.mubr.f32.mxu0 0.0
      %v3099 = vand.u32 %v257, 4294901760
      %v3100 = vsub.f32 %v257, %v3099
      %3101 = vmatmul.mubr.f32.gmra.mxu0 %v3100
      %v3102 = vpop.f32.mrf.mxu0
      %v3103 = vadd.f32 %v3010, %v3102
      %v3104 = vpop.f32.mrf.mxu0
      %3105 = vmatprep.mubr.f32.mxu0 0.0
      %v3106 = vand.u32 %v258, 4294901760
      %v3107 = vsub.f32 %v258, %v3106
      %3108 = vmatmul.mubr.f32.gmra.mxu0 %v3107
      %v3109 = vpop.f32.mrf.mxu0
      %v3110 = vadd.f32 %v3016, %v3109
      %v3111 = vpop.f32.mrf.mxu0
      %3112 = vdwg.mxu0
      %3113 = vmatprep.subr.mxu0 0.0
      %3114 = vmatpush1.xpose.msra.mxu0 0.0
      %3115 = vmatprep.subr.mxu0 0.0
      %3116 = vmatpush1.xpose.msra.mxu0 0.0
      %3117 = vmatprep.subr.mxu0 0.0
      %3118 = vmatpush1.xpose.msra.mxu0 0.0
      %3119 = vmatprep.subr.mxu0 0.0
      %3120 = vmatpush1.xpose.msra.mxu0 0.0
      %3121 = vmatprep.subr.mxu0 0.0
      %3122 = vmatpush1.xpose.msra.mxu0 0.0
      %3123 = vmatprep.subr.mxu0 0.0
      %3124 = vmatpush1.xpose.msra.mxu0 0.0
      %3125 = vmatprep.subr.mxu0 0.0
      %3126 = vmatpush1.xpose.msra.mxu0 0.0
      %3127 = vmatprep.subr.mxu0 0.0
      %3128 = vmatpush1.xpose.msra.mxu0 0.0
      %3129 = vmatprep.subr.mxu0 0.0
      %3130 = vmatpush1.xpose.msra.mxu0 0.0
      %3131 = vmatprep.subr.mxu0 0.0
      %3132 = vmatpush1.xpose.msra.mxu0 0.0
      %3133 = vmatprep.subr.mxu0 0.0
      %3134 = vmatpush1.xpose.msra.mxu0 0.0
      %3135 = vmatprep.subr.mxu0 0.0
      %3136 = vmatpush1.xpose.msra.mxu0 0.0
      %3137 = vmatprep.subr.mxu0 0.0
      %v3138 = vand.u32 %v2816, 4294901760
      %3139 = vmatpush1.xpose.msra.mxu0 %v3138
      %3140 = vmatprep.subr.mxu0 0.0
      %v3141 = vand.u32 %v2815, 4294901760
      %3142 = vmatpush1.xpose.msra.mxu0 %v3141
      %3143 = vmatprep.subr.mxu0 0.0
      %v3144 = vand.u32 %v2814, 4294901760
      %3145 = vmatpush1.xpose.msra.mxu0 %v3144
      %3146 = vmatprep.subr.mxu0 0.0
      %v3147 = vand.u32 %v2813, 4294901760
      %3148 = vmatpush1.xpose.msra.mxu0 %v3147
      %3149 = vmatprep.subr.mxu0 0.0
      %3150 = vmatpush2.xpose.msra.mxu0 0.0
      %3151 = vmatprep.subr.mxu0 0.0
      %3152 = vmatpush2.xpose.msra.mxu0 0.0
      %3153 = vmatprep.subr.mxu0 0.0
      %3154 = vmatpush2.xpose.msra.mxu0 0.0
      %3155 = vmatprep.subr.mxu0 0.0
      %3156 = vmatpush2.xpose.msra.mxu0 0.0
      %3157 = vmatprep.subr.mxu0 0.0
      %3158 = vmatpush2.xpose.msra.mxu0 0.0
      %3159 = vmatprep.subr.mxu0 0.0
      %3160 = vmatpush2.xpose.msra.mxu0 0.0
      %3161 = vmatprep.subr.mxu0 0.0
      %3162 = vmatpush2.xpose.msra.mxu0 0.0
      %3163 = vmatprep.subr.mxu0 0.0
      %3164 = vmatpush2.xpose.msra.mxu0 0.0
      %3165 = vmatprep.subr.mxu0 0.0
      %3166 = vmatpush2.xpose.msra.mxu0 0.0
      %3167 = vmatprep.subr.mxu0 0.0
      %3168 = vmatpush2.xpose.msra.mxu0 0.0
      %3169 = vmatprep.subr.mxu0 0.0
      %3170 = vmatpush2.xpose.msra.mxu0 0.0
      %3171 = vmatprep.subr.mxu0 0.0
      %3172 = vmatpush2.xpose.msra.mxu0 0.0
      %3173 = vmatprep.subr.mxu0 0.0
      %3174 = vmatpush2.xpose.msra.mxu0 0.0
      %3175 = vmatprep.subr.mxu0 0.0
      %3176 = vmatpush2.xpose.msra.mxu0 0.0
      %3177 = vmatprep.subr.mxu0 0.0
      %3178 = vmatpush2.xpose.msra.mxu0 0.0
      %3179 = vmatprep.subr.mxu0 0.0
      %3180 = vmatpush2.xpose.msra.mxu0 0.0
      %3181 = vmatprep.mubr.f32.mxu0 0.0
      %v3182 = vand.u32 %v256, 4294901760
      %v3183 = vsub.f32 %v256, %v3182
      %v3184 = vand.u32 %v3183, 4294901760
      %3185 = vmatmul.mubr.f32.gmra.mxu0 %v3184
      %v3186 = vpop.f32.mrf.mxu0
      %v3187 = vadd.f32 %v3096, %v3186
      %v3188 = vpop.f32.mrf.mxu0
      %3189 = vmatprep.mubr.f32.mxu0 0.0
      %v3190 = vand.u32 %v257, 4294901760
      %v3191 = vsub.f32 %v257, %v3190
      %v3192 = vand.u32 %v3191, 4294901760
      %3193 = vmatmul.mubr.f32.gmra.mxu0 %v3192
      %v3194 = vpop.f32.mrf.mxu0
      %v3195 = vadd.f32 %v3103, %v3194
      %v3196 = vpop.f32.mrf.mxu0
      %3197 = vmatprep.mubr.f32.mxu0 0.0
      %v3198 = vand.u32 %v258, 4294901760
      %v3199 = vsub.f32 %v258, %v3198
      %v3200 = vand.u32 %v3199, 4294901760
      %3201 = vmatmul.mubr.f32.gmra.mxu0 %v3200
      %v3202 = vpop.f32.mrf.mxu0
      %v3203 = vadd.f32 %v3110, %v3202
      %v3204 = vpop.f32.mrf.mxu0
      %3205 = vdwg.mxu0
      %3206 = vmatprep.subr.mxu0 0.0
      %3207 = vmatpush1.xpose.msra.mxu0 0.0
      %3208 = vmatprep.subr.mxu0 0.0
      %3209 = vmatpush1.xpose.msra.mxu0 0.0
      %3210 = vmatprep.subr.mxu0 0.0
      %3211 = vmatpush1.xpose.msra.mxu0 0.0
      %3212 = vmatprep.subr.mxu0 0.0
      %3213 = vmatpush1.xpose.msra.mxu0 0.0
      %3214 = vmatprep.subr.mxu0 0.0
      %3215 = vmatpush1.xpose.msra.mxu0 0.0
      %3216 = vmatprep.subr.mxu0 0.0
      %3217 = vmatpush1.xpose.msra.mxu0 0.0
      %3218 = vmatprep.subr.mxu0 0.0
      %3219 = vmatpush1.xpose.msra.mxu0 0.0
      %3220 = vmatprep.subr.mxu0 0.0
      %3221 = vmatpush1.xpose.msra.mxu0 0.0
      %3222 = vmatprep.subr.mxu0 0.0
      %3223 = vmatpush1.xpose.msra.mxu0 0.0
      %3224 = vmatprep.subr.mxu0 0.0
      %3225 = vmatpush1.xpose.msra.mxu0 0.0
      %3226 = vmatprep.subr.mxu0 0.0
      %3227 = vmatpush1.xpose.msra.mxu0 0.0
      %3228 = vmatprep.subr.mxu0 0.0
      %3229 = vmatpush1.xpose.msra.mxu0 0.0
      %3230 = vmatprep.subr.mxu0 0.0
      %v3231 = vand.u32 %v2816, 4294901760
      %v3232 = vsub.f32 %v2816, %v3231
      %v3233 = vand.u32 %v3232, 4294901760
      %3234 = vmatpush1.xpose.msra.mxu0 %v3233
      %3235 = vmatprep.subr.mxu0 0.0
      %v3236 = vand.u32 %v2815, 4294901760
      %v3237 = vsub.f32 %v2815, %v3236
      %v3238 = vand.u32 %v3237, 4294901760
      %3239 = vmatpush1.xpose.msra.mxu0 %v3238
      %3240 = vmatprep.subr.mxu0 0.0
      %v3241 = vand.u32 %v2814, 4294901760
      %v3242 = vsub.f32 %v2814, %v3241
      %v3243 = vand.u32 %v3242, 4294901760
      %3244 = vmatpush1.xpose.msra.mxu0 %v3243
      %3245 = vmatprep.subr.mxu0 0.0
      %v3246 = vand.u32 %v2813, 4294901760
      %v3247 = vsub.f32 %v2813, %v3246
      %v3248 = vand.u32 %v3247, 4294901760
      %3249 = vmatpush1.xpose.msra.mxu0 %v3248
      %3250 = vmatprep.subr.mxu0 0.0
      %3251 = vmatpush2.xpose.msra.mxu0 0.0
      %3252 = vmatprep.subr.mxu0 0.0
      %3253 = vmatpush2.xpose.msra.mxu0 0.0
      %3254 = vmatprep.subr.mxu0 0.0
      %3255 = vmatpush2.xpose.msra.mxu0 0.0
      %3256 = vmatprep.subr.mxu0 0.0
      %3257 = vmatpush2.xpose.msra.mxu0 0.0
      %3258 = vmatprep.subr.mxu0 0.0
      %3259 = vmatpush2.xpose.msra.mxu0 0.0
      %3260 = vmatprep.subr.mxu0 0.0
      %3261 = vmatpush2.xpose.msra.mxu0 0.0
      %3262 = vmatprep.subr.mxu0 0.0
      %3263 = vmatpush2.xpose.msra.mxu0 0.0
      %3264 = vmatprep.subr.mxu0 0.0
      %3265 = vmatpush2.xpose.msra.mxu0 0.0
      %3266 = vmatprep.subr.mxu0 0.0
      %3267 = vmatpush2.xpose.msra.mxu0 0.0
      %3268 = vmatprep.subr.mxu0 0.0
      %3269 = vmatpush2.xpose.msra.mxu0 0.0
      %3270 = vmatprep.subr.mxu0 0.0
      %3271 = vmatpush2.xpose.msra.mxu0 0.0
      %3272 = vmatprep.subr.mxu0 0.0
      %3273 = vmatpush2.xpose.msra.mxu0 0.0
      %3274 = vmatprep.subr.mxu0 0.0
      %3275 = vmatpush2.xpose.msra.mxu0 0.0
      %3276 = vmatprep.subr.mxu0 0.0
      %3277 = vmatpush2.xpose.msra.mxu0 0.0
      %3278 = vmatprep.subr.mxu0 0.0
      %3279 = vmatpush2.xpose.msra.mxu0 0.0
      %3280 = vmatprep.subr.mxu0 0.0
      %3281 = vmatpush2.xpose.msra.mxu0 0.0
      %3282 = vmatprep.mubr.f32.mxu0 0.0
      %v3283 = vand.u32 %v256, 4294901760
      %3284 = vmatmul.mubr.f32.gmra.mxu0 %v3283
      %v3285 = vpop.f32.mrf.mxu0
      %v3286 = vadd.f32 %v3187, %v3285
      %v3287 = vpop.f32.mrf.mxu0
      %3288 = vmatprep.mubr.f32.mxu0 0.0
      %v3289 = vand.u32 %v257, 4294901760
      %3290 = vmatmul.mubr.f32.gmra.mxu0 %v3289
      %v3291 = vpop.f32.mrf.mxu0
      %v3292 = vadd.f32 %v3195, %v3291
      %v3293 = vpop.f32.mrf.mxu0
      %3294 = vmatprep.mubr.f32.mxu0 0.0
      %v3295 = vand.u32 %v258, 4294901760
      %3296 = vmatmul.mubr.f32.gmra.mxu0 %v3295
      %v3297 = vpop.f32.mrf.mxu0
      %v3298 = vadd.f32 %v3203, %v3297
      %v3299 = vpop.f32.mrf.mxu0
      %3300 = vdwg.mxu0
      %3301 = vmatprep.subr.mxu0 0.0
      %3302 = vmatpush1.xpose.msra.mxu0 0.0
      %3303 = vmatprep.subr.mxu0 0.0
      %3304 = vmatpush1.xpose.msra.mxu0 0.0
      %3305 = vmatprep.subr.mxu0 0.0
      %3306 = vmatpush1.xpose.msra.mxu0 0.0
      %3307 = vmatprep.subr.mxu0 0.0
      %3308 = vmatpush1.xpose.msra.mxu0 0.0
      %3309 = vmatprep.subr.mxu0 0.0
      %3310 = vmatpush1.xpose.msra.mxu0 0.0
      %3311 = vmatprep.subr.mxu0 0.0
      %3312 = vmatpush1.xpose.msra.mxu0 0.0
      %3313 = vmatprep.subr.mxu0 0.0
      %3314 = vmatpush1.xpose.msra.mxu0 0.0
      %3315 = vmatprep.subr.mxu0 0.0
      %3316 = vmatpush1.xpose.msra.mxu0 0.0
      %3317 = vmatprep.subr.mxu0 0.0
      %3318 = vmatpush1.xpose.msra.mxu0 0.0
      %3319 = vmatprep.subr.mxu0 0.0
      %3320 = vmatpush1.xpose.msra.mxu0 0.0
      %3321 = vmatprep.subr.mxu0 0.0
      %3322 = vmatpush1.xpose.msra.mxu0 0.0
      %3323 = vmatprep.subr.mxu0 0.0
      %3324 = vmatpush1.xpose.msra.mxu0 0.0
      %3325 = vmatprep.subr.mxu0 0.0
      %v3326 = vand.u32 %v2816, 4294901760
      %3327 = vmatpush1.xpose.msra.mxu0 %v3326
      %3328 = vmatprep.subr.mxu0 0.0
      %v3329 = vand.u32 %v2815, 4294901760
      %3330 = vmatpush1.xpose.msra.mxu0 %v3329
      %3331 = vmatprep.subr.mxu0 0.0
      %v3332 = vand.u32 %v2814, 4294901760
      %3333 = vmatpush1.xpose.msra.mxu0 %v3332
      %3334 = vmatprep.subr.mxu0 0.0
      %v3335 = vand.u32 %v2813, 4294901760
      %3336 = vmatpush1.xpose.msra.mxu0 %v3335
      %3337 = vmatprep.subr.mxu0 0.0
      %3338 = vmatpush2.xpose.msra.mxu0 0.0
      %3339 = vmatprep.subr.mxu0 0.0
      %3340 = vmatpush2.xpose.msra.mxu0 0.0
      %3341 = vmatprep.subr.mxu0 0.0
      %3342 = vmatpush2.xpose.msra.mxu0 0.0
      %3343 = vmatprep.subr.mxu0 0.0
      %3344 = vmatpush2.xpose.msra.mxu0 0.0
      %3345 = vmatprep.subr.mxu0 0.0
      %3346 = vmatpush2.xpose.msra.mxu0 0.0
      %3347 = vmatprep.subr.mxu0 0.0
      %3348 = vmatpush2.xpose.msra.mxu0 0.0
      %3349 = vmatprep.subr.mxu0 0.0
      %3350 = vmatpush2.xpose.msra.mxu0 0.0
      %3351 = vmatprep.subr.mxu0 0.0
      %3352 = vmatpush2.xpose.msra.mxu0 0.0
      %3353 = vmatprep.subr.mxu0 0.0
      %3354 = vmatpush2.xpose.msra.mxu0 0.0
      %3355 = vmatprep.subr.mxu0 0.0
      %3356 = vmatpush2.xpose.msra.mxu0 0.0
      %3357 = vmatprep.subr.mxu0 0.0
      %3358 = vmatpush2.xpose.msra.mxu0 0.0
      %3359 = vmatprep.subr.mxu0 0.0
      %3360 = vmatpush2.xpose.msra.mxu0 0.0
      %3361 = vmatprep.subr.mxu0 0.0
      %3362 = vmatpush2.xpose.msra.mxu0 0.0
      %3363 = vmatprep.subr.mxu0 0.0
      %3364 = vmatpush2.xpose.msra.mxu0 0.0
      %3365 = vmatprep.subr.mxu0 0.0
      %3366 = vmatpush2.xpose.msra.mxu0 0.0
      %3367 = vmatprep.subr.mxu0 0.0
      %3368 = vmatpush2.xpose.msra.mxu0 0.0
      %3369 = vmatprep.mubr.f32.mxu0 0.0
      %v3370 = vand.u32 %v256, 4294901760
      %3371 = vmatmul.mubr.f32.gmra.mxu0 %v3370
      %v3372 = vpop.f32.mrf.mxu0
      %v3373 = vadd.f32 %v3286, %v3372
      %v3374 = vpop.f32.mrf.mxu0
      %3375 = vmatprep.mubr.f32.mxu0 0.0
      %v3376 = vand.u32 %v257, 4294901760
      %3377 = vmatmul.mubr.f32.gmra.mxu0 %v3376
      %v3378 = vpop.f32.mrf.mxu0
      %v3379 = vadd.f32 %v3292, %v3378
      %v3380 = vpop.f32.mrf.mxu0
      %3381 = vmatprep.mubr.f32.mxu0 0.0
      %v3382 = vand.u32 %v258, 4294901760
      %3383 = vmatmul.mubr.f32.gmra.mxu0 %v3382
      %v3384 = vpop.f32.mrf.mxu0
      %v3385 = vadd.f32 %v3298, %v3384
      %v3386 = vpop.f32.mrf.mxu0
      %3387 = vdwg.mxu0
      %v3388 = vadd.f32 %v2774, %v3373
      %v3389 = vadd.f32 %v2775, %v3379
      %v3390 = vadd.f32 %v2776, %v3385
      %v3391 = vsel %vm2805, 1e+30, %v2777
      %v3392 = vsel %vm2806, 1e+30, %v2778
      %v3393 = vsel %vm2807, 1e+30, %v2779
      %v3394 = vsel %vm2808, 1e+30, %v2780
      %3395 = vmin.xlane.f32.xlu0 %v3391
      %v3396 = vpop.xlane.xlu0 %3395
      %3397 = vmin.xlane.f32.xlu0 %v3392
      %v3398 = vpop.xlane.xlu0 %3397
      %3399 = vmin.xlane.f32.xlu0 %v3393
      %v3400 = vpop.xlane.xlu0 %3399
      %3401 = vmin.xlane.f32.xlu0 %v3394
      %v3402 = vpop.xlane.xlu0 %3401
      %vm3403 = vcmp.eq.f32.partialorder %v3391, %v3396
      %vm3404 = vcmp.eq.f32.partialorder %v3392, %v3398
      %vm3405 = vcmp.eq.f32.partialorder %v3393, %v3400
      %vm3406 = vcmp.eq.f32.partialorder %v3394, %v3402
      %v3407 = vsel %vm3403, %v261, 128.0
      %v3408 = vsel %vm3404, %v261, 128.0
      %v3409 = vsel %vm3405, %v261, 128.0
      %v3410 = vsel %vm3406, %v261, 128.0
      %3411 = vmin.xlane.f32.xlu0 %v3407
      %v3412 = vpop.xlane.xlu0 %3411
      %3413 = vmin.xlane.f32.xlu0 %v3408
      %v3414 = vpop.xlane.xlu0 %3413
      %3415 = vmin.xlane.f32.xlu0 %v3409
      %v3416 = vpop.xlane.xlu0 %3415
      %3417 = vmin.xlane.f32.xlu0 %v3410
      %v3418 = vpop.xlane.xlu0 %3417
      %vm3419 = vcmp.eq.f32.partialorder %v261, %v3412
      %vm3420 = vcmp.eq.f32.partialorder %v261, %v3414
      %vm3421 = vcmp.eq.f32.partialorder %v261, %v3416
      %vm3422 = vcmp.eq.f32.partialorder %v261, %v3418
      %v3423 = vsel %vm3419, 1, 0
      %v3424 = vsel %vm3420, 1, 0
      %v3425 = vsel %vm3421, 1, 0
      %v3426 = vsel %vm3422, 1, 0
      %v3427 = vcvt.s32.f32 %v3423
      %v3428 = vcvt.s32.f32 %v3424
      %v3429 = vcvt.s32.f32 %v3425
      %v3430 = vcvt.s32.f32 %v3426
      %3431 = vmatprep.subr.mxu0 0.0
      %3432 = vmatpush1.xpose.msra.mxu0 0.0
      %3433 = vmatprep.subr.mxu0 0.0
      %3434 = vmatpush1.xpose.msra.mxu0 0.0
      %3435 = vmatprep.subr.mxu0 0.0
      %3436 = vmatpush1.xpose.msra.mxu0 0.0
      %3437 = vmatprep.subr.mxu0 0.0
      %3438 = vmatpush1.xpose.msra.mxu0 0.0
      %3439 = vmatprep.subr.mxu0 0.0
      %3440 = vmatpush1.xpose.msra.mxu0 0.0
      %3441 = vmatprep.subr.mxu0 0.0
      %3442 = vmatpush1.xpose.msra.mxu0 0.0
      %3443 = vmatprep.subr.mxu0 0.0
      %3444 = vmatpush1.xpose.msra.mxu0 0.0
      %3445 = vmatprep.subr.mxu0 0.0
      %3446 = vmatpush1.xpose.msra.mxu0 0.0
      %3447 = vmatprep.subr.mxu0 0.0
      %3448 = vmatpush1.xpose.msra.mxu0 0.0
      %3449 = vmatprep.subr.mxu0 0.0
      %3450 = vmatpush1.xpose.msra.mxu0 0.0
      %3451 = vmatprep.subr.mxu0 0.0
      %3452 = vmatpush1.xpose.msra.mxu0 0.0
      %3453 = vmatprep.subr.mxu0 0.0
      %3454 = vmatpush1.xpose.msra.mxu0 0.0
      %3455 = vmatprep.subr.mxu0 0.0
      %v3456 = vand.u32 %v3430, 4294901760
      %3457 = vmatpush1.xpose.msra.mxu0 %v3456
      %3458 = vmatprep.subr.mxu0 0.0
      %v3459 = vand.u32 %v3429, 4294901760
      %3460 = vmatpush1.xpose.msra.mxu0 %v3459
      %3461 = vmatprep.subr.mxu0 0.0
      %v3462 = vand.u32 %v3428, 4294901760
      %3463 = vmatpush1.xpose.msra.mxu0 %v3462
      %3464 = vmatprep.subr.mxu0 0.0
      %v3465 = vand.u32 %v3427, 4294901760
      %3466 = vmatpush1.xpose.msra.mxu0 %v3465
      %3467 = vmatprep.subr.mxu0 0.0
      %3468 = vmatpush2.xpose.msra.mxu0 0.0
      %3469 = vmatprep.subr.mxu0 0.0
      %3470 = vmatpush2.xpose.msra.mxu0 0.0
      %3471 = vmatprep.subr.mxu0 0.0
      %3472 = vmatpush2.xpose.msra.mxu0 0.0
      %3473 = vmatprep.subr.mxu0 0.0
      %3474 = vmatpush2.xpose.msra.mxu0 0.0
      %3475 = vmatprep.subr.mxu0 0.0
      %3476 = vmatpush2.xpose.msra.mxu0 0.0
      %3477 = vmatprep.subr.mxu0 0.0
      %3478 = vmatpush2.xpose.msra.mxu0 0.0
      %3479 = vmatprep.subr.mxu0 0.0
      %3480 = vmatpush2.xpose.msra.mxu0 0.0
      %3481 = vmatprep.subr.mxu0 0.0
      %3482 = vmatpush2.xpose.msra.mxu0 0.0
      %3483 = vmatprep.subr.mxu0 0.0
      %3484 = vmatpush2.xpose.msra.mxu0 0.0
      %3485 = vmatprep.subr.mxu0 0.0
      %3486 = vmatpush2.xpose.msra.mxu0 0.0
      %3487 = vmatprep.subr.mxu0 0.0
      %3488 = vmatpush2.xpose.msra.mxu0 0.0
      %3489 = vmatprep.subr.mxu0 0.0
      %3490 = vmatpush2.xpose.msra.mxu0 0.0
      %3491 = vmatprep.subr.mxu0 0.0
      %3492 = vmatpush2.xpose.msra.mxu0 0.0
      %3493 = vmatprep.subr.mxu0 0.0
      %3494 = vmatpush2.xpose.msra.mxu0 0.0
      %3495 = vmatprep.subr.mxu0 0.0
      %3496 = vmatpush2.xpose.msra.mxu0 0.0
      %3497 = vmatprep.subr.mxu0 0.0
      %3498 = vmatpush2.xpose.msra.mxu0 0.0
      %3499 = vmatprep.mubr.f32.mxu0 0.0
      %v3500 = vand.u32 %v256, 4294901760
      %v3501 = vsub.f32 %v256, %v3500
      %v3502 = vand.u32 %v3501, 4294901760
      %v3503 = vsub.f32 %v3501, %v3502
      %v3504 = vand.u32 %v3503, 4294901760
      %3505 = vmatmul.mubr.f32.gmra.mxu0 %v3504
      %v3506 = vpop.f32.mrf.mxu0
      %v3507 = vadd.f32 0.0, %v3506
      %v3508 = vpop.f32.mrf.mxu0
      %3509 = vmatprep.mubr.f32.mxu0 0.0
      %v3510 = vand.u32 %v257, 4294901760
      %v3511 = vsub.f32 %v257, %v3510
      %v3512 = vand.u32 %v3511, 4294901760
      %v3513 = vsub.f32 %v3511, %v3512
      %v3514 = vand.u32 %v3513, 4294901760
      %3515 = vmatmul.mubr.f32.gmra.mxu0 %v3514
      %v3516 = vpop.f32.mrf.mxu0
      %v3517 = vadd.f32 0.0, %v3516
      %v3518 = vpop.f32.mrf.mxu0
      %3519 = vmatprep.mubr.f32.mxu0 0.0
      %v3520 = vand.u32 %v258, 4294901760
      %v3521 = vsub.f32 %v258, %v3520
      %v3522 = vand.u32 %v3521, 4294901760
      %v3523 = vsub.f32 %v3521, %v3522
      %v3524 = vand.u32 %v3523, 4294901760
      %3525 = vmatmul.mubr.f32.gmra.mxu0 %v3524
      %v3526 = vpop.f32.mrf.mxu0
      %v3527 = vadd.f32 0.0, %v3526
      %v3528 = vpop.f32.mrf.mxu0
      %3529 = vdwg.mxu0
      %3530 = vmatprep.subr.mxu0 0.0
      %3531 = vmatpush1.xpose.msra.mxu0 0.0
      %3532 = vmatprep.subr.mxu0 0.0
      %3533 = vmatpush1.xpose.msra.mxu0 0.0
      %3534 = vmatprep.subr.mxu0 0.0
      %3535 = vmatpush1.xpose.msra.mxu0 0.0
      %3536 = vmatprep.subr.mxu0 0.0
      %3537 = vmatpush1.xpose.msra.mxu0 0.0
      %3538 = vmatprep.subr.mxu0 0.0
      %3539 = vmatpush1.xpose.msra.mxu0 0.0
      %3540 = vmatprep.subr.mxu0 0.0
      %3541 = vmatpush1.xpose.msra.mxu0 0.0
      %3542 = vmatprep.subr.mxu0 0.0
      %3543 = vmatpush1.xpose.msra.mxu0 0.0
      %3544 = vmatprep.subr.mxu0 0.0
      %3545 = vmatpush1.xpose.msra.mxu0 0.0
      %3546 = vmatprep.subr.mxu0 0.0
      %3547 = vmatpush1.xpose.msra.mxu0 0.0
      %3548 = vmatprep.subr.mxu0 0.0
      %3549 = vmatpush1.xpose.msra.mxu0 0.0
      %3550 = vmatprep.subr.mxu0 0.0
      %3551 = vmatpush1.xpose.msra.mxu0 0.0
      %3552 = vmatprep.subr.mxu0 0.0
      %3553 = vmatpush1.xpose.msra.mxu0 0.0
      %3554 = vmatprep.subr.mxu0 0.0
      %v3555 = vand.u32 %v3430, 4294901760
      %v3556 = vsub.f32 %v3430, %v3555
      %v3557 = vand.u32 %v3556, 4294901760
      %v3558 = vsub.f32 %v3556, %v3557
      %v3559 = vand.u32 %v3558, 4294901760
      %3560 = vmatpush1.xpose.msra.mxu0 %v3559
      %3561 = vmatprep.subr.mxu0 0.0
      %v3562 = vand.u32 %v3429, 4294901760
      %v3563 = vsub.f32 %v3429, %v3562
      %v3564 = vand.u32 %v3563, 4294901760
      %v3565 = vsub.f32 %v3563, %v3564
      %v3566 = vand.u32 %v3565, 4294901760
      %3567 = vmatpush1.xpose.msra.mxu0 %v3566
      %3568 = vmatprep.subr.mxu0 0.0
      %v3569 = vand.u32 %v3428, 4294901760
      %v3570 = vsub.f32 %v3428, %v3569
      %v3571 = vand.u32 %v3570, 4294901760
      %v3572 = vsub.f32 %v3570, %v3571
      %v3573 = vand.u32 %v3572, 4294901760
      %3574 = vmatpush1.xpose.msra.mxu0 %v3573
      %3575 = vmatprep.subr.mxu0 0.0
      %v3576 = vand.u32 %v3427, 4294901760
      %v3577 = vsub.f32 %v3427, %v3576
      %v3578 = vand.u32 %v3577, 4294901760
      %v3579 = vsub.f32 %v3577, %v3578
      %v3580 = vand.u32 %v3579, 4294901760
      %3581 = vmatpush1.xpose.msra.mxu0 %v3580
      %3582 = vmatprep.subr.mxu0 0.0
      %3583 = vmatpush2.xpose.msra.mxu0 0.0
      %3584 = vmatprep.subr.mxu0 0.0
      %3585 = vmatpush2.xpose.msra.mxu0 0.0
      %3586 = vmatprep.subr.mxu0 0.0
      %3587 = vmatpush2.xpose.msra.mxu0 0.0
      %3588 = vmatprep.subr.mxu0 0.0
      %3589 = vmatpush2.xpose.msra.mxu0 0.0
      %3590 = vmatprep.subr.mxu0 0.0
      %3591 = vmatpush2.xpose.msra.mxu0 0.0
      %3592 = vmatprep.subr.mxu0 0.0
      %3593 = vmatpush2.xpose.msra.mxu0 0.0
      %3594 = vmatprep.subr.mxu0 0.0
      %3595 = vmatpush2.xpose.msra.mxu0 0.0
      %3596 = vmatprep.subr.mxu0 0.0
      %3597 = vmatpush2.xpose.msra.mxu0 0.0
      %3598 = vmatprep.subr.mxu0 0.0
      %3599 = vmatpush2.xpose.msra.mxu0 0.0
      %3600 = vmatprep.subr.mxu0 0.0
      %3601 = vmatpush2.xpose.msra.mxu0 0.0
      %3602 = vmatprep.subr.mxu0 0.0
      %3603 = vmatpush2.xpose.msra.mxu0 0.0
      %3604 = vmatprep.subr.mxu0 0.0
      %3605 = vmatpush2.xpose.msra.mxu0 0.0
      %3606 = vmatprep.subr.mxu0 0.0
      %3607 = vmatpush2.xpose.msra.mxu0 0.0
      %3608 = vmatprep.subr.mxu0 0.0
      %3609 = vmatpush2.xpose.msra.mxu0 0.0
      %3610 = vmatprep.subr.mxu0 0.0
      %3611 = vmatpush2.xpose.msra.mxu0 0.0
      %3612 = vmatprep.subr.mxu0 0.0
      %3613 = vmatpush2.xpose.msra.mxu0 0.0
      %3614 = vmatprep.mubr.f32.mxu0 0.0
      %v3615 = vand.u32 %v256, 4294901760
      %3616 = vmatmul.mubr.f32.gmra.mxu0 %v3615
      %v3617 = vpop.f32.mrf.mxu0
      %v3618 = vadd.f32 %v3507, %v3617
      %v3619 = vpop.f32.mrf.mxu0
      %3620 = vmatprep.mubr.f32.mxu0 0.0
      %v3621 = vand.u32 %v257, 4294901760
      %3622 = vmatmul.mubr.f32.gmra.mxu0 %v3621
      %v3623 = vpop.f32.mrf.mxu0
      %v3624 = vadd.f32 %v3517, %v3623
      %v3625 = vpop.f32.mrf.mxu0
      %3626 = vmatprep.mubr.f32.mxu0 0.0
      %v3627 = vand.u32 %v258, 4294901760
      %3628 = vmatmul.mubr.f32.gmra.mxu0 %v3627
      %v3629 = vpop.f32.mrf.mxu0
      %v3630 = vadd.f32 %v3527, %v3629
      %v3631 = vpop.f32.mrf.mxu0
      %3632 = vdwg.mxu0
      %3633 = vmatprep.subr.mxu0 0.0
      %3634 = vmatpush1.xpose.msra.mxu0 0.0
      %3635 = vmatprep.subr.mxu0 0.0
      %3636 = vmatpush1.xpose.msra.mxu0 0.0
      %3637 = vmatprep.subr.mxu0 0.0
      %3638 = vmatpush1.xpose.msra.mxu0 0.0
      %3639 = vmatprep.subr.mxu0 0.0
      %3640 = vmatpush1.xpose.msra.mxu0 0.0
      %3641 = vmatprep.subr.mxu0 0.0
      %3642 = vmatpush1.xpose.msra.mxu0 0.0
      %3643 = vmatprep.subr.mxu0 0.0
      %3644 = vmatpush1.xpose.msra.mxu0 0.0
      %3645 = vmatprep.subr.mxu0 0.0
      %3646 = vmatpush1.xpose.msra.mxu0 0.0
      %3647 = vmatprep.subr.mxu0 0.0
      %3648 = vmatpush1.xpose.msra.mxu0 0.0
      %3649 = vmatprep.subr.mxu0 0.0
      %3650 = vmatpush1.xpose.msra.mxu0 0.0
      %3651 = vmatprep.subr.mxu0 0.0
      %3652 = vmatpush1.xpose.msra.mxu0 0.0
      %3653 = vmatprep.subr.mxu0 0.0
      %3654 = vmatpush1.xpose.msra.mxu0 0.0
      %3655 = vmatprep.subr.mxu0 0.0
      %3656 = vmatpush1.xpose.msra.mxu0 0.0
      %3657 = vmatprep.subr.mxu0 0.0
      %v3658 = vand.u32 %v3430, 4294901760
      %v3659 = vsub.f32 %v3430, %v3658
      %3660 = vmatpush1.xpose.msra.mxu0 %v3659
      %3661 = vmatprep.subr.mxu0 0.0
      %v3662 = vand.u32 %v3429, 4294901760
      %v3663 = vsub.f32 %v3429, %v3662
      %3664 = vmatpush1.xpose.msra.mxu0 %v3663
      %3665 = vmatprep.subr.mxu0 0.0
      %v3666 = vand.u32 %v3428, 4294901760
      %v3667 = vsub.f32 %v3428, %v3666
      %3668 = vmatpush1.xpose.msra.mxu0 %v3667
      %3669 = vmatprep.subr.mxu0 0.0
      %v3670 = vand.u32 %v3427, 4294901760
      %v3671 = vsub.f32 %v3427, %v3670
      %3672 = vmatpush1.xpose.msra.mxu0 %v3671
      %3673 = vmatprep.subr.mxu0 0.0
      %3674 = vmatpush2.xpose.msra.mxu0 0.0
      %3675 = vmatprep.subr.mxu0 0.0
      %3676 = vmatpush2.xpose.msra.mxu0 0.0
      %3677 = vmatprep.subr.mxu0 0.0
      %3678 = vmatpush2.xpose.msra.mxu0 0.0
      %3679 = vmatprep.subr.mxu0 0.0
      %3680 = vmatpush2.xpose.msra.mxu0 0.0
      %3681 = vmatprep.subr.mxu0 0.0
      %3682 = vmatpush2.xpose.msra.mxu0 0.0
      %3683 = vmatprep.subr.mxu0 0.0
      %3684 = vmatpush2.xpose.msra.mxu0 0.0
      %3685 = vmatprep.subr.mxu0 0.0
      %3686 = vmatpush2.xpose.msra.mxu0 0.0
      %3687 = vmatprep.subr.mxu0 0.0
      %3688 = vmatpush2.xpose.msra.mxu0 0.0
      %3689 = vmatprep.subr.mxu0 0.0
      %3690 = vmatpush2.xpose.msra.mxu0 0.0
      %3691 = vmatprep.subr.mxu0 0.0
      %3692 = vmatpush2.xpose.msra.mxu0 0.0
      %3693 = vmatprep.subr.mxu0 0.0
      %3694 = vmatpush2.xpose.msra.mxu0 0.0
      %3695 = vmatprep.subr.mxu0 0.0
      %3696 = vmatpush2.xpose.msra.mxu0 0.0
      %3697 = vmatprep.subr.mxu0 0.0
      %3698 = vmatpush2.xpose.msra.mxu0 0.0
      %3699 = vmatprep.subr.mxu0 0.0
      %3700 = vmatpush2.xpose.msra.mxu0 0.0
      %3701 = vmatprep.subr.mxu0 0.0
      %3702 = vmatpush2.xpose.msra.mxu0 0.0
      %3703 = vmatprep.subr.mxu0 0.0
      %3704 = vmatpush2.xpose.msra.mxu0 0.0
      %3705 = vmatprep.mubr.f32.mxu0 0.0
      %v3706 = vand.u32 %v256, 4294901760
      %v3707 = vsub.f32 %v256, %v3706
      %3708 = vmatmul.mubr.f32.gmra.mxu0 %v3707
      %v3709 = vpop.f32.mrf.mxu0
      %v3710 = vadd.f32 %v3618, %v3709
      %v3711 = vpop.f32.mrf.mxu0
      %3712 = vmatprep.mubr.f32.mxu0 0.0
      %v3713 = vand.u32 %v257, 4294901760
      %v3714 = vsub.f32 %v257, %v3713
      %3715 = vmatmul.mubr.f32.gmra.mxu0 %v3714
      %v3716 = vpop.f32.mrf.mxu0
      %v3717 = vadd.f32 %v3624, %v3716
      %v3718 = vpop.f32.mrf.mxu0
      %3719 = vmatprep.mubr.f32.mxu0 0.0
      %v3720 = vand.u32 %v258, 4294901760
      %v3721 = vsub.f32 %v258, %v3720
      %3722 = vmatmul.mubr.f32.gmra.mxu0 %v3721
      %v3723 = vpop.f32.mrf.mxu0
      %v3724 = vadd.f32 %v3630, %v3723
      %v3725 = vpop.f32.mrf.mxu0
      %3726 = vdwg.mxu0
      %3727 = vmatprep.subr.mxu0 0.0
      %3728 = vmatpush1.xpose.msra.mxu0 0.0
      %3729 = vmatprep.subr.mxu0 0.0
      %3730 = vmatpush1.xpose.msra.mxu0 0.0
      %3731 = vmatprep.subr.mxu0 0.0
      %3732 = vmatpush1.xpose.msra.mxu0 0.0
      %3733 = vmatprep.subr.mxu0 0.0
      %3734 = vmatpush1.xpose.msra.mxu0 0.0
      %3735 = vmatprep.subr.mxu0 0.0
      %3736 = vmatpush1.xpose.msra.mxu0 0.0
      %3737 = vmatprep.subr.mxu0 0.0
      %3738 = vmatpush1.xpose.msra.mxu0 0.0
      %3739 = vmatprep.subr.mxu0 0.0
      %3740 = vmatpush1.xpose.msra.mxu0 0.0
      %3741 = vmatprep.subr.mxu0 0.0
      %3742 = vmatpush1.xpose.msra.mxu0 0.0
      %3743 = vmatprep.subr.mxu0 0.0
      %3744 = vmatpush1.xpose.msra.mxu0 0.0
      %3745 = vmatprep.subr.mxu0 0.0
      %3746 = vmatpush1.xpose.msra.mxu0 0.0
      %3747 = vmatprep.subr.mxu0 0.0
      %3748 = vmatpush1.xpose.msra.mxu0 0.0
      %3749 = vmatprep.subr.mxu0 0.0
      %3750 = vmatpush1.xpose.msra.mxu0 0.0
      %3751 = vmatprep.subr.mxu0 0.0
      %v3752 = vand.u32 %v3430, 4294901760
      %3753 = vmatpush1.xpose.msra.mxu0 %v3752
      %3754 = vmatprep.subr.mxu0 0.0
      %v3755 = vand.u32 %v3429, 4294901760
      %3756 = vmatpush1.xpose.msra.mxu0 %v3755
      %3757 = vmatprep.subr.mxu0 0.0
      %v3758 = vand.u32 %v3428, 4294901760
      %3759 = vmatpush1.xpose.msra.mxu0 %v3758
      %3760 = vmatprep.subr.mxu0 0.0
      %v3761 = vand.u32 %v3427, 4294901760
      %3762 = vmatpush1.xpose.msra.mxu0 %v3761
      %3763 = vmatprep.subr.mxu0 0.0
      %3764 = vmatpush2.xpose.msra.mxu0 0.0
      %3765 = vmatprep.subr.mxu0 0.0
      %3766 = vmatpush2.xpose.msra.mxu0 0.0
      %3767 = vmatprep.subr.mxu0 0.0
      %3768 = vmatpush2.xpose.msra.mxu0 0.0
      %3769 = vmatprep.subr.mxu0 0.0
      %3770 = vmatpush2.xpose.msra.mxu0 0.0
      %3771 = vmatprep.subr.mxu0 0.0
      %3772 = vmatpush2.xpose.msra.mxu0 0.0
      %3773 = vmatprep.subr.mxu0 0.0
      %3774 = vmatpush2.xpose.msra.mxu0 0.0
      %3775 = vmatprep.subr.mxu0 0.0
      %3776 = vmatpush2.xpose.msra.mxu0 0.0
      %3777 = vmatprep.subr.mxu0 0.0
      %3778 = vmatpush2.xpose.msra.mxu0 0.0
      %3779 = vmatprep.subr.mxu0 0.0
      %3780 = vmatpush2.xpose.msra.mxu0 0.0
      %3781 = vmatprep.subr.mxu0 0.0
      %3782 = vmatpush2.xpose.msra.mxu0 0.0
      %3783 = vmatprep.subr.mxu0 0.0
      %3784 = vmatpush2.xpose.msra.mxu0 0.0
      %3785 = vmatprep.subr.mxu0 0.0
      %3786 = vmatpush2.xpose.msra.mxu0 0.0
      %3787 = vmatprep.subr.mxu0 0.0
      %3788 = vmatpush2.xpose.msra.mxu0 0.0
      %3789 = vmatprep.subr.mxu0 0.0
      %3790 = vmatpush2.xpose.msra.mxu0 0.0
      %3791 = vmatprep.subr.mxu0 0.0
      %3792 = vmatpush2.xpose.msra.mxu0 0.0
      %3793 = vmatprep.subr.mxu0 0.0
      %3794 = vmatpush2.xpose.msra.mxu0 0.0
      %3795 = vmatprep.mubr.f32.mxu0 0.0
      %v3796 = vand.u32 %v256, 4294901760
      %v3797 = vsub.f32 %v256, %v3796
      %v3798 = vand.u32 %v3797, 4294901760
      %3799 = vmatmul.mubr.f32.gmra.mxu0 %v3798
      %v3800 = vpop.f32.mrf.mxu0
      %v3801 = vadd.f32 %v3710, %v3800
      %v3802 = vpop.f32.mrf.mxu0
      %3803 = vmatprep.mubr.f32.mxu0 0.0
      %v3804 = vand.u32 %v257, 4294901760
      %v3805 = vsub.f32 %v257, %v3804
      %v3806 = vand.u32 %v3805, 4294901760
      %3807 = vmatmul.mubr.f32.gmra.mxu0 %v3806
      %v3808 = vpop.f32.mrf.mxu0
      %v3809 = vadd.f32 %v3717, %v3808
      %v3810 = vpop.f32.mrf.mxu0
      %3811 = vmatprep.mubr.f32.mxu0 0.0
      %v3812 = vand.u32 %v258, 4294901760
      %v3813 = vsub.f32 %v258, %v3812
      %v3814 = vand.u32 %v3813, 4294901760
      %3815 = vmatmul.mubr.f32.gmra.mxu0 %v3814
      %v3816 = vpop.f32.mrf.mxu0
      %v3817 = vadd.f32 %v3724, %v3816
      %v3818 = vpop.f32.mrf.mxu0
      %3819 = vdwg.mxu0
      %3820 = vmatprep.subr.mxu0 0.0
      %3821 = vmatpush1.xpose.msra.mxu0 0.0
      %3822 = vmatprep.subr.mxu0 0.0
      %3823 = vmatpush1.xpose.msra.mxu0 0.0
      %3824 = vmatprep.subr.mxu0 0.0
      %3825 = vmatpush1.xpose.msra.mxu0 0.0
      %3826 = vmatprep.subr.mxu0 0.0
      %3827 = vmatpush1.xpose.msra.mxu0 0.0
      %3828 = vmatprep.subr.mxu0 0.0
      %3829 = vmatpush1.xpose.msra.mxu0 0.0
      %3830 = vmatprep.subr.mxu0 0.0
      %3831 = vmatpush1.xpose.msra.mxu0 0.0
      %3832 = vmatprep.subr.mxu0 0.0
      %3833 = vmatpush1.xpose.msra.mxu0 0.0
      %3834 = vmatprep.subr.mxu0 0.0
      %3835 = vmatpush1.xpose.msra.mxu0 0.0
      %3836 = vmatprep.subr.mxu0 0.0
      %3837 = vmatpush1.xpose.msra.mxu0 0.0
      %3838 = vmatprep.subr.mxu0 0.0
      %3839 = vmatpush1.xpose.msra.mxu0 0.0
      %3840 = vmatprep.subr.mxu0 0.0
      %3841 = vmatpush1.xpose.msra.mxu0 0.0
      %3842 = vmatprep.subr.mxu0 0.0
      %3843 = vmatpush1.xpose.msra.mxu0 0.0
      %3844 = vmatprep.subr.mxu0 0.0
      %v3845 = vand.u32 %v3430, 4294901760
      %v3846 = vsub.f32 %v3430, %v3845
      %v3847 = vand.u32 %v3846, 4294901760
      %3848 = vmatpush1.xpose.msra.mxu0 %v3847
      %3849 = vmatprep.subr.mxu0 0.0
      %v3850 = vand.u32 %v3429, 4294901760
      %v3851 = vsub.f32 %v3429, %v3850
      %v3852 = vand.u32 %v3851, 4294901760
      %3853 = vmatpush1.xpose.msra.mxu0 %v3852
      %3854 = vmatprep.subr.mxu0 0.0
      %v3855 = vand.u32 %v3428, 4294901760
      %v3856 = vsub.f32 %v3428, %v3855
      %v3857 = vand.u32 %v3856, 4294901760
      %3858 = vmatpush1.xpose.msra.mxu0 %v3857
      %3859 = vmatprep.subr.mxu0 0.0
      %v3860 = vand.u32 %v3427, 4294901760
      %v3861 = vsub.f32 %v3427, %v3860
      %v3862 = vand.u32 %v3861, 4294901760
      %3863 = vmatpush1.xpose.msra.mxu0 %v3862
      %3864 = vmatprep.subr.mxu0 0.0
      %3865 = vmatpush2.xpose.msra.mxu0 0.0
      %3866 = vmatprep.subr.mxu0 0.0
      %3867 = vmatpush2.xpose.msra.mxu0 0.0
      %3868 = vmatprep.subr.mxu0 0.0
      %3869 = vmatpush2.xpose.msra.mxu0 0.0
      %3870 = vmatprep.subr.mxu0 0.0
      %3871 = vmatpush2.xpose.msra.mxu0 0.0
      %3872 = vmatprep.subr.mxu0 0.0
      %3873 = vmatpush2.xpose.msra.mxu0 0.0
      %3874 = vmatprep.subr.mxu0 0.0
      %3875 = vmatpush2.xpose.msra.mxu0 0.0
      %3876 = vmatprep.subr.mxu0 0.0
      %3877 = vmatpush2.xpose.msra.mxu0 0.0
      %3878 = vmatprep.subr.mxu0 0.0
      %3879 = vmatpush2.xpose.msra.mxu0 0.0
      %3880 = vmatprep.subr.mxu0 0.0
      %3881 = vmatpush2.xpose.msra.mxu0 0.0
      %3882 = vmatprep.subr.mxu0 0.0
      %3883 = vmatpush2.xpose.msra.mxu0 0.0
      %3884 = vmatprep.subr.mxu0 0.0
      %3885 = vmatpush2.xpose.msra.mxu0 0.0
      %3886 = vmatprep.subr.mxu0 0.0
      %3887 = vmatpush2.xpose.msra.mxu0 0.0
      %3888 = vmatprep.subr.mxu0 0.0
      %3889 = vmatpush2.xpose.msra.mxu0 0.0
      %3890 = vmatprep.subr.mxu0 0.0
      %3891 = vmatpush2.xpose.msra.mxu0 0.0
      %3892 = vmatprep.subr.mxu0 0.0
      %3893 = vmatpush2.xpose.msra.mxu0 0.0
      %3894 = vmatprep.subr.mxu0 0.0
      %3895 = vmatpush2.xpose.msra.mxu0 0.0
      %3896 = vmatprep.mubr.f32.mxu0 0.0
      %v3897 = vand.u32 %v256, 4294901760
      %3898 = vmatmul.mubr.f32.gmra.mxu0 %v3897
      %v3899 = vpop.f32.mrf.mxu0
      %v3900 = vadd.f32 %v3801, %v3899
      %v3901 = vpop.f32.mrf.mxu0
      %3902 = vmatprep.mubr.f32.mxu0 0.0
      %v3903 = vand.u32 %v257, 4294901760
      %3904 = vmatmul.mubr.f32.gmra.mxu0 %v3903
      %v3905 = vpop.f32.mrf.mxu0
      %v3906 = vadd.f32 %v3809, %v3905
      %v3907 = vpop.f32.mrf.mxu0
      %3908 = vmatprep.mubr.f32.mxu0 0.0
      %v3909 = vand.u32 %v258, 4294901760
      %3910 = vmatmul.mubr.f32.gmra.mxu0 %v3909
      %v3911 = vpop.f32.mrf.mxu0
      %v3912 = vadd.f32 %v3817, %v3911
      %v3913 = vpop.f32.mrf.mxu0
      %3914 = vdwg.mxu0
      %3915 = vmatprep.subr.mxu0 0.0
      %3916 = vmatpush1.xpose.msra.mxu0 0.0
      %3917 = vmatprep.subr.mxu0 0.0
      %3918 = vmatpush1.xpose.msra.mxu0 0.0
      %3919 = vmatprep.subr.mxu0 0.0
      %3920 = vmatpush1.xpose.msra.mxu0 0.0
      %3921 = vmatprep.subr.mxu0 0.0
      %3922 = vmatpush1.xpose.msra.mxu0 0.0
      %3923 = vmatprep.subr.mxu0 0.0
      %3924 = vmatpush1.xpose.msra.mxu0 0.0
      %3925 = vmatprep.subr.mxu0 0.0
      %3926 = vmatpush1.xpose.msra.mxu0 0.0
      %3927 = vmatprep.subr.mxu0 0.0
      %3928 = vmatpush1.xpose.msra.mxu0 0.0
      %3929 = vmatprep.subr.mxu0 0.0
      %3930 = vmatpush1.xpose.msra.mxu0 0.0
      %3931 = vmatprep.subr.mxu0 0.0
      %3932 = vmatpush1.xpose.msra.mxu0 0.0
      %3933 = vmatprep.subr.mxu0 0.0
      %3934 = vmatpush1.xpose.msra.mxu0 0.0
      %3935 = vmatprep.subr.mxu0 0.0
      %3936 = vmatpush1.xpose.msra.mxu0 0.0
      %3937 = vmatprep.subr.mxu0 0.0
      %3938 = vmatpush1.xpose.msra.mxu0 0.0
      %3939 = vmatprep.subr.mxu0 0.0
      %v3940 = vand.u32 %v3430, 4294901760
      %3941 = vmatpush1.xpose.msra.mxu0 %v3940
      %3942 = vmatprep.subr.mxu0 0.0
      %v3943 = vand.u32 %v3429, 4294901760
      %3944 = vmatpush1.xpose.msra.mxu0 %v3943
      %3945 = vmatprep.subr.mxu0 0.0
      %v3946 = vand.u32 %v3428, 4294901760
      %3947 = vmatpush1.xpose.msra.mxu0 %v3946
      %3948 = vmatprep.subr.mxu0 0.0
      %v3949 = vand.u32 %v3427, 4294901760
      %3950 = vmatpush1.xpose.msra.mxu0 %v3949
      %3951 = vmatprep.subr.mxu0 0.0
      %3952 = vmatpush2.xpose.msra.mxu0 0.0
      %3953 = vmatprep.subr.mxu0 0.0
      %3954 = vmatpush2.xpose.msra.mxu0 0.0
      %3955 = vmatprep.subr.mxu0 0.0
      %3956 = vmatpush2.xpose.msra.mxu0 0.0
      %3957 = vmatprep.subr.mxu0 0.0
      %3958 = vmatpush2.xpose.msra.mxu0 0.0
      %3959 = vmatprep.subr.mxu0 0.0
      %3960 = vmatpush2.xpose.msra.mxu0 0.0
      %3961 = vmatprep.subr.mxu0 0.0
      %3962 = vmatpush2.xpose.msra.mxu0 0.0
      %3963 = vmatprep.subr.mxu0 0.0
      %3964 = vmatpush2.xpose.msra.mxu0 0.0
      %3965 = vmatprep.subr.mxu0 0.0
      %3966 = vmatpush2.xpose.msra.mxu0 0.0
      %3967 = vmatprep.subr.mxu0 0.0
      %3968 = vmatpush2.xpose.msra.mxu0 0.0
      %3969 = vmatprep.subr.mxu0 0.0
      %3970 = vmatpush2.xpose.msra.mxu0 0.0
      %3971 = vmatprep.subr.mxu0 0.0
      %3972 = vmatpush2.xpose.msra.mxu0 0.0
      %3973 = vmatprep.subr.mxu0 0.0
      %3974 = vmatpush2.xpose.msra.mxu0 0.0
      %3975 = vmatprep.subr.mxu0 0.0
      %3976 = vmatpush2.xpose.msra.mxu0 0.0
      %3977 = vmatprep.subr.mxu0 0.0
      %3978 = vmatpush2.xpose.msra.mxu0 0.0
      %3979 = vmatprep.subr.mxu0 0.0
      %3980 = vmatpush2.xpose.msra.mxu0 0.0
      %3981 = vmatprep.subr.mxu0 0.0
      %3982 = vmatpush2.xpose.msra.mxu0 0.0
      %3983 = vmatprep.mubr.f32.mxu0 0.0
      %v3984 = vand.u32 %v256, 4294901760
      %3985 = vmatmul.mubr.f32.gmra.mxu0 %v3984
      %v3986 = vpop.f32.mrf.mxu0
      %v3987 = vadd.f32 %v3900, %v3986
      %v3988 = vpop.f32.mrf.mxu0
      %3989 = vmatprep.mubr.f32.mxu0 0.0
      %v3990 = vand.u32 %v257, 4294901760
      %3991 = vmatmul.mubr.f32.gmra.mxu0 %v3990
      %v3992 = vpop.f32.mrf.mxu0
      %v3993 = vadd.f32 %v3906, %v3992
      %v3994 = vpop.f32.mrf.mxu0
      %3995 = vmatprep.mubr.f32.mxu0 0.0
      %v3996 = vand.u32 %v258, 4294901760
      %3997 = vmatmul.mubr.f32.gmra.mxu0 %v3996
      %v3998 = vpop.f32.mrf.mxu0
      %v3999 = vadd.f32 %v3912, %v3998
      %v4000 = vpop.f32.mrf.mxu0
      %4001 = vdwg.mxu0
      %v4002 = vadd.f32 %v3388, %v3987
      %v4003 = vadd.f32 %v3389, %v3993
      %v4004 = vadd.f32 %v3390, %v3999
      %v4005 = vsel %vm3419, 1e+30, %v3391
      %v4006 = vsel %vm3420, 1e+30, %v3392
      %v4007 = vsel %vm3421, 1e+30, %v3393
      %v4008 = vsel %vm3422, 1e+30, %v3394
      %4009 = vmin.xlane.f32.xlu0 %v4005
      %v4010 = vpop.xlane.xlu0 %4009
      %4011 = vmin.xlane.f32.xlu0 %v4006
      %v4012 = vpop.xlane.xlu0 %4011
      %4013 = vmin.xlane.f32.xlu0 %v4007
      %v4014 = vpop.xlane.xlu0 %4013
      %4015 = vmin.xlane.f32.xlu0 %v4008
      %v4016 = vpop.xlane.xlu0 %4015
      %vm4017 = vcmp.eq.f32.partialorder %v4005, %v4010
      %vm4018 = vcmp.eq.f32.partialorder %v4006, %v4012
      %vm4019 = vcmp.eq.f32.partialorder %v4007, %v4014
      %vm4020 = vcmp.eq.f32.partialorder %v4008, %v4016
      %v4021 = vsel %vm4017, %v261, 128.0
      %v4022 = vsel %vm4018, %v261, 128.0
      %v4023 = vsel %vm4019, %v261, 128.0
      %v4024 = vsel %vm4020, %v261, 128.0
      %4025 = vmin.xlane.f32.xlu0 %v4021
      %v4026 = vpop.xlane.xlu0 %4025
      %4027 = vmin.xlane.f32.xlu0 %v4022
      %v4028 = vpop.xlane.xlu0 %4027
      %4029 = vmin.xlane.f32.xlu0 %v4023
      %v4030 = vpop.xlane.xlu0 %4029
      %4031 = vmin.xlane.f32.xlu0 %v4024
      %v4032 = vpop.xlane.xlu0 %4031
      %vm4033 = vcmp.eq.f32.partialorder %v261, %v4026
      %vm4034 = vcmp.eq.f32.partialorder %v261, %v4028
      %vm4035 = vcmp.eq.f32.partialorder %v261, %v4030
      %vm4036 = vcmp.eq.f32.partialorder %v261, %v4032
      %v4037 = vsel %vm4033, 1, 0
      %v4038 = vsel %vm4034, 1, 0
      %v4039 = vsel %vm4035, 1, 0
      %v4040 = vsel %vm4036, 1, 0
      %v4041 = vcvt.s32.f32 %v4037
      %v4042 = vcvt.s32.f32 %v4038
      %v4043 = vcvt.s32.f32 %v4039
      %v4044 = vcvt.s32.f32 %v4040
      %4045 = vmatprep.subr.mxu0 0.0
      %4046 = vmatpush1.xpose.msra.mxu0 0.0
      %4047 = vmatprep.subr.mxu0 0.0
      %4048 = vmatpush1.xpose.msra.mxu0 0.0
      %4049 = vmatprep.subr.mxu0 0.0
      %4050 = vmatpush1.xpose.msra.mxu0 0.0
      %4051 = vmatprep.subr.mxu0 0.0
      %4052 = vmatpush1.xpose.msra.mxu0 0.0
      %4053 = vmatprep.subr.mxu0 0.0
      %4054 = vmatpush1.xpose.msra.mxu0 0.0
      %4055 = vmatprep.subr.mxu0 0.0
      %4056 = vmatpush1.xpose.msra.mxu0 0.0
      %4057 = vmatprep.subr.mxu0 0.0
      %4058 = vmatpush1.xpose.msra.mxu0 0.0
      %4059 = vmatprep.subr.mxu0 0.0
      %4060 = vmatpush1.xpose.msra.mxu0 0.0
      %4061 = vmatprep.subr.mxu0 0.0
      %4062 = vmatpush1.xpose.msra.mxu0 0.0
      %4063 = vmatprep.subr.mxu0 0.0
      %4064 = vmatpush1.xpose.msra.mxu0 0.0
      %4065 = vmatprep.subr.mxu0 0.0
      %4066 = vmatpush1.xpose.msra.mxu0 0.0
      %4067 = vmatprep.subr.mxu0 0.0
      %4068 = vmatpush1.xpose.msra.mxu0 0.0
      %4069 = vmatprep.subr.mxu0 0.0
      %v4070 = vand.u32 %v4044, 4294901760
      %4071 = vmatpush1.xpose.msra.mxu0 %v4070
      %4072 = vmatprep.subr.mxu0 0.0
      %v4073 = vand.u32 %v4043, 4294901760
      %4074 = vmatpush1.xpose.msra.mxu0 %v4073
      %4075 = vmatprep.subr.mxu0 0.0
      %v4076 = vand.u32 %v4042, 4294901760
      %4077 = vmatpush1.xpose.msra.mxu0 %v4076
      %4078 = vmatprep.subr.mxu0 0.0
      %v4079 = vand.u32 %v4041, 4294901760
      %4080 = vmatpush1.xpose.msra.mxu0 %v4079
      %4081 = vmatprep.subr.mxu0 0.0
      %4082 = vmatpush2.xpose.msra.mxu0 0.0
      %4083 = vmatprep.subr.mxu0 0.0
      %4084 = vmatpush2.xpose.msra.mxu0 0.0
      %4085 = vmatprep.subr.mxu0 0.0
      %4086 = vmatpush2.xpose.msra.mxu0 0.0
      %4087 = vmatprep.subr.mxu0 0.0
      %4088 = vmatpush2.xpose.msra.mxu0 0.0
      %4089 = vmatprep.subr.mxu0 0.0
      %4090 = vmatpush2.xpose.msra.mxu0 0.0
      %4091 = vmatprep.subr.mxu0 0.0
      %4092 = vmatpush2.xpose.msra.mxu0 0.0
      %4093 = vmatprep.subr.mxu0 0.0
      %4094 = vmatpush2.xpose.msra.mxu0 0.0
      %4095 = vmatprep.subr.mxu0 0.0
      %4096 = vmatpush2.xpose.msra.mxu0 0.0
      %4097 = vmatprep.subr.mxu0 0.0
      %4098 = vmatpush2.xpose.msra.mxu0 0.0
      %4099 = vmatprep.subr.mxu0 0.0
      %4100 = vmatpush2.xpose.msra.mxu0 0.0
      %4101 = vmatprep.subr.mxu0 0.0
      %4102 = vmatpush2.xpose.msra.mxu0 0.0
      %4103 = vmatprep.subr.mxu0 0.0
      %4104 = vmatpush2.xpose.msra.mxu0 0.0
      %4105 = vmatprep.subr.mxu0 0.0
      %4106 = vmatpush2.xpose.msra.mxu0 0.0
      %4107 = vmatprep.subr.mxu0 0.0
      %4108 = vmatpush2.xpose.msra.mxu0 0.0
      %4109 = vmatprep.subr.mxu0 0.0
      %4110 = vmatpush2.xpose.msra.mxu0 0.0
      %4111 = vmatprep.subr.mxu0 0.0
      %4112 = vmatpush2.xpose.msra.mxu0 0.0
      %4113 = vmatprep.mubr.f32.mxu0 0.0
      %v4114 = vand.u32 %v256, 4294901760
      %v4115 = vsub.f32 %v256, %v4114
      %v4116 = vand.u32 %v4115, 4294901760
      %v4117 = vsub.f32 %v4115, %v4116
      %v4118 = vand.u32 %v4117, 4294901760
      %4119 = vmatmul.mubr.f32.gmra.mxu0 %v4118
      %v4120 = vpop.f32.mrf.mxu0
      %v4121 = vadd.f32 0.0, %v4120
      %v4122 = vpop.f32.mrf.mxu0
      %4123 = vmatprep.mubr.f32.mxu0 0.0
      %v4124 = vand.u32 %v257, 4294901760
      %v4125 = vsub.f32 %v257, %v4124
      %v4126 = vand.u32 %v4125, 4294901760
      %v4127 = vsub.f32 %v4125, %v4126
      %v4128 = vand.u32 %v4127, 4294901760
      %4129 = vmatmul.mubr.f32.gmra.mxu0 %v4128
      %v4130 = vpop.f32.mrf.mxu0
      %v4131 = vadd.f32 0.0, %v4130
      %v4132 = vpop.f32.mrf.mxu0
      %4133 = vmatprep.mubr.f32.mxu0 0.0
      %v4134 = vand.u32 %v258, 4294901760
      %v4135 = vsub.f32 %v258, %v4134
      %v4136 = vand.u32 %v4135, 4294901760
      %v4137 = vsub.f32 %v4135, %v4136
      %v4138 = vand.u32 %v4137, 4294901760
      %4139 = vmatmul.mubr.f32.gmra.mxu0 %v4138
      %v4140 = vpop.f32.mrf.mxu0
      %v4141 = vadd.f32 0.0, %v4140
      %v4142 = vpop.f32.mrf.mxu0
      %4143 = vdwg.mxu0
      %4144 = vmatprep.subr.mxu0 0.0
      %4145 = vmatpush1.xpose.msra.mxu0 0.0
      %4146 = vmatprep.subr.mxu0 0.0
      %4147 = vmatpush1.xpose.msra.mxu0 0.0
      %4148 = vmatprep.subr.mxu0 0.0
      %4149 = vmatpush1.xpose.msra.mxu0 0.0
      %4150 = vmatprep.subr.mxu0 0.0
      %4151 = vmatpush1.xpose.msra.mxu0 0.0
      %4152 = vmatprep.subr.mxu0 0.0
      %4153 = vmatpush1.xpose.msra.mxu0 0.0
      %4154 = vmatprep.subr.mxu0 0.0
      %4155 = vmatpush1.xpose.msra.mxu0 0.0
      %4156 = vmatprep.subr.mxu0 0.0
      %4157 = vmatpush1.xpose.msra.mxu0 0.0
      %4158 = vmatprep.subr.mxu0 0.0
      %4159 = vmatpush1.xpose.msra.mxu0 0.0
      %4160 = vmatprep.subr.mxu0 0.0
      %4161 = vmatpush1.xpose.msra.mxu0 0.0
      %4162 = vmatprep.subr.mxu0 0.0
      %4163 = vmatpush1.xpose.msra.mxu0 0.0
      %4164 = vmatprep.subr.mxu0 0.0
      %4165 = vmatpush1.xpose.msra.mxu0 0.0
      %4166 = vmatprep.subr.mxu0 0.0
      %4167 = vmatpush1.xpose.msra.mxu0 0.0
      %4168 = vmatprep.subr.mxu0 0.0
      %v4169 = vand.u32 %v4044, 4294901760
      %v4170 = vsub.f32 %v4044, %v4169
      %v4171 = vand.u32 %v4170, 4294901760
      %v4172 = vsub.f32 %v4170, %v4171
      %v4173 = vand.u32 %v4172, 4294901760
      %4174 = vmatpush1.xpose.msra.mxu0 %v4173
      %4175 = vmatprep.subr.mxu0 0.0
      %v4176 = vand.u32 %v4043, 4294901760
      %v4177 = vsub.f32 %v4043, %v4176
      %v4178 = vand.u32 %v4177, 4294901760
      %v4179 = vsub.f32 %v4177, %v4178
      %v4180 = vand.u32 %v4179, 4294901760
      %4181 = vmatpush1.xpose.msra.mxu0 %v4180
      %4182 = vmatprep.subr.mxu0 0.0
      %v4183 = vand.u32 %v4042, 4294901760
      %v4184 = vsub.f32 %v4042, %v4183
      %v4185 = vand.u32 %v4184, 4294901760
      %v4186 = vsub.f32 %v4184, %v4185
      %v4187 = vand.u32 %v4186, 4294901760
      %4188 = vmatpush1.xpose.msra.mxu0 %v4187
      %4189 = vmatprep.subr.mxu0 0.0
      %v4190 = vand.u32 %v4041, 4294901760
      %v4191 = vsub.f32 %v4041, %v4190
      %v4192 = vand.u32 %v4191, 4294901760
      %v4193 = vsub.f32 %v4191, %v4192
      %v4194 = vand.u32 %v4193, 4294901760
      %4195 = vmatpush1.xpose.msra.mxu0 %v4194
      %4196 = vmatprep.subr.mxu0 0.0
      %4197 = vmatpush2.xpose.msra.mxu0 0.0
      %4198 = vmatprep.subr.mxu0 0.0
      %4199 = vmatpush2.xpose.msra.mxu0 0.0
      %4200 = vmatprep.subr.mxu0 0.0
      %4201 = vmatpush2.xpose.msra.mxu0 0.0
      %4202 = vmatprep.subr.mxu0 0.0
      %4203 = vmatpush2.xpose.msra.mxu0 0.0
      %4204 = vmatprep.subr.mxu0 0.0
      %4205 = vmatpush2.xpose.msra.mxu0 0.0
      %4206 = vmatprep.subr.mxu0 0.0
      %4207 = vmatpush2.xpose.msra.mxu0 0.0
      %4208 = vmatprep.subr.mxu0 0.0
      %4209 = vmatpush2.xpose.msra.mxu0 0.0
      %4210 = vmatprep.subr.mxu0 0.0
      %4211 = vmatpush2.xpose.msra.mxu0 0.0
      %4212 = vmatprep.subr.mxu0 0.0
      %4213 = vmatpush2.xpose.msra.mxu0 0.0
      %4214 = vmatprep.subr.mxu0 0.0
      %4215 = vmatpush2.xpose.msra.mxu0 0.0
      %4216 = vmatprep.subr.mxu0 0.0
      %4217 = vmatpush2.xpose.msra.mxu0 0.0
      %4218 = vmatprep.subr.mxu0 0.0
      %4219 = vmatpush2.xpose.msra.mxu0 0.0
      %4220 = vmatprep.subr.mxu0 0.0
      %4221 = vmatpush2.xpose.msra.mxu0 0.0
      %4222 = vmatprep.subr.mxu0 0.0
      %4223 = vmatpush2.xpose.msra.mxu0 0.0
      %4224 = vmatprep.subr.mxu0 0.0
      %4225 = vmatpush2.xpose.msra.mxu0 0.0
      %4226 = vmatprep.subr.mxu0 0.0
      %4227 = vmatpush2.xpose.msra.mxu0 0.0
      %4228 = vmatprep.mubr.f32.mxu0 0.0
      %v4229 = vand.u32 %v256, 4294901760
      %4230 = vmatmul.mubr.f32.gmra.mxu0 %v4229
      %v4231 = vpop.f32.mrf.mxu0
      %v4232 = vadd.f32 %v4121, %v4231
      %v4233 = vpop.f32.mrf.mxu0
      %4234 = vmatprep.mubr.f32.mxu0 0.0
      %v4235 = vand.u32 %v257, 4294901760
      %4236 = vmatmul.mubr.f32.gmra.mxu0 %v4235
      %v4237 = vpop.f32.mrf.mxu0
      %v4238 = vadd.f32 %v4131, %v4237
      %v4239 = vpop.f32.mrf.mxu0
      %4240 = vmatprep.mubr.f32.mxu0 0.0
      %v4241 = vand.u32 %v258, 4294901760
      %4242 = vmatmul.mubr.f32.gmra.mxu0 %v4241
      %v4243 = vpop.f32.mrf.mxu0
      %v4244 = vadd.f32 %v4141, %v4243
      %v4245 = vpop.f32.mrf.mxu0
      %4246 = vdwg.mxu0
      %4247 = vmatprep.subr.mxu0 0.0
      %4248 = vmatpush1.xpose.msra.mxu0 0.0
      %4249 = vmatprep.subr.mxu0 0.0
      %4250 = vmatpush1.xpose.msra.mxu0 0.0
      %4251 = vmatprep.subr.mxu0 0.0
      %4252 = vmatpush1.xpose.msra.mxu0 0.0
      %4253 = vmatprep.subr.mxu0 0.0
      %4254 = vmatpush1.xpose.msra.mxu0 0.0
      %4255 = vmatprep.subr.mxu0 0.0
      %4256 = vmatpush1.xpose.msra.mxu0 0.0
      %4257 = vmatprep.subr.mxu0 0.0
      %4258 = vmatpush1.xpose.msra.mxu0 0.0
      %4259 = vmatprep.subr.mxu0 0.0
      %4260 = vmatpush1.xpose.msra.mxu0 0.0
      %4261 = vmatprep.subr.mxu0 0.0
      %4262 = vmatpush1.xpose.msra.mxu0 0.0
      %4263 = vmatprep.subr.mxu0 0.0
      %4264 = vmatpush1.xpose.msra.mxu0 0.0
      %4265 = vmatprep.subr.mxu0 0.0
      %4266 = vmatpush1.xpose.msra.mxu0 0.0
      %4267 = vmatprep.subr.mxu0 0.0
      %4268 = vmatpush1.xpose.msra.mxu0 0.0
      %4269 = vmatprep.subr.mxu0 0.0
      %4270 = vmatpush1.xpose.msra.mxu0 0.0
      %4271 = vmatprep.subr.mxu0 0.0
      %v4272 = vand.u32 %v4044, 4294901760
      %v4273 = vsub.f32 %v4044, %v4272
      %4274 = vmatpush1.xpose.msra.mxu0 %v4273
      %4275 = vmatprep.subr.mxu0 0.0
      %v4276 = vand.u32 %v4043, 4294901760
      %v4277 = vsub.f32 %v4043, %v4276
      %4278 = vmatpush1.xpose.msra.mxu0 %v4277
      %4279 = vmatprep.subr.mxu0 0.0
      %v4280 = vand.u32 %v4042, 4294901760
      %v4281 = vsub.f32 %v4042, %v4280
      %4282 = vmatpush1.xpose.msra.mxu0 %v4281
      %4283 = vmatprep.subr.mxu0 0.0
      %v4284 = vand.u32 %v4041, 4294901760
      %v4285 = vsub.f32 %v4041, %v4284
      %4286 = vmatpush1.xpose.msra.mxu0 %v4285
      %4287 = vmatprep.subr.mxu0 0.0
      %4288 = vmatpush2.xpose.msra.mxu0 0.0
      %4289 = vmatprep.subr.mxu0 0.0
      %4290 = vmatpush2.xpose.msra.mxu0 0.0
      %4291 = vmatprep.subr.mxu0 0.0
      %4292 = vmatpush2.xpose.msra.mxu0 0.0
      %4293 = vmatprep.subr.mxu0 0.0
      %4294 = vmatpush2.xpose.msra.mxu0 0.0
      %4295 = vmatprep.subr.mxu0 0.0
      %4296 = vmatpush2.xpose.msra.mxu0 0.0
      %4297 = vmatprep.subr.mxu0 0.0
      %4298 = vmatpush2.xpose.msra.mxu0 0.0
      %4299 = vmatprep.subr.mxu0 0.0
      %4300 = vmatpush2.xpose.msra.mxu0 0.0
      %4301 = vmatprep.subr.mxu0 0.0
      %4302 = vmatpush2.xpose.msra.mxu0 0.0
      %4303 = vmatprep.subr.mxu0 0.0
      %4304 = vmatpush2.xpose.msra.mxu0 0.0
      %4305 = vmatprep.subr.mxu0 0.0
      %4306 = vmatpush2.xpose.msra.mxu0 0.0
      %4307 = vmatprep.subr.mxu0 0.0
      %4308 = vmatpush2.xpose.msra.mxu0 0.0
      %4309 = vmatprep.subr.mxu0 0.0
      %4310 = vmatpush2.xpose.msra.mxu0 0.0
      %4311 = vmatprep.subr.mxu0 0.0
      %4312 = vmatpush2.xpose.msra.mxu0 0.0
      %4313 = vmatprep.subr.mxu0 0.0
      %4314 = vmatpush2.xpose.msra.mxu0 0.0
      %4315 = vmatprep.subr.mxu0 0.0
      %4316 = vmatpush2.xpose.msra.mxu0 0.0
      %4317 = vmatprep.subr.mxu0 0.0
      %4318 = vmatpush2.xpose.msra.mxu0 0.0
      %4319 = vmatprep.mubr.f32.mxu0 0.0
      %v4320 = vand.u32 %v256, 4294901760
      %v4321 = vsub.f32 %v256, %v4320
      %4322 = vmatmul.mubr.f32.gmra.mxu0 %v4321
      %v4323 = vpop.f32.mrf.mxu0
      %v4324 = vadd.f32 %v4232, %v4323
      %v4325 = vpop.f32.mrf.mxu0
      %4326 = vmatprep.mubr.f32.mxu0 0.0
      %v4327 = vand.u32 %v257, 4294901760
      %v4328 = vsub.f32 %v257, %v4327
      %4329 = vmatmul.mubr.f32.gmra.mxu0 %v4328
      %v4330 = vpop.f32.mrf.mxu0
      %v4331 = vadd.f32 %v4238, %v4330
      %v4332 = vpop.f32.mrf.mxu0
      %4333 = vmatprep.mubr.f32.mxu0 0.0
      %v4334 = vand.u32 %v258, 4294901760
      %v4335 = vsub.f32 %v258, %v4334
      %4336 = vmatmul.mubr.f32.gmra.mxu0 %v4335
      %v4337 = vpop.f32.mrf.mxu0
      %v4338 = vadd.f32 %v4244, %v4337
      %v4339 = vpop.f32.mrf.mxu0
      %4340 = vdwg.mxu0
      %4341 = vmatprep.subr.mxu0 0.0
      %4342 = vmatpush1.xpose.msra.mxu0 0.0
      %4343 = vmatprep.subr.mxu0 0.0
      %4344 = vmatpush1.xpose.msra.mxu0 0.0
      %4345 = vmatprep.subr.mxu0 0.0
      %4346 = vmatpush1.xpose.msra.mxu0 0.0
      %4347 = vmatprep.subr.mxu0 0.0
      %4348 = vmatpush1.xpose.msra.mxu0 0.0
      %4349 = vmatprep.subr.mxu0 0.0
      %4350 = vmatpush1.xpose.msra.mxu0 0.0
      %4351 = vmatprep.subr.mxu0 0.0
      %4352 = vmatpush1.xpose.msra.mxu0 0.0
      %4353 = vmatprep.subr.mxu0 0.0
      %4354 = vmatpush1.xpose.msra.mxu0 0.0
      %4355 = vmatprep.subr.mxu0 0.0
      %4356 = vmatpush1.xpose.msra.mxu0 0.0
      %4357 = vmatprep.subr.mxu0 0.0
      %4358 = vmatpush1.xpose.msra.mxu0 0.0
      %4359 = vmatprep.subr.mxu0 0.0
      %4360 = vmatpush1.xpose.msra.mxu0 0.0
      %4361 = vmatprep.subr.mxu0 0.0
      %4362 = vmatpush1.xpose.msra.mxu0 0.0
      %4363 = vmatprep.subr.mxu0 0.0
      %4364 = vmatpush1.xpose.msra.mxu0 0.0
      %4365 = vmatprep.subr.mxu0 0.0
      %v4366 = vand.u32 %v4044, 4294901760
      %4367 = vmatpush1.xpose.msra.mxu0 %v4366
      %4368 = vmatprep.subr.mxu0 0.0
      %v4369 = vand.u32 %v4043, 4294901760
      %4370 = vmatpush1.xpose.msra.mxu0 %v4369
      %4371 = vmatprep.subr.mxu0 0.0
      %v4372 = vand.u32 %v4042, 4294901760
      %4373 = vmatpush1.xpose.msra.mxu0 %v4372
      %4374 = vmatprep.subr.mxu0 0.0
      %v4375 = vand.u32 %v4041, 4294901760
      %4376 = vmatpush1.xpose.msra.mxu0 %v4375
      %4377 = vmatprep.subr.mxu0 0.0
      %4378 = vmatpush2.xpose.msra.mxu0 0.0
      %4379 = vmatprep.subr.mxu0 0.0
      %4380 = vmatpush2.xpose.msra.mxu0 0.0
      %4381 = vmatprep.subr.mxu0 0.0
      %4382 = vmatpush2.xpose.msra.mxu0 0.0
      %4383 = vmatprep.subr.mxu0 0.0
      %4384 = vmatpush2.xpose.msra.mxu0 0.0
      %4385 = vmatprep.subr.mxu0 0.0
      %4386 = vmatpush2.xpose.msra.mxu0 0.0
      %4387 = vmatprep.subr.mxu0 0.0
      %4388 = vmatpush2.xpose.msra.mxu0 0.0
      %4389 = vmatprep.subr.mxu0 0.0
      %4390 = vmatpush2.xpose.msra.mxu0 0.0
      %4391 = vmatprep.subr.mxu0 0.0
      %4392 = vmatpush2.xpose.msra.mxu0 0.0
      %4393 = vmatprep.subr.mxu0 0.0
      %4394 = vmatpush2.xpose.msra.mxu0 0.0
      %4395 = vmatprep.subr.mxu0 0.0
      %4396 = vmatpush2.xpose.msra.mxu0 0.0
      %4397 = vmatprep.subr.mxu0 0.0
      %4398 = vmatpush2.xpose.msra.mxu0 0.0
      %4399 = vmatprep.subr.mxu0 0.0
      %4400 = vmatpush2.xpose.msra.mxu0 0.0
      %4401 = vmatprep.subr.mxu0 0.0
      %4402 = vmatpush2.xpose.msra.mxu0 0.0
      %4403 = vmatprep.subr.mxu0 0.0
      %4404 = vmatpush2.xpose.msra.mxu0 0.0
      %4405 = vmatprep.subr.mxu0 0.0
      %4406 = vmatpush2.xpose.msra.mxu0 0.0
      %4407 = vmatprep.subr.mxu0 0.0
      %4408 = vmatpush2.xpose.msra.mxu0 0.0
      %4409 = vmatprep.mubr.f32.mxu0 0.0
      %v4410 = vand.u32 %v256, 4294901760
      %v4411 = vsub.f32 %v256, %v4410
      %v4412 = vand.u32 %v4411, 4294901760
      %4413 = vmatmul.mubr.f32.gmra.mxu0 %v4412
      %v4414 = vpop.f32.mrf.mxu0
      %v4415 = vadd.f32 %v4324, %v4414
      %v4416 = vpop.f32.mrf.mxu0
      %4417 = vmatprep.mubr.f32.mxu0 0.0
      %v4418 = vand.u32 %v257, 4294901760
      %v4419 = vsub.f32 %v257, %v4418
      %v4420 = vand.u32 %v4419, 4294901760
      %4421 = vmatmul.mubr.f32.gmra.mxu0 %v4420
      %v4422 = vpop.f32.mrf.mxu0
      %v4423 = vadd.f32 %v4331, %v4422
      %v4424 = vpop.f32.mrf.mxu0
      %4425 = vmatprep.mubr.f32.mxu0 0.0
      %v4426 = vand.u32 %v258, 4294901760
      %v4427 = vsub.f32 %v258, %v4426
      %v4428 = vand.u32 %v4427, 4294901760
      %4429 = vmatmul.mubr.f32.gmra.mxu0 %v4428
      %v4430 = vpop.f32.mrf.mxu0
      %v4431 = vadd.f32 %v4338, %v4430
      %v4432 = vpop.f32.mrf.mxu0
      %4433 = vdwg.mxu0
      %4434 = vmatprep.subr.mxu0 0.0
      %4435 = vmatpush1.xpose.msra.mxu0 0.0
      %4436 = vmatprep.subr.mxu0 0.0
      %4437 = vmatpush1.xpose.msra.mxu0 0.0
      %4438 = vmatprep.subr.mxu0 0.0
      %4439 = vmatpush1.xpose.msra.mxu0 0.0
      %4440 = vmatprep.subr.mxu0 0.0
      %4441 = vmatpush1.xpose.msra.mxu0 0.0
      %4442 = vmatprep.subr.mxu0 0.0
      %4443 = vmatpush1.xpose.msra.mxu0 0.0
      %4444 = vmatprep.subr.mxu0 0.0
      %4445 = vmatpush1.xpose.msra.mxu0 0.0
      %4446 = vmatprep.subr.mxu0 0.0
      %4447 = vmatpush1.xpose.msra.mxu0 0.0
      %4448 = vmatprep.subr.mxu0 0.0
      %4449 = vmatpush1.xpose.msra.mxu0 0.0
      %4450 = vmatprep.subr.mxu0 0.0
      %4451 = vmatpush1.xpose.msra.mxu0 0.0
      %4452 = vmatprep.subr.mxu0 0.0
      %4453 = vmatpush1.xpose.msra.mxu0 0.0
      %4454 = vmatprep.subr.mxu0 0.0
      %4455 = vmatpush1.xpose.msra.mxu0 0.0
      %4456 = vmatprep.subr.mxu0 0.0
      %4457 = vmatpush1.xpose.msra.mxu0 0.0
      %4458 = vmatprep.subr.mxu0 0.0
      %v4459 = vand.u32 %v4044, 4294901760
      %v4460 = vsub.f32 %v4044, %v4459
      %v4461 = vand.u32 %v4460, 4294901760
      %4462 = vmatpush1.xpose.msra.mxu0 %v4461
      %4463 = vmatprep.subr.mxu0 0.0
      %v4464 = vand.u32 %v4043, 4294901760
      %v4465 = vsub.f32 %v4043, %v4464
      %v4466 = vand.u32 %v4465, 4294901760
      %4467 = vmatpush1.xpose.msra.mxu0 %v4466
      %4468 = vmatprep.subr.mxu0 0.0
      %v4469 = vand.u32 %v4042, 4294901760
      %v4470 = vsub.f32 %v4042, %v4469
      %v4471 = vand.u32 %v4470, 4294901760
      %4472 = vmatpush1.xpose.msra.mxu0 %v4471
      %4473 = vmatprep.subr.mxu0 0.0
      %v4474 = vand.u32 %v4041, 4294901760
      %v4475 = vsub.f32 %v4041, %v4474
      %v4476 = vand.u32 %v4475, 4294901760
      %4477 = vmatpush1.xpose.msra.mxu0 %v4476
      %4478 = vmatprep.subr.mxu0 0.0
      %4479 = vmatpush2.xpose.msra.mxu0 0.0
      %4480 = vmatprep.subr.mxu0 0.0
      %4481 = vmatpush2.xpose.msra.mxu0 0.0
      %4482 = vmatprep.subr.mxu0 0.0
      %4483 = vmatpush2.xpose.msra.mxu0 0.0
      %4484 = vmatprep.subr.mxu0 0.0
      %4485 = vmatpush2.xpose.msra.mxu0 0.0
      %4486 = vmatprep.subr.mxu0 0.0
      %4487 = vmatpush2.xpose.msra.mxu0 0.0
      %4488 = vmatprep.subr.mxu0 0.0
      %4489 = vmatpush2.xpose.msra.mxu0 0.0
      %4490 = vmatprep.subr.mxu0 0.0
      %4491 = vmatpush2.xpose.msra.mxu0 0.0
      %4492 = vmatprep.subr.mxu0 0.0
      %4493 = vmatpush2.xpose.msra.mxu0 0.0
      %4494 = vmatprep.subr.mxu0 0.0
      %4495 = vmatpush2.xpose.msra.mxu0 0.0
      %4496 = vmatprep.subr.mxu0 0.0
      %4497 = vmatpush2.xpose.msra.mxu0 0.0
      %4498 = vmatprep.subr.mxu0 0.0
      %4499 = vmatpush2.xpose.msra.mxu0 0.0
      %4500 = vmatprep.subr.mxu0 0.0
      %4501 = vmatpush2.xpose.msra.mxu0 0.0
      %4502 = vmatprep.subr.mxu0 0.0
      %4503 = vmatpush2.xpose.msra.mxu0 0.0
      %4504 = vmatprep.subr.mxu0 0.0
      %4505 = vmatpush2.xpose.msra.mxu0 0.0
      %4506 = vmatprep.subr.mxu0 0.0
      %4507 = vmatpush2.xpose.msra.mxu0 0.0
      %4508 = vmatprep.subr.mxu0 0.0
      %4509 = vmatpush2.xpose.msra.mxu0 0.0
      %4510 = vmatprep.mubr.f32.mxu0 0.0
      %v4511 = vand.u32 %v256, 4294901760
      %4512 = vmatmul.mubr.f32.gmra.mxu0 %v4511
      %v4513 = vpop.f32.mrf.mxu0
      %v4514 = vadd.f32 %v4415, %v4513
      %v4515 = vpop.f32.mrf.mxu0
      %4516 = vmatprep.mubr.f32.mxu0 0.0
      %v4517 = vand.u32 %v257, 4294901760
      %4518 = vmatmul.mubr.f32.gmra.mxu0 %v4517
      %v4519 = vpop.f32.mrf.mxu0
      %v4520 = vadd.f32 %v4423, %v4519
      %v4521 = vpop.f32.mrf.mxu0
      %4522 = vmatprep.mubr.f32.mxu0 0.0
      %v4523 = vand.u32 %v258, 4294901760
      %4524 = vmatmul.mubr.f32.gmra.mxu0 %v4523
      %v4525 = vpop.f32.mrf.mxu0
      %v4526 = vadd.f32 %v4431, %v4525
      %v4527 = vpop.f32.mrf.mxu0
      %4528 = vdwg.mxu0
      %4529 = vmatprep.subr.mxu0 0.0
      %4530 = vmatpush1.xpose.msra.mxu0 0.0
      %4531 = vmatprep.subr.mxu0 0.0
      %4532 = vmatpush1.xpose.msra.mxu0 0.0
      %4533 = vmatprep.subr.mxu0 0.0
      %4534 = vmatpush1.xpose.msra.mxu0 0.0
      %4535 = vmatprep.subr.mxu0 0.0
      %4536 = vmatpush1.xpose.msra.mxu0 0.0
      %4537 = vmatprep.subr.mxu0 0.0
      %4538 = vmatpush1.xpose.msra.mxu0 0.0
      %4539 = vmatprep.subr.mxu0 0.0
      %4540 = vmatpush1.xpose.msra.mxu0 0.0
      %4541 = vmatprep.subr.mxu0 0.0
      %4542 = vmatpush1.xpose.msra.mxu0 0.0
      %4543 = vmatprep.subr.mxu0 0.0
      %4544 = vmatpush1.xpose.msra.mxu0 0.0
      %4545 = vmatprep.subr.mxu0 0.0
      %4546 = vmatpush1.xpose.msra.mxu0 0.0
      %4547 = vmatprep.subr.mxu0 0.0
      %4548 = vmatpush1.xpose.msra.mxu0 0.0
      %4549 = vmatprep.subr.mxu0 0.0
      %4550 = vmatpush1.xpose.msra.mxu0 0.0
      %4551 = vmatprep.subr.mxu0 0.0
      %4552 = vmatpush1.xpose.msra.mxu0 0.0
      %4553 = vmatprep.subr.mxu0 0.0
      %v4554 = vand.u32 %v4044, 4294901760
      %4555 = vmatpush1.xpose.msra.mxu0 %v4554
      %4556 = vmatprep.subr.mxu0 0.0
      %v4557 = vand.u32 %v4043, 4294901760
      %4558 = vmatpush1.xpose.msra.mxu0 %v4557
      %4559 = vmatprep.subr.mxu0 0.0
      %v4560 = vand.u32 %v4042, 4294901760
      %4561 = vmatpush1.xpose.msra.mxu0 %v4560
      %4562 = vmatprep.subr.mxu0 0.0
      %v4563 = vand.u32 %v4041, 4294901760
      %4564 = vmatpush1.xpose.msra.mxu0 %v4563
      %4565 = vmatprep.subr.mxu0 0.0
      %4566 = vmatpush2.xpose.msra.mxu0 0.0
      %4567 = vmatprep.subr.mxu0 0.0
      %4568 = vmatpush2.xpose.msra.mxu0 0.0
      %4569 = vmatprep.subr.mxu0 0.0
      %4570 = vmatpush2.xpose.msra.mxu0 0.0
      %4571 = vmatprep.subr.mxu0 0.0
      %4572 = vmatpush2.xpose.msra.mxu0 0.0
      %4573 = vmatprep.subr.mxu0 0.0
      %4574 = vmatpush2.xpose.msra.mxu0 0.0
      %4575 = vmatprep.subr.mxu0 0.0
      %4576 = vmatpush2.xpose.msra.mxu0 0.0
      %4577 = vmatprep.subr.mxu0 0.0
      %4578 = vmatpush2.xpose.msra.mxu0 0.0
      %4579 = vmatprep.subr.mxu0 0.0
      %4580 = vmatpush2.xpose.msra.mxu0 0.0
      %4581 = vmatprep.subr.mxu0 0.0
      %4582 = vmatpush2.xpose.msra.mxu0 0.0
      %4583 = vmatprep.subr.mxu0 0.0
      %4584 = vmatpush2.xpose.msra.mxu0 0.0
      %4585 = vmatprep.subr.mxu0 0.0
      %4586 = vmatpush2.xpose.msra.mxu0 0.0
      %4587 = vmatprep.subr.mxu0 0.0
      %4588 = vmatpush2.xpose.msra.mxu0 0.0
      %4589 = vmatprep.subr.mxu0 0.0
      %4590 = vmatpush2.xpose.msra.mxu0 0.0
      %4591 = vmatprep.subr.mxu0 0.0
      %4592 = vmatpush2.xpose.msra.mxu0 0.0
      %4593 = vmatprep.subr.mxu0 0.0
      %4594 = vmatpush2.xpose.msra.mxu0 0.0
      %4595 = vmatprep.subr.mxu0 0.0
      %4596 = vmatpush2.xpose.msra.mxu0 0.0
      %4597 = vmatprep.mubr.f32.mxu0 0.0
      %v4598 = vand.u32 %v256, 4294901760
      %4599 = vmatmul.mubr.f32.gmra.mxu0 %v4598
      %v4600 = vpop.f32.mrf.mxu0
      %v4601 = vadd.f32 %v4514, %v4600
      %v4602 = vpop.f32.mrf.mxu0
      %4603 = vmatprep.mubr.f32.mxu0 0.0
      %v4604 = vand.u32 %v257, 4294901760
      %4605 = vmatmul.mubr.f32.gmra.mxu0 %v4604
      %v4606 = vpop.f32.mrf.mxu0
      %v4607 = vadd.f32 %v4520, %v4606
      %v4608 = vpop.f32.mrf.mxu0
      %4609 = vmatprep.mubr.f32.mxu0 0.0
      %v4610 = vand.u32 %v258, 4294901760
      %4611 = vmatmul.mubr.f32.gmra.mxu0 %v4610
      %v4612 = vpop.f32.mrf.mxu0
      %v4613 = vadd.f32 %v4526, %v4612
      %v4614 = vpop.f32.mrf.mxu0
      %4615 = vdwg.mxu0
      %v4616 = vadd.f32 %v4002, %v4601
      %v4617 = vadd.f32 %v4003, %v4607
      %v4618 = vadd.f32 %v4004, %v4613
      %v4619 = vsel %vm4033, 1e+30, %v4005
      %v4620 = vsel %vm4034, 1e+30, %v4006
      %v4621 = vsel %vm4035, 1e+30, %v4007
      %v4622 = vsel %vm4036, 1e+30, %v4008
      %4623 = vmin.xlane.f32.xlu0 %v4619
      %v4624 = vpop.xlane.xlu0 %4623
      %4625 = vmin.xlane.f32.xlu0 %v4620
      %v4626 = vpop.xlane.xlu0 %4625
      %4627 = vmin.xlane.f32.xlu0 %v4621
      %v4628 = vpop.xlane.xlu0 %4627
      %4629 = vmin.xlane.f32.xlu0 %v4622
      %v4630 = vpop.xlane.xlu0 %4629
      %vm4631 = vcmp.eq.f32.partialorder %v4619, %v4624
      %vm4632 = vcmp.eq.f32.partialorder %v4620, %v4626
      %vm4633 = vcmp.eq.f32.partialorder %v4621, %v4628
      %vm4634 = vcmp.eq.f32.partialorder %v4622, %v4630
      %v4635 = vsel %vm4631, %v261, 128.0
      %v4636 = vsel %vm4632, %v261, 128.0
      %v4637 = vsel %vm4633, %v261, 128.0
      %v4638 = vsel %vm4634, %v261, 128.0
      %4639 = vmin.xlane.f32.xlu0 %v4635
      %v4640 = vpop.xlane.xlu0 %4639
      %4641 = vmin.xlane.f32.xlu0 %v4636
      %v4642 = vpop.xlane.xlu0 %4641
      %4643 = vmin.xlane.f32.xlu0 %v4637
      %v4644 = vpop.xlane.xlu0 %4643
      %4645 = vmin.xlane.f32.xlu0 %v4638
      %v4646 = vpop.xlane.xlu0 %4645
      %vm4647 = vcmp.eq.f32.partialorder %v261, %v4640
      %vm4648 = vcmp.eq.f32.partialorder %v261, %v4642
      %vm4649 = vcmp.eq.f32.partialorder %v261, %v4644
      %vm4650 = vcmp.eq.f32.partialorder %v261, %v4646
      %v4651 = vsel %vm4647, 1, 0
      %v4652 = vsel %vm4648, 1, 0
      %v4653 = vsel %vm4649, 1, 0
      %v4654 = vsel %vm4650, 1, 0
      %v4655 = vcvt.s32.f32 %v4651
      %v4656 = vcvt.s32.f32 %v4652
      %v4657 = vcvt.s32.f32 %v4653
      %v4658 = vcvt.s32.f32 %v4654
      %4659 = vmatprep.subr.mxu0 0.0
      %4660 = vmatpush1.xpose.msra.mxu0 0.0
      %4661 = vmatprep.subr.mxu0 0.0
      %4662 = vmatpush1.xpose.msra.mxu0 0.0
      %4663 = vmatprep.subr.mxu0 0.0
      %4664 = vmatpush1.xpose.msra.mxu0 0.0
      %4665 = vmatprep.subr.mxu0 0.0
      %4666 = vmatpush1.xpose.msra.mxu0 0.0
      %4667 = vmatprep.subr.mxu0 0.0
      %4668 = vmatpush1.xpose.msra.mxu0 0.0
      %4669 = vmatprep.subr.mxu0 0.0
      %4670 = vmatpush1.xpose.msra.mxu0 0.0
      %4671 = vmatprep.subr.mxu0 0.0
      %4672 = vmatpush1.xpose.msra.mxu0 0.0
      %4673 = vmatprep.subr.mxu0 0.0
      %4674 = vmatpush1.xpose.msra.mxu0 0.0
      %4675 = vmatprep.subr.mxu0 0.0
      %4676 = vmatpush1.xpose.msra.mxu0 0.0
      %4677 = vmatprep.subr.mxu0 0.0
      %4678 = vmatpush1.xpose.msra.mxu0 0.0
      %4679 = vmatprep.subr.mxu0 0.0
      %4680 = vmatpush1.xpose.msra.mxu0 0.0
      %4681 = vmatprep.subr.mxu0 0.0
      %4682 = vmatpush1.xpose.msra.mxu0 0.0
      %4683 = vmatprep.subr.mxu0 0.0
      %v4684 = vand.u32 %v4658, 4294901760
      %4685 = vmatpush1.xpose.msra.mxu0 %v4684
      %4686 = vmatprep.subr.mxu0 0.0
      %v4687 = vand.u32 %v4657, 4294901760
      %4688 = vmatpush1.xpose.msra.mxu0 %v4687
      %4689 = vmatprep.subr.mxu0 0.0
      %v4690 = vand.u32 %v4656, 4294901760
      %4691 = vmatpush1.xpose.msra.mxu0 %v4690
      %4692 = vmatprep.subr.mxu0 0.0
      %v4693 = vand.u32 %v4655, 4294901760
      %4694 = vmatpush1.xpose.msra.mxu0 %v4693
      %4695 = vmatprep.subr.mxu0 0.0
      %4696 = vmatpush2.xpose.msra.mxu0 0.0
      %4697 = vmatprep.subr.mxu0 0.0
      %4698 = vmatpush2.xpose.msra.mxu0 0.0
      %4699 = vmatprep.subr.mxu0 0.0
      %4700 = vmatpush2.xpose.msra.mxu0 0.0
      %4701 = vmatprep.subr.mxu0 0.0
      %4702 = vmatpush2.xpose.msra.mxu0 0.0
      %4703 = vmatprep.subr.mxu0 0.0
      %4704 = vmatpush2.xpose.msra.mxu0 0.0
      %4705 = vmatprep.subr.mxu0 0.0
      %4706 = vmatpush2.xpose.msra.mxu0 0.0
      %4707 = vmatprep.subr.mxu0 0.0
      %4708 = vmatpush2.xpose.msra.mxu0 0.0
      %4709 = vmatprep.subr.mxu0 0.0
      %4710 = vmatpush2.xpose.msra.mxu0 0.0
      %4711 = vmatprep.subr.mxu0 0.0
      %4712 = vmatpush2.xpose.msra.mxu0 0.0
      %4713 = vmatprep.subr.mxu0 0.0
      %4714 = vmatpush2.xpose.msra.mxu0 0.0
      %4715 = vmatprep.subr.mxu0 0.0
      %4716 = vmatpush2.xpose.msra.mxu0 0.0
      %4717 = vmatprep.subr.mxu0 0.0
      %4718 = vmatpush2.xpose.msra.mxu0 0.0
      %4719 = vmatprep.subr.mxu0 0.0
      %4720 = vmatpush2.xpose.msra.mxu0 0.0
      %4721 = vmatprep.subr.mxu0 0.0
      %4722 = vmatpush2.xpose.msra.mxu0 0.0
      %4723 = vmatprep.subr.mxu0 0.0
      %4724 = vmatpush2.xpose.msra.mxu0 0.0
      %4725 = vmatprep.subr.mxu0 0.0
      %4726 = vmatpush2.xpose.msra.mxu0 0.0
      %4727 = vmatprep.mubr.f32.mxu0 0.0
      %v4728 = vand.u32 %v256, 4294901760
      %v4729 = vsub.f32 %v256, %v4728
      %v4730 = vand.u32 %v4729, 4294901760
      %v4731 = vsub.f32 %v4729, %v4730
      %v4732 = vand.u32 %v4731, 4294901760
      %4733 = vmatmul.mubr.f32.gmra.mxu0 %v4732
      %v4734 = vpop.f32.mrf.mxu0
      %v4735 = vadd.f32 0.0, %v4734
      %v4736 = vpop.f32.mrf.mxu0
      %4737 = vmatprep.mubr.f32.mxu0 0.0
      %v4738 = vand.u32 %v257, 4294901760
      %v4739 = vsub.f32 %v257, %v4738
      %v4740 = vand.u32 %v4739, 4294901760
      %v4741 = vsub.f32 %v4739, %v4740
      %v4742 = vand.u32 %v4741, 4294901760
      %4743 = vmatmul.mubr.f32.gmra.mxu0 %v4742
      %v4744 = vpop.f32.mrf.mxu0
      %v4745 = vadd.f32 0.0, %v4744
      %v4746 = vpop.f32.mrf.mxu0
      %4747 = vmatprep.mubr.f32.mxu0 0.0
      %v4748 = vand.u32 %v258, 4294901760
      %v4749 = vsub.f32 %v258, %v4748
      %v4750 = vand.u32 %v4749, 4294901760
      %v4751 = vsub.f32 %v4749, %v4750
      %v4752 = vand.u32 %v4751, 4294901760
      %4753 = vmatmul.mubr.f32.gmra.mxu0 %v4752
      %v4754 = vpop.f32.mrf.mxu0
      %v4755 = vadd.f32 0.0, %v4754
      %v4756 = vpop.f32.mrf.mxu0
      %4757 = vdwg.mxu0
      %4758 = vmatprep.subr.mxu0 0.0
      %4759 = vmatpush1.xpose.msra.mxu0 0.0
      %4760 = vmatprep.subr.mxu0 0.0
      %4761 = vmatpush1.xpose.msra.mxu0 0.0
      %4762 = vmatprep.subr.mxu0 0.0
      %4763 = vmatpush1.xpose.msra.mxu0 0.0
      %4764 = vmatprep.subr.mxu0 0.0
      %4765 = vmatpush1.xpose.msra.mxu0 0.0
      %4766 = vmatprep.subr.mxu0 0.0
      %4767 = vmatpush1.xpose.msra.mxu0 0.0
      %4768 = vmatprep.subr.mxu0 0.0
      %4769 = vmatpush1.xpose.msra.mxu0 0.0
      %4770 = vmatprep.subr.mxu0 0.0
      %4771 = vmatpush1.xpose.msra.mxu0 0.0
      %4772 = vmatprep.subr.mxu0 0.0
      %4773 = vmatpush1.xpose.msra.mxu0 0.0
      %4774 = vmatprep.subr.mxu0 0.0
      %4775 = vmatpush1.xpose.msra.mxu0 0.0
      %4776 = vmatprep.subr.mxu0 0.0
      %4777 = vmatpush1.xpose.msra.mxu0 0.0
      %4778 = vmatprep.subr.mxu0 0.0
      %4779 = vmatpush1.xpose.msra.mxu0 0.0
      %4780 = vmatprep.subr.mxu0 0.0
      %4781 = vmatpush1.xpose.msra.mxu0 0.0
      %4782 = vmatprep.subr.mxu0 0.0
      %v4783 = vand.u32 %v4658, 4294901760
      %v4784 = vsub.f32 %v4658, %v4783
      %v4785 = vand.u32 %v4784, 4294901760
      %v4786 = vsub.f32 %v4784, %v4785
      %v4787 = vand.u32 %v4786, 4294901760
      %4788 = vmatpush1.xpose.msra.mxu0 %v4787
      %4789 = vmatprep.subr.mxu0 0.0
      %v4790 = vand.u32 %v4657, 4294901760
      %v4791 = vsub.f32 %v4657, %v4790
      %v4792 = vand.u32 %v4791, 4294901760
      %v4793 = vsub.f32 %v4791, %v4792
      %v4794 = vand.u32 %v4793, 4294901760
      %4795 = vmatpush1.xpose.msra.mxu0 %v4794
      %4796 = vmatprep.subr.mxu0 0.0
      %v4797 = vand.u32 %v4656, 4294901760
      %v4798 = vsub.f32 %v4656, %v4797
      %v4799 = vand.u32 %v4798, 4294901760
      %v4800 = vsub.f32 %v4798, %v4799
      %v4801 = vand.u32 %v4800, 4294901760
      %4802 = vmatpush1.xpose.msra.mxu0 %v4801
      %4803 = vmatprep.subr.mxu0 0.0
      %v4804 = vand.u32 %v4655, 4294901760
      %v4805 = vsub.f32 %v4655, %v4804
      %v4806 = vand.u32 %v4805, 4294901760
      %v4807 = vsub.f32 %v4805, %v4806
      %v4808 = vand.u32 %v4807, 4294901760
      %4809 = vmatpush1.xpose.msra.mxu0 %v4808
      %4810 = vmatprep.subr.mxu0 0.0
      %4811 = vmatpush2.xpose.msra.mxu0 0.0
      %4812 = vmatprep.subr.mxu0 0.0
      %4813 = vmatpush2.xpose.msra.mxu0 0.0
      %4814 = vmatprep.subr.mxu0 0.0
      %4815 = vmatpush2.xpose.msra.mxu0 0.0
      %4816 = vmatprep.subr.mxu0 0.0
      %4817 = vmatpush2.xpose.msra.mxu0 0.0
      %4818 = vmatprep.subr.mxu0 0.0
      %4819 = vmatpush2.xpose.msra.mxu0 0.0
      %4820 = vmatprep.subr.mxu0 0.0
      %4821 = vmatpush2.xpose.msra.mxu0 0.0
      %4822 = vmatprep.subr.mxu0 0.0
      %4823 = vmatpush2.xpose.msra.mxu0 0.0
      %4824 = vmatprep.subr.mxu0 0.0
      %4825 = vmatpush2.xpose.msra.mxu0 0.0
      %4826 = vmatprep.subr.mxu0 0.0
      %4827 = vmatpush2.xpose.msra.mxu0 0.0
      %4828 = vmatprep.subr.mxu0 0.0
      %4829 = vmatpush2.xpose.msra.mxu0 0.0
      %4830 = vmatprep.subr.mxu0 0.0
      %4831 = vmatpush2.xpose.msra.mxu0 0.0
      %4832 = vmatprep.subr.mxu0 0.0
      %4833 = vmatpush2.xpose.msra.mxu0 0.0
      %4834 = vmatprep.subr.mxu0 0.0
      %4835 = vmatpush2.xpose.msra.mxu0 0.0
      %4836 = vmatprep.subr.mxu0 0.0
      %4837 = vmatpush2.xpose.msra.mxu0 0.0
      %4838 = vmatprep.subr.mxu0 0.0
      %4839 = vmatpush2.xpose.msra.mxu0 0.0
      %4840 = vmatprep.subr.mxu0 0.0
      %4841 = vmatpush2.xpose.msra.mxu0 0.0
      %4842 = vmatprep.mubr.f32.mxu0 0.0
      %v4843 = vand.u32 %v256, 4294901760
      %4844 = vmatmul.mubr.f32.gmra.mxu0 %v4843
      %v4845 = vpop.f32.mrf.mxu0
      %v4846 = vadd.f32 %v4735, %v4845
      %v4847 = vpop.f32.mrf.mxu0
      %4848 = vmatprep.mubr.f32.mxu0 0.0
      %v4849 = vand.u32 %v257, 4294901760
      %4850 = vmatmul.mubr.f32.gmra.mxu0 %v4849
      %v4851 = vpop.f32.mrf.mxu0
      %v4852 = vadd.f32 %v4745, %v4851
      %v4853 = vpop.f32.mrf.mxu0
      %4854 = vmatprep.mubr.f32.mxu0 0.0
      %v4855 = vand.u32 %v258, 4294901760
      %4856 = vmatmul.mubr.f32.gmra.mxu0 %v4855
      %v4857 = vpop.f32.mrf.mxu0
      %v4858 = vadd.f32 %v4755, %v4857
      %v4859 = vpop.f32.mrf.mxu0
      %4860 = vdwg.mxu0
      %4861 = vmatprep.subr.mxu0 0.0
      %4862 = vmatpush1.xpose.msra.mxu0 0.0
      %4863 = vmatprep.subr.mxu0 0.0
      %4864 = vmatpush1.xpose.msra.mxu0 0.0
      %4865 = vmatprep.subr.mxu0 0.0
      %4866 = vmatpush1.xpose.msra.mxu0 0.0
      %4867 = vmatprep.subr.mxu0 0.0
      %4868 = vmatpush1.xpose.msra.mxu0 0.0
      %4869 = vmatprep.subr.mxu0 0.0
      %4870 = vmatpush1.xpose.msra.mxu0 0.0
      %4871 = vmatprep.subr.mxu0 0.0
      %4872 = vmatpush1.xpose.msra.mxu0 0.0
      %4873 = vmatprep.subr.mxu0 0.0
      %4874 = vmatpush1.xpose.msra.mxu0 0.0
      %4875 = vmatprep.subr.mxu0 0.0
      %4876 = vmatpush1.xpose.msra.mxu0 0.0
      %4877 = vmatprep.subr.mxu0 0.0
      %4878 = vmatpush1.xpose.msra.mxu0 0.0
      %4879 = vmatprep.subr.mxu0 0.0
      %4880 = vmatpush1.xpose.msra.mxu0 0.0
      %4881 = vmatprep.subr.mxu0 0.0
      %4882 = vmatpush1.xpose.msra.mxu0 0.0
      %4883 = vmatprep.subr.mxu0 0.0
      %4884 = vmatpush1.xpose.msra.mxu0 0.0
      %4885 = vmatprep.subr.mxu0 0.0
      %v4886 = vand.u32 %v4658, 4294901760
      %v4887 = vsub.f32 %v4658, %v4886
      %4888 = vmatpush1.xpose.msra.mxu0 %v4887
      %4889 = vmatprep.subr.mxu0 0.0
      %v4890 = vand.u32 %v4657, 4294901760
      %v4891 = vsub.f32 %v4657, %v4890
      %4892 = vmatpush1.xpose.msra.mxu0 %v4891
      %4893 = vmatprep.subr.mxu0 0.0
      %v4894 = vand.u32 %v4656, 4294901760
      %v4895 = vsub.f32 %v4656, %v4894
      %4896 = vmatpush1.xpose.msra.mxu0 %v4895
      %4897 = vmatprep.subr.mxu0 0.0
      %v4898 = vand.u32 %v4655, 4294901760
      %v4899 = vsub.f32 %v4655, %v4898
      %4900 = vmatpush1.xpose.msra.mxu0 %v4899
      %4901 = vmatprep.subr.mxu0 0.0
      %4902 = vmatpush2.xpose.msra.mxu0 0.0
      %4903 = vmatprep.subr.mxu0 0.0
      %4904 = vmatpush2.xpose.msra.mxu0 0.0
      %4905 = vmatprep.subr.mxu0 0.0
      %4906 = vmatpush2.xpose.msra.mxu0 0.0
      %4907 = vmatprep.subr.mxu0 0.0
      %4908 = vmatpush2.xpose.msra.mxu0 0.0
      %4909 = vmatprep.subr.mxu0 0.0
      %4910 = vmatpush2.xpose.msra.mxu0 0.0
      %4911 = vmatprep.subr.mxu0 0.0
      %4912 = vmatpush2.xpose.msra.mxu0 0.0
      %4913 = vmatprep.subr.mxu0 0.0
      %4914 = vmatpush2.xpose.msra.mxu0 0.0
      %4915 = vmatprep.subr.mxu0 0.0
      %4916 = vmatpush2.xpose.msra.mxu0 0.0
      %4917 = vmatprep.subr.mxu0 0.0
      %4918 = vmatpush2.xpose.msra.mxu0 0.0
      %4919 = vmatprep.subr.mxu0 0.0
      %4920 = vmatpush2.xpose.msra.mxu0 0.0
      %4921 = vmatprep.subr.mxu0 0.0
      %4922 = vmatpush2.xpose.msra.mxu0 0.0
      %4923 = vmatprep.subr.mxu0 0.0
      %4924 = vmatpush2.xpose.msra.mxu0 0.0
      %4925 = vmatprep.subr.mxu0 0.0
      %4926 = vmatpush2.xpose.msra.mxu0 0.0
      %4927 = vmatprep.subr.mxu0 0.0
      %4928 = vmatpush2.xpose.msra.mxu0 0.0
      %4929 = vmatprep.subr.mxu0 0.0
      %4930 = vmatpush2.xpose.msra.mxu0 0.0
      %4931 = vmatprep.subr.mxu0 0.0
      %4932 = vmatpush2.xpose.msra.mxu0 0.0
      %4933 = vmatprep.mubr.f32.mxu0 0.0
      %v4934 = vand.u32 %v256, 4294901760
      %v4935 = vsub.f32 %v256, %v4934
      %4936 = vmatmul.mubr.f32.gmra.mxu0 %v4935
      %v4937 = vpop.f32.mrf.mxu0
      %v4938 = vadd.f32 %v4846, %v4937
      %v4939 = vpop.f32.mrf.mxu0
      %4940 = vmatprep.mubr.f32.mxu0 0.0
      %v4941 = vand.u32 %v257, 4294901760
      %v4942 = vsub.f32 %v257, %v4941
      %4943 = vmatmul.mubr.f32.gmra.mxu0 %v4942
      %v4944 = vpop.f32.mrf.mxu0
      %v4945 = vadd.f32 %v4852, %v4944
      %v4946 = vpop.f32.mrf.mxu0
      %4947 = vmatprep.mubr.f32.mxu0 0.0
      %v4948 = vand.u32 %v258, 4294901760
      %v4949 = vsub.f32 %v258, %v4948
      %4950 = vmatmul.mubr.f32.gmra.mxu0 %v4949
      %v4951 = vpop.f32.mrf.mxu0
      %v4952 = vadd.f32 %v4858, %v4951
      %v4953 = vpop.f32.mrf.mxu0
      %4954 = vdwg.mxu0
      %4955 = vmatprep.subr.mxu0 0.0
      %4956 = vmatpush1.xpose.msra.mxu0 0.0
      %4957 = vmatprep.subr.mxu0 0.0
      %4958 = vmatpush1.xpose.msra.mxu0 0.0
      %4959 = vmatprep.subr.mxu0 0.0
      %4960 = vmatpush1.xpose.msra.mxu0 0.0
      %4961 = vmatprep.subr.mxu0 0.0
      %4962 = vmatpush1.xpose.msra.mxu0 0.0
      %4963 = vmatprep.subr.mxu0 0.0
      %4964 = vmatpush1.xpose.msra.mxu0 0.0
      %4965 = vmatprep.subr.mxu0 0.0
      %4966 = vmatpush1.xpose.msra.mxu0 0.0
      %4967 = vmatprep.subr.mxu0 0.0
      %4968 = vmatpush1.xpose.msra.mxu0 0.0
      %4969 = vmatprep.subr.mxu0 0.0
      %4970 = vmatpush1.xpose.msra.mxu0 0.0
      %4971 = vmatprep.subr.mxu0 0.0
      %4972 = vmatpush1.xpose.msra.mxu0 0.0
      %4973 = vmatprep.subr.mxu0 0.0
      %4974 = vmatpush1.xpose.msra.mxu0 0.0
      %4975 = vmatprep.subr.mxu0 0.0
      %4976 = vmatpush1.xpose.msra.mxu0 0.0
      %4977 = vmatprep.subr.mxu0 0.0
      %4978 = vmatpush1.xpose.msra.mxu0 0.0
      %4979 = vmatprep.subr.mxu0 0.0
      %v4980 = vand.u32 %v4658, 4294901760
      %4981 = vmatpush1.xpose.msra.mxu0 %v4980
      %4982 = vmatprep.subr.mxu0 0.0
      %v4983 = vand.u32 %v4657, 4294901760
      %4984 = vmatpush1.xpose.msra.mxu0 %v4983
      %4985 = vmatprep.subr.mxu0 0.0
      %v4986 = vand.u32 %v4656, 4294901760
      %4987 = vmatpush1.xpose.msra.mxu0 %v4986
      %4988 = vmatprep.subr.mxu0 0.0
      %v4989 = vand.u32 %v4655, 4294901760
      %4990 = vmatpush1.xpose.msra.mxu0 %v4989
      %4991 = vmatprep.subr.mxu0 0.0
      %4992 = vmatpush2.xpose.msra.mxu0 0.0
      %4993 = vmatprep.subr.mxu0 0.0
      %4994 = vmatpush2.xpose.msra.mxu0 0.0
      %4995 = vmatprep.subr.mxu0 0.0
      %4996 = vmatpush2.xpose.msra.mxu0 0.0
      %4997 = vmatprep.subr.mxu0 0.0
      %4998 = vmatpush2.xpose.msra.mxu0 0.0
      %4999 = vmatprep.subr.mxu0 0.0
      %5000 = vmatpush2.xpose.msra.mxu0 0.0
      %5001 = vmatprep.subr.mxu0 0.0
      %5002 = vmatpush2.xpose.msra.mxu0 0.0
      %5003 = vmatprep.subr.mxu0 0.0
      %5004 = vmatpush2.xpose.msra.mxu0 0.0
      %5005 = vmatprep.subr.mxu0 0.0
      %5006 = vmatpush2.xpose.msra.mxu0 0.0
      %5007 = vmatprep.subr.mxu0 0.0
      %5008 = vmatpush2.xpose.msra.mxu0 0.0
      %5009 = vmatprep.subr.mxu0 0.0
      %5010 = vmatpush2.xpose.msra.mxu0 0.0
      %5011 = vmatprep.subr.mxu0 0.0
      %5012 = vmatpush2.xpose.msra.mxu0 0.0
      %5013 = vmatprep.subr.mxu0 0.0
      %5014 = vmatpush2.xpose.msra.mxu0 0.0
      %5015 = vmatprep.subr.mxu0 0.0
      %5016 = vmatpush2.xpose.msra.mxu0 0.0
      %5017 = vmatprep.subr.mxu0 0.0
      %5018 = vmatpush2.xpose.msra.mxu0 0.0
      %5019 = vmatprep.subr.mxu0 0.0
      %5020 = vmatpush2.xpose.msra.mxu0 0.0
      %5021 = vmatprep.subr.mxu0 0.0
      %5022 = vmatpush2.xpose.msra.mxu0 0.0
      %5023 = vmatprep.mubr.f32.mxu0 0.0
      %v5024 = vand.u32 %v256, 4294901760
      %v5025 = vsub.f32 %v256, %v5024
      %v5026 = vand.u32 %v5025, 4294901760
      %5027 = vmatmul.mubr.f32.gmra.mxu0 %v5026
      %v5028 = vpop.f32.mrf.mxu0
      %v5029 = vadd.f32 %v4938, %v5028
      %v5030 = vpop.f32.mrf.mxu0
      %5031 = vmatprep.mubr.f32.mxu0 0.0
      %v5032 = vand.u32 %v257, 4294901760
      %v5033 = vsub.f32 %v257, %v5032
      %v5034 = vand.u32 %v5033, 4294901760
      %5035 = vmatmul.mubr.f32.gmra.mxu0 %v5034
      %v5036 = vpop.f32.mrf.mxu0
      %v5037 = vadd.f32 %v4945, %v5036
      %v5038 = vpop.f32.mrf.mxu0
      %5039 = vmatprep.mubr.f32.mxu0 0.0
      %v5040 = vand.u32 %v258, 4294901760
      %v5041 = vsub.f32 %v258, %v5040
      %v5042 = vand.u32 %v5041, 4294901760
      %5043 = vmatmul.mubr.f32.gmra.mxu0 %v5042
      %v5044 = vpop.f32.mrf.mxu0
      %v5045 = vadd.f32 %v4952, %v5044
      %v5046 = vpop.f32.mrf.mxu0
      %5047 = vdwg.mxu0
      %5048 = vmatprep.subr.mxu0 0.0
      %5049 = vmatpush1.xpose.msra.mxu0 0.0
      %5050 = vmatprep.subr.mxu0 0.0
      %5051 = vmatpush1.xpose.msra.mxu0 0.0
      %5052 = vmatprep.subr.mxu0 0.0
      %5053 = vmatpush1.xpose.msra.mxu0 0.0
      %5054 = vmatprep.subr.mxu0 0.0
      %5055 = vmatpush1.xpose.msra.mxu0 0.0
      %5056 = vmatprep.subr.mxu0 0.0
      %5057 = vmatpush1.xpose.msra.mxu0 0.0
      %5058 = vmatprep.subr.mxu0 0.0
      %5059 = vmatpush1.xpose.msra.mxu0 0.0
      %5060 = vmatprep.subr.mxu0 0.0
      %5061 = vmatpush1.xpose.msra.mxu0 0.0
      %5062 = vmatprep.subr.mxu0 0.0
      %5063 = vmatpush1.xpose.msra.mxu0 0.0
      %5064 = vmatprep.subr.mxu0 0.0
      %5065 = vmatpush1.xpose.msra.mxu0 0.0
      %5066 = vmatprep.subr.mxu0 0.0
      %5067 = vmatpush1.xpose.msra.mxu0 0.0
      %5068 = vmatprep.subr.mxu0 0.0
      %5069 = vmatpush1.xpose.msra.mxu0 0.0
      %5070 = vmatprep.subr.mxu0 0.0
      %5071 = vmatpush1.xpose.msra.mxu0 0.0
      %5072 = vmatprep.subr.mxu0 0.0
      %v5073 = vand.u32 %v4658, 4294901760
      %v5074 = vsub.f32 %v4658, %v5073
      %v5075 = vand.u32 %v5074, 4294901760
      %5076 = vmatpush1.xpose.msra.mxu0 %v5075
      %5077 = vmatprep.subr.mxu0 0.0
      %v5078 = vand.u32 %v4657, 4294901760
      %v5079 = vsub.f32 %v4657, %v5078
      %v5080 = vand.u32 %v5079, 4294901760
      %5081 = vmatpush1.xpose.msra.mxu0 %v5080
      %5082 = vmatprep.subr.mxu0 0.0
      %v5083 = vand.u32 %v4656, 4294901760
      %v5084 = vsub.f32 %v4656, %v5083
      %v5085 = vand.u32 %v5084, 4294901760
      %5086 = vmatpush1.xpose.msra.mxu0 %v5085
      %5087 = vmatprep.subr.mxu0 0.0
      %v5088 = vand.u32 %v4655, 4294901760
      %v5089 = vsub.f32 %v4655, %v5088
      %v5090 = vand.u32 %v5089, 4294901760
      %5091 = vmatpush1.xpose.msra.mxu0 %v5090
      %5092 = vmatprep.subr.mxu0 0.0
      %5093 = vmatpush2.xpose.msra.mxu0 0.0
      %5094 = vmatprep.subr.mxu0 0.0
      %5095 = vmatpush2.xpose.msra.mxu0 0.0
      %5096 = vmatprep.subr.mxu0 0.0
      %5097 = vmatpush2.xpose.msra.mxu0 0.0
      %5098 = vmatprep.subr.mxu0 0.0
      %5099 = vmatpush2.xpose.msra.mxu0 0.0
      %5100 = vmatprep.subr.mxu0 0.0
      %5101 = vmatpush2.xpose.msra.mxu0 0.0
      %5102 = vmatprep.subr.mxu0 0.0
      %5103 = vmatpush2.xpose.msra.mxu0 0.0
      %5104 = vmatprep.subr.mxu0 0.0
      %5105 = vmatpush2.xpose.msra.mxu0 0.0
      %5106 = vmatprep.subr.mxu0 0.0
      %5107 = vmatpush2.xpose.msra.mxu0 0.0
      %5108 = vmatprep.subr.mxu0 0.0
      %5109 = vmatpush2.xpose.msra.mxu0 0.0
      %5110 = vmatprep.subr.mxu0 0.0
      %5111 = vmatpush2.xpose.msra.mxu0 0.0
      %5112 = vmatprep.subr.mxu0 0.0
      %5113 = vmatpush2.xpose.msra.mxu0 0.0
      %5114 = vmatprep.subr.mxu0 0.0
      %5115 = vmatpush2.xpose.msra.mxu0 0.0
      %5116 = vmatprep.subr.mxu0 0.0
      %5117 = vmatpush2.xpose.msra.mxu0 0.0
      %5118 = vmatprep.subr.mxu0 0.0
      %5119 = vmatpush2.xpose.msra.mxu0 0.0
      %5120 = vmatprep.subr.mxu0 0.0
      %5121 = vmatpush2.xpose.msra.mxu0 0.0
      %5122 = vmatprep.subr.mxu0 0.0
      %5123 = vmatpush2.xpose.msra.mxu0 0.0
      %5124 = vmatprep.mubr.f32.mxu0 0.0
      %v5125 = vand.u32 %v256, 4294901760
      %5126 = vmatmul.mubr.f32.gmra.mxu0 %v5125
      %v5127 = vpop.f32.mrf.mxu0
      %v5128 = vadd.f32 %v5029, %v5127
      %v5129 = vpop.f32.mrf.mxu0
      %5130 = vmatprep.mubr.f32.mxu0 0.0
      %v5131 = vand.u32 %v257, 4294901760
      %5132 = vmatmul.mubr.f32.gmra.mxu0 %v5131
      %v5133 = vpop.f32.mrf.mxu0
      %v5134 = vadd.f32 %v5037, %v5133
      %v5135 = vpop.f32.mrf.mxu0
      %5136 = vmatprep.mubr.f32.mxu0 0.0
      %v5137 = vand.u32 %v258, 4294901760
      %5138 = vmatmul.mubr.f32.gmra.mxu0 %v5137
      %v5139 = vpop.f32.mrf.mxu0
      %v5140 = vadd.f32 %v5045, %v5139
      %v5141 = vpop.f32.mrf.mxu0
      %5142 = vdwg.mxu0
      %5143 = vmatprep.subr.mxu0 0.0
      %5144 = vmatpush1.xpose.msra.mxu0 0.0
      %5145 = vmatprep.subr.mxu0 0.0
      %5146 = vmatpush1.xpose.msra.mxu0 0.0
      %5147 = vmatprep.subr.mxu0 0.0
      %5148 = vmatpush1.xpose.msra.mxu0 0.0
      %5149 = vmatprep.subr.mxu0 0.0
      %5150 = vmatpush1.xpose.msra.mxu0 0.0
      %5151 = vmatprep.subr.mxu0 0.0
      %5152 = vmatpush1.xpose.msra.mxu0 0.0
      %5153 = vmatprep.subr.mxu0 0.0
      %5154 = vmatpush1.xpose.msra.mxu0 0.0
      %5155 = vmatprep.subr.mxu0 0.0
      %5156 = vmatpush1.xpose.msra.mxu0 0.0
      %5157 = vmatprep.subr.mxu0 0.0
      %5158 = vmatpush1.xpose.msra.mxu0 0.0
      %5159 = vmatprep.subr.mxu0 0.0
      %5160 = vmatpush1.xpose.msra.mxu0 0.0
      %5161 = vmatprep.subr.mxu0 0.0
      %5162 = vmatpush1.xpose.msra.mxu0 0.0
      %5163 = vmatprep.subr.mxu0 0.0
      %5164 = vmatpush1.xpose.msra.mxu0 0.0
      %5165 = vmatprep.subr.mxu0 0.0
      %5166 = vmatpush1.xpose.msra.mxu0 0.0
      %5167 = vmatprep.subr.mxu0 0.0
      %v5168 = vand.u32 %v4658, 4294901760
      %5169 = vmatpush1.xpose.msra.mxu0 %v5168
      %5170 = vmatprep.subr.mxu0 0.0
      %v5171 = vand.u32 %v4657, 4294901760
      %5172 = vmatpush1.xpose.msra.mxu0 %v5171
      %5173 = vmatprep.subr.mxu0 0.0
      %v5174 = vand.u32 %v4656, 4294901760
      %5175 = vmatpush1.xpose.msra.mxu0 %v5174
      %5176 = vmatprep.subr.mxu0 0.0
      %v5177 = vand.u32 %v4655, 4294901760
      %5178 = vmatpush1.xpose.msra.mxu0 %v5177
      %5179 = vmatprep.subr.mxu0 0.0
      %5180 = vmatpush2.xpose.msra.mxu0 0.0
      %5181 = vmatprep.subr.mxu0 0.0
      %5182 = vmatpush2.xpose.msra.mxu0 0.0
      %5183 = vmatprep.subr.mxu0 0.0
      %5184 = vmatpush2.xpose.msra.mxu0 0.0
      %5185 = vmatprep.subr.mxu0 0.0
      %5186 = vmatpush2.xpose.msra.mxu0 0.0
      %5187 = vmatprep.subr.mxu0 0.0
      %5188 = vmatpush2.xpose.msra.mxu0 0.0
      %5189 = vmatprep.subr.mxu0 0.0
      %5190 = vmatpush2.xpose.msra.mxu0 0.0
      %5191 = vmatprep.subr.mxu0 0.0
      %5192 = vmatpush2.xpose.msra.mxu0 0.0
      %5193 = vmatprep.subr.mxu0 0.0
      %5194 = vmatpush2.xpose.msra.mxu0 0.0
      %5195 = vmatprep.subr.mxu0 0.0
      %5196 = vmatpush2.xpose.msra.mxu0 0.0
      %5197 = vmatprep.subr.mxu0 0.0
      %5198 = vmatpush2.xpose.msra.mxu0 0.0
      %5199 = vmatprep.subr.mxu0 0.0
      %5200 = vmatpush2.xpose.msra.mxu0 0.0
      %5201 = vmatprep.subr.mxu0 0.0
      %5202 = vmatpush2.xpose.msra.mxu0 0.0
      %5203 = vmatprep.subr.mxu0 0.0
      %5204 = vmatpush2.xpose.msra.mxu0 0.0
      %5205 = vmatprep.subr.mxu0 0.0
      %5206 = vmatpush2.xpose.msra.mxu0 0.0
      %5207 = vmatprep.subr.mxu0 0.0
      %5208 = vmatpush2.xpose.msra.mxu0 0.0
      %5209 = vmatprep.subr.mxu0 0.0
      %5210 = vmatpush2.xpose.msra.mxu0 0.0
      %5211 = vmatprep.mubr.f32.mxu0 0.0
      %v5212 = vand.u32 %v256, 4294901760
      %5213 = vmatmul.mubr.f32.gmra.mxu0 %v5212
      %v5214 = vpop.f32.mrf.mxu0
      %v5215 = vadd.f32 %v5128, %v5214
      %v5216 = vpop.f32.mrf.mxu0
      %5217 = vmatprep.mubr.f32.mxu0 0.0
      %v5218 = vand.u32 %v257, 4294901760
      %5219 = vmatmul.mubr.f32.gmra.mxu0 %v5218
      %v5220 = vpop.f32.mrf.mxu0
      %v5221 = vadd.f32 %v5134, %v5220
      %v5222 = vpop.f32.mrf.mxu0
      %5223 = vmatprep.mubr.f32.mxu0 0.0
      %v5224 = vand.u32 %v258, 4294901760
      %5225 = vmatmul.mubr.f32.gmra.mxu0 %v5224
      %v5226 = vpop.f32.mrf.mxu0
      %v5227 = vadd.f32 %v5140, %v5226
      %v5228 = vpop.f32.mrf.mxu0
      %5229 = vdwg.mxu0
      %v5230 = vadd.f32 %v4616, %v5215
      %v5231 = vadd.f32 %v4617, %v5221
      %v5232 = vadd.f32 %v4618, %v5227
      %v5233 = vsel %vm4647, 1e+30, %v4619
      %v5234 = vsel %vm4648, 1e+30, %v4620
      %v5235 = vsel %vm4649, 1e+30, %v4621
      %v5236 = vsel %vm4650, 1e+30, %v4622
      %5237 = vmin.xlane.f32.xlu0 %v5233
      %v5238 = vpop.xlane.xlu0 %5237
      %5239 = vmin.xlane.f32.xlu0 %v5234
      %v5240 = vpop.xlane.xlu0 %5239
      %5241 = vmin.xlane.f32.xlu0 %v5235
      %v5242 = vpop.xlane.xlu0 %5241
      %5243 = vmin.xlane.f32.xlu0 %v5236
      %v5244 = vpop.xlane.xlu0 %5243
      %vm5245 = vcmp.eq.f32.partialorder %v5233, %v5238
      %vm5246 = vcmp.eq.f32.partialorder %v5234, %v5240
      %vm5247 = vcmp.eq.f32.partialorder %v5235, %v5242
      %vm5248 = vcmp.eq.f32.partialorder %v5236, %v5244
      %v5249 = vsel %vm5245, %v261, 128.0
      %v5250 = vsel %vm5246, %v261, 128.0
      %v5251 = vsel %vm5247, %v261, 128.0
      %v5252 = vsel %vm5248, %v261, 128.0
      %5253 = vmin.xlane.f32.xlu0 %v5249
      %v5254 = vpop.xlane.xlu0 %5253
      %5255 = vmin.xlane.f32.xlu0 %v5250
      %v5256 = vpop.xlane.xlu0 %5255
      %5257 = vmin.xlane.f32.xlu0 %v5251
      %v5258 = vpop.xlane.xlu0 %5257
      %5259 = vmin.xlane.f32.xlu0 %v5252
      %v5260 = vpop.xlane.xlu0 %5259
      %vm5261 = vcmp.eq.f32.partialorder %v261, %v5254
      %vm5262 = vcmp.eq.f32.partialorder %v261, %v5256
      %vm5263 = vcmp.eq.f32.partialorder %v261, %v5258
      %vm5264 = vcmp.eq.f32.partialorder %v261, %v5260
      %v5265 = vsel %vm5261, 1, 0
      %v5266 = vsel %vm5262, 1, 0
      %v5267 = vsel %vm5263, 1, 0
      %v5268 = vsel %vm5264, 1, 0
      %v5269 = vcvt.s32.f32 %v5265
      %v5270 = vcvt.s32.f32 %v5266
      %v5271 = vcvt.s32.f32 %v5267
      %v5272 = vcvt.s32.f32 %v5268
      %5273 = vmatprep.subr.mxu0 0.0
      %5274 = vmatpush1.xpose.msra.mxu0 0.0
      %5275 = vmatprep.subr.mxu0 0.0
      %5276 = vmatpush1.xpose.msra.mxu0 0.0
      %5277 = vmatprep.subr.mxu0 0.0
      %5278 = vmatpush1.xpose.msra.mxu0 0.0
      %5279 = vmatprep.subr.mxu0 0.0
      %5280 = vmatpush1.xpose.msra.mxu0 0.0
      %5281 = vmatprep.subr.mxu0 0.0
      %5282 = vmatpush1.xpose.msra.mxu0 0.0
      %5283 = vmatprep.subr.mxu0 0.0
      %5284 = vmatpush1.xpose.msra.mxu0 0.0
      %5285 = vmatprep.subr.mxu0 0.0
      %5286 = vmatpush1.xpose.msra.mxu0 0.0
      %5287 = vmatprep.subr.mxu0 0.0
      %5288 = vmatpush1.xpose.msra.mxu0 0.0
      %5289 = vmatprep.subr.mxu0 0.0
      %5290 = vmatpush1.xpose.msra.mxu0 0.0
      %5291 = vmatprep.subr.mxu0 0.0
      %5292 = vmatpush1.xpose.msra.mxu0 0.0
      %5293 = vmatprep.subr.mxu0 0.0
      %5294 = vmatpush1.xpose.msra.mxu0 0.0
      %5295 = vmatprep.subr.mxu0 0.0
      %5296 = vmatpush1.xpose.msra.mxu0 0.0
      %5297 = vmatprep.subr.mxu0 0.0
      %v5298 = vand.u32 %v5272, 4294901760
      %5299 = vmatpush1.xpose.msra.mxu0 %v5298
      %5300 = vmatprep.subr.mxu0 0.0
      %v5301 = vand.u32 %v5271, 4294901760
      %5302 = vmatpush1.xpose.msra.mxu0 %v5301
      %5303 = vmatprep.subr.mxu0 0.0
      %v5304 = vand.u32 %v5270, 4294901760
      %5305 = vmatpush1.xpose.msra.mxu0 %v5304
      %5306 = vmatprep.subr.mxu0 0.0
      %v5307 = vand.u32 %v5269, 4294901760
      %5308 = vmatpush1.xpose.msra.mxu0 %v5307
      %5309 = vmatprep.subr.mxu0 0.0
      %5310 = vmatpush2.xpose.msra.mxu0 0.0
      %5311 = vmatprep.subr.mxu0 0.0
      %5312 = vmatpush2.xpose.msra.mxu0 0.0
      %5313 = vmatprep.subr.mxu0 0.0
      %5314 = vmatpush2.xpose.msra.mxu0 0.0
      %5315 = vmatprep.subr.mxu0 0.0
      %5316 = vmatpush2.xpose.msra.mxu0 0.0
      %5317 = vmatprep.subr.mxu0 0.0
      %5318 = vmatpush2.xpose.msra.mxu0 0.0
      %5319 = vmatprep.subr.mxu0 0.0
      %5320 = vmatpush2.xpose.msra.mxu0 0.0
      %5321 = vmatprep.subr.mxu0 0.0
      %5322 = vmatpush2.xpose.msra.mxu0 0.0
      %5323 = vmatprep.subr.mxu0 0.0
      %5324 = vmatpush2.xpose.msra.mxu0 0.0
      %5325 = vmatprep.subr.mxu0 0.0
      %5326 = vmatpush2.xpose.msra.mxu0 0.0
      %5327 = vmatprep.subr.mxu0 0.0
      %5328 = vmatpush2.xpose.msra.mxu0 0.0
      %5329 = vmatprep.subr.mxu0 0.0
      %5330 = vmatpush2.xpose.msra.mxu0 0.0
      %5331 = vmatprep.subr.mxu0 0.0
      %5332 = vmatpush2.xpose.msra.mxu0 0.0
      %5333 = vmatprep.subr.mxu0 0.0
      %5334 = vmatpush2.xpose.msra.mxu0 0.0
      %5335 = vmatprep.subr.mxu0 0.0
      %5336 = vmatpush2.xpose.msra.mxu0 0.0
      %5337 = vmatprep.subr.mxu0 0.0
      %5338 = vmatpush2.xpose.msra.mxu0 0.0
      %5339 = vmatprep.subr.mxu0 0.0
      %5340 = vmatpush2.xpose.msra.mxu0 0.0
      %5341 = vmatprep.mubr.f32.mxu0 0.0
      %v5342 = vand.u32 %v256, 4294901760
      %v5343 = vsub.f32 %v256, %v5342
      %v5344 = vand.u32 %v5343, 4294901760
      %v5345 = vsub.f32 %v5343, %v5344
      %v5346 = vand.u32 %v5345, 4294901760
      %5347 = vmatmul.mubr.f32.gmra.mxu0 %v5346
      %v5348 = vpop.f32.mrf.mxu0
      %v5349 = vadd.f32 0.0, %v5348
      %v5350 = vpop.f32.mrf.mxu0
      %5351 = vmatprep.mubr.f32.mxu0 0.0
      %v5352 = vand.u32 %v257, 4294901760
      %v5353 = vsub.f32 %v257, %v5352
      %v5354 = vand.u32 %v5353, 4294901760
      %v5355 = vsub.f32 %v5353, %v5354
      %v5356 = vand.u32 %v5355, 4294901760
      %5357 = vmatmul.mubr.f32.gmra.mxu0 %v5356
      %v5358 = vpop.f32.mrf.mxu0
      %v5359 = vadd.f32 0.0, %v5358
      %v5360 = vpop.f32.mrf.mxu0
      %5361 = vmatprep.mubr.f32.mxu0 0.0
      %v5362 = vand.u32 %v258, 4294901760
      %v5363 = vsub.f32 %v258, %v5362
      %v5364 = vand.u32 %v5363, 4294901760
      %v5365 = vsub.f32 %v5363, %v5364
      %v5366 = vand.u32 %v5365, 4294901760
      %5367 = vmatmul.mubr.f32.gmra.mxu0 %v5366
      %v5368 = vpop.f32.mrf.mxu0
      %v5369 = vadd.f32 0.0, %v5368
      %v5370 = vpop.f32.mrf.mxu0
      %5371 = vdwg.mxu0
      %5372 = vmatprep.subr.mxu0 0.0
      %5373 = vmatpush1.xpose.msra.mxu0 0.0
      %5374 = vmatprep.subr.mxu0 0.0
      %5375 = vmatpush1.xpose.msra.mxu0 0.0
      %5376 = vmatprep.subr.mxu0 0.0
      %5377 = vmatpush1.xpose.msra.mxu0 0.0
      %5378 = vmatprep.subr.mxu0 0.0
      %5379 = vmatpush1.xpose.msra.mxu0 0.0
      %5380 = vmatprep.subr.mxu0 0.0
      %5381 = vmatpush1.xpose.msra.mxu0 0.0
      %5382 = vmatprep.subr.mxu0 0.0
      %5383 = vmatpush1.xpose.msra.mxu0 0.0
      %5384 = vmatprep.subr.mxu0 0.0
      %5385 = vmatpush1.xpose.msra.mxu0 0.0
      %5386 = vmatprep.subr.mxu0 0.0
      %5387 = vmatpush1.xpose.msra.mxu0 0.0
      %5388 = vmatprep.subr.mxu0 0.0
      %5389 = vmatpush1.xpose.msra.mxu0 0.0
      %5390 = vmatprep.subr.mxu0 0.0
      %5391 = vmatpush1.xpose.msra.mxu0 0.0
      %5392 = vmatprep.subr.mxu0 0.0
      %5393 = vmatpush1.xpose.msra.mxu0 0.0
      %5394 = vmatprep.subr.mxu0 0.0
      %5395 = vmatpush1.xpose.msra.mxu0 0.0
      %5396 = vmatprep.subr.mxu0 0.0
      %v5397 = vand.u32 %v5272, 4294901760
      %v5398 = vsub.f32 %v5272, %v5397
      %v5399 = vand.u32 %v5398, 4294901760
      %v5400 = vsub.f32 %v5398, %v5399
      %v5401 = vand.u32 %v5400, 4294901760
      %5402 = vmatpush1.xpose.msra.mxu0 %v5401
      %5403 = vmatprep.subr.mxu0 0.0
      %v5404 = vand.u32 %v5271, 4294901760
      %v5405 = vsub.f32 %v5271, %v5404
      %v5406 = vand.u32 %v5405, 4294901760
      %v5407 = vsub.f32 %v5405, %v5406
      %v5408 = vand.u32 %v5407, 4294901760
      %5409 = vmatpush1.xpose.msra.mxu0 %v5408
      %5410 = vmatprep.subr.mxu0 0.0
      %v5411 = vand.u32 %v5270, 4294901760
      %v5412 = vsub.f32 %v5270, %v5411
      %v5413 = vand.u32 %v5412, 4294901760
      %v5414 = vsub.f32 %v5412, %v5413
      %v5415 = vand.u32 %v5414, 4294901760
      %5416 = vmatpush1.xpose.msra.mxu0 %v5415
      %5417 = vmatprep.subr.mxu0 0.0
      %v5418 = vand.u32 %v5269, 4294901760
      %v5419 = vsub.f32 %v5269, %v5418
      %v5420 = vand.u32 %v5419, 4294901760
      %v5421 = vsub.f32 %v5419, %v5420
      %v5422 = vand.u32 %v5421, 4294901760
      %5423 = vmatpush1.xpose.msra.mxu0 %v5422
      %5424 = vmatprep.subr.mxu0 0.0
      %5425 = vmatpush2.xpose.msra.mxu0 0.0
      %5426 = vmatprep.subr.mxu0 0.0
      %5427 = vmatpush2.xpose.msra.mxu0 0.0
      %5428 = vmatprep.subr.mxu0 0.0
      %5429 = vmatpush2.xpose.msra.mxu0 0.0
      %5430 = vmatprep.subr.mxu0 0.0
      %5431 = vmatpush2.xpose.msra.mxu0 0.0
      %5432 = vmatprep.subr.mxu0 0.0
      %5433 = vmatpush2.xpose.msra.mxu0 0.0
      %5434 = vmatprep.subr.mxu0 0.0
      %5435 = vmatpush2.xpose.msra.mxu0 0.0
      %5436 = vmatprep.subr.mxu0 0.0
      %5437 = vmatpush2.xpose.msra.mxu0 0.0
      %5438 = vmatprep.subr.mxu0 0.0
      %5439 = vmatpush2.xpose.msra.mxu0 0.0
      %5440 = vmatprep.subr.mxu0 0.0
      %5441 = vmatpush2.xpose.msra.mxu0 0.0
      %5442 = vmatprep.subr.mxu0 0.0
      %5443 = vmatpush2.xpose.msra.mxu0 0.0
      %5444 = vmatprep.subr.mxu0 0.0
      %5445 = vmatpush2.xpose.msra.mxu0 0.0
      %5446 = vmatprep.subr.mxu0 0.0
      %5447 = vmatpush2.xpose.msra.mxu0 0.0
      %5448 = vmatprep.subr.mxu0 0.0
      %5449 = vmatpush2.xpose.msra.mxu0 0.0
      %5450 = vmatprep.subr.mxu0 0.0
      %5451 = vmatpush2.xpose.msra.mxu0 0.0
      %5452 = vmatprep.subr.mxu0 0.0
      %5453 = vmatpush2.xpose.msra.mxu0 0.0
      %5454 = vmatprep.subr.mxu0 0.0
      %5455 = vmatpush2.xpose.msra.mxu0 0.0
      %5456 = vmatprep.mubr.f32.mxu0 0.0
      %v5457 = vand.u32 %v256, 4294901760
      %5458 = vmatmul.mubr.f32.gmra.mxu0 %v5457
      %v5459 = vpop.f32.mrf.mxu0
      %v5460 = vadd.f32 %v5349, %v5459
      %v5461 = vpop.f32.mrf.mxu0
      %5462 = vmatprep.mubr.f32.mxu0 0.0
      %v5463 = vand.u32 %v257, 4294901760
      %5464 = vmatmul.mubr.f32.gmra.mxu0 %v5463
      %v5465 = vpop.f32.mrf.mxu0
      %v5466 = vadd.f32 %v5359, %v5465
      %v5467 = vpop.f32.mrf.mxu0
      %5468 = vmatprep.mubr.f32.mxu0 0.0
      %v5469 = vand.u32 %v258, 4294901760
      %5470 = vmatmul.mubr.f32.gmra.mxu0 %v5469
      %v5471 = vpop.f32.mrf.mxu0
      %v5472 = vadd.f32 %v5369, %v5471
      %v5473 = vpop.f32.mrf.mxu0
      %5474 = vdwg.mxu0
      %5475 = vmatprep.subr.mxu0 0.0
      %5476 = vmatpush1.xpose.msra.mxu0 0.0
      %5477 = vmatprep.subr.mxu0 0.0
      %5478 = vmatpush1.xpose.msra.mxu0 0.0
      %5479 = vmatprep.subr.mxu0 0.0
      %5480 = vmatpush1.xpose.msra.mxu0 0.0
      %5481 = vmatprep.subr.mxu0 0.0
      %5482 = vmatpush1.xpose.msra.mxu0 0.0
      %5483 = vmatprep.subr.mxu0 0.0
      %5484 = vmatpush1.xpose.msra.mxu0 0.0
      %5485 = vmatprep.subr.mxu0 0.0
      %5486 = vmatpush1.xpose.msra.mxu0 0.0
      %5487 = vmatprep.subr.mxu0 0.0
      %5488 = vmatpush1.xpose.msra.mxu0 0.0
      %5489 = vmatprep.subr.mxu0 0.0
      %5490 = vmatpush1.xpose.msra.mxu0 0.0
      %5491 = vmatprep.subr.mxu0 0.0
      %5492 = vmatpush1.xpose.msra.mxu0 0.0
      %5493 = vmatprep.subr.mxu0 0.0
      %5494 = vmatpush1.xpose.msra.mxu0 0.0
      %5495 = vmatprep.subr.mxu0 0.0
      %5496 = vmatpush1.xpose.msra.mxu0 0.0
      %5497 = vmatprep.subr.mxu0 0.0
      %5498 = vmatpush1.xpose.msra.mxu0 0.0
      %5499 = vmatprep.subr.mxu0 0.0
      %v5500 = vand.u32 %v5272, 4294901760
      %v5501 = vsub.f32 %v5272, %v5500
      %5502 = vmatpush1.xpose.msra.mxu0 %v5501
      %5503 = vmatprep.subr.mxu0 0.0
      %v5504 = vand.u32 %v5271, 4294901760
      %v5505 = vsub.f32 %v5271, %v5504
      %5506 = vmatpush1.xpose.msra.mxu0 %v5505
      %5507 = vmatprep.subr.mxu0 0.0
      %v5508 = vand.u32 %v5270, 4294901760
      %v5509 = vsub.f32 %v5270, %v5508
      %5510 = vmatpush1.xpose.msra.mxu0 %v5509
      %5511 = vmatprep.subr.mxu0 0.0
      %v5512 = vand.u32 %v5269, 4294901760
      %v5513 = vsub.f32 %v5269, %v5512
      %5514 = vmatpush1.xpose.msra.mxu0 %v5513
      %5515 = vmatprep.subr.mxu0 0.0
      %5516 = vmatpush2.xpose.msra.mxu0 0.0
      %5517 = vmatprep.subr.mxu0 0.0
      %5518 = vmatpush2.xpose.msra.mxu0 0.0
      %5519 = vmatprep.subr.mxu0 0.0
      %5520 = vmatpush2.xpose.msra.mxu0 0.0
      %5521 = vmatprep.subr.mxu0 0.0
      %5522 = vmatpush2.xpose.msra.mxu0 0.0
      %5523 = vmatprep.subr.mxu0 0.0
      %5524 = vmatpush2.xpose.msra.mxu0 0.0
      %5525 = vmatprep.subr.mxu0 0.0
      %5526 = vmatpush2.xpose.msra.mxu0 0.0
      %5527 = vmatprep.subr.mxu0 0.0
      %5528 = vmatpush2.xpose.msra.mxu0 0.0
      %5529 = vmatprep.subr.mxu0 0.0
      %5530 = vmatpush2.xpose.msra.mxu0 0.0
      %5531 = vmatprep.subr.mxu0 0.0
      %5532 = vmatpush2.xpose.msra.mxu0 0.0
      %5533 = vmatprep.subr.mxu0 0.0
      %5534 = vmatpush2.xpose.msra.mxu0 0.0
      %5535 = vmatprep.subr.mxu0 0.0
      %5536 = vmatpush2.xpose.msra.mxu0 0.0
      %5537 = vmatprep.subr.mxu0 0.0
      %5538 = vmatpush2.xpose.msra.mxu0 0.0
      %5539 = vmatprep.subr.mxu0 0.0
      %5540 = vmatpush2.xpose.msra.mxu0 0.0
      %5541 = vmatprep.subr.mxu0 0.0
      %5542 = vmatpush2.xpose.msra.mxu0 0.0
      %5543 = vmatprep.subr.mxu0 0.0
      %5544 = vmatpush2.xpose.msra.mxu0 0.0
      %5545 = vmatprep.subr.mxu0 0.0
      %5546 = vmatpush2.xpose.msra.mxu0 0.0
      %5547 = vmatprep.mubr.f32.mxu0 0.0
      %v5548 = vand.u32 %v256, 4294901760
      %v5549 = vsub.f32 %v256, %v5548
      %5550 = vmatmul.mubr.f32.gmra.mxu0 %v5549
      %v5551 = vpop.f32.mrf.mxu0
      %v5552 = vadd.f32 %v5460, %v5551
      %v5553 = vpop.f32.mrf.mxu0
      %5554 = vmatprep.mubr.f32.mxu0 0.0
      %v5555 = vand.u32 %v257, 4294901760
      %v5556 = vsub.f32 %v257, %v5555
      %5557 = vmatmul.mubr.f32.gmra.mxu0 %v5556
      %v5558 = vpop.f32.mrf.mxu0
      %v5559 = vadd.f32 %v5466, %v5558
      %v5560 = vpop.f32.mrf.mxu0
      %5561 = vmatprep.mubr.f32.mxu0 0.0
      %v5562 = vand.u32 %v258, 4294901760
      %v5563 = vsub.f32 %v258, %v5562
      %5564 = vmatmul.mubr.f32.gmra.mxu0 %v5563
      %v5565 = vpop.f32.mrf.mxu0
      %v5566 = vadd.f32 %v5472, %v5565
      %v5567 = vpop.f32.mrf.mxu0
      %5568 = vdwg.mxu0
      %5569 = vmatprep.subr.mxu0 0.0
      %5570 = vmatpush1.xpose.msra.mxu0 0.0
      %5571 = vmatprep.subr.mxu0 0.0
      %5572 = vmatpush1.xpose.msra.mxu0 0.0
      %5573 = vmatprep.subr.mxu0 0.0
      %5574 = vmatpush1.xpose.msra.mxu0 0.0
      %5575 = vmatprep.subr.mxu0 0.0
      %5576 = vmatpush1.xpose.msra.mxu0 0.0
      %5577 = vmatprep.subr.mxu0 0.0
      %5578 = vmatpush1.xpose.msra.mxu0 0.0
      %5579 = vmatprep.subr.mxu0 0.0
      %5580 = vmatpush1.xpose.msra.mxu0 0.0
      %5581 = vmatprep.subr.mxu0 0.0
      %5582 = vmatpush1.xpose.msra.mxu0 0.0
      %5583 = vmatprep.subr.mxu0 0.0
      %5584 = vmatpush1.xpose.msra.mxu0 0.0
      %5585 = vmatprep.subr.mxu0 0.0
      %5586 = vmatpush1.xpose.msra.mxu0 0.0
      %5587 = vmatprep.subr.mxu0 0.0
      %5588 = vmatpush1.xpose.msra.mxu0 0.0
      %5589 = vmatprep.subr.mxu0 0.0
      %5590 = vmatpush1.xpose.msra.mxu0 0.0
      %5591 = vmatprep.subr.mxu0 0.0
      %5592 = vmatpush1.xpose.msra.mxu0 0.0
      %5593 = vmatprep.subr.mxu0 0.0
      %v5594 = vand.u32 %v5272, 4294901760
      %5595 = vmatpush1.xpose.msra.mxu0 %v5594
      %5596 = vmatprep.subr.mxu0 0.0
      %v5597 = vand.u32 %v5271, 4294901760
      %5598 = vmatpush1.xpose.msra.mxu0 %v5597
      %5599 = vmatprep.subr.mxu0 0.0
      %v5600 = vand.u32 %v5270, 4294901760
      %5601 = vmatpush1.xpose.msra.mxu0 %v5600
      %5602 = vmatprep.subr.mxu0 0.0
      %v5603 = vand.u32 %v5269, 4294901760
      %5604 = vmatpush1.xpose.msra.mxu0 %v5603
      %5605 = vmatprep.subr.mxu0 0.0
      %5606 = vmatpush2.xpose.msra.mxu0 0.0
      %5607 = vmatprep.subr.mxu0 0.0
      %5608 = vmatpush2.xpose.msra.mxu0 0.0
      %5609 = vmatprep.subr.mxu0 0.0
      %5610 = vmatpush2.xpose.msra.mxu0 0.0
      %5611 = vmatprep.subr.mxu0 0.0
      %5612 = vmatpush2.xpose.msra.mxu0 0.0
      %5613 = vmatprep.subr.mxu0 0.0
      %5614 = vmatpush2.xpose.msra.mxu0 0.0
      %5615 = vmatprep.subr.mxu0 0.0
      %5616 = vmatpush2.xpose.msra.mxu0 0.0
      %5617 = vmatprep.subr.mxu0 0.0
      %5618 = vmatpush2.xpose.msra.mxu0 0.0
      %5619 = vmatprep.subr.mxu0 0.0
      %5620 = vmatpush2.xpose.msra.mxu0 0.0
      %5621 = vmatprep.subr.mxu0 0.0
      %5622 = vmatpush2.xpose.msra.mxu0 0.0
      %5623 = vmatprep.subr.mxu0 0.0
      %5624 = vmatpush2.xpose.msra.mxu0 0.0
      %5625 = vmatprep.subr.mxu0 0.0
      %5626 = vmatpush2.xpose.msra.mxu0 0.0
      %5627 = vmatprep.subr.mxu0 0.0
      %5628 = vmatpush2.xpose.msra.mxu0 0.0
      %5629 = vmatprep.subr.mxu0 0.0
      %5630 = vmatpush2.xpose.msra.mxu0 0.0
      %5631 = vmatprep.subr.mxu0 0.0
      %5632 = vmatpush2.xpose.msra.mxu0 0.0
      %5633 = vmatprep.subr.mxu0 0.0
      %5634 = vmatpush2.xpose.msra.mxu0 0.0
      %5635 = vmatprep.subr.mxu0 0.0
      %5636 = vmatpush2.xpose.msra.mxu0 0.0
      %5637 = vmatprep.mubr.f32.mxu0 0.0
      %v5638 = vand.u32 %v256, 4294901760
      %v5639 = vsub.f32 %v256, %v5638
      %v5640 = vand.u32 %v5639, 4294901760
      %5641 = vmatmul.mubr.f32.gmra.mxu0 %v5640
      %v5642 = vpop.f32.mrf.mxu0
      %v5643 = vadd.f32 %v5552, %v5642
      %v5644 = vpop.f32.mrf.mxu0
      %5645 = vmatprep.mubr.f32.mxu0 0.0
      %v5646 = vand.u32 %v257, 4294901760
      %v5647 = vsub.f32 %v257, %v5646
      %v5648 = vand.u32 %v5647, 4294901760
      %5649 = vmatmul.mubr.f32.gmra.mxu0 %v5648
      %v5650 = vpop.f32.mrf.mxu0
      %v5651 = vadd.f32 %v5559, %v5650
      %v5652 = vpop.f32.mrf.mxu0
      %5653 = vmatprep.mubr.f32.mxu0 0.0
      %v5654 = vand.u32 %v258, 4294901760
      %v5655 = vsub.f32 %v258, %v5654
      %v5656 = vand.u32 %v5655, 4294901760
      %5657 = vmatmul.mubr.f32.gmra.mxu0 %v5656
      %v5658 = vpop.f32.mrf.mxu0
      %v5659 = vadd.f32 %v5566, %v5658
      %v5660 = vpop.f32.mrf.mxu0
      %5661 = vdwg.mxu0
      %5662 = vmatprep.subr.mxu0 0.0
      %5663 = vmatpush1.xpose.msra.mxu0 0.0
      %5664 = vmatprep.subr.mxu0 0.0
      %5665 = vmatpush1.xpose.msra.mxu0 0.0
      %5666 = vmatprep.subr.mxu0 0.0
      %5667 = vmatpush1.xpose.msra.mxu0 0.0
      %5668 = vmatprep.subr.mxu0 0.0
      %5669 = vmatpush1.xpose.msra.mxu0 0.0
      %5670 = vmatprep.subr.mxu0 0.0
      %5671 = vmatpush1.xpose.msra.mxu0 0.0
      %5672 = vmatprep.subr.mxu0 0.0
      %5673 = vmatpush1.xpose.msra.mxu0 0.0
      %5674 = vmatprep.subr.mxu0 0.0
      %5675 = vmatpush1.xpose.msra.mxu0 0.0
      %5676 = vmatprep.subr.mxu0 0.0
      %5677 = vmatpush1.xpose.msra.mxu0 0.0
      %5678 = vmatprep.subr.mxu0 0.0
      %5679 = vmatpush1.xpose.msra.mxu0 0.0
      %5680 = vmatprep.subr.mxu0 0.0
      %5681 = vmatpush1.xpose.msra.mxu0 0.0
      %5682 = vmatprep.subr.mxu0 0.0
      %5683 = vmatpush1.xpose.msra.mxu0 0.0
      %5684 = vmatprep.subr.mxu0 0.0
      %5685 = vmatpush1.xpose.msra.mxu0 0.0
      %5686 = vmatprep.subr.mxu0 0.0
      %v5687 = vand.u32 %v5272, 4294901760
      %v5688 = vsub.f32 %v5272, %v5687
      %v5689 = vand.u32 %v5688, 4294901760
      %5690 = vmatpush1.xpose.msra.mxu0 %v5689
      %5691 = vmatprep.subr.mxu0 0.0
      %v5692 = vand.u32 %v5271, 4294901760
      %v5693 = vsub.f32 %v5271, %v5692
      %v5694 = vand.u32 %v5693, 4294901760
      %5695 = vmatpush1.xpose.msra.mxu0 %v5694
      %5696 = vmatprep.subr.mxu0 0.0
      %v5697 = vand.u32 %v5270, 4294901760
      %v5698 = vsub.f32 %v5270, %v5697
      %v5699 = vand.u32 %v5698, 4294901760
      %5700 = vmatpush1.xpose.msra.mxu0 %v5699
      %5701 = vmatprep.subr.mxu0 0.0
      %v5702 = vand.u32 %v5269, 4294901760
      %v5703 = vsub.f32 %v5269, %v5702
      %v5704 = vand.u32 %v5703, 4294901760
      %5705 = vmatpush1.xpose.msra.mxu0 %v5704
      %5706 = vmatprep.subr.mxu0 0.0
      %5707 = vmatpush2.xpose.msra.mxu0 0.0
      %5708 = vmatprep.subr.mxu0 0.0
      %5709 = vmatpush2.xpose.msra.mxu0 0.0
      %5710 = vmatprep.subr.mxu0 0.0
      %5711 = vmatpush2.xpose.msra.mxu0 0.0
      %5712 = vmatprep.subr.mxu0 0.0
      %5713 = vmatpush2.xpose.msra.mxu0 0.0
      %5714 = vmatprep.subr.mxu0 0.0
      %5715 = vmatpush2.xpose.msra.mxu0 0.0
      %5716 = vmatprep.subr.mxu0 0.0
      %5717 = vmatpush2.xpose.msra.mxu0 0.0
      %5718 = vmatprep.subr.mxu0 0.0
      %5719 = vmatpush2.xpose.msra.mxu0 0.0
      %5720 = vmatprep.subr.mxu0 0.0
      %5721 = vmatpush2.xpose.msra.mxu0 0.0
      %5722 = vmatprep.subr.mxu0 0.0
      %5723 = vmatpush2.xpose.msra.mxu0 0.0
      %5724 = vmatprep.subr.mxu0 0.0
      %5725 = vmatpush2.xpose.msra.mxu0 0.0
      %5726 = vmatprep.subr.mxu0 0.0
      %5727 = vmatpush2.xpose.msra.mxu0 0.0
      %5728 = vmatprep.subr.mxu0 0.0
      %5729 = vmatpush2.xpose.msra.mxu0 0.0
      %5730 = vmatprep.subr.mxu0 0.0
      %5731 = vmatpush2.xpose.msra.mxu0 0.0
      %5732 = vmatprep.subr.mxu0 0.0
      %5733 = vmatpush2.xpose.msra.mxu0 0.0
      %5734 = vmatprep.subr.mxu0 0.0
      %5735 = vmatpush2.xpose.msra.mxu0 0.0
      %5736 = vmatprep.subr.mxu0 0.0
      %5737 = vmatpush2.xpose.msra.mxu0 0.0
      %5738 = vmatprep.mubr.f32.mxu0 0.0
      %v5739 = vand.u32 %v256, 4294901760
      %5740 = vmatmul.mubr.f32.gmra.mxu0 %v5739
      %v5741 = vpop.f32.mrf.mxu0
      %v5742 = vadd.f32 %v5643, %v5741
      %v5743 = vpop.f32.mrf.mxu0
      %5744 = vmatprep.mubr.f32.mxu0 0.0
      %v5745 = vand.u32 %v257, 4294901760
      %5746 = vmatmul.mubr.f32.gmra.mxu0 %v5745
      %v5747 = vpop.f32.mrf.mxu0
      %v5748 = vadd.f32 %v5651, %v5747
      %v5749 = vpop.f32.mrf.mxu0
      %5750 = vmatprep.mubr.f32.mxu0 0.0
      %v5751 = vand.u32 %v258, 4294901760
      %5752 = vmatmul.mubr.f32.gmra.mxu0 %v5751
      %v5753 = vpop.f32.mrf.mxu0
      %v5754 = vadd.f32 %v5659, %v5753
      %v5755 = vpop.f32.mrf.mxu0
      %5756 = vdwg.mxu0
      %5757 = vmatprep.subr.mxu0 0.0
      %5758 = vmatpush1.xpose.msra.mxu0 0.0
      %5759 = vmatprep.subr.mxu0 0.0
      %5760 = vmatpush1.xpose.msra.mxu0 0.0
      %5761 = vmatprep.subr.mxu0 0.0
      %5762 = vmatpush1.xpose.msra.mxu0 0.0
      %5763 = vmatprep.subr.mxu0 0.0
      %5764 = vmatpush1.xpose.msra.mxu0 0.0
      %5765 = vmatprep.subr.mxu0 0.0
      %5766 = vmatpush1.xpose.msra.mxu0 0.0
      %5767 = vmatprep.subr.mxu0 0.0
      %5768 = vmatpush1.xpose.msra.mxu0 0.0
      %5769 = vmatprep.subr.mxu0 0.0
      %5770 = vmatpush1.xpose.msra.mxu0 0.0
      %5771 = vmatprep.subr.mxu0 0.0
      %5772 = vmatpush1.xpose.msra.mxu0 0.0
      %5773 = vmatprep.subr.mxu0 0.0
      %5774 = vmatpush1.xpose.msra.mxu0 0.0
      %5775 = vmatprep.subr.mxu0 0.0
      %5776 = vmatpush1.xpose.msra.mxu0 0.0
      %5777 = vmatprep.subr.mxu0 0.0
      %5778 = vmatpush1.xpose.msra.mxu0 0.0
      %5779 = vmatprep.subr.mxu0 0.0
      %5780 = vmatpush1.xpose.msra.mxu0 0.0
      %5781 = vmatprep.subr.mxu0 0.0
      %v5782 = vand.u32 %v5272, 4294901760
      %5783 = vmatpush1.xpose.msra.mxu0 %v5782
      %5784 = vmatprep.subr.mxu0 0.0
      %v5785 = vand.u32 %v5271, 4294901760
      %5786 = vmatpush1.xpose.msra.mxu0 %v5785
      %5787 = vmatprep.subr.mxu0 0.0
      %v5788 = vand.u32 %v5270, 4294901760
      %5789 = vmatpush1.xpose.msra.mxu0 %v5788
      %5790 = vmatprep.subr.mxu0 0.0
      %v5791 = vand.u32 %v5269, 4294901760
      %5792 = vmatpush1.xpose.msra.mxu0 %v5791
      %5793 = vmatprep.subr.mxu0 0.0
      %5794 = vmatpush2.xpose.msra.mxu0 0.0
      %5795 = vmatprep.subr.mxu0 0.0
      %5796 = vmatpush2.xpose.msra.mxu0 0.0
      %5797 = vmatprep.subr.mxu0 0.0
      %5798 = vmatpush2.xpose.msra.mxu0 0.0
      %5799 = vmatprep.subr.mxu0 0.0
      %5800 = vmatpush2.xpose.msra.mxu0 0.0
      %5801 = vmatprep.subr.mxu0 0.0
      %5802 = vmatpush2.xpose.msra.mxu0 0.0
      %5803 = vmatprep.subr.mxu0 0.0
      %5804 = vmatpush2.xpose.msra.mxu0 0.0
      %5805 = vmatprep.subr.mxu0 0.0
      %5806 = vmatpush2.xpose.msra.mxu0 0.0
      %5807 = vmatprep.subr.mxu0 0.0
      %5808 = vmatpush2.xpose.msra.mxu0 0.0
      %5809 = vmatprep.subr.mxu0 0.0
      %5810 = vmatpush2.xpose.msra.mxu0 0.0
      %5811 = vmatprep.subr.mxu0 0.0
      %5812 = vmatpush2.xpose.msra.mxu0 0.0
      %5813 = vmatprep.subr.mxu0 0.0
      %5814 = vmatpush2.xpose.msra.mxu0 0.0
      %5815 = vmatprep.subr.mxu0 0.0
      %5816 = vmatpush2.xpose.msra.mxu0 0.0
      %5817 = vmatprep.subr.mxu0 0.0
      %5818 = vmatpush2.xpose.msra.mxu0 0.0
      %5819 = vmatprep.subr.mxu0 0.0
      %5820 = vmatpush2.xpose.msra.mxu0 0.0
      %5821 = vmatprep.subr.mxu0 0.0
      %5822 = vmatpush2.xpose.msra.mxu0 0.0
      %5823 = vmatprep.subr.mxu0 0.0
      %5824 = vmatpush2.xpose.msra.mxu0 0.0
      %5825 = vmatprep.mubr.f32.mxu0 0.0
      %v5826 = vand.u32 %v256, 4294901760
      %5827 = vmatmul.mubr.f32.gmra.mxu0 %v5826
      %v5828 = vpop.f32.mrf.mxu0
      %v5829 = vadd.f32 %v5742, %v5828
      %v5830 = vpop.f32.mrf.mxu0
      %5831 = vmatprep.mubr.f32.mxu0 0.0
      %v5832 = vand.u32 %v257, 4294901760
      %5833 = vmatmul.mubr.f32.gmra.mxu0 %v5832
      %v5834 = vpop.f32.mrf.mxu0
      %v5835 = vadd.f32 %v5748, %v5834
      %v5836 = vpop.f32.mrf.mxu0
      %5837 = vmatprep.mubr.f32.mxu0 0.0
      %v5838 = vand.u32 %v258, 4294901760
      %5839 = vmatmul.mubr.f32.gmra.mxu0 %v5838
      %v5840 = vpop.f32.mrf.mxu0
      %v5841 = vadd.f32 %v5754, %v5840
      %v5842 = vpop.f32.mrf.mxu0
      %5843 = vdwg.mxu0
      %v5844 = vadd.f32 %v5230, %v5829
      %v5845 = vadd.f32 %v5231, %v5835
      %v5846 = vadd.f32 %v5232, %v5841
      %v5847 = vmul.f32 %v5844, 0.125
      %v5848 = vmul.f32 %v5845, 0.125
      %v5849 = vmul.f32 %v5846, 0.125
      %v5850 = vsub.f32 %v1531, %v5847
      %v5851 = vsub.f32 %v1537, %v5848
      %v5852 = vsub.f32 %v1543, %v5849
      %v5853 = vsub.f32 %v2145, %v5847
      %v5854 = vsub.f32 %v2151, %v5848
      %v5855 = vsub.f32 %v2157, %v5849
      %v5856 = vsub.f32 %v2759, %v5847
      %v5857 = vsub.f32 %v2765, %v5848
      %v5858 = vsub.f32 %v2771, %v5849
      %v5859 = vsub.f32 %v3373, %v5847
      %v5860 = vsub.f32 %v3379, %v5848
      %v5861 = vsub.f32 %v3385, %v5849
      %v5862 = vsub.f32 %v3987, %v5847
      %v5863 = vsub.f32 %v3993, %v5848
      %v5864 = vsub.f32 %v3999, %v5849
      %v5865 = vsub.f32 %v4601, %v5847
      %v5866 = vsub.f32 %v4607, %v5848
      %v5867 = vsub.f32 %v4613, %v5849
      %v5868 = vsub.f32 %v5215, %v5847
      %v5869 = vsub.f32 %v5221, %v5848
      %v5870 = vsub.f32 %v5227, %v5849
      %v5871 = vsub.f32 %v5829, %v5847
      %v5872 = vsub.f32 %v5835, %v5848
      %v5873 = vsub.f32 %v5841, %v5849
      %5877 = vrot.lane.b32.xlu0 %v5853, 32
      %v5878 = vpop.permute.xlu0 %5877
      %5879 = vrot.lane.b32.xlu0 %v5854, 32
      %v5880 = vpop.permute.xlu0 %5879
      %5881 = vrot.lane.b32.xlu0 %v5855, 32
      %v5882 = vpop.permute.xlu0 %5881
      %5889 = vrot.lane.b32.xlu0 %v5856, 64
      %v5890 = vpop.permute.xlu0 %5889
      %5891 = vrot.lane.b32.xlu0 %v5857, 64
      %v5892 = vpop.permute.xlu0 %5891
      %5893 = vrot.lane.b32.xlu0 %v5858, 64
      %v5894 = vpop.permute.xlu0 %5893
      %5901 = vrot.lane.b32.xlu0 %v5859, 96
      %v5902 = vpop.permute.xlu0 %5901
      %5903 = vrot.lane.b32.xlu0 %v5860, 96
      %v5904 = vpop.permute.xlu0 %5903
      %5905 = vrot.lane.b32.xlu0 %v5861, 96
      %v5906 = vpop.permute.xlu0 %5905
      %5913 = vrot.lane.b32.xlu0 %v5865, 32
      %v5914 = vpop.permute.xlu0 %5913
      %5915 = vrot.lane.b32.xlu0 %v5866, 32
      %v5916 = vpop.permute.xlu0 %5915
      %5917 = vrot.lane.b32.xlu0 %v5867, 32
      %v5918 = vpop.permute.xlu0 %5917
      %5925 = vrot.lane.b32.xlu0 %v5868, 64
      %v5926 = vpop.permute.xlu0 %5925
      %5927 = vrot.lane.b32.xlu0 %v5869, 64
      %v5928 = vpop.permute.xlu0 %5927
      %5929 = vrot.lane.b32.xlu0 %v5870, 64
      %v5930 = vpop.permute.xlu0 %5929
      %5937 = vrot.lane.b32.xlu0 %v5871, 96
      %v5938 = vpop.permute.xlu0 %5937
      %5939 = vrot.lane.b32.xlu0 %v5872, 96
      %v5940 = vpop.permute.xlu0 %5939
      %5941 = vrot.lane.b32.xlu0 %v5873, 96
      %v5942 = vpop.permute.xlu0 %5941
      %vm5946 = vcmask 261120
      %v5947 = vsel %vm5946, %v5850, %v5878
      %v5948 = vsel %vm5946, %v5851, %v5880
      %v5949 = vsel %vm5946, %v5852, %v5882
      %vm5950 = vcmask 523264
      %v5951 = vsel %vm5950, %v5947, %v5890
      %v5952 = vsel %vm5950, %v5948, %v5892
      %v5953 = vsel %vm5950, %v5949, %v5894
      %vm5954 = vcmask 785408
      %v5955 = vsel %vm5954, %v5951, %v5902
      %v5956 = vsel %vm5954, %v5952, %v5904
      %v5957 = vsel %vm5954, %v5953, %v5906
      %v5958 = vsel %vm5946, %v5862, %v5914
      %v5959 = vsel %vm5946, %v5863, %v5916
      %v5960 = vsel %vm5946, %v5864, %v5918
      %v5961 = vsel %vm5950, %v5958, %v5926
      %v5962 = vsel %vm5950, %v5959, %v5928
      %v5963 = vsel %vm5950, %v5960, %v5930
      %v5964 = vsel %vm5954, %v5961, %v5938
      %v5965 = vsel %vm5954, %v5962, %v5940
      %v5966 = vsel %vm5954, %v5963, %v5942
      %v5967 = vadd.f32 %v5955, %v5964
      %5968 = vadd.xlane.f32.xlu0 %v5967
      %v5969 = vpop.xlane.xlu0 %5968
      %v5970 = vadd.f32 %v5956, %v5965
      %5971 = vadd.xlane.f32.xlu0 %v5970
      %v5972 = vpop.xlane.xlu0 %5971
      %vm5973 = vcmask 1042432
      %v5974 = vsel %vm5973, %v5957, 0.0
      %v5975 = vsel %vm5973, %v5966, 0.0
      %v5976 = vadd.f32 %v5974, %v5975
      %5977 = vadd.xlane.f32.xlu0 %v5976
      %v5978 = vpop.xlane.xlu0 %5977
      %v5979 = vadd.f32 %v5969, %v5972
      %v5980 = vsel %vm5973, %v5978, 0.0
      %v5981 = vadd.f32 %v5979, %v5980
      %v5982 = vrot.slane %v5981, 4
      %v5983 = vadd.f32 %v5981, %v5982
      %v5984 = vrot.slane %v5983, 2
      %v5985 = vadd.f32 %v5983, %v5984
      %v5986 = vrot.slane %v5985, 1
      %v5987 = vadd.f32 %v5985, %v5986
      %v5988 = vmul.f32 %v5955, %v5955
      %v5989 = vmul.f32 %v5964, %v5964
      %v5990 = vmul.f32 %v5956, %v5956
      %v5991 = vmul.f32 %v5965, %v5965
      %v5992 = vmul.f32 %v5957, %v5957
      %v5993 = vmul.f32 %v5966, %v5966
      %v5994 = vadd.f32 %v5988, %v5989
      %5995 = vadd.xlane.f32.xlu0 %v5994
      %v5996 = vpop.xlane.xlu0 %5995
      %v5997 = vadd.f32 %v5990, %v5991
      %5998 = vadd.xlane.f32.xlu0 %v5997
      %v5999 = vpop.xlane.xlu0 %5998
      %v6000 = vsel %vm5973, %v5992, 0.0
      %v6001 = vsel %vm5973, %v5993, 0.0
      %v6002 = vadd.f32 %v6000, %v6001
      %6003 = vadd.xlane.f32.xlu0 %v6002
      %v6004 = vpop.xlane.xlu0 %6003
      %v6005 = vadd.f32 %v5996, %v5999
      %v6006 = vsel %vm5973, %v6004, 0.0
      %v6007 = vadd.f32 %v6005, %v6006
      %v6008 = vrot.slane %v6007, 4
      %v6009 = vadd.f32 %v6007, %v6008
      %v6010 = vrot.slane %v6009, 2
      %v6011 = vadd.f32 %v6009, %v6010
      %v6012 = vrot.slane %v6011, 1
      %v6013 = vadd.f32 %v6011, %v6012
      %v6014 = vmul.f32 %v5987, %v5987
      %v6015 = vmul.f32 %v6014, 0.0002055921
      %v6016 = vsub.f32 %v6013, %v6015
      %v6017 = vmul.f32 %v6016, 0.00020563438
      %v6018 = vrsqrt.pop %v6017
      %v6019 = vmul.f32 %v6017, %v6018
      %vm6020 = vcmp.eq.f32.partialorder %v6017, inf
      %v6021 = vsel %vm6020, %v6017, %v6019
      %vm6022 = vcmp.eq.f32.partialorder %v6017, 0.0
      %v6023 = vand.u32 %v6017, 2147483648
      %v6024 = vsel %vm6022, %v6023, %v6021
      %v6025 = vadd.f32 %v6024, 1e-05
      %v6026 = vrcp.pop %v6025
      %v6027 = vmul.f32 1.0, %v6026
      %v6028 = vld [vmem:[%s2] sm:$0xff]
      %v6029 = vld [vmem:[%s2 + $0x8] sm:$0xff]
      %v6030 = vld [vmem:[%s2 + $0x10] sm:$0x7]
      %v6031 = vmul.f32 %v5955, %v6027
      %v6032 = vmul.f32 %v5964, %v6027
      %v6033 = vmul.f32 %v5956, %v6027
      %v6034 = vmul.f32 %v5965, %v6027
      %v6035 = vmul.f32 %v5957, %v6027
      %v6036 = vmul.f32 %v5966, %v6027
      %6038 = vset.pattern.permute.xlu0 0
      %6039 = vperm.xlu0 %6038, %v6028
      %v6040 = vpop.permute.xlu0 %6039
      %6043 = vset.pattern.permute.xlu0 0
      %6044 = vperm.xlu0 %6043, %v6029
      %v6045 = vpop.permute.xlu0 %6044
      %6048 = vset.pattern.permute.xlu0 0
      %6049 = vperm.xlu0 %6048, %v6030
      %v6050 = vpop.permute.xlu0 %6049
      %v6052 = vmul.f32 %v6040, %v6031
      %v6053 = vmul.f32 %v6040, %v6032
      %v6054 = vmul.f32 %v6045, %v6033
      %v6055 = vmul.f32 %v6045, %v6034
      %v6056 = vmul.f32 %v6050, %v6035
      %v6057 = vmul.f32 %v6050, %v6036
      %v6058 = vld [vmem:[%s3] sm:$0xff]
      %v6059 = vld [vmem:[%s3 + $0x8] sm:$0xff]
      %v6060 = vld [vmem:[%s3 + $0x10] sm:$0x7]
      %6062 = vset.pattern.permute.xlu0 0
      %6063 = vperm.xlu0 %6062, %v6058
      %v6064 = vpop.permute.xlu0 %6063
      %6067 = vset.pattern.permute.xlu0 0
      %6068 = vperm.xlu0 %6067, %v6059
      %v6069 = vpop.permute.xlu0 %6068
      %6072 = vset.pattern.permute.xlu0 0
      %6073 = vperm.xlu0 %6072, %v6060
      %v6074 = vpop.permute.xlu0 %6073
      %v6076 = vadd.f32 %v6052, %v6064
      %v6077 = vadd.f32 %v6053, %v6064
      %v6078 = vadd.f32 %v6054, %v6069
      %v6079 = vadd.f32 %v6055, %v6069
      %v6080 = vadd.f32 %v6056, %v6074
      %v6081 = vadd.f32 %v6057, %v6074
      %6082 = vst [vmem:[%s254] sm:$0xff] %v6076
      %6083 = vst [vmem:[%s254 + $0x8] sm:$0xff] %v6077
      %6084 = vst [vmem:[%s254 + $0x10] sm:$0xff] %v6078
      %6085 = vst [vmem:[%s254 + $0x18] sm:$0xff] %v6079
      %6086 = vst [vmem:[%s254 + $0x20] sm:$0x7] %v6080
      %6087 = vst [vmem:[%s254 + $0x28] sm:$0x7] %v6081
      %6090 = vrot.lane.b32.xlu0 %v898, 32
      %v6091 = vpop.permute.xlu0 %6090
      %6092 = vrot.lane.b32.xlu0 %v904, 32
      %v6093 = vpop.permute.xlu0 %6092
      %6096 = vrot.lane.b32.xlu0 %v898, 64
      %v6097 = vpop.permute.xlu0 %6096
      %6098 = vrot.lane.b32.xlu0 %v904, 64
      %v6099 = vpop.permute.xlu0 %6098
      %6102 = vrot.lane.b32.xlu0 %v898, 96
      %v6103 = vpop.permute.xlu0 %6102
      %6104 = vrot.lane.b32.xlu0 %v904, 96
      %v6105 = vpop.permute.xlu0 %6104
      %v6108 = vsel %vm5946, %v898, %v6091
      %v6109 = vsel %vm5946, %v904, %v6093
      %v6110 = vsel %vm5950, %v6108, %v6097
      %v6111 = vsel %vm5950, %v6109, %v6099
      %v6112 = vsel %vm5954, %v6110, %v6103
      %v6113 = vsel %vm5954, %v6111, %v6105
      %v6116 = vrot.slane %v6112, 5
      %v6117 = vrot.slane %v6113, 5
      %v6118 = vsel %vm5973, %v6116, %v6117
      %6122 = vst [vmem:[%s254 + $0x20] sm:$0xf8] %v6116
      %6123 = vst [vmem:[%s254 + $0x28] sm:$0xf8] %v6116
      %6124 = vst [vmem:[%s254 + $0x30] sm:$0xff] %v6118
      %6125 = vst [vmem:[%s254 + $0x38] sm:$0xff] %v6118
      %6126 = vst [vmem:[%s254 + $0x40] sm:$0x7] %v6117
      %6127 = vst [vmem:[%s254 + $0x48] sm:$0x7] %v6117
      %p6128 = scmp.lt.s32.totalorder %s17, 1
      %s6129 = scalar_select %p6128, %s17, 1
      %s6130 = smul.addr %s6129, 4
      %s6131 = smul.addr %s6130, 8
      %s6132 = scalar_lea.vmem %s4, %s6131
      %p6133 = scmp.lt.s32.totalorder %s17, 1
      %s6134 = scalar_select %p6133, %s17, 1
      %s6135 = smul.addr %s6134, 10
      %s6136 = smul.addr %s6135, 8
      %s6137 = scalar_lea.vmem %s5, %s6136
      // Predicated region
      $region44: #{local_grouper_forward.1} parent=35 // pred_check
        %p6138 = pneg %p129
      $region45: #{local_grouper_forward.1} parent=35 // pred_check_branch
        %6140 = sbr.rel (%p6138) target = $region47
      $region46: #{local_grouper_forward.1} parent=35 // pred_region
        _
      $region47: #{local_grouper_forward.1} parent=35 // pred_fallthru
        _
      // Predicated region
      $region48: #{local_grouper_forward.1} parent=35 // pred_check
        %p6141 = pneg %p155
      $region49: #{local_grouper_forward.1} parent=35 // pred_check_branch
        %6143 = sbr.rel (%p6141) target = $region51
      $region50: #{local_grouper_forward.1} parent=35 // pred_region
        _
      $region51: #{local_grouper_forward.1} parent=35 // pred_fallthru
        _
    $region36: #{local_grouper_forward.1} parent=5 // pred_fallthru
      _
    %p6144 = scmp.le.s32.totalorder 2, %s12
    // Predicated region
    $region52: #{local_grouper_forward.1} parent=5 // pred_check
      %p6145 = pneg %p6144
    $region53: #{local_grouper_forward.1} parent=5 // pred_check_branch
      %6147 = sbr.rel (%p6145) target = $region55
    $region54: #{local_grouper_forward.1} parent=5 // pred_region
      %s6148 = ssub.s32 %s12, 2
      // Predicated region
      $region56: #{local_grouper_forward.1} parent=54 // pred_check
        %p6149 = pneg %p135
      $region57: #{local_grouper_forward.1} parent=54 // pred_check_branch
        %6151 = sbr.rel (%p6149) target = $region59
      $region58: #{local_grouper_forward.1} parent=54 // pred_region
        %p6152 = scmp.lt.s32.totalorder %s18, 1
        %s6153 = scalar_select %p6152, %s18, 1
        %s6154 = smul.addr %s6153, 4
        %s6155 = smul.addr %s6154, 8
        %s6156 = scalar_lea.vmem %s4, %s6155
      $region59: #{local_grouper_forward.1} parent=54 // pred_fallthru
        _
      // Predicated region
      $region60: #{local_grouper_forward.1} parent=54 // pred_check
        %p6157 = pneg %p161
      $region61: #{local_grouper_forward.1} parent=54 // pred_check_branch
        %6159 = sbr.rel (%p6157) target = $region63
      $region62: #{local_grouper_forward.1} parent=54 // pred_region
        %p6160 = scmp.lt.s32.totalorder %s18, 1
        %s6161 = scalar_select %p6160, %s18, 1
        %s6162 = smul.addr %s6161, 10
        %s6163 = smul.addr %s6162, 8
        %s6164 = scalar_lea.vmem %s5, %s6163
      $region63: #{local_grouper_forward.1} parent=54 // pred_fallthru
        _
    $region55: #{local_grouper_forward.1} parent=5 // pred_fallthru
      _
  $region6: #{local_grouper_forward.1} parent=0 // loop_footer
    %s16 = sadd.s32 1, %s12
  $region7: #{local_grouper_forward.1} parent=0 // loop_footer_branch
    %11 = sbr.rel target = $region3
  $region8: #{local_grouper_forward.1} parent=0 // loop_exit
    _

</llo_original>
